<compile_context>
chip_gen: v7x
topology: tpu7x:2x2x1
jax: 0.10.0
libtpu: 0.0.40
codegen_flags: <defaults>
</compile_context>

<pallas_src>
import jax
import jax.numpy as jnp
from jax import lax
from jax.experimental import pallas as pl
from jax.experimental.pallas import tpu as pltpu

BN_EPS = 1e-5
STAT_ROWS = 8          # sublane-padded stats rows: row 0 = sum, row 1 = sum-of-squares

# MXU-native tile targets (256x256 matches v6e/v7x MXU; 128-multiples keep v5e happy).
MM_TM, MM_TK, MM_TN = 256, 512, 256
AFF_TM, AFF_TN = 1024, 1024
VMEM_LIMIT = 32 * 1024 * 1024   # explicit, safe on v5e/v6e/v7x (tiles use ~a few MiB)


def _round_up(x, m):
    return (x + m - 1) // m * m


def _pick_tile(dim, max_tile, align):
    """Fixed-size tiling: tile = min(max_tile, round_up(dim, align)); padded dim is a
    multiple of the tile.  Never degrades to tiny tiles the way gcd() could."""
    d = _round_up(dim, align)
    if d <= max_tile:
        return d, d
    return max_tile, _round_up(d, max_tile)


def _pick_tile_k(K, align=128):
    """K (reduction) tile: prefer 512, fall back to 384/256 when that wastes less
    padding.  Tiles never drop below 256 for large K."""
    ka = _round_up(K, align)
    if ka <= MM_TK:
        return ka, ka
    best_t, best_p = None, None
    for t in (512, 384, 256):
        kp = _round_up(ka, t)
        if best_p is None or kp < best_p:
            best_t, best_p = t, kp
    return best_t, best_p


def _largest_divisor_tile(dim, max_tile):
    t = max_tile
    while t >= 8:
        if dim % t == 0:
            return t
        t //= 2
    return dim


# ---------------------------------------------------------------------------
# Pallas kernels
# ---------------------------------------------------------------------------
def _make_mm_bias_stats_kernel(n_ab):
    """Tiled bf16 matmul over n_ab (A_i, B_i) pairs sharing one fp32 accumulator;
    on the last K step: add bias, write y, and write bias-shifted per-channel
    sum / sum-of-squares (from the fp32 accumulator) in one full-block store."""

    def kernel(*refs):
        a_refs = refs[:n_ab]
        b_refs = refs[n_ab:2 * n_ab]
        bias_ref = refs[2 * n_ab]
        y_ref = refs[2 * n_ab + 1]
        st_ref = refs[2 * n_ab + 2]
        acc_ref = refs[2 * n_ab + 3]
        k = pl.program_id(2)

        @pl.when(k == 0)
        def _init():
            acc_ref[...] = jnp.zeros_like(acc_ref)

        partial = None
        for a_ref, b_ref in zip(a_refs, b_refs):
            d = jnp.dot(a_ref[...], b_ref[...], preferred_element_type=jnp.float32)
            partial = d if partial is None else partial + d
        acc_ref[...] += partial

        @pl.when(k == pl.num_programs(2) - 1)
        def _finalize():
            acc = acc_ref[...]
            y_ref[...] = (acc + bias_ref[...]).astype(y_ref.dtype)
            # Bias-shifted statistics: padded (all-zero) A rows contribute exactly 0,
            # and the mean shift improves E[y^2]-E[y]^2 conditioning.
            s1 = jnp.sum(acc, axis=0, keepdims=True)
            s2 = jnp.sum(acc * acc, axis=0, keepdims=True)
            rows = lax.broadcasted_iota(jnp.int32, (STAT_ROWS, s1.shape[-1]), 0)
            st = jnp.where(rows == 0, s1, jnp.where(rows == 1, s2, 0.0))
            st_ref[...] = st[None]          # one full (1, 8, TN) store, no masked vst

    return kernel


def _affine_relu_kernel(y_ref, s_ref, t_ref, o_ref):
    y = y_ref[...].astype(jnp.float32)
    o_ref[...] = jnp.maximum(y * s_ref[...] + t_ref[...], 0.0).astype(o_ref.dtype)


# ---------------------------------------------------------------------------
# Pallas wrappers (tiling / padding)
# ---------------------------------------------------------------------------
def _fused_conv_matmul(a_list, b_list, bias, y_dtype=jnp.bfloat16):
    """sum_i A_i @ B_i + bias for equally shaped [M,K] A_i and [K,Nc] B_i.
    Returns (y_pad [Mp,Np] y_dtype, (sum, sumsq) of (y - bias) per padded channel,
    (M, Mp, Nc, Np))."""
    M, K = a_list[0].shape
    Nc = b_list[0].shape[1]
    n_ab = len(a_list)
    for a in a_list:
        assert a.shape == (M, K)
    for b in b_list:
        assert b.shape == (K, Nc)

    TM, Mp = _pick_tile(M, MM_TM, 16)
    TK, Kp = _pick_tile_k(K)
    TN, Np = _pick_tile(Nc, MM_TN, 128)
    gm, gn, gk = Mp // TM, Np // TN, Kp // TK

    a_pads = [jnp.pad(a.astype(jnp.bfloat16), ((0, Mp - M), (0, Kp - K))) for a in a_list]
    b_pads = [jnp.pad(b.astype(jnp.bfloat16), ((0, Kp - K), (0, Np - Nc))) for b in b_list]
    bias_p = jnp.pad(bias.astype(jnp.float32), (0, Np - Nc)).reshape(1, Np)

    a_spec = pl.BlockSpec((TM, TK), lambda i, j, k: (i, k))
    b_spec = pl.BlockSpec((TK, TN), lambda i, j, k: (k, j))

    cost = pl.CostEstimate(
        flops=2 * Mp * Kp * Np * n_ab,
        transcendentals=0,
        bytes_accessed=(n_ab * (gn * Mp * Kp * 2 + gm * Kp * Np * 2)
                        + Mp * Np * jnp.dtype(y_dtype).itemsize
                        + gm * STAT_ROWS * Np * 4),
    )

    y_pad, stats = pl.pallas_call(
        _make_mm_bias_stats_kernel(n_ab),
        out_shape=(
            jax.ShapeDtypeStruct((Mp, Np), y_dtype),
            jax.ShapeDtypeStruct((gm, STAT_ROWS, Np), jnp.float32),
        ),
        grid=(gm, gn, gk),
        in_specs=[a_spec] * n_ab + [b_spec] * n_ab
                 + [pl.BlockSpec((1, TN), lambda i, j, k: (0, j))],
        out_specs=(
            pl.BlockSpec((TM, TN), lambda i, j, k: (i, j)),
            pl.BlockSpec((1, STAT_ROWS, TN), lambda i, j, k: (i, 0, j)),
        ),
        scratch_shapes=[pltpu.VMEM((TM, TN), jnp.float32)],
        compiler_params=pltpu.CompilerParams(
            dimension_semantics=("parallel", "parallel", "arbitrary"),
            vmem_limit_bytes=VMEM_LIMIT),
        cost_estimate=cost,
    )(*a_pads, *b_pads, bias_p)

    stats = jnp.sum(stats, axis=0)            # [STAT_ROWS, Np]; padded rows are exactly 0
    return y_pad, (stats[0], stats[1]), (M, Mp, Nc, Np)


def _affine_relu_apply(y_pad, scale_p, shift_p, out_dtype=jnp.bfloat16):
    # TODO(synk): fold the trailing [:M,:Nc] slice + pixel-shuffle into this kernel's
    # output BlockSpec so XLA does not run an extra layout pass per layer.
    Mp, Np = y_pad.shape
    TM = _largest_divisor_tile(Mp, AFF_TM)
    TN = _largest_divisor_tile(Np, AFF_TN)
    gm, gn = Mp // TM, Np // TN
    return pl.pallas_call(
        _affine_relu_kernel,
        out_shape=jax.ShapeDtypeStruct((Mp, Np), out_dtype),
        grid=(gm, gn),
        in_specs=[
            pl.BlockSpec((TM, TN), lambda i, j: (i, j)),
            pl.BlockSpec((1, TN), lambda i, j: (0, j)),
            pl.BlockSpec((1, TN), lambda i, j: (0, j)),
        ],
        out_specs=pl.BlockSpec((TM, TN), lambda i, j: (i, j)),
        compiler_params=pltpu.CompilerParams(
            dimension_semantics=("parallel", "parallel"),
            vmem_limit_bytes=VMEM_LIMIT),
    )(y_pad, scale_p.reshape(1, Np), shift_p.reshape(1, Np))


# ---------------------------------------------------------------------------
# Conv / ConvTranspose lowering glue (plain JAX: pads, static slices, reshapes)
# ---------------------------------------------------------------------------
def _im2col(x, kh, kw, stride, padding):
    # TODO(synk): assemble patches inside the kernel from a halo-tiled VMEM input
    # block instead of materializing the [M, kh*kw*Cin] matrix in HBM.
    N, H, W, Cin = x.shape
    xp = jnp.pad(x, ((0, 0), (padding, padding), (padding, padding), (0, 0)))
    Ho = (H + 2 * padding - kh) // stride + 1
    Wo = (W + 2 * padding - kw) // stride + 1
    cols = []
    for dh in range(kh):
        for dw in range(kw):
            cols.append(xp[:, dh:dh + stride * (Ho - 1) + 1:stride,
                           dw:dw + stride * (Wo - 1) + 1:stride, :])
    patches = jnp.concatenate(cols, axis=-1)      # (dh, dw, cin) ordering
    return patches.reshape(N * Ho * Wo, kh * kw * Cin), (N, Ho, Wo)


def _flatten_conv_weight(W):
    # W: [Cout, Cin, kh, kw] -> [kh*kw*Cin, Cout] matching _im2col ordering.
    Cout, Cin, kh, kw = W.shape
    return jnp.transpose(W, (2, 3, 1, 0)).reshape(kh * kw * Cin, Cout)


def _convt_subpixel_weight(Wt):
    """ConvTranspose2d(k=4, s=2, p=1) weight [Cin, Cout, 4, 4] -> combined stride-1
    3x3 weight (3, 3, Cin, 4, Cout); sub-pixel column order is (r, s, cout):
    out[2m+r, 2n+s] = sum_{a,b} xpad[m+r+a, n+s+b] * Wt[:, :, 3-r-2a, 3-s-2b]."""
    Cin, Cout = Wt.shape[0], Wt.shape[1]
    Wc = jnp.zeros((3, 3, Cin, 4, Cout), Wt.dtype)
    for r in range(2):
        for s in range(2):
            for a in range(2):
                for b in range(2):
                    Wc = Wc.at[r + a, s + b, :, 2 * r + s, :].set(
                        Wt[:, :, 3 - r - 2 * a, 3 - s - 2 * b])
    return Wc


def _pixel_shuffle2(y, N, H, W, Cout):
    # y: [N*H*W, 4*Cout] with column order (r, s, cout) -> [N, 2H, 2W, Cout]
    y = y.reshape(N, H, W, 2, 2, Cout)
    y = y.transpose(0, 1, 3, 2, 4, 5)
    return y.reshape(N, 2 * H, 2 * W, Cout)


# ---------------------------------------------------------------------------
# Layers
# ---------------------------------------------------------------------------
def conv_bn_relu(x, pp, stride, padding):
    patches, (N, Ho, Wo) = _im2col(x, 3, 3, stride, padding)
    y_pad, (s1, s2), (M, _Mp, Nc, Np) = _fused_conv_matmul([patches], [pp["w"]], pp["b"])
    mean_c = s1 / M                                      # E[y] - bias
    var = jnp.maximum(s2 / M - mean_c * mean_c, 0.0)     # biased variance (training BN)
    bias_p = jnp.pad(pp["b"], (0, Np - Nc))
    gamma_p = jnp.pad(pp["gamma"], (0, Np - Nc))
    beta_p = jnp.pad(pp["beta"], (0, Np - Nc))
    scale = gamma_p * lax.rsqrt(var + BN_EPS)
    shift = beta_p - (mean_c + bias_p) * scale
    out = _affine_relu_apply(y_pad, scale, shift)[:M, :Nc]
    return out.reshape(N, Ho, Wo, Nc)


def _convt_matmul(x_parts, pp, y_dtype=jnp.bfloat16):
    patch_list, dims = [], None
    for xi in x_parts:
        p, dims = _im2col(xi, 3, 3, stride=1, padding=1)   # Ho=H, Wo=W
        patch_list.append(p)
    y_pad, sums, sizes = _fused_conv_matmul(patch_list, pp["w_list"], pp["b4"],
                                            y_dtype=y_dtype)
    return y_pad, sums, sizes, dims


def convt_bn_relu(x_parts, pp):
    y_pad, (s1, s2), (M, _Mp, Nc, Np), (N, H, W) = _convt_matmul(x_parts, pp)
    Cout = Nc // 4
    # BN statistics cover all N*2H*2W output pixels = all 4 sub-pixel phases.
    s1c = s1[:Nc].reshape(4, Cout).sum(axis=0)
    s2c = s2[:Nc].reshape(4, Cout).sum(axis=0)
    cnt = 4.0 * M
    mean_c = s1c / cnt
    var = jnp.maximum(s2c / cnt - mean_c * mean_c, 0.0)
    scale = pp["gamma"] * lax.rsqrt(var + BN_EPS)
    shift = pp["beta"] - (mean_c + pp["b4"][:Cout]) * scale
    scale_p = jnp.pad(jnp.tile(scale, 4), (0, Np - Nc))
    shift_p = jnp.pad(jnp.tile(shift, 4), (0, Np - Nc))
    out = _affine_relu_apply(y_pad, scale_p, shift_p)[:M, :Nc]
    return _pixel_shuffle2(out, N, H, W, Cout)


def convt_final(x_parts, pp):
    y_pad, _sums, (M, _Mp, Nc, _Np), (N, H, W) = _convt_matmul(
        x_parts, pp, y_dtype=jnp.float32)
    return _pixel_shuffle2(y_pad[:M, :Nc], N, H, W, Nc // 4)


# ---------------------------------------------------------------------------
# Parameters
# ---------------------------------------------------------------------------
def init_params(key, C):
    ks = jax.random.split(key, 16)
    f32 = jnp.float32

    def conv_block(kw_, kb_, cout, cin, k):
        return {"W": jax.random.normal(kw_, (cout, cin, k, k), f32) * 0.05,
                "b": jax.random.normal(kb_, (cout,), f32) * 0.05,
                "gamma": jnp.ones((cout,), f32),
                "beta": jnp.zeros((cout,), f32)}

    def convt_block(kw_, kb_, cin, cout, k, with_bn=True):
        p = {"W": jax.random.normal(kw_, (cin, cout, k, k), f32) * 0.05,
             "b": jax.random.normal(kb_, (cout,), f32) * 0.05}
        if with_bn:
            p["gamma"] = jnp.ones((cout,), f32)
            p["beta"] = jnp.zeros((cout,), f32)
        return p

    return {
        "down1": conv_block(ks[0], ks[1], C, 3, 3),
        "down2": conv_block(ks[2], ks[3], 2 * C, C, 3),
        "down3": conv_block(ks[4], ks[5], 4 * C, 2 * C, 3),
        "down4": conv_block(ks[6], ks[7], 8 * C, 4 * C, 3),
        "up4": convt_block(ks[8], ks[9], 8 * C, 4 * C, 4),
        "up3": convt_block(ks[10], ks[11], 8 * C, 2 * C, 4),
        "up2": convt_block(ks[12], ks[13], 4 * C, C, 4),
        "up1": convt_block(ks[14], ks[15], 2 * C, 3, 4, with_bn=False),
    }


def prepare_params(params):
    """One-time (outside the jitted forward) transform of PyTorch-layout weights into
    matmul-ready bf16 operands; decoder ConvT weights are pre-split per skip source."""
    f32, bf16 = jnp.float32, jnp.bfloat16
    prepared = {}
    for name in ("down1", "down2", "down3", "down4"):
        p = params[name]
        prepared[name] = {"w": _flatten_conv_weight(p["W"]).astype(bf16),
                          "b": p["b"].astype(f32),
                          "gamma": p["gamma"].astype(f32),
                          "beta": p["beta"].astype(f32)}

    def prep_up(p, n_splits, with_bn):
        Cin, Cout = p["W"].shape[0], p["W"].shape[1]
        Wc = _convt_subpixel_weight(p["W"])                    # (3,3,Cin,4,Cout)
        step = Cin // n_splits
        w_list = [Wc[:, :, i * step:(i + 1) * step]
                  .reshape(9 * step, 4 * Cout).astype(bf16) for i in range(n_splits)]
        out = {"w_list": w_list, "b4": jnp.tile(p["b"].astype(f32), 4)}
        if with_bn:
            out["gamma"] = p["gamma"].astype(f32)
            out["beta"] = p["beta"].astype(f32)
        return out

    prepared["up4"] = prep_up(params["up4"], 1, True)
    prepared["up3"] = prep_up(params["up3"], 2, True)
    prepared["up2"] = prep_up(params["up2"], 2, True)
    prepared["up1"] = prep_up(params["up1"], 2, False)
    return prepared


# ---------------------------------------------------------------------------
# Model
# ---------------------------------------------------------------------------
# TODO(synk): BatchNorm running_mean/running_var buffer updates (training-mode side
# effect) are not materialized; they do not affect the forward output.
@jax.jit
def denoising_genius_forward(prepared, x_nchw, t):
    del t  # unused, exactly as in the PyTorch forward
    x = jnp.transpose(x_nchw, (0, 2, 3, 1)).astype(jnp.float32)  # NCHW -> NHWC

    a1 = conv_bn_relu(x, prepared["down1"], 2, 1)
    a2 = conv_bn_relu(a1, prepared["down2"], 2, 1)
    a3 = conv_bn_relu(a2, prepared["down3"], 2, 1)
    a4 = conv_bn_relu(a3, prepared["down4"], 2, 1)

    # Skip connections are fed as separate A operands (split-K accumulation) — no
    # HBM concatenate round-trip.
    u = convt_bn_relu([a4], prepared["up4"])
    u = convt_bn_relu([u, a3], prepared["up3"])
    u = convt_bn_relu([u, a2], prepared["up2"])
    u = convt_final([u, a1], prepared["up1"])

    return jnp.transpose(u, (0, 3, 1, 2)).astype(jnp.float32)    # NHWC -> NCHW


if __name__ == "__main__":
    C = 32          # n_channels (small stand-in for 256)
    N, H, W = 2, 16, 16

    key = jax.random.PRNGKey(0)
    k_param, k_x = jax.random.split(key)
    params = init_params(k_param, C)
    prepared = prepare_params(params)          # weight flattening hoisted out of forward
    x = jax.random.normal(k_x, (N, 3, H, W), jnp.float32)   # NCHW like PyTorch
    t = jnp.zeros((N,), jnp.float32)

    out = denoising_genius_forward(prepared, x, t)
    out = jax.block_until_ready(out)

    assert out.shape == (N, 3, H, W), out.shape
    assert bool(jnp.all(jnp.isfinite(out))), "non-finite output"
    print("KERNEL_OK")
</pallas_src>

<mosaic_0001>
module attributes {stable_mosaic.version = 11 : i64} {
  func.func @_affine_relu_kernel(%arg0: i32, %arg1: i32, %arg2: memref<128x128xbf16, #tpu.memory_space<vmem>>, %arg3: memref<1x128xf32, #tpu.memory_space<vmem>>, %arg4: memref<1x128xf32, #tpu.memory_space<vmem>>, %arg5: memref<128x128xbf16, #tpu.memory_space<vmem>>) attributes {dimension_semantics = [#tpu.dimension_semantics<parallel>, #tpu.dimension_semantics<parallel>], iteration_bounds = array<i64: 1, 1>, scalar_prefetch = 0 : i64, scratch_operands = 0 : i64, tpu.core_type = #tpu.core_type<tc>, window_params = [{transform_indices = @transform_0, window_bounds = array<i64: 128, 128>}, {transform_indices = @transform_1, window_bounds = array<i64: 1, 128>}, {transform_indices = @transform_2, window_bounds = array<i64: 1, 128>}, {transform_indices = @transform_3, window_bounds = array<i64: 128, 128>}]} {
    %c0 = arith.constant 0 : index
    %c0_0 = arith.constant 0 : index
    %0 = vector.load %arg2[%c0, %c0_0] : memref<128x128xbf16, #tpu.memory_space<vmem>>, vector<128x128xbf16>
    %1 = arith.extf %0 : vector<128x128xbf16> to vector<128x128xf32>
    %c0_1 = arith.constant 0 : index
    %c0_2 = arith.constant 0 : index
    %2 = vector.load %arg3[%c0_1, %c0_2] : memref<1x128xf32, #tpu.memory_space<vmem>>, vector<1x128xf32>
    %3 = vector.broadcast %2 : vector<1x128xf32> to vector<128x128xf32>
    %4 = arith.mulf %1, %3 : vector<128x128xf32>
    %c0_3 = arith.constant 0 : index
    %c0_4 = arith.constant 0 : index
    %5 = vector.load %arg4[%c0_3, %c0_4] : memref<1x128xf32, #tpu.memory_space<vmem>>, vector<1x128xf32>
    %6 = vector.broadcast %5 : vector<1x128xf32> to vector<128x128xf32>
    %7 = arith.addf %4, %6 : vector<128x128xf32>
    %cst = arith.constant 0.000000e+00 : f32
    %8 = vector.broadcast %cst : f32 to vector<128x128xf32>
    %9 = arith.maximumf %7, %8 : vector<128x128xf32>
    %10 = arith.truncf %9 : vector<128x128xf32> to vector<128x128xbf16>
    %c0_5 = arith.constant 0 : index
    %c0_6 = arith.constant 0 : index
    %11 = vector.load %arg5[%c0_5, %c0_6] : memref<128x128xbf16, #tpu.memory_space<vmem>>, vector<128x128xbf16>
    tpu.vector_store %arg5[%c0_5, %c0_6], %10 {strides = array<i32>} : memref<128x128xbf16, #tpu.memory_space<vmem>>, vector<128x128xbf16>,
    return
  }
  func.func @transform_0(%arg0: i32, %arg1: i32) -> (i32, i32) {
    %c0_i32 = arith.constant 0 : i32
    return %arg0, %arg1 : i32, i32
  }
  func.func @transform_1(%arg0: i32, %arg1: i32) -> (i32, i32) {
    %c0_i32 = arith.constant 0 : i32
    %c0_i32_0 = arith.constant 0 : i32
    return %c0_i32, %arg1 : i32, i32
  }
  func.func @transform_2(%arg0: i32, %arg1: i32) -> (i32, i32) {
    %c0_i32 = arith.constant 0 : i32
    %c0_i32_0 = arith.constant 0 : i32
    return %c0_i32, %arg1 : i32, i32
  }
  func.func @transform_3(%arg0: i32, %arg1: i32) -> (i32, i32) {
    %c0_i32 = arith.constant 0 : i32
    return %arg0, %arg1 : i32, i32
  }
}

module attributes {stable_mosaic.version = 11 : i64} {
  func.func @kernel(%arg0: i32, %arg1: i32, %arg2: i32, %arg3: memref<128x128xbf16, #tpu.memory_space<vmem>>, %arg4: memref<128x128xbf16, #tpu.memory_space<vmem>>, %arg5: memref<1x128xf32, #tpu.memory_space<vmem>>, %arg6: memref<128x128xbf16, #tpu.memory_space<vmem>>, %arg7: memref<1x8x128xf32, #tpu.memory_space<vmem>>, %arg8: memref<128x128xf32, #tpu.memory_space<vmem>>) attributes {dimension_semantics = [#tpu.dimension_semantics<parallel>, #tpu.dimension_semantics<parallel>, #tpu.dimension_semantics<arbitrary>], iteration_bounds = array<i64: 1, 1, 1>, scalar_prefetch = 0 : i64, scratch_operands = 1 : i64, tpu.core_type = #tpu.core_type<tc>, window_params = [{transform_indices = @transform_0, window_bounds = array<i64: 128, 128>}, {transform_indices = @transform_1, window_bounds = array<i64: 128, 128>}, {transform_indices = @transform_2, window_bounds = array<i64: 1, 128>}, {transform_indices = @transform_3, window_bounds = array<i64: 128, 128>}, {transform_indices = @transform_4, window_bounds = array<i64: 1, 8, 128>}]} {
    %c0_i32 = arith.constant 0 : i32
    %0 = arith.cmpi eq, %arg2, %c0_i32 : i32
    %1 = arith.extui %0 : i1 to i32
    %c0_i32_0 = arith.constant 0 : i32
    %2 = arith.cmpi ne, %1, %c0_i32_0 : i32
    scf.if %2 {
      %cst_10 = arith.constant 0.000000e+00 : f32
      %12 = vector.broadcast %cst_10 : f32 to vector<128x128xf32>
      %c0_11 = arith.constant 0 : index
      %c0_12 = arith.constant 0 : index
      %13 = vector.load %arg8[%c0_11, %c0_12] : memref<128x128xf32, #tpu.memory_space<vmem>>, vector<128x128xf32>
      tpu.vector_store %arg8[%c0_11, %c0_12], %12 {strides = array<i32>} : memref<128x128xf32, #tpu.memory_space<vmem>>, vector<128x128xf32>,
    } else {
    }
    %c0 = arith.constant 0 : index
    %c0_1 = arith.constant 0 : index
    %3 = vector.load %arg3[%c0, %c0_1] : memref<128x128xbf16, #tpu.memory_space<vmem>>, vector<128x128xbf16>
    %c0_2 = arith.constant 0 : index
    %c0_3 = arith.constant 0 : index
    %4 = vector.load %arg4[%c0_2, %c0_3] : memref<128x128xbf16, #tpu.memory_space<vmem>>, vector<128x128xbf16>
    %cst = arith.constant dense<0.000000e+00> : vector<128x128xf32>
    %5 = tpu.matmul %3, %4, %cst {dimension_numbers = #tpu.dot_dimension_numbers<[1], [0], [0], [1], [0, 0, 1, 1], [], []>} : vector<128x128xbf16>, vector<128x128xbf16>, vector<128x128xf32> -> vector<128x128xf32>
    %c0_4 = arith.constant 0 : index
    %c0_5 = arith.constant 0 : index
    %6 = vector.load %arg8[%c0_4, %c0_5] : memref<128x128xf32, #tpu.memory_space<vmem>>, vector<128x128xf32>
    %7 = arith.addf %6, %5 : vector<128x128xf32>
    %c0_6 = arith.constant 0 : index
    %c0_7 = arith.constant 0 : index
    %8 = vector.load %arg8[%c0_6, %c0_7] : memref<128x128xf32, #tpu.memory_space<vmem>>, vector<128x128xf32>
    tpu.vector_store %arg8[%c0_6, %c0_7], %7 {strides = array<i32>} : memref<128x128xf32, #tpu.memory_space<vmem>>, vector<128x128xf32>,
    %c0_i32_8 = arith.constant 0 : i32
    %9 = arith.cmpi eq, %arg2, %c0_i32_8 : i32
    %10 = arith.extui %9 : i1 to i32
    %c0_i32_9 = arith.constant 0 : i32
    %11 = arith.cmpi ne, %10, %c0_i32_9 : i32
    scf.if %11 {
      %c0_10 = arith.constant 0 : index
      %c0_11 = arith.constant 0 : index
      %12 = vector.load %arg8[%c0_10, %c0_11] : memref<128x128xf32, #tpu.memory_space<vmem>>, vector<128x128xf32>
      %c0_12 = arith.constant 0 : index
      %c0_13 = arith.constant 0 : index
      %13 = vector.load %arg5[%c0_12, %c0_13] : memref<1x128xf32, #tpu.memory_space<vmem>>, vector<1x128xf32>
      %14 = vector.broadcast %13 : vector<1x128xf32> to vector<128x128xf32>
      %15 = arith.addf %12, %14 : vector<128x128xf32>
      %16 = arith.truncf %15 : vector<128x128xf32> to vector<128x128xbf16>
      %c0_14 = arith.constant 0 : index
      %c0_15 = arith.constant 0 : index
      %17 = vector.load %arg6[%c0_14, %c0_15] : memref<128x128xbf16, #tpu.memory_space<vmem>>, vector<128x128xbf16>
      tpu.vector_store %arg6[%c0_14, %c0_15], %16 {strides = array<i32>} : memref<128x128xbf16, #tpu.memory_space<vmem>>, vector<128x128xbf16>,
      %cst_16 = arith.constant dense<0.000000e+00> : vector<128xf32>
      %18 = vector.multi_reduction <add>, %12, %cst_16 [0] : vector<128x128xf32> to vector<128xf32>
      %19 = vector.shape_cast %18 : vector<128xf32> to vector<1x128xf32>
      %20 = arith.mulf %12, %12 : vector<128x128xf32>
      %cst_17 = arith.constant dense<0.000000e+00> : vector<128xf32>
      %21 = vector.multi_reduction <add>, %20, %cst_17 [0] : vector<128x128xf32> to vector<128xf32>
      %22 = vector.shape_cast %21 : vector<128xf32> to vector<1x128xf32>
      %23 = tpu.iota {dimensions = array<i32: 0>} : vector<8x128xi32>
      %c0_i32_18 = arith.constant 0 : i32
      %24 = vector.broadcast %c0_i32_18 : i32 to vector<8x128xi32>
      %25 = arith.cmpi eq, %23, %24 : vector<8x128xi32>
      %c1_i32 = arith.constant 1 : i32
      %26 = vector.broadcast %c1_i32 : i32 to vector<8x128xi32>
      %27 = arith.cmpi eq, %23, %26 : vector<8x128xi32>
      %cst_19 = arith.constant 0.000000e+00 : f32
      %28 = vector.shape_cast %22 : vector<1x128xf32> to vector<1x128xf32>
      %29 = vector.broadcast %28 : vector<1x128xf32> to vector<8x128xf32>
      %30 = vector.broadcast %cst_19 : f32 to vector<8x128xf32>
      %31 = arith.select %27, %29, %30 : vector<8x128xi1>, vector<8x128xf32>
      %32 = vector.shape_cast %19 : vector<1x128xf32> to vector<1x128xf32>
      %33 = vector.broadcast %32 : vector<1x128xf32> to vector<8x128xf32>
      %34 = arith.select %25, %33, %31 : vector<8x128xi1>, vector<8x128xf32>
      %35 = vector.shape_cast %34 : vector<8x128xf32> to vector<1x8x128xf32>
      %c0_20 = arith.constant 0 : index
      %c0_21 = arith.constant 0 : index
      %c0_22 = arith.constant 0 : index
      %36 = vector.load %arg7[%c0_20, %c0_21, %c0_22] : memref<1x8x128xf32, #tpu.memory_space<vmem>>, vector<1x8x128xf32>
      tpu.vector_store %arg7[%c0_20, %c0_21, %c0_22], %35 {strides = array<i32>} : memref<1x8x128xf32, #tpu.memory_space<vmem>>, vector<1x8x128xf32>,
    } else {
    }
    return
  }
  func.func @transform_0(%arg0: i32, %arg1: i32, %arg2: i32) -> (i32, i32) {
    %c0_i32 = arith.constant 0 : i32
    return %arg0, %arg2 : i32, i32
  }
  func.func @transform_1(%arg0: i32, %arg1: i32, %arg2: i32) -> (i32, i32) {
    %c0_i32 = arith.constant 0 : i32
    return %arg2, %arg1 : i32, i32
  }
  func.func @transform_2(%arg0: i32, %arg1: i32, %arg2: i32) -> (i32, i32) {
    %c0_i32 = arith.constant 0 : i32
    %c0_i32_0 = arith.constant 0 : i32
    return %c0_i32, %arg1 : i32, i32
  }
  func.func @transform_3(%arg0: i32, %arg1: i32, %arg2: i32) -> (i32, i32) {
    %c0_i32 = arith.constant 0 : i32
    return %arg0, %arg1 : i32, i32
  }
  func.func @transform_4(%arg0: i32, %arg1: i32, %arg2: i32) -> (i32, i32, i32) {
    %c0_i32 = arith.constant 0 : i32
    %c0_i32_0 = arith.constant 0 : i32
    return %arg0, %c0_i32, %arg1 : i32, i32, i32
  }
}

module attributes {stable_mosaic.version = 11 : i64} {
  func.func @_affine_relu_kernel(%arg0: i32, %arg1: i32, %arg2: memref<32x128xbf16, #tpu.memory_space<vmem>>, %arg3: memref<1x128xf32, #tpu.memory_space<vmem>>, %arg4: memref<1x128xf32, #tpu.memory_space<vmem>>, %arg5: memref<32x128xbf16, #tpu.memory_space<vmem>>) attributes {dimension_semantics = [#tpu.dimension_semantics<parallel>, #tpu.dimension_semantics<parallel>], iteration_bounds = array<i64: 1, 1>, scalar_prefetch = 0 : i64, scratch_operands = 0 : i64, tpu.core_type = #tpu.core_type<tc>, window_params = [{transform_indices = @transform_0, window_bounds = array<i64: 32, 128>}, {transform_indices = @transform_1, window_bounds = array<i64: 1, 128>}, {transform_indices = @transform_2, window_bounds = array<i64: 1, 128>}, {transform_indices = @transform_3, window_bounds = array<i64: 32, 128>}]} {
    %c0 = arith.constant 0 : index
    %c0_0 = arith.constant 0 : index
    %0 = vector.load %arg2[%c0, %c0_0] : memref<32x128xbf16, #tpu.memory_space<vmem>>, vector<32x128xbf16>
    %1 = arith.extf %0 : vector<32x128xbf16> to vector<32x128xf32>
    %c0_1 = arith.constant 0 : index
    %c0_2 = arith.constant 0 : index
    %2 = vector.load %arg3[%c0_1, %c0_2] : memref<1x128xf32, #tpu.memory_space<vmem>>, vector<1x128xf32>
    %3 = vector.broadcast %2 : vector<1x128xf32> to vector<32x128xf32>
    %4 = arith.mulf %1, %3 : vector<32x128xf32>
    %c0_3 = arith.constant 0 : index
    %c0_4 = arith.constant 0 : index
    %5 = vector.load %arg4[%c0_3, %c0_4] : memref<1x128xf32, #tpu.memory_space<vmem>>, vector<1x128xf32>
    %6 = vector.broadcast %5 : vector<1x128xf32> to vector<32x128xf32>
    %7 = arith.addf %4, %6 : vector<32x128xf32>
    %cst = arith.constant 0.000000e+00 : f32
    %8 = vector.broadcast %cst : f32 to vector<32x128xf32>
    %9 = arith.maximumf %7, %8 : vector<32x128xf32>
    %10 = arith.truncf %9 : vector<32x128xf32> to vector<32x128xbf16>
    %c0_5 = arith.constant 0 : index
    %c0_6 = arith.constant 0 : index
    %11 = vector.load %arg5[%c0_5, %c0_6] : memref<32x128xbf16, #tpu.memory_space<vmem>>, vector<32x128xbf16>
    tpu.vector_store %arg5[%c0_5, %c0_6], %10 {strides = array<i32>} : memref<32x128xbf16, #tpu.memory_space<vmem>>, vector<32x128xbf16>,
    return
  }
  func.func @transform_0(%arg0: i32, %arg1: i32) -> (i32, i32) {
    %c0_i32 = arith.constant 0 : i32
    return %arg0, %arg1 : i32, i32
  }
  func.func @transform_1(%arg0: i32, %arg1: i32) -> (i32, i32) {
    %c0_i32 = arith.constant 0 : i32
    %c0_i32_0 = arith.constant 0 : i32
    return %c0_i32, %arg1 : i32, i32
  }
  func.func @transform_2(%arg0: i32, %arg1: i32) -> (i32, i32) {
    %c0_i32 = arith.constant 0 : i32
    %c0_i32_0 = arith.constant 0 : i32
    return %c0_i32, %arg1 : i32, i32
  }
  func.func @transform_3(%arg0: i32, %arg1: i32) -> (i32, i32) {
    %c0_i32 = arith.constant 0 : i32
    return %arg0, %arg1 : i32, i32
  }
}

module attributes {stable_mosaic.version = 11 : i64} {
  func.func @kernel(%arg0: i32, %arg1: i32, %arg2: i32, %arg3: memref<32x384xbf16, #tpu.memory_space<vmem>>, %arg4: memref<384x128xbf16, #tpu.memory_space<vmem>>, %arg5: memref<1x128xf32, #tpu.memory_space<vmem>>, %arg6: memref<32x128xbf16, #tpu.memory_space<vmem>>, %arg7: memref<1x8x128xf32, #tpu.memory_space<vmem>>, %arg8: memref<32x128xf32, #tpu.memory_space<vmem>>) attributes {dimension_semantics = [#tpu.dimension_semantics<parallel>, #tpu.dimension_semantics<parallel>, #tpu.dimension_semantics<arbitrary>], iteration_bounds = array<i64: 1, 1, 1>, scalar_prefetch = 0 : i64, scratch_operands = 1 : i64, tpu.core_type = #tpu.core_type<tc>, window_params = [{transform_indices = @transform_0, window_bounds = array<i64: 32, 384>}, {transform_indices = @transform_1, window_bounds = array<i64: 384, 128>}, {transform_indices = @transform_2, window_bounds = array<i64: 1, 128>}, {transform_indices = @transform_3, window_bounds = array<i64: 32, 128>}, {transform_indices = @transform_4, window_bounds = array<i64: 1, 8, 128>}]} {
    %c0_i32 = arith.constant 0 : i32
    %0 = arith.cmpi eq, %arg2, %c0_i32 : i32
    %1 = arith.extui %0 : i1 to i32
    %c0_i32_0 = arith.constant 0 : i32
    %2 = arith.cmpi ne, %1, %c0_i32_0 : i32
    scf.if %2 {
      %cst_10 = arith.constant 0.000000e+00 : f32
      %12 = vector.broadcast %cst_10 : f32 to vector<32x128xf32>
      %c0_11 = arith.constant 0 : index
      %c0_12 = arith.constant 0 : index
      %13 = vector.load %arg8[%c0_11, %c0_12] : memref<32x128xf32, #tpu.memory_space<vmem>>, vector<32x128xf32>
      tpu.vector_store %arg8[%c0_11, %c0_12], %12 {strides = array<i32>} : memref<32x128xf32, #tpu.memory_space<vmem>>, vector<32x128xf32>,
    } else {
    }
    %c0 = arith.constant 0 : index
    %c0_1 = arith.constant 0 : index
    %3 = vector.load %arg3[%c0, %c0_1] : memref<32x384xbf16, #tpu.memory_space<vmem>>, vector<32x384xbf16>
    %c0_2 = arith.constant 0 : index
    %c0_3 = arith.constant 0 : index
    %4 = vector.load %arg4[%c0_2, %c0_3] : memref<384x128xbf16, #tpu.memory_space<vmem>>, vector<384x128xbf16>
    %cst = arith.constant dense<0.000000e+00> : vector<32x128xf32>
    %5 = tpu.matmul %3, %4, %cst {dimension_numbers = #tpu.dot_dimension_numbers<[1], [0], [0], [1], [0, 0, 1, 1], [], []>} : vector<32x384xbf16>, vector<384x128xbf16>, vector<32x128xf32> -> vector<32x128xf32>
    %c0_4 = arith.constant 0 : index
    %c0_5 = arith.constant 0 : index
    %6 = vector.load %arg8[%c0_4, %c0_5] : memref<32x128xf32, #tpu.memory_space<vmem>>, vector<32x128xf32>
    %7 = arith.addf %6, %5 : vector<32x128xf32>
    %c0_6 = arith.constant 0 : index
    %c0_7 = arith.constant 0 : index
    %8 = vector.load %arg8[%c0_6, %c0_7] : memref<32x128xf32, #tpu.memory_space<vmem>>, vector<32x128xf32>
    tpu.vector_store %arg8[%c0_6, %c0_7], %7 {strides = array<i32>} : memref<32x128xf32, #tpu.memory_space<vmem>>, vector<32x128xf32>,
    %c0_i32_8 = arith.constant 0 : i32
    %9 = arith.cmpi eq, %arg2, %c0_i32_8 : i32
    %10 = arith.extui %9 : i1 to i32
    %c0_i32_9 = arith.constant 0 : i32
    %11 = arith.cmpi ne, %10, %c0_i32_9 : i32
    scf.if %11 {
      %c0_10 = arith.constant 0 : index
      %c0_11 = arith.constant 0 : index
      %12 = vector.load %arg8[%c0_10, %c0_11] : memref<32x128xf32, #tpu.memory_space<vmem>>, vector<32x128xf32>
      %c0_12 = arith.constant 0 : index
      %c0_13 = arith.constant 0 : index
      %13 = vector.load %arg5[%c0_12, %c0_13] : memref<1x128xf32, #tpu.memory_space<vmem>>, vector<1x128xf32>
      %14 = vector.broadcast %13 : vector<1x128xf32> to vector<32x128xf32>
      %15 = arith.addf %12, %14 : vector<32x128xf32>
      %16 = arith.truncf %15 : vector<32x128xf32> to vector<32x128xbf16>
      %c0_14 = arith.constant 0 : index
      %c0_15 = arith.constant 0 : index
      %17 = vector.load %arg6[%c0_14, %c0_15] : memref<32x128xbf16, #tpu.memory_space<vmem>>, vector<32x128xbf16>
      tpu.vector_store %arg6[%c0_14, %c0_15], %16 {strides = array<i32>} : memref<32x128xbf16, #tpu.memory_space<vmem>>, vector<32x128xbf16>,
      %cst_16 = arith.constant dense<0.000000e+00> : vector<128xf32>
      %18 = vector.multi_reduction <add>, %12, %cst_16 [0] : vector<32x128xf32> to vector<128xf32>
      %19 = vector.shape_cast %18 : vector<128xf32> to vector<1x128xf32>
      %20 = arith.mulf %12, %12 : vector<32x128xf32>
      %cst_17 = arith.constant dense<0.000000e+00> : vector<128xf32>
      %21 = vector.multi_reduction <add>, %20, %cst_17 [0] : vector<32x128xf32> to vector<128xf32>
      %22 = vector.shape_cast %21 : vector<128xf32> to vector<1x128xf32>
      %23 = tpu.iota {dimensions = array<i32: 0>} : vector<8x128xi32>
      %c0_i32_18 = arith.constant 0 : i32
      %24 = vector.broadcast %c0_i32_18 : i32 to vector<8x128xi32>
      %25 = arith.cmpi eq, %23, %24 : vector<8x128xi32>
      %c1_i32 = arith.constant 1 : i32
      %26 = vector.broadcast %c1_i32 : i32 to vector<8x128xi32>
      %27 = arith.cmpi eq, %23, %26 : vector<8x128xi32>
      %cst_19 = arith.constant 0.000000e+00 : f32
      %28 = vector.shape_cast %22 : vector<1x128xf32> to vector<1x128xf32>
      %29 = vector.broadcast %28 : vector<1x128xf32> to vector<8x128xf32>
      %30 = vector.broadcast %cst_19 : f32 to vector<8x128xf32>
      %31 = arith.select %27, %29, %30 : vector<8x128xi1>, vector<8x128xf32>
      %32 = vector.shape_cast %19 : vector<1x128xf32> to vector<1x128xf32>
      %33 = vector.broadcast %32 : vector<1x128xf32> to vector<8x128xf32>
      %34 = arith.select %25, %33, %31 : vector<8x128xi1>, vector<8x128xf32>
      %35 = vector.shape_cast %34 : vector<8x128xf32> to vector<1x8x128xf32>
      %c0_20 = arith.constant 0 : index
      %c0_21 = arith.constant 0 : index
      %c0_22 = arith.constant 0 : index
      %36 = vector.load %arg7[%c0_20, %c0_21, %c0_22] : memref<1x8x128xf32, #tpu.memory_space<vmem>>, vector<1x8x128xf32>
      tpu.vector_store %arg7[%c0_20, %c0_21, %c0_22], %35 {strides = array<i32>} : memref<1x8x128xf32, #tpu.memory_space<vmem>>, vector<1x8x128xf32>,
    } else {
    }
    return
  }
  func.func @transform_0(%arg0: i32, %arg1: i32, %arg2: i32) -> (i32, i32) {
    %c0_i32 = arith.constant 0 : i32
    return %arg0, %arg2 : i32, i32
  }
  func.func @transform_1(%arg0: i32, %arg1: i32, %arg2: i32) -> (i32, i32) {
    %c0_i32 = arith.constant 0 : i32
    return %arg2, %arg1 : i32, i32
  }
  func.func @transform_2(%arg0: i32, %arg1: i32, %arg2: i32) -> (i32, i32) {
    %c0_i32 = arith.constant 0 : i32
    %c0_i32_0 = arith.constant 0 : i32
    return %c0_i32, %arg1 : i32, i32
  }
  func.func @transform_3(%arg0: i32, %arg1: i32, %arg2: i32) -> (i32, i32) {
    %c0_i32 = arith.constant 0 : i32
    return %arg0, %arg1 : i32, i32
  }
  func.func @transform_4(%arg0: i32, %arg1: i32, %arg2: i32) -> (i32, i32, i32) {
    %c0_i32 = arith.constant 0 : i32
    %c0_i32_0 = arith.constant 0 : i32
    return %arg0, %c0_i32, %arg1 : i32, i32, i32
  }
}

module attributes {stable_mosaic.version = 11 : i64} {
  func.func @kernel(%arg0: i32, %arg1: i32, %arg2: i32, %arg3: memref<16x384xbf16, #tpu.memory_space<vmem>>, %arg4: memref<384x128xbf16, #tpu.memory_space<vmem>>, %arg5: memref<1x128xf32, #tpu.memory_space<vmem>>, %arg6: memref<16x128xbf16, #tpu.memory_space<vmem>>, %arg7: memref<1x8x128xf32, #tpu.memory_space<vmem>>, %arg8: memref<16x128xf32, #tpu.memory_space<vmem>>) attributes {dimension_semantics = [#tpu.dimension_semantics<parallel>, #tpu.dimension_semantics<parallel>, #tpu.dimension_semantics<arbitrary>], iteration_bounds = array<i64: 1, 1, 2>, scalar_prefetch = 0 : i64, scratch_operands = 1 : i64, tpu.core_type = #tpu.core_type<tc>, window_params = [{transform_indices = @transform_0, window_bounds = array<i64: 16, 384>}, {transform_indices = @transform_1, window_bounds = array<i64: 384, 128>}, {transform_indices = @transform_2, window_bounds = array<i64: 1, 128>}, {transform_indices = @transform_3, window_bounds = array<i64: 16, 128>}, {transform_indices = @transform_4, window_bounds = array<i64: 1, 8, 128>}]} {
    %c0_i32 = arith.constant 0 : i32
    %0 = arith.cmpi eq, %arg2, %c0_i32 : i32
    %1 = arith.extui %0 : i1 to i32
    %c0_i32_0 = arith.constant 0 : i32
    %2 = arith.cmpi ne, %1, %c0_i32_0 : i32
    scf.if %2 {
      %cst_9 = arith.constant 0.000000e+00 : f32
      %12 = vector.broadcast %cst_9 : f32 to vector<16x128xf32>
      %c0_10 = arith.constant 0 : index
      %c0_11 = arith.constant 0 : index
      %13 = vector.load %arg8[%c0_10, %c0_11] : memref<16x128xf32, #tpu.memory_space<vmem>>, vector<16x128xf32>
      tpu.vector_store %arg8[%c0_10, %c0_11], %12 {strides = array<i32>} : memref<16x128xf32, #tpu.memory_space<vmem>>, vector<16x128xf32>,
    } else {
    }
    %c0 = arith.constant 0 : index
    %c0_1 = arith.constant 0 : index
    %3 = vector.load %arg3[%c0, %c0_1] : memref<16x384xbf16, #tpu.memory_space<vmem>>, vector<16x384xbf16>
    %c0_2 = arith.constant 0 : index
    %c0_3 = arith.constant 0 : index
    %4 = vector.load %arg4[%c0_2, %c0_3] : memref<384x128xbf16, #tpu.memory_space<vmem>>, vector<384x128xbf16>
    %cst = arith.constant dense<0.000000e+00> : vector<16x128xf32>
    %5 = tpu.matmul %3, %4, %cst {dimension_numbers = #tpu.dot_dimension_numbers<[1], [0], [0], [1], [0, 0, 1, 1], [], []>} : vector<16x384xbf16>, vector<384x128xbf16>, vector<16x128xf32> -> vector<16x128xf32>
    %c0_4 = arith.constant 0 : index
    %c0_5 = arith.constant 0 : index
    %6 = vector.load %arg8[%c0_4, %c0_5] : memref<16x128xf32, #tpu.memory_space<vmem>>, vector<16x128xf32>
    %7 = arith.addf %6, %5 : vector<16x128xf32>
    %c0_6 = arith.constant 0 : index
    %c0_7 = arith.constant 0 : index
    %8 = vector.load %arg8[%c0_6, %c0_7] : memref<16x128xf32, #tpu.memory_space<vmem>>, vector<16x128xf32>
    tpu.vector_store %arg8[%c0_6, %c0_7], %7 {strides = array<i32>} : memref<16x128xf32, #tpu.memory_space<vmem>>, vector<16x128xf32>,
    %c1_i32 = arith.constant 1 : i32
    %9 = arith.cmpi eq, %arg2, %c1_i32 : i32
    %10 = arith.extui %9 : i1 to i32
    %c0_i32_8 = arith.constant 0 : i32
    %11 = arith.cmpi ne, %10, %c0_i32_8 : i32
    scf.if %11 {
      %c0_9 = arith.constant 0 : index
      %c0_10 = arith.constant 0 : index
      %12 = vector.load %arg8[%c0_9, %c0_10] : memref<16x128xf32, #tpu.memory_space<vmem>>, vector<16x128xf32>
      %c0_11 = arith.constant 0 : index
      %c0_12 = arith.constant 0 : index
      %13 = vector.load %arg5[%c0_11, %c0_12] : memref<1x128xf32, #tpu.memory_space<vmem>>, vector<1x128xf32>
      %14 = vector.broadcast %13 : vector<1x128xf32> to vector<16x128xf32>
      %15 = arith.addf %12, %14 : vector<16x128xf32>
      %16 = arith.truncf %15 : vector<16x128xf32> to vector<16x128xbf16>
      %c0_13 = arith.constant 0 : index
      %c0_14 = arith.constant 0 : index
      %17 = vector.load %arg6[%c0_13, %c0_14] : memref<16x128xbf16, #tpu.memory_space<vmem>>, vector<16x128xbf16>
      tpu.vector_store %arg6[%c0_13, %c0_14], %16 {strides = array<i32>} : memref<16x128xbf16, #tpu.memory_space<vmem>>, vector<16x128xbf16>,
      %cst_15 = arith.constant dense<0.000000e+00> : vector<128xf32>
      %18 = vector.multi_reduction <add>, %12, %cst_15 [0] : vector<16x128xf32> to vector<128xf32>
      %19 = vector.shape_cast %18 : vector<128xf32> to vector<1x128xf32>
      %20 = arith.mulf %12, %12 : vector<16x128xf32>
      %cst_16 = arith.constant dense<0.000000e+00> : vector<128xf32>
      %21 = vector.multi_reduction <add>, %20, %cst_16 [0] : vector<16x128xf32> to vector<128xf32>
      %22 = vector.shape_cast %21 : vector<128xf32> to vector<1x128xf32>
      %23 = tpu.iota {dimensions = array<i32: 0>} : vector<8x128xi32>
      %c0_i32_17 = arith.constant 0 : i32
      %24 = vector.broadcast %c0_i32_17 : i32 to vector<8x128xi32>
      %25 = arith.cmpi eq, %23, %24 : vector<8x128xi32>
      %c1_i32_18 = arith.constant 1 : i32
      %26 = vector.broadcast %c1_i32_18 : i32 to vector<8x128xi32>
      %27 = arith.cmpi eq, %23, %26 : vector<8x128xi32>
      %cst_19 = arith.constant 0.000000e+00 : f32
      %28 = vector.shape_cast %22 : vector<1x128xf32> to vector<1x128xf32>
      %29 = vector.broadcast %28 : vector<1x128xf32> to vector<8x128xf32>
      %30 = vector.broadcast %cst_19 : f32 to vector<8x128xf32>
      %31 = arith.select %27, %29, %30 : vector<8x128xi1>, vector<8x128xf32>
      %32 = vector.shape_cast %19 : vector<1x128xf32> to vector<1x128xf32>
      %33 = vector.broadcast %32 : vector<1x128xf32> to vector<8x128xf32>
      %34 = arith.select %25, %33, %31 : vector<8x128xi1>, vector<8x128xf32>
      %35 = vector.shape_cast %34 : vector<8x128xf32> to vector<1x8x128xf32>
      %c0_20 = arith.constant 0 : index
      %c0_21 = arith.constant 0 : index
      %c0_22 = arith.constant 0 : index
      %36 = vector.load %arg7[%c0_20, %c0_21, %c0_22] : memref<1x8x128xf32, #tpu.memory_space<vmem>>, vector<1x8x128xf32>
      tpu.vector_store %arg7[%c0_20, %c0_21, %c0_22], %35 {strides = array<i32>} : memref<1x8x128xf32, #tpu.memory_space<vmem>>, vector<1x8x128xf32>,
    } else {
    }
    return
  }
  func.func @transform_0(%arg0: i32, %arg1: i32, %arg2: i32) -> (i32, i32) {
    %c0_i32 = arith.constant 0 : i32
    return %arg0, %arg2 : i32, i32
  }
  func.func @transform_1(%arg0: i32, %arg1: i32, %arg2: i32) -> (i32, i32) {
    %c0_i32 = arith.constant 0 : i32
    return %arg2, %arg1 : i32, i32
  }
  func.func @transform_2(%arg0: i32, %arg1: i32, %arg2: i32) -> (i32, i32) {
    %c0_i32 = arith.constant 0 : i32
    %c0_i32_0 = arith.constant 0 : i32
    return %c0_i32, %arg1 : i32, i32
  }
  func.func @transform_3(%arg0: i32, %arg1: i32, %arg2: i32) -> (i32, i32) {
    %c0_i32 = arith.constant 0 : i32
    return %arg0, %arg1 : i32, i32
  }
  func.func @transform_4(%arg0: i32, %arg1: i32, %arg2: i32) -> (i32, i32, i32) {
    %c0_i32 = arith.constant 0 : i32
    %c0_i32_0 = arith.constant 0 : i32
    return %arg0, %c0_i32, %arg1 : i32, i32, i32
  }
}

module attributes {stable_mosaic.version = 11 : i64} {
  func.func @_affine_relu_kernel(%arg0: i32, %arg1: i32, %arg2: memref<16x128xbf16, #tpu.memory_space<vmem>>, %arg3: memref<1x128xf32, #tpu.memory_space<vmem>>, %arg4: memref<1x128xf32, #tpu.memory_space<vmem>>, %arg5: memref<16x128xbf16, #tpu.memory_space<vmem>>) attributes {dimension_semantics = [#tpu.dimension_semantics<parallel>, #tpu.dimension_semantics<parallel>], iteration_bounds = array<i64: 1, 1>, scalar_prefetch = 0 : i64, scratch_operands = 0 : i64, tpu.core_type = #tpu.core_type<tc>, window_params = [{transform_indices = @transform_0, window_bounds = array<i64: 16, 128>}, {transform_indices = @transform_1, window_bounds = array<i64: 1, 128>}, {transform_indices = @transform_2, window_bounds = array<i64: 1, 128>}, {transform_indices = @transform_3, window_bounds = array<i64: 16, 128>}]} {
    %c0 = arith.constant 0 : index
    %c0_0 = arith.constant 0 : index
    %0 = vector.load %arg2[%c0, %c0_0] : memref<16x128xbf16, #tpu.memory_space<vmem>>, vector<16x128xbf16>
    %1 = arith.extf %0 : vector<16x128xbf16> to vector<16x128xf32>
    %c0_1 = arith.constant 0 : index
    %c0_2 = arith.constant 0 : index
    %2 = vector.load %arg3[%c0_1, %c0_2] : memref<1x128xf32, #tpu.memory_space<vmem>>, vector<1x128xf32>
    %3 = vector.broadcast %2 : vector<1x128xf32> to vector<16x128xf32>
    %4 = arith.mulf %1, %3 : vector<16x128xf32>
    %c0_3 = arith.constant 0 : index
    %c0_4 = arith.constant 0 : index
    %5 = vector.load %arg4[%c0_3, %c0_4] : memref<1x128xf32, #tpu.memory_space<vmem>>, vector<1x128xf32>
    %6 = vector.broadcast %5 : vector<1x128xf32> to vector<16x128xf32>
    %7 = arith.addf %4, %6 : vector<16x128xf32>
    %cst = arith.constant 0.000000e+00 : f32
    %8 = vector.broadcast %cst : f32 to vector<16x128xf32>
    %9 = arith.maximumf %7, %8 : vector<16x128xf32>
    %10 = arith.truncf %9 : vector<16x128xf32> to vector<16x128xbf16>
    %c0_5 = arith.constant 0 : index
    %c0_6 = arith.constant 0 : index
    %11 = vector.load %arg5[%c0_5, %c0_6] : memref<16x128xbf16, #tpu.memory_space<vmem>>, vector<16x128xbf16>
    tpu.vector_store %arg5[%c0_5, %c0_6], %10 {strides = array<i32>} : memref<16x128xbf16, #tpu.memory_space<vmem>>, vector<16x128xbf16>,
    return
  }
  func.func @transform_0(%arg0: i32, %arg1: i32) -> (i32, i32) {
    %c0_i32 = arith.constant 0 : i32
    return %arg0, %arg1 : i32, i32
  }
  func.func @transform_1(%arg0: i32, %arg1: i32) -> (i32, i32) {
    %c0_i32 = arith.constant 0 : i32
    %c0_i32_0 = arith.constant 0 : i32
    return %c0_i32, %arg1 : i32, i32
  }
  func.func @transform_2(%arg0: i32, %arg1: i32) -> (i32, i32) {
    %c0_i32 = arith.constant 0 : i32
    %c0_i32_0 = arith.constant 0 : i32
    return %c0_i32, %arg1 : i32, i32
  }
  func.func @transform_3(%arg0: i32, %arg1: i32) -> (i32, i32) {
    %c0_i32 = arith.constant 0 : i32
    return %arg0, %arg1 : i32, i32
  }
}

module attributes {stable_mosaic.version = 11 : i64} {
  func.func @_affine_relu_kernel(%arg0: i32, %arg1: i32, %arg2: memref<16x256xbf16, #tpu.memory_space<vmem>>, %arg3: memref<1x256xf32, #tpu.memory_space<vmem>>, %arg4: memref<1x256xf32, #tpu.memory_space<vmem>>, %arg5: memref<16x256xbf16, #tpu.memory_space<vmem>>) attributes {dimension_semantics = [#tpu.dimension_semantics<parallel>, #tpu.dimension_semantics<parallel>], iteration_bounds = array<i64: 1, 1>, scalar_prefetch = 0 : i64, scratch_operands = 0 : i64, tpu.core_type = #tpu.core_type<tc>, window_params = [{transform_indices = @transform_0, window_bounds = array<i64: 16, 256>}, {transform_indices = @transform_1, window_bounds = array<i64: 1, 256>}, {transform_indices = @transform_2, window_bounds = array<i64: 1, 256>}, {transform_indices = @transform_3, window_bounds = array<i64: 16, 256>}]} {
    %c0 = arith.constant 0 : index
    %c0_0 = arith.constant 0 : index
    %0 = vector.load %arg2[%c0, %c0_0] : memref<16x256xbf16, #tpu.memory_space<vmem>>, vector<16x256xbf16>
    %1 = arith.extf %0 : vector<16x256xbf16> to vector<16x256xf32>
    %c0_1 = arith.constant 0 : index
    %c0_2 = arith.constant 0 : index
    %2 = vector.load %arg3[%c0_1, %c0_2] : memref<1x256xf32, #tpu.memory_space<vmem>>, vector<1x256xf32>
    %3 = vector.broadcast %2 : vector<1x256xf32> to vector<16x256xf32>
    %4 = arith.mulf %1, %3 : vector<16x256xf32>
    %c0_3 = arith.constant 0 : index
    %c0_4 = arith.constant 0 : index
    %5 = vector.load %arg4[%c0_3, %c0_4] : memref<1x256xf32, #tpu.memory_space<vmem>>, vector<1x256xf32>
    %6 = vector.broadcast %5 : vector<1x256xf32> to vector<16x256xf32>
    %7 = arith.addf %4, %6 : vector<16x256xf32>
    %cst = arith.constant 0.000000e+00 : f32
    %8 = vector.broadcast %cst : f32 to vector<16x256xf32>
    %9 = arith.maximumf %7, %8 : vector<16x256xf32>
    %10 = arith.truncf %9 : vector<16x256xf32> to vector<16x256xbf16>
    %c0_5 = arith.constant 0 : index
    %c0_6 = arith.constant 0 : index
    %11 = vector.load %arg5[%c0_5, %c0_6] : memref<16x256xbf16, #tpu.memory_space<vmem>>, vector<16x256xbf16>
    tpu.vector_store %arg5[%c0_5, %c0_6], %10 {strides = array<i32>} : memref<16x256xbf16, #tpu.memory_space<vmem>>, vector<16x256xbf16>,
    return
  }
  func.func @transform_0(%arg0: i32, %arg1: i32) -> (i32, i32) {
    %c0_i32 = arith.constant 0 : i32
    return %arg0, %arg1 : i32, i32
  }
  func.func @transform_1(%arg0: i32, %arg1: i32) -> (i32, i32) {
    %c0_i32 = arith.constant 0 : i32
    %c0_i32_0 = arith.constant 0 : i32
    return %c0_i32, %arg1 : i32, i32
  }
  func.func @transform_2(%arg0: i32, %arg1: i32) -> (i32, i32) {
    %c0_i32 = arith.constant 0 : i32
    %c0_i32_0 = arith.constant 0 : i32
    return %c0_i32, %arg1 : i32, i32
  }
  func.func @transform_3(%arg0: i32, %arg1: i32) -> (i32, i32) {
    %c0_i32 = arith.constant 0 : i32
    return %arg0, %arg1 : i32, i32
  }
}

module attributes {stable_mosaic.version = 11 : i64} {
  func.func @kernel(%arg0: i32, %arg1: i32, %arg2: i32, %arg3: memref<16x384xbf16, #tpu.memory_space<vmem>>, %arg4: memref<384x256xbf16, #tpu.memory_space<vmem>>, %arg5: memref<1x256xf32, #tpu.memory_space<vmem>>, %arg6: memref<16x256xbf16, #tpu.memory_space<vmem>>, %arg7: memref<1x8x256xf32, #tpu.memory_space<vmem>>, %arg8: memref<16x256xf32, #tpu.memory_space<vmem>>) attributes {dimension_semantics = [#tpu.dimension_semantics<parallel>, #tpu.dimension_semantics<parallel>, #tpu.dimension_semantics<arbitrary>], iteration_bounds = array<i64: 1, 1, 3>, scalar_prefetch = 0 : i64, scratch_operands = 1 : i64, tpu.core_type = #tpu.core_type<tc>, window_params = [{transform_indices = @transform_0, window_bounds = array<i64: 16, 384>}, {transform_indices = @transform_1, window_bounds = array<i64: 384, 256>}, {transform_indices = @transform_2, window_bounds = array<i64: 1, 256>}, {transform_indices = @transform_3, window_bounds = array<i64: 16, 256>}, {transform_indices = @transform_4, window_bounds = array<i64: 1, 8, 256>}]} {
    %c0_i32 = arith.constant 0 : i32
    %0 = arith.cmpi eq, %arg2, %c0_i32 : i32
    %1 = arith.extui %0 : i1 to i32
    %c0_i32_0 = arith.constant 0 : i32
    %2 = arith.cmpi ne, %1, %c0_i32_0 : i32
    scf.if %2 {
      %cst_9 = arith.constant 0.000000e+00 : f32
      %12 = vector.broadcast %cst_9 : f32 to vector<16x256xf32>
      %c0_10 = arith.constant 0 : index
      %c0_11 = arith.constant 0 : index
      %13 = vector.load %arg8[%c0_10, %c0_11] : memref<16x256xf32, #tpu.memory_space<vmem>>, vector<16x256xf32>
      tpu.vector_store %arg8[%c0_10, %c0_11], %12 {strides = array<i32>} : memref<16x256xf32, #tpu.memory_space<vmem>>, vector<16x256xf32>,
    } else {
    }
    %c0 = arith.constant 0 : index
    %c0_1 = arith.constant 0 : index
    %3 = vector.load %arg3[%c0, %c0_1] : memref<16x384xbf16, #tpu.memory_space<vmem>>, vector<16x384xbf16>
    %c0_2 = arith.constant 0 : index
    %c0_3 = arith.constant 0 : index
    %4 = vector.load %arg4[%c0_2, %c0_3] : memref<384x256xbf16, #tpu.memory_space<vmem>>, vector<384x256xbf16>
    %cst = arith.constant dense<0.000000e+00> : vector<16x256xf32>
    %5 = tpu.matmul %3, %4, %cst {dimension_numbers = #tpu.dot_dimension_numbers<[1], [0], [0], [1], [0, 0, 1, 1], [], []>} : vector<16x384xbf16>, vector<384x256xbf16>, vector<16x256xf32> -> vector<16x256xf32>
    %c0_4 = arith.constant 0 : index
    %c0_5 = arith.constant 0 : index
    %6 = vector.load %arg8[%c0_4, %c0_5] : memref<16x256xf32, #tpu.memory_space<vmem>>, vector<16x256xf32>
    %7 = arith.addf %6, %5 : vector<16x256xf32>
    %c0_6 = arith.constant 0 : index
    %c0_7 = arith.constant 0 : index
    %8 = vector.load %arg8[%c0_6, %c0_7] : memref<16x256xf32, #tpu.memory_space<vmem>>, vector<16x256xf32>
    tpu.vector_store %arg8[%c0_6, %c0_7], %7 {strides = array<i32>} : memref<16x256xf32, #tpu.memory_space<vmem>>, vector<16x256xf32>,
    %c2_i32 = arith.constant 2 : i32
    %9 = arith.cmpi eq, %arg2, %c2_i32 : i32
    %10 = arith.extui %9 : i1 to i32
    %c0_i32_8 = arith.constant 0 : i32
    %11 = arith.cmpi ne, %10, %c0_i32_8 : i32
    scf.if %11 {
      %c0_9 = arith.constant 0 : index
      %c0_10 = arith.constant 0 : index
      %12 = vector.load %arg8[%c0_9, %c0_10] : memref<16x256xf32, #tpu.memory_space<vmem>>, vector<16x256xf32>
      %c0_11 = arith.constant 0 : index
      %c0_12 = arith.constant 0 : index
      %13 = vector.load %arg5[%c0_11, %c0_12] : memref<1x256xf32, #tpu.memory_space<vmem>>, vector<1x256xf32>
      %14 = vector.broadcast %13 : vector<1x256xf32> to vector<16x256xf32>
      %15 = arith.addf %12, %14 : vector<16x256xf32>
      %16 = arith.truncf %15 : vector<16x256xf32> to vector<16x256xbf16>
      %c0_13 = arith.constant 0 : index
      %c0_14 = arith.constant 0 : index
      %17 = vector.load %arg6[%c0_13, %c0_14] : memref<16x256xbf16, #tpu.memory_space<vmem>>, vector<16x256xbf16>
      tpu.vector_store %arg6[%c0_13, %c0_14], %16 {strides = array<i32>} : memref<16x256xbf16, #tpu.memory_space<vmem>>, vector<16x256xbf16>,
      %cst_15 = arith.constant dense<0.000000e+00> : vector<256xf32>
      %18 = vector.multi_reduction <add>, %12, %cst_15 [0] : vector<16x256xf32> to vector<256xf32>
      %19 = vector.shape_cast %18 : vector<256xf32> to vector<1x256xf32>
      %20 = arith.mulf %12, %12 : vector<16x256xf32>
      %cst_16 = arith.constant dense<0.000000e+00> : vector<256xf32>
      %21 = vector.multi_reduction <add>, %20, %cst_16 [0] : vector<16x256xf32> to vector<256xf32>
      %22 = vector.shape_cast %21 : vector<256xf32> to vector<1x256xf32>
      %23 = tpu.iota {dimensions = array<i32: 0>} : vector<8x256xi32>
      %c0_i32_17 = arith.constant 0 : i32
      %24 = vector.broadcast %c0_i32_17 : i32 to vector<8x256xi32>
      %25 = arith.cmpi eq, %23, %24 : vector<8x256xi32>
      %c1_i32 = arith.constant 1 : i32
      %26 = vector.broadcast %c1_i32 : i32 to vector<8x256xi32>
      %27 = arith.cmpi eq, %23, %26 : vector<8x256xi32>
      %cst_18 = arith.constant 0.000000e+00 : f32
      %28 = vector.shape_cast %22 : vector<1x256xf32> to vector<1x256xf32>
      %29 = vector.broadcast %28 : vector<1x256xf32> to vector<8x256xf32>
      %30 = vector.broadcast %cst_18 : f32 to vector<8x256xf32>
      %31 = arith.select %27, %29, %30 : vector<8x256xi1>, vector<8x256xf32>
      %32 = vector.shape_cast %19 : vector<1x256xf32> to vector<1x256xf32>
      %33 = vector.broadcast %32 : vector<1x256xf32> to vector<8x256xf32>
      %34 = arith.select %25, %33, %31 : vector<8x256xi1>, vector<8x256xf32>
      %35 = vector.shape_cast %34 : vector<8x256xf32> to vector<1x8x256xf32>
      %c0_19 = arith.constant 0 : index
      %c0_20 = arith.constant 0 : index
      %c0_21 = arith.constant 0 : index
      %36 = vector.load %arg7[%c0_19, %c0_20, %c0_21] : memref<1x8x256xf32, #tpu.memory_space<vmem>>, vector<1x8x256xf32>
      tpu.vector_store %arg7[%c0_19, %c0_20, %c0_21], %35 {strides = array<i32>} : memref<1x8x256xf32, #tpu.memory_space<vmem>>, vector<1x8x256xf32>,
    } else {
    }
    return
  }
  func.func @transform_0(%arg0: i32, %arg1: i32, %arg2: i32) -> (i32, i32) {
    %c0_i32 = arith.constant 0 : i32
    return %arg0, %arg2 : i32, i32
  }
  func.func @transform_1(%arg0: i32, %arg1: i32, %arg2: i32) -> (i32, i32) {
    %c0_i32 = arith.constant 0 : i32
    return %arg2, %arg1 : i32, i32
  }
  func.func @transform_2(%arg0: i32, %arg1: i32, %arg2: i32) -> (i32, i32) {
    %c0_i32 = arith.constant 0 : i32
    %c0_i32_0 = arith.constant 0 : i32
    return %c0_i32, %arg1 : i32, i32
  }
  func.func @transform_3(%arg0: i32, %arg1: i32, %arg2: i32) -> (i32, i32) {
    %c0_i32 = arith.constant 0 : i32
    return %arg0, %arg1 : i32, i32
  }
  func.func @transform_4(%arg0: i32, %arg1: i32, %arg2: i32) -> (i32, i32, i32) {
    %c0_i32 = arith.constant 0 : i32
    %c0_i32_0 = arith.constant 0 : i32
    return %arg0, %c0_i32, %arg1 : i32, i32, i32
  }
}

module attributes {stable_mosaic.version = 11 : i64} {
  func.func @kernel(%arg0: i32, %arg1: i32, %arg2: i32, %arg3: memref<16x384xbf16, #tpu.memory_space<vmem>>, %arg4: memref<384x256xbf16, #tpu.memory_space<vmem>>, %arg5: memref<1x256xf32, #tpu.memory_space<vmem>>, %arg6: memref<16x256xbf16, #tpu.memory_space<vmem>>, %arg7: memref<1x8x256xf32, #tpu.memory_space<vmem>>, %arg8: memref<16x256xf32, #tpu.memory_space<vmem>>) attributes {dimension_semantics = [#tpu.dimension_semantics<parallel>, #tpu.dimension_semantics<parallel>, #tpu.dimension_semantics<arbitrary>], iteration_bounds = array<i64: 1, 2, 6>, scalar_prefetch = 0 : i64, scratch_operands = 1 : i64, tpu.core_type = #tpu.core_type<tc>, window_params = [{transform_indices = @transform_0, window_bounds = array<i64: 16, 384>}, {transform_indices = @transform_1, window_bounds = array<i64: 384, 256>}, {transform_indices = @transform_2, window_bounds = array<i64: 1, 256>}, {transform_indices = @transform_3, window_bounds = array<i64: 16, 256>}, {transform_indices = @transform_4, window_bounds = array<i64: 1, 8, 256>}]} {
    %c0_i32 = arith.constant 0 : i32
    %0 = arith.cmpi eq, %arg2, %c0_i32 : i32
    %1 = arith.extui %0 : i1 to i32
    %c0_i32_0 = arith.constant 0 : i32
    %2 = arith.cmpi ne, %1, %c0_i32_0 : i32
    scf.if %2 {
      %cst_9 = arith.constant 0.000000e+00 : f32
      %12 = vector.broadcast %cst_9 : f32 to vector<16x256xf32>
      %c0_10 = arith.constant 0 : index
      %c0_11 = arith.constant 0 : index
      %13 = vector.load %arg8[%c0_10, %c0_11] : memref<16x256xf32, #tpu.memory_space<vmem>>, vector<16x256xf32>
      tpu.vector_store %arg8[%c0_10, %c0_11], %12 {strides = array<i32>} : memref<16x256xf32, #tpu.memory_space<vmem>>, vector<16x256xf32>,
    } else {
    }
    %c0 = arith.constant 0 : index
    %c0_1 = arith.constant 0 : index
    %3 = vector.load %arg3[%c0, %c0_1] : memref<16x384xbf16, #tpu.memory_space<vmem>>, vector<16x384xbf16>
    %c0_2 = arith.constant 0 : index
    %c0_3 = arith.constant 0 : index
    %4 = vector.load %arg4[%c0_2, %c0_3] : memref<384x256xbf16, #tpu.memory_space<vmem>>, vector<384x256xbf16>
    %cst = arith.constant dense<0.000000e+00> : vector<16x256xf32>
    %5 = tpu.matmul %3, %4, %cst {dimension_numbers = #tpu.dot_dimension_numbers<[1], [0], [0], [1], [0, 0, 1, 1], [], []>} : vector<16x384xbf16>, vector<384x256xbf16>, vector<16x256xf32> -> vector<16x256xf32>
    %c0_4 = arith.constant 0 : index
    %c0_5 = arith.constant 0 : index
    %6 = vector.load %arg8[%c0_4, %c0_5] : memref<16x256xf32, #tpu.memory_space<vmem>>, vector<16x256xf32>
    %7 = arith.addf %6, %5 : vector<16x256xf32>
    %c0_6 = arith.constant 0 : index
    %c0_7 = arith.constant 0 : index
    %8 = vector.load %arg8[%c0_6, %c0_7] : memref<16x256xf32, #tpu.memory_space<vmem>>, vector<16x256xf32>
    tpu.vector_store %arg8[%c0_6, %c0_7], %7 {strides = array<i32>} : memref<16x256xf32, #tpu.memory_space<vmem>>, vector<16x256xf32>,
    %c5_i32 = arith.constant 5 : i32
    %9 = arith.cmpi eq, %arg2, %c5_i32 : i32
    %10 = arith.extui %9 : i1 to i32
    %c0_i32_8 = arith.constant 0 : i32
    %11 = arith.cmpi ne, %10, %c0_i32_8 : i32
    scf.if %11 {
      %c0_9 = arith.constant 0 : index
      %c0_10 = arith.constant 0 : index
      %12 = vector.load %arg8[%c0_9, %c0_10] : memref<16x256xf32, #tpu.memory_space<vmem>>, vector<16x256xf32>
      %c0_11 = arith.constant 0 : index
      %c0_12 = arith.constant 0 : index
      %13 = vector.load %arg5[%c0_11, %c0_12] : memref<1x256xf32, #tpu.memory_space<vmem>>, vector<1x256xf32>
      %14 = vector.broadcast %13 : vector<1x256xf32> to vector<16x256xf32>
      %15 = arith.addf %12, %14 : vector<16x256xf32>
      %16 = arith.truncf %15 : vector<16x256xf32> to vector<16x256xbf16>
      %c0_13 = arith.constant 0 : index
      %c0_14 = arith.constant 0 : index
      %17 = vector.load %arg6[%c0_13, %c0_14] : memref<16x256xbf16, #tpu.memory_space<vmem>>, vector<16x256xbf16>
      tpu.vector_store %arg6[%c0_13, %c0_14], %16 {strides = array<i32>} : memref<16x256xbf16, #tpu.memory_space<vmem>>, vector<16x256xbf16>,
      %cst_15 = arith.constant dense<0.000000e+00> : vector<256xf32>
      %18 = vector.multi_reduction <add>, %12, %cst_15 [0] : vector<16x256xf32> to vector<256xf32>
      %19 = vector.shape_cast %18 : vector<256xf32> to vector<1x256xf32>
      %20 = arith.mulf %12, %12 : vector<16x256xf32>
      %cst_16 = arith.constant dense<0.000000e+00> : vector<256xf32>
      %21 = vector.multi_reduction <add>, %20, %cst_16 [0] : vector<16x256xf32> to vector<256xf32>
      %22 = vector.shape_cast %21 : vector<256xf32> to vector<1x256xf32>
      %23 = tpu.iota {dimensions = array<i32: 0>} : vector<8x256xi32>
      %c0_i32_17 = arith.constant 0 : i32
      %24 = vector.broadcast %c0_i32_17 : i32 to vector<8x256xi32>
      %25 = arith.cmpi eq, %23, %24 : vector<8x256xi32>
      %c1_i32 = arith.constant 1 : i32
      %26 = vector.broadcast %c1_i32 : i32 to vector<8x256xi32>
      %27 = arith.cmpi eq, %23, %26 : vector<8x256xi32>
      %cst_18 = arith.constant 0.000000e+00 : f32
      %28 = vector.shape_cast %22 : vector<1x256xf32> to vector<1x256xf32>
      %29 = vector.broadcast %28 : vector<1x256xf32> to vector<8x256xf32>
      %30 = vector.broadcast %cst_18 : f32 to vector<8x256xf32>
      %31 = arith.select %27, %29, %30 : vector<8x256xi1>, vector<8x256xf32>
      %32 = vector.shape_cast %19 : vector<1x256xf32> to vector<1x256xf32>
      %33 = vector.broadcast %32 : vector<1x256xf32> to vector<8x256xf32>
      %34 = arith.select %25, %33, %31 : vector<8x256xi1>, vector<8x256xf32>
      %35 = vector.shape_cast %34 : vector<8x256xf32> to vector<1x8x256xf32>
      %c0_19 = arith.constant 0 : index
      %c0_20 = arith.constant 0 : index
      %c0_21 = arith.constant 0 : index
      %36 = vector.load %arg7[%c0_19, %c0_20, %c0_21] : memref<1x8x256xf32, #tpu.memory_space<vmem>>, vector<1x8x256xf32>
      tpu.vector_store %arg7[%c0_19, %c0_20, %c0_21], %35 {strides = array<i32>} : memref<1x8x256xf32, #tpu.memory_space<vmem>>, vector<1x8x256xf32>,
    } else {
    }
    return
  }
  func.func @transform_0(%arg0: i32, %arg1: i32, %arg2: i32) -> (i32, i32) {
    %c0_i32 = arith.constant 0 : i32
    return %arg0, %arg2 : i32, i32
  }
  func.func @transform_1(%arg0: i32, %arg1: i32, %arg2: i32) -> (i32, i32) {
    %c0_i32 = arith.constant 0 : i32
    return %arg2, %arg1 : i32, i32
  }
  func.func @transform_2(%arg0: i32, %arg1: i32, %arg2: i32) -> (i32, i32) {
    %c0_i32 = arith.constant 0 : i32
    %c0_i32_0 = arith.constant 0 : i32
    return %c0_i32, %arg1 : i32, i32
  }
  func.func @transform_3(%arg0: i32, %arg1: i32, %arg2: i32) -> (i32, i32) {
    %c0_i32 = arith.constant 0 : i32
    return %arg0, %arg1 : i32, i32
  }
  func.func @transform_4(%arg0: i32, %arg1: i32, %arg2: i32) -> (i32, i32, i32) {
    %c0_i32 = arith.constant 0 : i32
    %c0_i32_0 = arith.constant 0 : i32
    return %arg0, %c0_i32, %arg1 : i32, i32, i32
  }
}

module attributes {stable_mosaic.version = 11 : i64} {
  func.func @_affine_relu_kernel(%arg0: i32, %arg1: i32, %arg2: memref<16x512xbf16, #tpu.memory_space<vmem>>, %arg3: memref<1x512xf32, #tpu.memory_space<vmem>>, %arg4: memref<1x512xf32, #tpu.memory_space<vmem>>, %arg5: memref<16x512xbf16, #tpu.memory_space<vmem>>) attributes {dimension_semantics = [#tpu.dimension_semantics<parallel>, #tpu.dimension_semantics<parallel>], iteration_bounds = array<i64: 1, 1>, scalar_prefetch = 0 : i64, scratch_operands = 0 : i64, tpu.core_type = #tpu.core_type<tc>, window_params = [{transform_indices = @transform_0, window_bounds = array<i64: 16, 512>}, {transform_indices = @transform_1, window_bounds = array<i64: 1, 512>}, {transform_indices = @transform_2, window_bounds = array<i64: 1, 512>}, {transform_indices = @transform_3, window_bounds = array<i64: 16, 512>}]} {
    %c0 = arith.constant 0 : index
    %c0_0 = arith.constant 0 : index
    %0 = vector.load %arg2[%c0, %c0_0] : memref<16x512xbf16, #tpu.memory_space<vmem>>, vector<16x512xbf16>
    %1 = arith.extf %0 : vector<16x512xbf16> to vector<16x512xf32>
    %c0_1 = arith.constant 0 : index
    %c0_2 = arith.constant 0 : index
    %2 = vector.load %arg3[%c0_1, %c0_2] : memref<1x512xf32, #tpu.memory_space<vmem>>, vector<1x512xf32>
    %3 = vector.broadcast %2 : vector<1x512xf32> to vector<16x512xf32>
    %4 = arith.mulf %1, %3 : vector<16x512xf32>
    %c0_3 = arith.constant 0 : index
    %c0_4 = arith.constant 0 : index
    %5 = vector.load %arg4[%c0_3, %c0_4] : memref<1x512xf32, #tpu.memory_space<vmem>>, vector<1x512xf32>
    %6 = vector.broadcast %5 : vector<1x512xf32> to vector<16x512xf32>
    %7 = arith.addf %4, %6 : vector<16x512xf32>
    %cst = arith.constant 0.000000e+00 : f32
    %8 = vector.broadcast %cst : f32 to vector<16x512xf32>
    %9 = arith.maximumf %7, %8 : vector<16x512xf32>
    %10 = arith.truncf %9 : vector<16x512xf32> to vector<16x512xbf16>
    %c0_5 = arith.constant 0 : index
    %c0_6 = arith.constant 0 : index
    %11 = vector.load %arg5[%c0_5, %c0_6] : memref<16x512xbf16, #tpu.memory_space<vmem>>, vector<16x512xbf16>
    tpu.vector_store %arg5[%c0_5, %c0_6], %10 {strides = array<i32>} : memref<16x512xbf16, #tpu.memory_space<vmem>>, vector<16x512xbf16>,
    return
  }
  func.func @transform_0(%arg0: i32, %arg1: i32) -> (i32, i32) {
    %c0_i32 = arith.constant 0 : i32
    return %arg0, %arg1 : i32, i32
  }
  func.func @transform_1(%arg0: i32, %arg1: i32) -> (i32, i32) {
    %c0_i32 = arith.constant 0 : i32
    %c0_i32_0 = arith.constant 0 : i32
    return %c0_i32, %arg1 : i32, i32
  }
  func.func @transform_2(%arg0: i32, %arg1: i32) -> (i32, i32) {
    %c0_i32 = arith.constant 0 : i32
    %c0_i32_0 = arith.constant 0 : i32
    return %c0_i32, %arg1 : i32, i32
  }
  func.func @transform_3(%arg0: i32, %arg1: i32) -> (i32, i32) {
    %c0_i32 = arith.constant 0 : i32
    return %arg0, %arg1 : i32, i32
  }
}

module attributes {stable_mosaic.version = 11 : i64} {
  func.func @kernel(%arg0: i32, %arg1: i32, %arg2: i32, %arg3: memref<16x384xbf16, #tpu.memory_space<vmem>>, %arg4: memref<16x384xbf16, #tpu.memory_space<vmem>>, %arg5: memref<384x256xbf16, #tpu.memory_space<vmem>>, %arg6: memref<384x256xbf16, #tpu.memory_space<vmem>>, %arg7: memref<1x256xf32, #tpu.memory_space<vmem>>, %arg8: memref<16x256xbf16, #tpu.memory_space<vmem>>, %arg9: memref<1x8x256xf32, #tpu.memory_space<vmem>>, %arg10: memref<16x256xf32, #tpu.memory_space<vmem>>) attributes {dimension_semantics = [#tpu.dimension_semantics<parallel>, #tpu.dimension_semantics<parallel>, #tpu.dimension_semantics<arbitrary>], iteration_bounds = array<i64: 1, 1, 3>, scalar_prefetch = 0 : i64, scratch_operands = 1 : i64, tpu.core_type = #tpu.core_type<tc>, window_params = [{transform_indices = @transform_0, window_bounds = array<i64: 16, 384>}, {transform_indices = @transform_1, window_bounds = array<i64: 16, 384>}, {transform_indices = @transform_2, window_bounds = array<i64: 384, 256>}, {transform_indices = @transform_3, window_bounds = array<i64: 384, 256>}, {transform_indices = @transform_4, window_bounds = array<i64: 1, 256>}, {transform_indices = @transform_5, window_bounds = array<i64: 16, 256>}, {transform_indices = @transform_6, window_bounds = array<i64: 1, 8, 256>}]} {
    %c0_i32 = arith.constant 0 : i32
    %0 = arith.cmpi eq, %arg2, %c0_i32 : i32
    %1 = arith.extui %0 : i1 to i32
    %c0_i32_0 = arith.constant 0 : i32
    %2 = arith.cmpi ne, %1, %c0_i32_0 : i32
    scf.if %2 {
      %cst_14 = arith.constant 0.000000e+00 : f32
      %16 = vector.broadcast %cst_14 : f32 to vector<16x256xf32>
      %c0_15 = arith.constant 0 : index
      %c0_16 = arith.constant 0 : index
      %17 = vector.load %arg10[%c0_15, %c0_16] : memref<16x256xf32, #tpu.memory_space<vmem>>, vector<16x256xf32>
      tpu.vector_store %arg10[%c0_15, %c0_16], %16 {strides = array<i32>} : memref<16x256xf32, #tpu.memory_space<vmem>>, vector<16x256xf32>,
    } else {
    }
    %c0 = arith.constant 0 : index
    %c0_1 = arith.constant 0 : index
    %3 = vector.load %arg3[%c0, %c0_1] : memref<16x384xbf16, #tpu.memory_space<vmem>>, vector<16x384xbf16>
    %c0_2 = arith.constant 0 : index
    %c0_3 = arith.constant 0 : index
    %4 = vector.load %arg5[%c0_2, %c0_3] : memref<384x256xbf16, #tpu.memory_space<vmem>>, vector<384x256xbf16>
    %cst = arith.constant dense<0.000000e+00> : vector<16x256xf32>
    %5 = tpu.matmul %3, %4, %cst {dimension_numbers = #tpu.dot_dimension_numbers<[1], [0], [0], [1], [0, 0, 1, 1], [], []>} : vector<16x384xbf16>, vector<384x256xbf16>, vector<16x256xf32> -> vector<16x256xf32>
    %c0_4 = arith.constant 0 : index
    %c0_5 = arith.constant 0 : index
    %6 = vector.load %arg4[%c0_4, %c0_5] : memref<16x384xbf16, #tpu.memory_space<vmem>>, vector<16x384xbf16>
    %c0_6 = arith.constant 0 : index
    %c0_7 = arith.constant 0 : index
    %7 = vector.load %arg6[%c0_6, %c0_7] : memref<384x256xbf16, #tpu.memory_space<vmem>>, vector<384x256xbf16>
    %cst_8 = arith.constant dense<0.000000e+00> : vector<16x256xf32>
    %8 = tpu.matmul %6, %7, %cst_8 {dimension_numbers = #tpu.dot_dimension_numbers<[1], [0], [0], [1], [0, 0, 1, 1], [], []>} : vector<16x384xbf16>, vector<384x256xbf16>, vector<16x256xf32> -> vector<16x256xf32>
    %9 = arith.addf %5, %8 : vector<16x256xf32>
    %c0_9 = arith.constant 0 : index
    %c0_10 = arith.constant 0 : index
    %10 = vector.load %arg10[%c0_9, %c0_10] : memref<16x256xf32, #tpu.memory_space<vmem>>, vector<16x256xf32>
    %11 = arith.addf %10, %9 : vector<16x256xf32>
    %c0_11 = arith.constant 0 : index
    %c0_12 = arith.constant 0 : index
    %12 = vector.load %arg10[%c0_11, %c0_12] : memref<16x256xf32, #tpu.memory_space<vmem>>, vector<16x256xf32>
    tpu.vector_store %arg10[%c0_11, %c0_12], %11 {strides = array<i32>} : memref<16x256xf32, #tpu.memory_space<vmem>>, vector<16x256xf32>,
    %c2_i32 = arith.constant 2 : i32
    %13 = arith.cmpi eq, %arg2, %c2_i32 : i32
    %14 = arith.extui %13 : i1 to i32
    %c0_i32_13 = arith.constant 0 : i32
    %15 = arith.cmpi ne, %14, %c0_i32_13 : i32
    scf.if %15 {
      %c0_14 = arith.constant 0 : index
      %c0_15 = arith.constant 0 : index
      %16 = vector.load %arg10[%c0_14, %c0_15] : memref<16x256xf32, #tpu.memory_space<vmem>>, vector<16x256xf32>
      %c0_16 = arith.constant 0 : index
      %c0_17 = arith.constant 0 : index
      %17 = vector.load %arg7[%c0_16, %c0_17] : memref<1x256xf32, #tpu.memory_space<vmem>>, vector<1x256xf32>
      %18 = vector.broadcast %17 : vector<1x256xf32> to vector<16x256xf32>
      %19 = arith.addf %16, %18 : vector<16x256xf32>
      %20 = arith.truncf %19 : vector<16x256xf32> to vector<16x256xbf16>
      %c0_18 = arith.constant 0 : index
      %c0_19 = arith.constant 0 : index
      %21 = vector.load %arg8[%c0_18, %c0_19] : memref<16x256xbf16, #tpu.memory_space<vmem>>, vector<16x256xbf16>
      tpu.vector_store %arg8[%c0_18, %c0_19], %20 {strides = array<i32>} : memref<16x256xbf16, #tpu.memory_space<vmem>>, vector<16x256xbf16>,
      %cst_20 = arith.constant dense<0.000000e+00> : vector<256xf32>
      %22 = vector.multi_reduction <add>, %16, %cst_20 [0] : vector<16x256xf32> to vector<256xf32>
      %23 = vector.shape_cast %22 : vector<256xf32> to vector<1x256xf32>
      %24 = arith.mulf %16, %16 : vector<16x256xf32>
      %cst_21 = arith.constant dense<0.000000e+00> : vector<256xf32>
      %25 = vector.multi_reduction <add>, %24, %cst_21 [0] : vector<16x256xf32> to vector<256xf32>
      %26 = vector.shape_cast %25 : vector<256xf32> to vector<1x256xf32>
      %27 = tpu.iota {dimensions = array<i32: 0>} : vector<8x256xi32>
      %c0_i32_22 = arith.constant 0 : i32
      %28 = vector.broadcast %c0_i32_22 : i32 to vector<8x256xi32>
      %29 = arith.cmpi eq, %27, %28 : vector<8x256xi32>
      %c1_i32 = arith.constant 1 : i32
      %30 = vector.broadcast %c1_i32 : i32 to vector<8x256xi32>
      %31 = arith.cmpi eq, %27, %30 : vector<8x256xi32>
      %cst_23 = arith.constant 0.000000e+00 : f32
      %32 = vector.shape_cast %26 : vector<1x256xf32> to vector<1x256xf32>
      %33 = vector.broadcast %32 : vector<1x256xf32> to vector<8x256xf32>
      %34 = vector.broadcast %cst_23 : f32 to vector<8x256xf32>
      %35 = arith.select %31, %33, %34 : vector<8x256xi1>, vector<8x256xf32>
      %36 = vector.shape_cast %23 : vector<1x256xf32> to vector<1x256xf32>
      %37 = vector.broadcast %36 : vector<1x256xf32> to vector<8x256xf32>
      %38 = arith.select %29, %37, %35 : vector<8x256xi1>, vector<8x256xf32>
      %39 = vector.shape_cast %38 : vector<8x256xf32> to vector<1x8x256xf32>
      %c0_24 = arith.constant 0 : index
      %c0_25 = arith.constant 0 : index
      %c0_26 = arith.constant 0 : index
      %40 = vector.load %arg9[%c0_24, %c0_25, %c0_26] : memref<1x8x256xf32, #tpu.memory_space<vmem>>, vector<1x8x256xf32>
      tpu.vector_store %arg9[%c0_24, %c0_25, %c0_26], %39 {strides = array<i32>} : memref<1x8x256xf32, #tpu.memory_space<vmem>>, vector<1x8x256xf32>,
    } else {
    }
    return
  }
  func.func @transform_0(%arg0: i32, %arg1: i32, %arg2: i32) -> (i32, i32) {
    %c0_i32 = arith.constant 0 : i32
    return %arg0, %arg2 : i32, i32
  }
  func.func @transform_1(%arg0: i32, %arg1: i32, %arg2: i32) -> (i32, i32) {
    %c0_i32 = arith.constant 0 : i32
    return %arg0, %arg2 : i32, i32
  }
  func.func @transform_2(%arg0: i32, %arg1: i32, %arg2: i32) -> (i32, i32) {
    %c0_i32 = arith.constant 0 : i32
    return %arg2, %arg1 : i32, i32
  }
  func.func @transform_3(%arg0: i32, %arg1: i32, %arg2: i32) -> (i32, i32) {
    %c0_i32 = arith.constant 0 : i32
    return %arg2, %arg1 : i32, i32
  }
  func.func @transform_4(%arg0: i32, %arg1: i32, %arg2: i32) -> (i32, i32) {
    %c0_i32 = arith.constant 0 : i32
    %c0_i32_0 = arith.constant 0 : i32
    return %c0_i32, %arg1 : i32, i32
  }
  func.func @transform_5(%arg0: i32, %arg1: i32, %arg2: i32) -> (i32, i32) {
    %c0_i32 = arith.constant 0 : i32
    return %arg0, %arg1 : i32, i32
  }
  func.func @transform_6(%arg0: i32, %arg1: i32, %arg2: i32) -> (i32, i32, i32) {
    %c0_i32 = arith.constant 0 : i32
    %c0_i32_0 = arith.constant 0 : i32
    return %arg0, %c0_i32, %arg1 : i32, i32, i32
  }
}

module attributes {stable_mosaic.version = 11 : i64} {
  func.func @kernel(%arg0: i32, %arg1: i32, %arg2: i32, %arg3: memref<32x384xbf16, #tpu.memory_space<vmem>>, %arg4: memref<32x384xbf16, #tpu.memory_space<vmem>>, %arg5: memref<384x128xbf16, #tpu.memory_space<vmem>>, %arg6: memref<384x128xbf16, #tpu.memory_space<vmem>>, %arg7: memref<1x128xf32, #tpu.memory_space<vmem>>, %arg8: memref<32x128xbf16, #tpu.memory_space<vmem>>, %arg9: memref<1x8x128xf32, #tpu.memory_space<vmem>>, %arg10: memref<32x128xf32, #tpu.memory_space<vmem>>) attributes {dimension_semantics = [#tpu.dimension_semantics<parallel>, #tpu.dimension_semantics<parallel>, #tpu.dimension_semantics<arbitrary>], iteration_bounds = array<i64: 1, 1, 2>, scalar_prefetch = 0 : i64, scratch_operands = 1 : i64, tpu.core_type = #tpu.core_type<tc>, window_params = [{transform_indices = @transform_0, window_bounds = array<i64: 32, 384>}, {transform_indices = @transform_1, window_bounds = array<i64: 32, 384>}, {transform_indices = @transform_2, window_bounds = array<i64: 384, 128>}, {transform_indices = @transform_3, window_bounds = array<i64: 384, 128>}, {transform_indices = @transform_4, window_bounds = array<i64: 1, 128>}, {transform_indices = @transform_5, window_bounds = array<i64: 32, 128>}, {transform_indices = @transform_6, window_bounds = array<i64: 1, 8, 128>}]} {
    %c0_i32 = arith.constant 0 : i32
    %0 = arith.cmpi eq, %arg2, %c0_i32 : i32
    %1 = arith.extui %0 : i1 to i32
    %c0_i32_0 = arith.constant 0 : i32
    %2 = arith.cmpi ne, %1, %c0_i32_0 : i32
    scf.if %2 {
      %cst_14 = arith.constant 0.000000e+00 : f32
      %16 = vector.broadcast %cst_14 : f32 to vector<32x128xf32>
      %c0_15 = arith.constant 0 : index
      %c0_16 = arith.constant 0 : index
      %17 = vector.load %arg10[%c0_15, %c0_16] : memref<32x128xf32, #tpu.memory_space<vmem>>, vector<32x128xf32>
      tpu.vector_store %arg10[%c0_15, %c0_16], %16 {strides = array<i32>} : memref<32x128xf32, #tpu.memory_space<vmem>>, vector<32x128xf32>,
    } else {
    }
    %c0 = arith.constant 0 : index
    %c0_1 = arith.constant 0 : index
    %3 = vector.load %arg3[%c0, %c0_1] : memref<32x384xbf16, #tpu.memory_space<vmem>>, vector<32x384xbf16>
    %c0_2 = arith.constant 0 : index
    %c0_3 = arith.constant 0 : index
    %4 = vector.load %arg5[%c0_2, %c0_3] : memref<384x128xbf16, #tpu.memory_space<vmem>>, vector<384x128xbf16>
    %cst = arith.constant dense<0.000000e+00> : vector<32x128xf32>
    %5 = tpu.matmul %3, %4, %cst {dimension_numbers = #tpu.dot_dimension_numbers<[1], [0], [0], [1], [0, 0, 1, 1], [], []>} : vector<32x384xbf16>, vector<384x128xbf16>, vector<32x128xf32> -> vector<32x128xf32>
    %c0_4 = arith.constant 0 : index
    %c0_5 = arith.constant 0 : index
    %6 = vector.load %arg4[%c0_4, %c0_5] : memref<32x384xbf16, #tpu.memory_space<vmem>>, vector<32x384xbf16>
    %c0_6 = arith.constant 0 : index
    %c0_7 = arith.constant 0 : index
    %7 = vector.load %arg6[%c0_6, %c0_7] : memref<384x128xbf16, #tpu.memory_space<vmem>>, vector<384x128xbf16>
    %cst_8 = arith.constant dense<0.000000e+00> : vector<32x128xf32>
    %8 = tpu.matmul %6, %7, %cst_8 {dimension_numbers = #tpu.dot_dimension_numbers<[1], [0], [0], [1], [0, 0, 1, 1], [], []>} : vector<32x384xbf16>, vector<384x128xbf16>, vector<32x128xf32> -> vector<32x128xf32>
    %9 = arith.addf %5, %8 : vector<32x128xf32>
    %c0_9 = arith.constant 0 : index
    %c0_10 = arith.constant 0 : index
    %10 = vector.load %arg10[%c0_9, %c0_10] : memref<32x128xf32, #tpu.memory_space<vmem>>, vector<32x128xf32>
    %11 = arith.addf %10, %9 : vector<32x128xf32>
    %c0_11 = arith.constant 0 : index
    %c0_12 = arith.constant 0 : index
    %12 = vector.load %arg10[%c0_11, %c0_12] : memref<32x128xf32, #tpu.memory_space<vmem>>, vector<32x128xf32>
    tpu.vector_store %arg10[%c0_11, %c0_12], %11 {strides = array<i32>} : memref<32x128xf32, #tpu.memory_space<vmem>>, vector<32x128xf32>,
    %c1_i32 = arith.constant 1 : i32
    %13 = arith.cmpi eq, %arg2, %c1_i32 : i32
    %14 = arith.extui %13 : i1 to i32
    %c0_i32_13 = arith.constant 0 : i32
    %15 = arith.cmpi ne, %14, %c0_i32_13 : i32
    scf.if %15 {
      %c0_14 = arith.constant 0 : index
      %c0_15 = arith.constant 0 : index
      %16 = vector.load %arg10[%c0_14, %c0_15] : memref<32x128xf32, #tpu.memory_space<vmem>>, vector<32x128xf32>
      %c0_16 = arith.constant 0 : index
      %c0_17 = arith.constant 0 : index
      %17 = vector.load %arg7[%c0_16, %c0_17] : memref<1x128xf32, #tpu.memory_space<vmem>>, vector<1x128xf32>
      %18 = vector.broadcast %17 : vector<1x128xf32> to vector<32x128xf32>
      %19 = arith.addf %16, %18 : vector<32x128xf32>
      %20 = arith.truncf %19 : vector<32x128xf32> to vector<32x128xbf16>
      %c0_18 = arith.constant 0 : index
      %c0_19 = arith.constant 0 : index
      %21 = vector.load %arg8[%c0_18, %c0_19] : memref<32x128xbf16, #tpu.memory_space<vmem>>, vector<32x128xbf16>
      tpu.vector_store %arg8[%c0_18, %c0_19], %20 {strides = array<i32>} : memref<32x128xbf16, #tpu.memory_space<vmem>>, vector<32x128xbf16>,
      %cst_20 = arith.constant dense<0.000000e+00> : vector<128xf32>
      %22 = vector.multi_reduction <add>, %16, %cst_20 [0] : vector<32x128xf32> to vector<128xf32>
      %23 = vector.shape_cast %22 : vector<128xf32> to vector<1x128xf32>
      %24 = arith.mulf %16, %16 : vector<32x128xf32>
      %cst_21 = arith.constant dense<0.000000e+00> : vector<128xf32>
      %25 = vector.multi_reduction <add>, %24, %cst_21 [0] : vector<32x128xf32> to vector<128xf32>
      %26 = vector.shape_cast %25 : vector<128xf32> to vector<1x128xf32>
      %27 = tpu.iota {dimensions = array<i32: 0>} : vector<8x128xi32>
      %c0_i32_22 = arith.constant 0 : i32
      %28 = vector.broadcast %c0_i32_22 : i32 to vector<8x128xi32>
      %29 = arith.cmpi eq, %27, %28 : vector<8x128xi32>
      %c1_i32_23 = arith.constant 1 : i32
      %30 = vector.broadcast %c1_i32_23 : i32 to vector<8x128xi32>
      %31 = arith.cmpi eq, %27, %30 : vector<8x128xi32>
      %cst_24 = arith.constant 0.000000e+00 : f32
      %32 = vector.shape_cast %26 : vector<1x128xf32> to vector<1x128xf32>
      %33 = vector.broadcast %32 : vector<1x128xf32> to vector<8x128xf32>
      %34 = vector.broadcast %cst_24 : f32 to vector<8x128xf32>
      %35 = arith.select %31, %33, %34 : vector<8x128xi1>, vector<8x128xf32>
      %36 = vector.shape_cast %23 : vector<1x128xf32> to vector<1x128xf32>
      %37 = vector.broadcast %36 : vector<1x128xf32> to vector<8x128xf32>
      %38 = arith.select %29, %37, %35 : vector<8x128xi1>, vector<8x128xf32>
      %39 = vector.shape_cast %38 : vector<8x128xf32> to vector<1x8x128xf32>
      %c0_25 = arith.constant 0 : index
      %c0_26 = arith.constant 0 : index
      %c0_27 = arith.constant 0 : index
      %40 = vector.load %arg9[%c0_25, %c0_26, %c0_27] : memref<1x8x128xf32, #tpu.memory_space<vmem>>, vector<1x8x128xf32>
      tpu.vector_store %arg9[%c0_25, %c0_26, %c0_27], %39 {strides = array<i32>} : memref<1x8x128xf32, #tpu.memory_space<vmem>>, vector<1x8x128xf32>,
    } else {
    }
    return
  }
  func.func @transform_0(%arg0: i32, %arg1: i32, %arg2: i32) -> (i32, i32) {
    %c0_i32 = arith.constant 0 : i32
    return %arg0, %arg2 : i32, i32
  }
  func.func @transform_1(%arg0: i32, %arg1: i32, %arg2: i32) -> (i32, i32) {
    %c0_i32 = arith.constant 0 : i32
    return %arg0, %arg2 : i32, i32
  }
  func.func @transform_2(%arg0: i32, %arg1: i32, %arg2: i32) -> (i32, i32) {
    %c0_i32 = arith.constant 0 : i32
    return %arg2, %arg1 : i32, i32
  }
  func.func @transform_3(%arg0: i32, %arg1: i32, %arg2: i32) -> (i32, i32) {
    %c0_i32 = arith.constant 0 : i32
    return %arg2, %arg1 : i32, i32
  }
  func.func @transform_4(%arg0: i32, %arg1: i32, %arg2: i32) -> (i32, i32) {
    %c0_i32 = arith.constant 0 : i32
    %c0_i32_0 = arith.constant 0 : i32
    return %c0_i32, %arg1 : i32, i32
  }
  func.func @transform_5(%arg0: i32, %arg1: i32, %arg2: i32) -> (i32, i32) {
    %c0_i32 = arith.constant 0 : i32
    return %arg0, %arg1 : i32, i32
  }
  func.func @transform_6(%arg0: i32, %arg1: i32, %arg2: i32) -> (i32, i32, i32) {
    %c0_i32 = arith.constant 0 : i32
    %c0_i32_0 = arith.constant 0 : i32
    return %arg0, %c0_i32, %arg1 : i32, i32, i32
  }
}

module attributes {stable_mosaic.version = 11 : i64} {
  func.func @kernel(%arg0: i32, %arg1: i32, %arg2: i32, %arg3: memref<128x384xbf16, #tpu.memory_space<vmem>>, %arg4: memref<128x384xbf16, #tpu.memory_space<vmem>>, %arg5: memref<384x128xbf16, #tpu.memory_space<vmem>>, %arg6: memref<384x128xbf16, #tpu.memory_space<vmem>>, %arg7: memref<1x128xf32, #tpu.memory_space<vmem>>, %arg8: memref<128x128xf32, #tpu.memory_space<vmem>>, %arg9: memref<1x8x128xf32, #tpu.memory_space<vmem>>, %arg10: memref<128x128xf32, #tpu.memory_space<vmem>>) attributes {dimension_semantics = [#tpu.dimension_semantics<parallel>, #tpu.dimension_semantics<parallel>, #tpu.dimension_semantics<arbitrary>], iteration_bounds = array<i64: 1, 1, 1>, scalar_prefetch = 0 : i64, scratch_operands = 1 : i64, tpu.core_type = #tpu.core_type<tc>, window_params = [{transform_indices = @transform_0, window_bounds = array<i64: 128, 384>}, {transform_indices = @transform_1, window_bounds = array<i64: 128, 384>}, {transform_indices = @transform_2, window_bounds = array<i64: 384, 128>}, {transform_indices = @transform_3, window_bounds = array<i64: 384, 128>}, {transform_indices = @transform_4, window_bounds = array<i64: 1, 128>}, {transform_indices = @transform_5, window_bounds = array<i64: 128, 128>}, {transform_indices = @transform_6, window_bounds = array<i64: 1, 8, 128>}]} {
    %c0_i32 = arith.constant 0 : i32
    %0 = arith.cmpi eq, %arg2, %c0_i32 : i32
    %1 = arith.extui %0 : i1 to i32
    %c0_i32_0 = arith.constant 0 : i32
    %2 = arith.cmpi ne, %1, %c0_i32_0 : i32
    scf.if %2 {
      %cst_15 = arith.constant 0.000000e+00 : f32
      %16 = vector.broadcast %cst_15 : f32 to vector<128x128xf32>
      %c0_16 = arith.constant 0 : index
      %c0_17 = arith.constant 0 : index
      %17 = vector.load %arg10[%c0_16, %c0_17] : memref<128x128xf32, #tpu.memory_space<vmem>>, vector<128x128xf32>
      tpu.vector_store %arg10[%c0_16, %c0_17], %16 {strides = array<i32>} : memref<128x128xf32, #tpu.memory_space<vmem>>, vector<128x128xf32>,
    } else {
    }
    %c0 = arith.constant 0 : index
    %c0_1 = arith.constant 0 : index
    %3 = vector.load %arg3[%c0, %c0_1] : memref<128x384xbf16, #tpu.memory_space<vmem>>, vector<128x384xbf16>
    %c0_2 = arith.constant 0 : index
    %c0_3 = arith.constant 0 : index
    %4 = vector.load %arg5[%c0_2, %c0_3] : memref<384x128xbf16, #tpu.memory_space<vmem>>, vector<384x128xbf16>
    %cst = arith.constant dense<0.000000e+00> : vector<128x128xf32>
    %5 = tpu.matmul %3, %4, %cst {dimension_numbers = #tpu.dot_dimension_numbers<[1], [0], [0], [1], [0, 0, 1, 1], [], []>} : vector<128x384xbf16>, vector<384x128xbf16>, vector<128x128xf32> -> vector<128x128xf32>
    %c0_4 = arith.constant 0 : index
    %c0_5 = arith.constant 0 : index
    %6 = vector.load %arg4[%c0_4, %c0_5] : memref<128x384xbf16, #tpu.memory_space<vmem>>, vector<128x384xbf16>
    %c0_6 = arith.constant 0 : index
    %c0_7 = arith.constant 0 : index
    %7 = vector.load %arg6[%c0_6, %c0_7] : memref<384x128xbf16, #tpu.memory_space<vmem>>, vector<384x128xbf16>
    %cst_8 = arith.constant dense<0.000000e+00> : vector<128x128xf32>
    %8 = tpu.matmul %6, %7, %cst_8 {dimension_numbers = #tpu.dot_dimension_numbers<[1], [0], [0], [1], [0, 0, 1, 1], [], []>} : vector<128x384xbf16>, vector<384x128xbf16>, vector<128x128xf32> -> vector<128x128xf32>
    %9 = arith.addf %5, %8 : vector<128x128xf32>
    %c0_9 = arith.constant 0 : index
    %c0_10 = arith.constant 0 : index
    %10 = vector.load %arg10[%c0_9, %c0_10] : memref<128x128xf32, #tpu.memory_space<vmem>>, vector<128x128xf32>
    %11 = arith.addf %10, %9 : vector<128x128xf32>
    %c0_11 = arith.constant 0 : index
    %c0_12 = arith.constant 0 : index
    %12 = vector.load %arg10[%c0_11, %c0_12] : memref<128x128xf32, #tpu.memory_space<vmem>>, vector<128x128xf32>
    tpu.vector_store %arg10[%c0_11, %c0_12], %11 {strides = array<i32>} : memref<128x128xf32, #tpu.memory_space<vmem>>, vector<128x128xf32>,
    %c0_i32_13 = arith.constant 0 : i32
    %13 = arith.cmpi eq, %arg2, %c0_i32_13 : i32
    %14 = arith.extui %13 : i1 to i32
    %c0_i32_14 = arith.constant 0 : i32
    %15 = arith.cmpi ne, %14, %c0_i32_14 : i32
    scf.if %15 {
      %c0_15 = arith.constant 0 : index
      %c0_16 = arith.constant 0 : index
      %16 = vector.load %arg10[%c0_15, %c0_16] : memref<128x128xf32, #tpu.memory_space<vmem>>, vector<128x128xf32>
      %c0_17 = arith.constant 0 : index
      %c0_18 = arith.constant 0 : index
      %17 = vector.load %arg7[%c0_17, %c0_18] : memref<1x128xf32, #tpu.memory_space<vmem>>, vector<1x128xf32>
      %18 = vector.broadcast %17 : vector<1x128xf32> to vector<128x128xf32>
      %19 = arith.addf %16, %18 : vector<128x128xf32>
      %c0_19 = arith.constant 0 : index
      %c0_20 = arith.constant 0 : index
      %20 = vector.load %arg8[%c0_19, %c0_20] : memref<128x128xf32, #tpu.memory_space<vmem>>, vector<128x128xf32>
      tpu.vector_store %arg8[%c0_19, %c0_20], %19 {strides = array<i32>} : memref<128x128xf32, #tpu.memory_space<vmem>>, vector<128x128xf32>,
      %cst_21 = arith.constant dense<0.000000e+00> : vector<128xf32>
      %21 = vector.multi_reduction <add>, %16, %cst_21 [0] : vector<128x128xf32> to vector<128xf32>
      %22 = vector.shape_cast %21 : vector<128xf32> to vector<1x128xf32>
      %23 = arith.mulf %16, %16 : vector<128x128xf32>
      %cst_22 = arith.constant dense<0.000000e+00> : vector<128xf32>
      %24 = vector.multi_reduction <add>, %23, %cst_22 [0] : vector<128x128xf32> to vector<128xf32>
      %25 = vector.shape_cast %24 : vector<128xf32> to vector<1x128xf32>
      %26 = tpu.iota {dimensions = array<i32: 0>} : vector<8x128xi32>
      %c0_i32_23 = arith.constant 0 : i32
      %27 = vector.broadcast %c0_i32_23 : i32 to vector<8x128xi32>
      %28 = arith.cmpi eq, %26, %27 : vector<8x128xi32>
      %c1_i32 = arith.constant 1 : i32
      %29 = vector.broadcast %c1_i32 : i32 to vector<8x128xi32>
      %30 = arith.cmpi eq, %26, %29 : vector<8x128xi32>
      %cst_24 = arith.constant 0.000000e+00 : f32
      %31 = vector.shape_cast %25 : vector<1x128xf32> to vector<1x128xf32>
      %32 = vector.broadcast %31 : vector<1x128xf32> to vector<8x128xf32>
      %33 = vector.broadcast %cst_24 : f32 to vector<8x128xf32>
      %34 = arith.select %30, %32, %33 : vector<8x128xi1>, vector<8x128xf32>
      %35 = vector.shape_cast %22 : vector<1x128xf32> to vector<1x128xf32>
      %36 = vector.broadcast %35 : vector<1x128xf32> to vector<8x128xf32>
      %37 = arith.select %28, %36, %34 : vector<8x128xi1>, vector<8x128xf32>
      %38 = vector.shape_cast %37 : vector<8x128xf32> to vector<1x8x128xf32>
      %c0_25 = arith.constant 0 : index
      %c0_26 = arith.constant 0 : index
      %c0_27 = arith.constant 0 : index
      %39 = vector.load %arg9[%c0_25, %c0_26, %c0_27] : memref<1x8x128xf32, #tpu.memory_space<vmem>>, vector<1x8x128xf32>
      tpu.vector_store %arg9[%c0_25, %c0_26, %c0_27], %38 {strides = array<i32>} : memref<1x8x128xf32, #tpu.memory_space<vmem>>, vector<1x8x128xf32>,
    } else {
    }
    return
  }
  func.func @transform_0(%arg0: i32, %arg1: i32, %arg2: i32) -> (i32, i32) {
    %c0_i32 = arith.constant 0 : i32
    return %arg0, %arg2 : i32, i32
  }
  func.func @transform_1(%arg0: i32, %arg1: i32, %arg2: i32) -> (i32, i32) {
    %c0_i32 = arith.constant 0 : i32
    return %arg0, %arg2 : i32, i32
  }
  func.func @transform_2(%arg0: i32, %arg1: i32, %arg2: i32) -> (i32, i32) {
    %c0_i32 = arith.constant 0 : i32
    return %arg2, %arg1 : i32, i32
  }
  func.func @transform_3(%arg0: i32, %arg1: i32, %arg2: i32) -> (i32, i32) {
    %c0_i32 = arith.constant 0 : i32
    return %arg2, %arg1 : i32, i32
  }
  func.func @transform_4(%arg0: i32, %arg1: i32, %arg2: i32) -> (i32, i32) {
    %c0_i32 = arith.constant 0 : i32
    %c0_i32_0 = arith.constant 0 : i32
    return %c0_i32, %arg1 : i32, i32
  }
  func.func @transform_5(%arg0: i32, %arg1: i32, %arg2: i32) -> (i32, i32) {
    %c0_i32 = arith.constant 0 : i32
    return %arg0, %arg1 : i32, i32
  }
  func.func @transform_6(%arg0: i32, %arg1: i32, %arg2: i32) -> (i32, i32, i32) {
    %c0_i32 = arith.constant 0 : i32
    %c0_i32_0 = arith.constant 0 : i32
    return %arg0, %c0_i32, %arg1 : i32, i32, i32
  }
}

</mosaic_0001>

<llo_original>
// kernel: denoising_genius_forward.16
$region0: #{denoising_genius_forward.16}
  #allocation0 [shape = 'u32[]', space=smem, size = 0x4, offset = 0x4, fixed_abs, tag = 'smem constant byte address 0x4 - core index']
  #allocation1 [shape = 'u32[144,128]{1,0:T(1,128)}', space=vmem, size = 0x12000, scoped, tag = 'internal scratch']
  %s0 = inlined_call_operand.vmem [shape: bf16[128,128], index: 0, kind: input, shape index: {}]
  %s1 = inlined_call_operand.vmem [shape: f32[1,128], index: 1, kind: input, shape index: {}]
  %s2 = inlined_call_operand.vmem [shape: f32[1,128], index: 2, kind: input, shape index: {}]
  %s3 = inlined_call_operand.vmem [shape: bf16[128,128], index: 3, kind: output, shape index: {}]
  %s4 = sld [smem:[#allocation0]]
  $region22: #{denoising_genius_forward.16} parent=0
    _
  %s6 = ssub.s32 1, %s4
  %s7 = scalar_select 0, %s6, %s4
  // Predicated region
  $region2: #{denoising_genius_forward.16} parent=0 // pred_check
    _
  $region3: #{denoising_genius_forward.16} parent=0 // pred_check_branch
    %9 = sbr.rel (0) target = $region5
  $region4: #{denoising_genius_forward.16} parent=0 // pred_region
    _
  $region5: #{denoising_genius_forward.16} parent=0 // pred_fallthru
    _
  // Predicated region
  $region6: #{denoising_genius_forward.16} parent=0 // pred_check
    _
  $region7: #{denoising_genius_forward.16} parent=0 // pred_check_branch
    %11 = sbr.rel (0) target = $region9
  $region8: #{denoising_genius_forward.16} parent=0 // pred_region
    _
  $region9: #{denoising_genius_forward.16} parent=0 // pred_fallthru
    _
  // Predicated region
  $region10: #{denoising_genius_forward.16} parent=0 // pred_check
    _
  $region11: #{denoising_genius_forward.16} parent=0 // pred_check_branch
    %13 = sbr.rel (0) target = $region13
  $region12: #{denoising_genius_forward.16} parent=0 // pred_region
    _
  $region13: #{denoising_genius_forward.16} parent=0 // pred_fallthru
    _
  %v14 = vld [vmem:[%s0] sm:$0xf]
  %v15 = vld [vmem:[%s0 + $0x4] sm:$0xf]
  %v16 = vld [vmem:[%s0 + $0x8] sm:$0xf]
  %v17 = vld [vmem:[%s0 + $0xc] sm:$0xf]
  %v18 = vld [vmem:[%s0 + $0x10] sm:$0xf]
  %v19 = vld [vmem:[%s0 + $0x14] sm:$0xf]
  %v20 = vld [vmem:[%s0 + $0x18] sm:$0xf]
  %v21 = vld [vmem:[%s0 + $0x1c] sm:$0xf]
  %v22 = vld [vmem:[%s0 + $0x20] sm:$0xf]
  %v23 = vld [vmem:[%s0 + $0x24] sm:$0xf]
  %v24 = vld [vmem:[%s0 + $0x28] sm:$0xf]
  %v25 = vld [vmem:[%s0 + $0x2c] sm:$0xf]
  %v26 = vld [vmem:[%s0 + $0x30] sm:$0xf]
  %v27 = vld [vmem:[%s0 + $0x34] sm:$0xf]
  %v28 = vld [vmem:[%s0 + $0x38] sm:$0xf]
  %v29 = vld [vmem:[%s0 + $0x3c] sm:$0xf]
  %v30 = vunpack.c.l.bf16 %v14
  %v31 = vunpack.c.l.bf16 %v15
  %v32 = vunpack.c.l.bf16 %v16
  %v33 = vunpack.c.l.bf16 %v17
  %v34 = vunpack.c.l.bf16 %v18
  %v35 = vunpack.c.l.bf16 %v19
  %v36 = vunpack.c.l.bf16 %v20
  %v37 = vunpack.c.l.bf16 %v21
  %v38 = vunpack.c.l.bf16 %v22
  %v39 = vunpack.c.l.bf16 %v23
  %v40 = vunpack.c.l.bf16 %v24
  %v41 = vunpack.c.l.bf16 %v25
  %v42 = vunpack.c.l.bf16 %v26
  %v43 = vunpack.c.l.bf16 %v27
  %v44 = vunpack.c.l.bf16 %v28
  %v45 = vunpack.c.l.bf16 %v29
  %v46 = vld [vmem:[%s1] sm:$0x1]
  %v48 = vlaneseq
  %v49 = vshrl.u32 %v48, 7
  %v50 = vsub.s32 0, %v49
  %v51 = vrot.slane %v46, %v50
  %v53 = vmul.f32 %v30, %v51
  %v54 = vmul.f32 %v31, %v51
  %v55 = vmul.f32 %v32, %v51
  %v56 = vmul.f32 %v33, %v51
  %v57 = vmul.f32 %v34, %v51
  %v58 = vmul.f32 %v35, %v51
  %v59 = vmul.f32 %v36, %v51
  %v60 = vmul.f32 %v37, %v51
  %v61 = vmul.f32 %v38, %v51
  %v62 = vmul.f32 %v39, %v51
  %v63 = vmul.f32 %v40, %v51
  %v64 = vmul.f32 %v41, %v51
  %v65 = vmul.f32 %v42, %v51
  %v66 = vmul.f32 %v43, %v51
  %v67 = vmul.f32 %v44, %v51
  %v68 = vmul.f32 %v45, %v51
  %v69 = vld [vmem:[%s2] sm:$0x1]
  %v71 = vlaneseq
  %v72 = vshrl.u32 %v71, 7
  %v73 = vsub.s32 0, %v72
  %v74 = vrot.slane %v69, %v73
  %v76 = vadd.f32 %v53, %v74
  %v77 = vadd.f32 %v54, %v74
  %v78 = vadd.f32 %v55, %v74
  %v79 = vadd.f32 %v56, %v74
  %v80 = vadd.f32 %v57, %v74
  %v81 = vadd.f32 %v58, %v74
  %v82 = vadd.f32 %v59, %v74
  %v83 = vadd.f32 %v60, %v74
  %v84 = vadd.f32 %v61, %v74
  %v85 = vadd.f32 %v62, %v74
  %v86 = vadd.f32 %v63, %v74
  %v87 = vadd.f32 %v64, %v74
  %v88 = vadd.f32 %v65, %v74
  %v89 = vadd.f32 %v66, %v74
  %v90 = vadd.f32 %v67, %v74
  %v91 = vadd.f32 %v68, %v74
  %v92 = vmax.f32 %v76, 0.0
  %v93 = vmax.f32 %v77, 0.0
  %v94 = vmax.f32 %v78, 0.0
  %v95 = vmax.f32 %v79, 0.0
  %v96 = vmax.f32 %v80, 0.0
  %v97 = vmax.f32 %v81, 0.0
  %v98 = vmax.f32 %v82, 0.0
  %v99 = vmax.f32 %v83, 0.0
  %v100 = vmax.f32 %v84, 0.0
  %v101 = vmax.f32 %v85, 0.0
  %v102 = vmax.f32 %v86, 0.0
  %v103 = vmax.f32 %v87, 0.0
  %v104 = vmax.f32 %v88, 0.0
  %v105 = vmax.f32 %v89, 0.0
  %v106 = vmax.f32 %v90, 0.0
  %v107 = vmax.f32 %v91, 0.0
  %v108 = vpack.c.bf16 %v93, %v92
  %v109 = vpack.c.bf16 %v95, %v94
  %v110 = vpack.c.bf16 %v97, %v96
  %v111 = vpack.c.bf16 %v99, %v98
  %v112 = vpack.c.bf16 %v101, %v100
  %v113 = vpack.c.bf16 %v103, %v102
  %v114 = vpack.c.bf16 %v105, %v104
  %v115 = vpack.c.bf16 %v107, %v106
  %v124 = vunpack.c.l.b16 %v108
  %v125 = vunpack.c.h.b16 %v108
  %v126 = vunpack.c.l.b16 %v109
  %v127 = vunpack.c.h.b16 %v109
  %v128 = vunpack.c.l.b16 %v110
  %v129 = vunpack.c.h.b16 %v110
  %v130 = vunpack.c.l.b16 %v111
  %v131 = vunpack.c.h.b16 %v111
  %v132 = vunpack.c.l.b16 %v112
  %v133 = vunpack.c.h.b16 %v112
  %v134 = vunpack.c.l.b16 %v113
  %v135 = vunpack.c.h.b16 %v113
  %v136 = vunpack.c.l.b16 %v114
  %v137 = vunpack.c.h.b16 %v114
  %v138 = vunpack.c.l.b16 %v115
  %v139 = vunpack.c.h.b16 %v115
  %v140 = vpack.c.b16 %v124, %v124
  %v141 = vpack.c.b16 %v125, %v125
  %v142 = vpack.c.b16 %v126, %v126
  %v143 = vpack.c.b16 %v127, %v127
  %v144 = vpack.c.b16 %v128, %v128
  %v145 = vpack.c.b16 %v129, %v129
  %v146 = vpack.c.b16 %v130, %v130
  %v147 = vpack.c.b16 %v131, %v131
  %v148 = vpack.c.b16 %v132, %v132
  %v149 = vpack.c.b16 %v133, %v133
  %v150 = vpack.c.b16 %v134, %v134
  %v151 = vpack.c.b16 %v135, %v135
  %v152 = vpack.c.b16 %v136, %v136
  %v153 = vpack.c.b16 %v137, %v137
  %v154 = vpack.c.b16 %v138, %v138
  %v155 = vpack.c.b16 %v139, %v139
  %172 = vst [vmem:[%s3] sm:$0xf] %v140
  %173 = vst [vmem:[%s3 + $0x4] sm:$0xf] %v141
  %174 = vst [vmem:[%s3 + $0x8] sm:$0xf] %v142
  %175 = vst [vmem:[%s3 + $0xc] sm:$0xf] %v143
  %176 = vst [vmem:[%s3 + $0x10] sm:$0xf] %v144
  %177 = vst [vmem:[%s3 + $0x14] sm:$0xf] %v145
  %178 = vst [vmem:[%s3 + $0x18] sm:$0xf] %v146
  %179 = vst [vmem:[%s3 + $0x1c] sm:$0xf] %v147
  %180 = vst [vmem:[%s3 + $0x20] sm:$0xf] %v148
  %181 = vst [vmem:[%s3 + $0x24] sm:$0xf] %v149
  %182 = vst [vmem:[%s3 + $0x28] sm:$0xf] %v150
  %183 = vst [vmem:[%s3 + $0x2c] sm:$0xf] %v151
  %184 = vst [vmem:[%s3 + $0x30] sm:$0xf] %v152
  %185 = vst [vmem:[%s3 + $0x34] sm:$0xf] %v153
  %186 = vst [vmem:[%s3 + $0x38] sm:$0xf] %v154
  %187 = vst [vmem:[%s3 + $0x3c] sm:$0xf] %v155
  // Predicated region
  $region14: #{denoising_genius_forward.16} parent=0 // pred_check
    _
  $region15: #{denoising_genius_forward.16} parent=0 // pred_check_branch
    %189 = sbr.rel (0) target = $region17
  $region16: #{denoising_genius_forward.16} parent=0 // pred_region
    _
  $region17: #{denoising_genius_forward.16} parent=0 // pred_fallthru
    _
  // Predicated region
  $region18: #{denoising_genius_forward.16} parent=0 // pred_check
    _
  $region19: #{denoising_genius_forward.16} parent=0 // pred_check_branch
    %191 = sbr.rel (0) target = $region21
  $region20: #{denoising_genius_forward.16} parent=0 // pred_region
    _
  $region21: #{denoising_genius_forward.16} parent=0 // pred_fallthru
    _

// kernel: denoising_genius_forward.15
$region0: #{denoising_genius_forward.15}
  #allocation0 [shape = 'u32[]', space=smem, size = 0x4, offset = 0x4, fixed_abs, tag = 'smem constant byte address 0x4 - core index']
  #allocation1 [shape = 'u32[144,128]{1,0:T(1,128)}', space=vmem, size = 0x12000, scoped, tag = 'internal scratch']
  #allocation2 [shape = 'f32[128,128]{1,0:T(8,128)}', space=vmem, size = 0x10000, scoped, tag = 'scratch operand']
  %s0 = inlined_call_operand.vmem [shape: bf16[128,128], index: 0, kind: input, shape index: {}]
  %s1 = inlined_call_operand.vmem [shape: bf16[128,128], index: 1, kind: input, shape index: {}]
  %s2 = inlined_call_operand.vmem [shape: f32[1,128], index: 2, kind: input, shape index: {}]
  %s3 = inlined_call_operand.vmem [shape: bf16[128,128], index: 3, kind: output, shape index: {0}]
  %s4 = inlined_call_operand.vmem [shape: f32[1,8,128], index: 4, kind: output, shape index: {1}]
  %5 = xla_tuple %s3, %s4
  %s6 = sld [smem:[#allocation0]]
  $region38: #{denoising_genius_forward.15} parent=0
    _
  %s8 = ssub.s32 1, %s6
  %s9 = scalar_select 0, %s8, %s6
  // Predicated region
  $region2: #{denoising_genius_forward.15} parent=0 // pred_check
    _
  $region3: #{denoising_genius_forward.15} parent=0 // pred_check_branch
    %11 = sbr.rel (0) target = $region5
  $region4: #{denoising_genius_forward.15} parent=0 // pred_region
    _
  $region5: #{denoising_genius_forward.15} parent=0 // pred_fallthru
    _
  // Predicated region
  $region6: #{denoising_genius_forward.15} parent=0 // pred_check
    _
  $region7: #{denoising_genius_forward.15} parent=0 // pred_check_branch
    %13 = sbr.rel (0) target = $region9
  $region8: #{denoising_genius_forward.15} parent=0 // pred_region
    _
  $region9: #{denoising_genius_forward.15} parent=0 // pred_fallthru
    _
  // Predicated region
  $region10: #{denoising_genius_forward.15} parent=0 // pred_check
    _
  $region11: #{denoising_genius_forward.15} parent=0 // pred_check_branch
    %15 = sbr.rel (0) target = $region13
  $region12: #{denoising_genius_forward.15} parent=0 // pred_region
    _
  $region13: #{denoising_genius_forward.15} parent=0 // pred_fallthru
    _
  %p17 = scmp.eq.s32.totalorder 0, 0
  // Predicated region
  $region14: #{denoising_genius_forward.15} parent=0 // pred_check
    %p18 = pneg %p17
  $region15: #{denoising_genius_forward.15} parent=0 // pred_check_branch
    %20 = sbr.rel (%p18) target = $region17
  $region16: #{denoising_genius_forward.15} parent=0 // pred_region
    %21 = vst [vmem:[#allocation2] sm:$0xff] 0.0
    %22 = vst [vmem:[#allocation2 + $0x8] sm:$0xff] 0.0
    %23 = vst [vmem:[#allocation2 + $0x10] sm:$0xff] 0.0
    %24 = vst [vmem:[#allocation2 + $0x18] sm:$0xff] 0.0
    %25 = vst [vmem:[#allocation2 + $0x20] sm:$0xff] 0.0
    %26 = vst [vmem:[#allocation2 + $0x28] sm:$0xff] 0.0
    %27 = vst [vmem:[#allocation2 + $0x30] sm:$0xff] 0.0
    %28 = vst [vmem:[#allocation2 + $0x38] sm:$0xff] 0.0
    %29 = vst [vmem:[#allocation2 + $0x40] sm:$0xff] 0.0
    %30 = vst [vmem:[#allocation2 + $0x48] sm:$0xff] 0.0
    %31 = vst [vmem:[#allocation2 + $0x50] sm:$0xff] 0.0
    %32 = vst [vmem:[#allocation2 + $0x58] sm:$0xff] 0.0
    %33 = vst [vmem:[#allocation2 + $0x60] sm:$0xff] 0.0
    %34 = vst [vmem:[#allocation2 + $0x68] sm:$0xff] 0.0
    %35 = vst [vmem:[#allocation2 + $0x70] sm:$0xff] 0.0
    %36 = vst [vmem:[#allocation2 + $0x78] sm:$0xff] 0.0
  $region17: #{denoising_genius_forward.15} parent=0 // pred_fallthru
    _
  %v37 = vld [vmem:[%s0] sm:$0xf]
  %v38 = vld [vmem:[%s0 + $0x4] sm:$0xf]
  %v39 = vld [vmem:[%s0 + $0x8] sm:$0xf]
  %v40 = vld [vmem:[%s0 + $0xc] sm:$0xf]
  %v41 = vld [vmem:[%s0 + $0x10] sm:$0xf]
  %v42 = vld [vmem:[%s0 + $0x14] sm:$0xf]
  %v43 = vld [vmem:[%s0 + $0x18] sm:$0xf]
  %v44 = vld [vmem:[%s0 + $0x1c] sm:$0xf]
  %v45 = vld [vmem:[%s0 + $0x20] sm:$0xf]
  %v46 = vld [vmem:[%s0 + $0x24] sm:$0xf]
  %v47 = vld [vmem:[%s0 + $0x28] sm:$0xf]
  %v48 = vld [vmem:[%s0 + $0x2c] sm:$0xf]
  %v49 = vld [vmem:[%s0 + $0x30] sm:$0xf]
  %v50 = vld [vmem:[%s0 + $0x34] sm:$0xf]
  %v51 = vld [vmem:[%s0 + $0x38] sm:$0xf]
  %v52 = vld [vmem:[%s0 + $0x3c] sm:$0xf]
  %v53 = vld [vmem:[%s1] sm:$0xf]
  %v54 = vld [vmem:[%s1 + $0x4] sm:$0xf]
  %v55 = vld [vmem:[%s1 + $0x8] sm:$0xf]
  %v56 = vld [vmem:[%s1 + $0xc] sm:$0xf]
  %v57 = vld [vmem:[%s1 + $0x10] sm:$0xf]
  %v58 = vld [vmem:[%s1 + $0x14] sm:$0xf]
  %v59 = vld [vmem:[%s1 + $0x18] sm:$0xf]
  %v60 = vld [vmem:[%s1 + $0x1c] sm:$0xf]
  %v61 = vld [vmem:[%s1 + $0x20] sm:$0xf]
  %v62 = vld [vmem:[%s1 + $0x24] sm:$0xf]
  %v63 = vld [vmem:[%s1 + $0x28] sm:$0xf]
  %v64 = vld [vmem:[%s1 + $0x2c] sm:$0xf]
  %v65 = vld [vmem:[%s1 + $0x30] sm:$0xf]
  %v66 = vld [vmem:[%s1 + $0x34] sm:$0xf]
  %v67 = vld [vmem:[%s1 + $0x38] sm:$0xf]
  %v68 = vld [vmem:[%s1 + $0x3c] sm:$0xf]
  %v85 = vunpack.c.l.b16 %v37
  %v86 = vunpack.c.l.b16 %v38
  %v87 = vunpack.c.l.b16 %v39
  %v88 = vunpack.c.l.b16 %v40
  %v89 = vunpack.c.l.b16 %v41
  %v90 = vunpack.c.l.b16 %v42
  %v91 = vunpack.c.l.b16 %v43
  %v92 = vunpack.c.l.b16 %v44
  %v93 = vunpack.c.l.b16 %v45
  %v94 = vunpack.c.l.b16 %v46
  %v95 = vunpack.c.l.b16 %v47
  %v96 = vunpack.c.l.b16 %v48
  %v97 = vunpack.c.l.b16 %v49
  %v98 = vunpack.c.l.b16 %v50
  %v99 = vunpack.c.l.b16 %v51
  %v100 = vunpack.c.l.b16 %v52
  %v101 = vpack.c.b16 %v86, %v85
  %v102 = vpack.c.b16 %v88, %v87
  %v103 = vpack.c.b16 %v90, %v89
  %v104 = vpack.c.b16 %v92, %v91
  %v105 = vpack.c.b16 %v94, %v93
  %v106 = vpack.c.b16 %v96, %v95
  %v107 = vpack.c.b16 %v98, %v97
  %v108 = vpack.c.b16 %v100, %v99
  %v133 = vunpack.c.l.b16 %v53
  %v134 = vunpack.c.l.b16 %v54
  %v135 = vunpack.c.l.b16 %v55
  %v136 = vunpack.c.l.b16 %v56
  %v137 = vunpack.c.l.b16 %v57
  %v138 = vunpack.c.l.b16 %v58
  %v139 = vunpack.c.l.b16 %v59
  %v140 = vunpack.c.l.b16 %v60
  %v141 = vunpack.c.l.b16 %v61
  %v142 = vunpack.c.l.b16 %v62
  %v143 = vunpack.c.l.b16 %v63
  %v144 = vunpack.c.l.b16 %v64
  %v145 = vunpack.c.l.b16 %v65
  %v146 = vunpack.c.l.b16 %v66
  %v147 = vunpack.c.l.b16 %v67
  %v148 = vunpack.c.l.b16 %v68
  %v149 = vpack.c.b16 %v134, %v133
  %v150 = vpack.c.b16 %v136, %v135
  %v151 = vpack.c.b16 %v138, %v137
  %v152 = vpack.c.b16 %v140, %v139
  %v153 = vpack.c.b16 %v142, %v141
  %v154 = vpack.c.b16 %v144, %v143
  %v155 = vpack.c.b16 %v146, %v145
  %v156 = vpack.c.b16 %v148, %v147
  %165 = vmatprep.subr.bf16.mxu0 0
  %166 = vmatpush1.bf16.msra.mxu0 %v149
  %167 = vmatprep.subr.bf16.mxu0 0
  %168 = vmatpush1.bf16.msra.mxu0 %v150
  %169 = vmatprep.subr.bf16.mxu0 0
  %170 = vmatpush1.bf16.msra.mxu0 %v151
  %171 = vmatprep.subr.bf16.mxu0 0
  %172 = vmatpush1.bf16.msra.mxu0 %v152
  %173 = vmatprep.subr.bf16.mxu0 0
  %174 = vmatpush1.bf16.msra.mxu0 %v153
  %175 = vmatprep.subr.bf16.mxu0 0
  %176 = vmatpush1.bf16.msra.mxu0 %v154
  %177 = vmatprep.subr.bf16.mxu0 0
  %178 = vmatpush1.bf16.msra.mxu0 %v155
  %179 = vmatprep.subr.bf16.mxu0 0
  %180 = vmatpush1.bf16.msra.mxu0 %v156
  %181 = vmatprep.subr.bf16.mxu0 0
  %182 = vmatpush1.bf16.msra.mxu0 0
  %183 = vmatprep.subr.bf16.mxu0 0
  %184 = vmatpush1.bf16.msra.mxu0 0
  %185 = vmatprep.subr.bf16.mxu0 0
  %186 = vmatpush1.bf16.msra.mxu0 0
  %187 = vmatprep.subr.bf16.mxu0 0
  %188 = vmatpush1.bf16.msra.mxu0 0
  %189 = vmatprep.subr.bf16.mxu0 0
  %190 = vmatpush1.bf16.msra.mxu0 0
  %191 = vmatprep.subr.bf16.mxu0 0
  %192 = vmatpush1.bf16.msra.mxu0 0
  %193 = vmatprep.subr.bf16.mxu0 0
  %194 = vmatpush1.bf16.msra.mxu0 0
  %195 = vmatprep.subr.bf16.mxu0 0
  %196 = vmatpush1.bf16.msra.mxu0 0
  %197 = vmatprep.mubr.bf16.mxu0 0
  %198 = vmatmul.mubr.bf16.gmra.mrb[0].mxu0 %v101
  %v199 = vpop.f32.mrb[0].mxu0
  %v200 = vadd.f32 0.0, %v199
  %v201 = vpop.f32.mrb[0].mxu0
  %v202 = vpop.f32.mrb[0].mxu0
  %v203 = vadd.f32 0.0, %v202
  %v204 = vpop.f32.mrb[0].mxu0
  %205 = vmatprep.mubr.bf16.mxu0 0
  %206 = vmatmul.mubr.bf16.gmra.mrb[0].mxu0 %v102
  %v207 = vpop.f32.mrb[0].mxu0
  %v208 = vadd.f32 0.0, %v207
  %v209 = vpop.f32.mrb[0].mxu0
  %v210 = vpop.f32.mrb[0].mxu0
  %v211 = vadd.f32 0.0, %v210
  %v212 = vpop.f32.mrb[0].mxu0
  %213 = vmatprep.mubr.bf16.mxu0 0
  %214 = vmatmul.mubr.bf16.gmra.mrb[0].mxu0 %v103
  %v215 = vpop.f32.mrb[0].mxu0
  %v216 = vadd.f32 0.0, %v215
  %v217 = vpop.f32.mrb[0].mxu0
  %v218 = vpop.f32.mrb[0].mxu0
  %v219 = vadd.f32 0.0, %v218
  %v220 = vpop.f32.mrb[0].mxu0
  %221 = vmatprep.mubr.bf16.mxu0 0
  %222 = vmatmul.mubr.bf16.gmra.mrb[0].mxu0 %v104
  %v223 = vpop.f32.mrb[0].mxu0
  %v224 = vadd.f32 0.0, %v223
  %v225 = vpop.f32.mrb[0].mxu0
  %v226 = vpop.f32.mrb[0].mxu0
  %v227 = vadd.f32 0.0, %v226
  %v228 = vpop.f32.mrb[0].mxu0
  %229 = vmatprep.mubr.bf16.mxu0 0
  %230 = vmatmul.mubr.bf16.gmra.mrb[0].mxu0 %v105
  %v231 = vpop.f32.mrb[0].mxu0
  %v232 = vadd.f32 0.0, %v231
  %v233 = vpop.f32.mrb[0].mxu0
  %v234 = vpop.f32.mrb[0].mxu0
  %v235 = vadd.f32 0.0, %v234
  %v236 = vpop.f32.mrb[0].mxu0
  %237 = vmatprep.mubr.bf16.mxu0 0
  %238 = vmatmul.mubr.bf16.gmra.mrb[0].mxu0 %v106
  %v239 = vpop.f32.mrb[0].mxu0
  %v240 = vadd.f32 0.0, %v239
  %v241 = vpop.f32.mrb[0].mxu0
  %v242 = vpop.f32.mrb[0].mxu0
  %v243 = vadd.f32 0.0, %v242
  %v244 = vpop.f32.mrb[0].mxu0
  %245 = vmatprep.mubr.bf16.mxu0 0
  %246 = vmatmul.mubr.bf16.gmra.mrb[0].mxu0 %v107
  %v247 = vpop.f32.mrb[0].mxu0
  %v248 = vadd.f32 0.0, %v247
  %v249 = vpop.f32.mrb[0].mxu0
  %v250 = vpop.f32.mrb[0].mxu0
  %v251 = vadd.f32 0.0, %v250
  %v252 = vpop.f32.mrb[0].mxu0
  %253 = vmatprep.mubr.bf16.mxu0 0
  %254 = vmatmul.mubr.bf16.gmra.mrb[0].mxu0 %v108
  %v255 = vpop.f32.mrb[0].mxu0
  %v256 = vadd.f32 0.0, %v255
  %v257 = vpop.f32.mrb[0].mxu0
  %v258 = vpop.f32.mrb[0].mxu0
  %v259 = vadd.f32 0.0, %v258
  %v260 = vpop.f32.mrb[0].mxu0
  %261 = vdwg.mxu0
  %v262 = vld [vmem:[#allocation2] sm:$0xff]
  %v263 = vld [vmem:[#allocation2 + $0x8] sm:$0xff]
  %v264 = vld [vmem:[#allocation2 + $0x10] sm:$0xff]
  %v265 = vld [vmem:[#allocation2 + $0x18] sm:$0xff]
  %v266 = vld [vmem:[#allocation2 + $0x20] sm:$0xff]
  %v267 = vld [vmem:[#allocation2 + $0x28] sm:$0xff]
  %v268 = vld [vmem:[#allocation2 + $0x30] sm:$0xff]
  %v269 = vld [vmem:[#allocation2 + $0x38] sm:$0xff]
  %v270 = vld [vmem:[#allocation2 + $0x40] sm:$0xff]
  %v271 = vld [vmem:[#allocation2 + $0x48] sm:$0xff]
  %v272 = vld [vmem:[#allocation2 + $0x50] sm:$0xff]
  %v273 = vld [vmem:[#allocation2 + $0x58] sm:$0xff]
  %v274 = vld [vmem:[#allocation2 + $0x60] sm:$0xff]
  %v275 = vld [vmem:[#allocation2 + $0x68] sm:$0xff]
  %v276 = vld [vmem:[#allocation2 + $0x70] sm:$0xff]
  %v277 = vld [vmem:[#allocation2 + $0x78] sm:$0xff]
  %v278 = vadd.f32 %v262, %v200
  %v279 = vadd.f32 %v263, %v203
  %v280 = vadd.f32 %v264, %v208
  %v281 = vadd.f32 %v265, %v211
  %v282 = vadd.f32 %v266, %v216
  %v283 = vadd.f32 %v267, %v219
  %v284 = vadd.f32 %v268, %v224
  %v285 = vadd.f32 %v269, %v227
  %v286 = vadd.f32 %v270, %v232
  %v287 = vadd.f32 %v271, %v235
  %v288 = vadd.f32 %v272, %v240
  %v289 = vadd.f32 %v273, %v243
  %v290 = vadd.f32 %v274, %v248
  %v291 = vadd.f32 %v275, %v251
  %v292 = vadd.f32 %v276, %v256
  %v293 = vadd.f32 %v277, %v259
  %294 = vst [vmem:[#allocation2] sm:$0xff] %v278
  %295 = vst [vmem:[#allocation2 + $0x8] sm:$0xff] %v279
  %296 = vst [vmem:[#allocation2 + $0x10] sm:$0xff] %v280
  %297 = vst [vmem:[#allocation2 + $0x18] sm:$0xff] %v281
  %298 = vst [vmem:[#allocation2 + $0x20] sm:$0xff] %v282
  %299 = vst [vmem:[#allocation2 + $0x28] sm:$0xff] %v283
  %300 = vst [vmem:[#allocation2 + $0x30] sm:$0xff] %v284
  %301 = vst [vmem:[#allocation2 + $0x38] sm:$0xff] %v285
  %302 = vst [vmem:[#allocation2 + $0x40] sm:$0xff] %v286
  %303 = vst [vmem:[#allocation2 + $0x48] sm:$0xff] %v287
  %304 = vst [vmem:[#allocation2 + $0x50] sm:$0xff] %v288
  %305 = vst [vmem:[#allocation2 + $0x58] sm:$0xff] %v289
  %306 = vst [vmem:[#allocation2 + $0x60] sm:$0xff] %v290
  %307 = vst [vmem:[#allocation2 + $0x68] sm:$0xff] %v291
  %308 = vst [vmem:[#allocation2 + $0x70] sm:$0xff] %v292
  %309 = vst [vmem:[#allocation2 + $0x78] sm:$0xff] %v293
  // Predicated region
  $region18: #{denoising_genius_forward.15} parent=0 // pred_check
    %p310 = pneg %p17
  $region19: #{denoising_genius_forward.15} parent=0 // pred_check_branch
    %312 = sbr.rel (%p310) target = $region21
  $region20: #{denoising_genius_forward.15} parent=0 // pred_region
    %v313 = vld [vmem:[#allocation2] sm:$0xff]
    %v314 = vld [vmem:[#allocation2 + $0x8] sm:$0xff]
    %v315 = vld [vmem:[#allocation2 + $0x10] sm:$0xff]
    %v316 = vld [vmem:[#allocation2 + $0x18] sm:$0xff]
    %v317 = vld [vmem:[#allocation2 + $0x20] sm:$0xff]
    %v318 = vld [vmem:[#allocation2 + $0x28] sm:$0xff]
    %v319 = vld [vmem:[#allocation2 + $0x30] sm:$0xff]
    %v320 = vld [vmem:[#allocation2 + $0x38] sm:$0xff]
    %v321 = vld [vmem:[#allocation2 + $0x40] sm:$0xff]
    %v322 = vld [vmem:[#allocation2 + $0x48] sm:$0xff]
    %v323 = vld [vmem:[#allocation2 + $0x50] sm:$0xff]
    %v324 = vld [vmem:[#allocation2 + $0x58] sm:$0xff]
    %v325 = vld [vmem:[#allocation2 + $0x60] sm:$0xff]
    %v326 = vld [vmem:[#allocation2 + $0x68] sm:$0xff]
    %v327 = vld [vmem:[#allocation2 + $0x70] sm:$0xff]
    %v328 = vld [vmem:[#allocation2 + $0x78] sm:$0xff]
    %v329 = vld [vmem:[%s2] sm:$0x1]
    %v331 = vlaneseq
    %v332 = vshrl.u32 %v331, 7
    %v333 = vsub.s32 0, %v332
    %v334 = vrot.slane %v329, %v333
    %v336 = vadd.f32 %v313, %v334
    %v337 = vadd.f32 %v314, %v334
    %v338 = vadd.f32 %v315, %v334
    %v339 = vadd.f32 %v316, %v334
    %v340 = vadd.f32 %v317, %v334
    %v341 = vadd.f32 %v318, %v334
    %v342 = vadd.f32 %v319, %v334
    %v343 = vadd.f32 %v320, %v334
    %v344 = vadd.f32 %v321, %v334
    %v345 = vadd.f32 %v322, %v334
    %v346 = vadd.f32 %v323, %v334
    %v347 = vadd.f32 %v324, %v334
    %v348 = vadd.f32 %v325, %v334
    %v349 = vadd.f32 %v326, %v334
    %v350 = vadd.f32 %v327, %v334
    %v351 = vadd.f32 %v328, %v334
    %v352 = vpack.c.bf16 %v337, %v336
    %v353 = vpack.c.bf16 %v339, %v338
    %v354 = vpack.c.bf16 %v341, %v340
    %v355 = vpack.c.bf16 %v343, %v342
    %v356 = vpack.c.bf16 %v345, %v344
    %v357 = vpack.c.bf16 %v347, %v346
    %v358 = vpack.c.bf16 %v349, %v348
    %v359 = vpack.c.bf16 %v351, %v350
    %v368 = vunpack.c.l.b16 %v352
    %v369 = vunpack.c.h.b16 %v352
    %v370 = vunpack.c.l.b16 %v353
    %v371 = vunpack.c.h.b16 %v353
    %v372 = vunpack.c.l.b16 %v354
    %v373 = vunpack.c.h.b16 %v354
    %v374 = vunpack.c.l.b16 %v355
    %v375 = vunpack.c.h.b16 %v355
    %v376 = vunpack.c.l.b16 %v356
    %v377 = vunpack.c.h.b16 %v356
    %v378 = vunpack.c.l.b16 %v357
    %v379 = vunpack.c.h.b16 %v357
    %v380 = vunpack.c.l.b16 %v358
    %v381 = vunpack.c.h.b16 %v358
    %v382 = vunpack.c.l.b16 %v359
    %v383 = vunpack.c.h.b16 %v359
    %v384 = vpack.c.b16 %v368, %v368
    %v385 = vpack.c.b16 %v369, %v369
    %v386 = vpack.c.b16 %v370, %v370
    %v387 = vpack.c.b16 %v371, %v371
    %v388 = vpack.c.b16 %v372, %v372
    %v389 = vpack.c.b16 %v373, %v373
    %v390 = vpack.c.b16 %v374, %v374
    %v391 = vpack.c.b16 %v375, %v375
    %v392 = vpack.c.b16 %v376, %v376
    %v393 = vpack.c.b16 %v377, %v377
    %v394 = vpack.c.b16 %v378, %v378
    %v395 = vpack.c.b16 %v379, %v379
    %v396 = vpack.c.b16 %v380, %v380
    %v397 = vpack.c.b16 %v381, %v381
    %v398 = vpack.c.b16 %v382, %v382
    %v399 = vpack.c.b16 %v383, %v383
    %416 = vst [vmem:[%s3] sm:$0xf] %v384
    %417 = vst [vmem:[%s3 + $0x4] sm:$0xf] %v385
    %418 = vst [vmem:[%s3 + $0x8] sm:$0xf] %v386
    %419 = vst [vmem:[%s3 + $0xc] sm:$0xf] %v387
    %420 = vst [vmem:[%s3 + $0x10] sm:$0xf] %v388
    %421 = vst [vmem:[%s3 + $0x14] sm:$0xf] %v389
    %422 = vst [vmem:[%s3 + $0x18] sm:$0xf] %v390
    %423 = vst [vmem:[%s3 + $0x1c] sm:$0xf] %v391
    %424 = vst [vmem:[%s3 + $0x20] sm:$0xf] %v392
    %425 = vst [vmem:[%s3 + $0x24] sm:$0xf] %v393
    %426 = vst [vmem:[%s3 + $0x28] sm:$0xf] %v394
    %427 = vst [vmem:[%s3 + $0x2c] sm:$0xf] %v395
    %428 = vst [vmem:[%s3 + $0x30] sm:$0xf] %v396
    %429 = vst [vmem:[%s3 + $0x34] sm:$0xf] %v397
    %430 = vst [vmem:[%s3 + $0x38] sm:$0xf] %v398
    %431 = vst [vmem:[%s3 + $0x3c] sm:$0xf] %v399
    %v432 = vadd.f32 %v313, %v314
    %v433 = vadd.f32 %v432, %v315
    %v434 = vadd.f32 %v433, %v316
    %v435 = vadd.f32 %v434, %v317
    %v436 = vadd.f32 %v435, %v318
    %v437 = vadd.f32 %v436, %v319
    %v438 = vadd.f32 %v437, %v320
    %v439 = vadd.f32 %v438, %v321
    %v440 = vadd.f32 %v439, %v322
    %v441 = vadd.f32 %v440, %v323
    %v442 = vadd.f32 %v441, %v324
    %v443 = vadd.f32 %v442, %v325
    %v444 = vadd.f32 %v443, %v326
    %v445 = vadd.f32 %v444, %v327
    %v446 = vadd.f32 %v445, %v328
    %v447 = vrot.slane %v446, 4
    %v448 = vadd.f32 %v446, %v447
    %v449 = vrot.slane %v448, 2
    %v450 = vadd.f32 %v448, %v449
    %v451 = vrot.slane %v450, 1
    %v452 = vadd.f32 %v450, %v451
    %v453 = vmul.f32 %v313, %v313
    %v454 = vmul.f32 %v314, %v314
    %v455 = vmul.f32 %v315, %v315
    %v456 = vmul.f32 %v316, %v316
    %v457 = vmul.f32 %v317, %v317
    %v458 = vmul.f32 %v318, %v318
    %v459 = vmul.f32 %v319, %v319
    %v460 = vmul.f32 %v320, %v320
    %v461 = vmul.f32 %v321, %v321
    %v462 = vmul.f32 %v322, %v322
    %v463 = vmul.f32 %v323, %v323
    %v464 = vmul.f32 %v324, %v324
    %v465 = vmul.f32 %v325, %v325
    %v466 = vmul.f32 %v326, %v326
    %v467 = vmul.f32 %v327, %v327
    %v468 = vmul.f32 %v328, %v328
    %v469 = vadd.f32 %v453, %v454
    %v470 = vadd.f32 %v469, %v455
    %v471 = vadd.f32 %v470, %v456
    %v472 = vadd.f32 %v471, %v457
    %v473 = vadd.f32 %v472, %v458
    %v474 = vadd.f32 %v473, %v459
    %v475 = vadd.f32 %v474, %v460
    %v476 = vadd.f32 %v475, %v461
    %v477 = vadd.f32 %v476, %v462
    %v478 = vadd.f32 %v477, %v463
    %v479 = vadd.f32 %v478, %v464
    %v480 = vadd.f32 %v479, %v465
    %v481 = vadd.f32 %v480, %v466
    %v482 = vadd.f32 %v481, %v467
    %v483 = vadd.f32 %v482, %v468
    %v484 = vrot.slane %v483, 4
    %v485 = vadd.f32 %v483, %v484
    %v486 = vrot.slane %v485, 2
    %v487 = vadd.f32 %v485, %v486
    %v488 = vrot.slane %v487, 1
    %v489 = vadd.f32 %v487, %v488
    %v490 = vlaneseq
    %v491 = vshrl.u32 %v490, 7
    %vm492 = vcmp.eq.s32.totalorder %v491, 0
    %vm493 = vcmp.eq.s32.totalorder %v491, 1
    %v494 = vsel %vm493, %v489, 0.0
    %v495 = vsel %vm492, %v452, %v494
    %496 = vst [vmem:[%s4] sm:$0xff] %v495
  $region21: #{denoising_genius_forward.15} parent=0 // pred_fallthru
    _
  // Predicated region
  $region22: #{denoising_genius_forward.15} parent=0 // pred_check
    _
  $region23: #{denoising_genius_forward.15} parent=0 // pred_check_branch
    %498 = sbr.rel (0) target = $region25
  $region24: #{denoising_genius_forward.15} parent=0 // pred_region
    _
  $region25: #{denoising_genius_forward.15} parent=0 // pred_fallthru
    _
  // Predicated region
  $region26: #{denoising_genius_forward.15} parent=0 // pred_check
    _
  $region27: #{denoising_genius_forward.15} parent=0 // pred_check_branch
    %500 = sbr.rel (0) target = $region29
  $region28: #{denoising_genius_forward.15} parent=0 // pred_region
    _
  $region29: #{denoising_genius_forward.15} parent=0 // pred_fallthru
    _
  // Predicated region
  $region30: #{denoising_genius_forward.15} parent=0 // pred_check
    _
  $region31: #{denoising_genius_forward.15} parent=0 // pred_check_branch
    %502 = sbr.rel (0) target = $region33
  $region32: #{denoising_genius_forward.15} parent=0 // pred_region
    _
  $region33: #{denoising_genius_forward.15} parent=0 // pred_fallthru
    _
  // Predicated region
  $region34: #{denoising_genius_forward.15} parent=0 // pred_check
    _
  $region35: #{denoising_genius_forward.15} parent=0 // pred_check_branch
    %504 = sbr.rel (0) target = $region37
  $region36: #{denoising_genius_forward.15} parent=0 // pred_region
    _
  $region37: #{denoising_genius_forward.15} parent=0 // pred_fallthru
    _

// kernel: denoising_genius_forward.18
$region0: #{denoising_genius_forward.18}
  #allocation0 [shape = 'u32[]', space=smem, size = 0x4, offset = 0x4, fixed_abs, tag = 'smem constant byte address 0x4 - core index']
  #allocation1 [shape = 'u32[144,128]{1,0:T(1,128)}', space=vmem, size = 0x12000, scoped, tag = 'internal scratch']
  %s0 = inlined_call_operand.vmem [shape: bf16[32,128], index: 0, kind: input, shape index: {}]
  %s1 = inlined_call_operand.vmem [shape: f32[1,128], index: 1, kind: input, shape index: {}]
  %s2 = inlined_call_operand.vmem [shape: f32[1,128], index: 2, kind: input, shape index: {}]
  %s3 = inlined_call_operand.vmem [shape: bf16[32,128], index: 3, kind: output, shape index: {}]
  %s4 = sld [smem:[#allocation0]]
  $region22: #{denoising_genius_forward.18} parent=0
    _
  %s6 = ssub.s32 1, %s4
  %s7 = scalar_select 0, %s6, %s4
  // Predicated region
  $region2: #{denoising_genius_forward.18} parent=0 // pred_check
    _
  $region3: #{denoising_genius_forward.18} parent=0 // pred_check_branch
    %9 = sbr.rel (0) target = $region5
  $region4: #{denoising_genius_forward.18} parent=0 // pred_region
    _
  $region5: #{denoising_genius_forward.18} parent=0 // pred_fallthru
    _
  // Predicated region
  $region6: #{denoising_genius_forward.18} parent=0 // pred_check
    _
  $region7: #{denoising_genius_forward.18} parent=0 // pred_check_branch
    %11 = sbr.rel (0) target = $region9
  $region8: #{denoising_genius_forward.18} parent=0 // pred_region
    _
  $region9: #{denoising_genius_forward.18} parent=0 // pred_fallthru
    _
  // Predicated region
  $region10: #{denoising_genius_forward.18} parent=0 // pred_check
    _
  $region11: #{denoising_genius_forward.18} parent=0 // pred_check_branch
    %13 = sbr.rel (0) target = $region13
  $region12: #{denoising_genius_forward.18} parent=0 // pred_region
    _
  $region13: #{denoising_genius_forward.18} parent=0 // pred_fallthru
    _
  %v14 = vld [vmem:[%s0] sm:$0xf]
  %v15 = vld [vmem:[%s0 + $0x4] sm:$0xf]
  %v16 = vld [vmem:[%s0 + $0x8] sm:$0xf]
  %v17 = vld [vmem:[%s0 + $0xc] sm:$0xf]
  %v18 = vunpack.c.l.bf16 %v14
  %v19 = vunpack.c.l.bf16 %v15
  %v20 = vunpack.c.l.bf16 %v16
  %v21 = vunpack.c.l.bf16 %v17
  %v22 = vld [vmem:[%s1] sm:$0x1]
  %v24 = vlaneseq
  %v25 = vshrl.u32 %v24, 7
  %v26 = vsub.s32 0, %v25
  %v27 = vrot.slane %v22, %v26
  %v29 = vmul.f32 %v18, %v27
  %v30 = vmul.f32 %v19, %v27
  %v31 = vmul.f32 %v20, %v27
  %v32 = vmul.f32 %v21, %v27
  %v33 = vld [vmem:[%s2] sm:$0x1]
  %v35 = vlaneseq
  %v36 = vshrl.u32 %v35, 7
  %v37 = vsub.s32 0, %v36
  %v38 = vrot.slane %v33, %v37
  %v40 = vadd.f32 %v29, %v38
  %v41 = vadd.f32 %v30, %v38
  %v42 = vadd.f32 %v31, %v38
  %v43 = vadd.f32 %v32, %v38
  %v44 = vmax.f32 %v40, 0.0
  %v45 = vmax.f32 %v41, 0.0
  %v46 = vmax.f32 %v42, 0.0
  %v47 = vmax.f32 %v43, 0.0
  %v48 = vpack.c.bf16 %v45, %v44
  %v49 = vpack.c.bf16 %v47, %v46
  %v52 = vunpack.c.l.b16 %v48
  %v53 = vunpack.c.h.b16 %v48
  %v54 = vunpack.c.l.b16 %v49
  %v55 = vunpack.c.h.b16 %v49
  %v56 = vpack.c.b16 %v52, %v52
  %v57 = vpack.c.b16 %v53, %v53
  %v58 = vpack.c.b16 %v54, %v54
  %v59 = vpack.c.b16 %v55, %v55
  %64 = vst [vmem:[%s3] sm:$0xf] %v56
  %65 = vst [vmem:[%s3 + $0x4] sm:$0xf] %v57
  %66 = vst [vmem:[%s3 + $0x8] sm:$0xf] %v58
  %67 = vst [vmem:[%s3 + $0xc] sm:$0xf] %v59
  // Predicated region
  $region14: #{denoising_genius_forward.18} parent=0 // pred_check
    _
  $region15: #{denoising_genius_forward.18} parent=0 // pred_check_branch
    %69 = sbr.rel (0) target = $region17
  $region16: #{denoising_genius_forward.18} parent=0 // pred_region
    _
  $region17: #{denoising_genius_forward.18} parent=0 // pred_fallthru
    _
  // Predicated region
  $region18: #{denoising_genius_forward.18} parent=0 // pred_check
    _
  $region19: #{denoising_genius_forward.18} parent=0 // pred_check_branch
    %71 = sbr.rel (0) target = $region21
  $region20: #{denoising_genius_forward.18} parent=0 // pred_region
    _
  $region21: #{denoising_genius_forward.18} parent=0 // pred_fallthru
    _

// kernel: denoising_genius_forward.17
$region0: #{denoising_genius_forward.17}
  #allocation0 [shape = 'u32[]', space=smem, size = 0x4, offset = 0x4, fixed_abs, tag = 'smem constant byte address 0x4 - core index']
  #allocation1 [shape = 'u32[144,128]{1,0:T(1,128)}', space=vmem, size = 0x12000, scoped, tag = 'internal scratch']
  #allocation2 [shape = 'f32[32,128]{1,0:T(8,128)}', space=vmem, size = 0x4000, scoped, tag = 'scratch operand']
  %s0 = inlined_call_operand.vmem [shape: bf16[32,384], index: 0, kind: input, shape index: {}]
  %s1 = inlined_call_operand.vmem [shape: bf16[384,128], index: 1, kind: input, shape index: {}]
  %s2 = inlined_call_operand.vmem [shape: f32[1,128], index: 2, kind: input, shape index: {}]
  %s3 = inlined_call_operand.vmem [shape: bf16[32,128], index: 3, kind: output, shape index: {0}]
  %s4 = inlined_call_operand.vmem [shape: f32[1,8,128], index: 4, kind: output, shape index: {1}]
  %5 = xla_tuple %s3, %s4
  %s6 = sld [smem:[#allocation0]]
  $region38: #{denoising_genius_forward.17} parent=0
    _
  %s8 = ssub.s32 1, %s6
  %s9 = scalar_select 0, %s8, %s6
  // Predicated region
  $region2: #{denoising_genius_forward.17} parent=0 // pred_check
    _
  $region3: #{denoising_genius_forward.17} parent=0 // pred_check_branch
    %11 = sbr.rel (0) target = $region5
  $region4: #{denoising_genius_forward.17} parent=0 // pred_region
    _
  $region5: #{denoising_genius_forward.17} parent=0 // pred_fallthru
    _
  // Predicated region
  $region6: #{denoising_genius_forward.17} parent=0 // pred_check
    _
  $region7: #{denoising_genius_forward.17} parent=0 // pred_check_branch
    %13 = sbr.rel (0) target = $region9
  $region8: #{denoising_genius_forward.17} parent=0 // pred_region
    _
  $region9: #{denoising_genius_forward.17} parent=0 // pred_fallthru
    _
  // Predicated region
  $region10: #{denoising_genius_forward.17} parent=0 // pred_check
    _
  $region11: #{denoising_genius_forward.17} parent=0 // pred_check_branch
    %15 = sbr.rel (0) target = $region13
  $region12: #{denoising_genius_forward.17} parent=0 // pred_region
    _
  $region13: #{denoising_genius_forward.17} parent=0 // pred_fallthru
    _
  %p17 = scmp.eq.s32.totalorder 0, 0
  // Predicated region
  $region14: #{denoising_genius_forward.17} parent=0 // pred_check
    %p18 = pneg %p17
  $region15: #{denoising_genius_forward.17} parent=0 // pred_check_branch
    %20 = sbr.rel (%p18) target = $region17
  $region16: #{denoising_genius_forward.17} parent=0 // pred_region
    %21 = vst [vmem:[#allocation2] sm:$0xff] 0.0
    %22 = vst [vmem:[#allocation2 + $0x8] sm:$0xff] 0.0
    %23 = vst [vmem:[#allocation2 + $0x10] sm:$0xff] 0.0
    %24 = vst [vmem:[#allocation2 + $0x18] sm:$0xff] 0.0
  $region17: #{denoising_genius_forward.17} parent=0 // pred_fallthru
    _
  %v25 = vld [vmem:[%s0] sm:$0xff]
  %v26 = vld [vmem:[%s0 + $0x8] sm:$0xf]
  %v27 = vld [vmem:[%s0 + $0xc] sm:$0xff]
  %v28 = vld [vmem:[%s0 + $0x14] sm:$0xf]
  %v29 = vld [vmem:[%s0 + $0x18] sm:$0xff]
  %v30 = vld [vmem:[%s0 + $0x20] sm:$0xf]
  %v31 = vld [vmem:[%s0 + $0x24] sm:$0xff]
  %v32 = vld [vmem:[%s0 + $0x2c] sm:$0xf]
  %v33 = vld [vmem:[%s1] sm:$0xf]
  %v34 = vld [vmem:[%s1 + $0x4] sm:$0xf]
  %v35 = vld [vmem:[%s1 + $0x8] sm:$0xf]
  %v36 = vld [vmem:[%s1 + $0xc] sm:$0xf]
  %v37 = vld [vmem:[%s1 + $0x10] sm:$0xf]
  %v38 = vld [vmem:[%s1 + $0x14] sm:$0xf]
  %v39 = vld [vmem:[%s1 + $0x18] sm:$0xf]
  %v40 = vld [vmem:[%s1 + $0x1c] sm:$0xf]
  %v41 = vld [vmem:[%s1 + $0x20] sm:$0xf]
  %v42 = vld [vmem:[%s1 + $0x24] sm:$0xf]
  %v43 = vld [vmem:[%s1 + $0x28] sm:$0xf]
  %v44 = vld [vmem:[%s1 + $0x2c] sm:$0xf]
  %v45 = vld [vmem:[%s1 + $0x30] sm:$0xf]
  %v46 = vld [vmem:[%s1 + $0x34] sm:$0xf]
  %v47 = vld [vmem:[%s1 + $0x38] sm:$0xf]
  %v48 = vld [vmem:[%s1 + $0x3c] sm:$0xf]
  %v49 = vld [vmem:[%s1 + $0x40] sm:$0xf]
  %v50 = vld [vmem:[%s1 + $0x44] sm:$0xf]
  %v51 = vld [vmem:[%s1 + $0x48] sm:$0xf]
  %v52 = vld [vmem:[%s1 + $0x4c] sm:$0xf]
  %v53 = vld [vmem:[%s1 + $0x50] sm:$0xf]
  %v54 = vld [vmem:[%s1 + $0x54] sm:$0xf]
  %v55 = vld [vmem:[%s1 + $0x58] sm:$0xf]
  %v56 = vld [vmem:[%s1 + $0x5c] sm:$0xf]
  %v57 = vld [vmem:[%s1 + $0x60] sm:$0xf]
  %v58 = vld [vmem:[%s1 + $0x64] sm:$0xf]
  %v59 = vld [vmem:[%s1 + $0x68] sm:$0xf]
  %v60 = vld [vmem:[%s1 + $0x6c] sm:$0xf]
  %v61 = vld [vmem:[%s1 + $0x70] sm:$0xf]
  %v62 = vld [vmem:[%s1 + $0x74] sm:$0xf]
  %v63 = vld [vmem:[%s1 + $0x78] sm:$0xf]
  %v64 = vld [vmem:[%s1 + $0x7c] sm:$0xf]
  %v65 = vld [vmem:[%s1 + $0x80] sm:$0xf]
  %v66 = vld [vmem:[%s1 + $0x84] sm:$0xf]
  %v67 = vld [vmem:[%s1 + $0x88] sm:$0xf]
  %v68 = vld [vmem:[%s1 + $0x8c] sm:$0xf]
  %v69 = vld [vmem:[%s1 + $0x90] sm:$0xf]
  %v70 = vld [vmem:[%s1 + $0x94] sm:$0xf]
  %v71 = vld [vmem:[%s1 + $0x98] sm:$0xf]
  %v72 = vld [vmem:[%s1 + $0x9c] sm:$0xf]
  %v73 = vld [vmem:[%s1 + $0xa0] sm:$0xf]
  %v74 = vld [vmem:[%s1 + $0xa4] sm:$0xf]
  %v75 = vld [vmem:[%s1 + $0xa8] sm:$0xf]
  %v76 = vld [vmem:[%s1 + $0xac] sm:$0xf]
  %v77 = vld [vmem:[%s1 + $0xb0] sm:$0xf]
  %v78 = vld [vmem:[%s1 + $0xb4] sm:$0xf]
  %v79 = vld [vmem:[%s1 + $0xb8] sm:$0xf]
  %v80 = vld [vmem:[%s1 + $0xbc] sm:$0xf]
  %v89 = vunpack.c.l.b16 %v25
  %v90 = vunpack.c.h.b16 %v25
  %v91 = vunpack.c.l.b16 %v26
  %v92 = vunpack.c.l.b16 %v27
  %v93 = vunpack.c.h.b16 %v27
  %v94 = vunpack.c.l.b16 %v28
  %v95 = vunpack.c.l.b16 %v29
  %v96 = vunpack.c.h.b16 %v29
  %v97 = vunpack.c.l.b16 %v30
  %v98 = vunpack.c.l.b16 %v31
  %v99 = vunpack.c.h.b16 %v31
  %v100 = vunpack.c.l.b16 %v32
  %v101 = vpack.c.b16 %v92, %v89
  %v102 = vpack.c.b16 %v93, %v90
  %v103 = vpack.c.b16 %v94, %v91
  %v104 = vpack.c.b16 %v98, %v95
  %v105 = vpack.c.b16 %v99, %v96
  %v106 = vpack.c.b16 %v100, %v97
  %v161 = vunpack.c.l.b16 %v33
  %v162 = vunpack.c.l.b16 %v34
  %v163 = vunpack.c.l.b16 %v35
  %v164 = vunpack.c.l.b16 %v36
  %v165 = vunpack.c.l.b16 %v37
  %v166 = vunpack.c.l.b16 %v38
  %v167 = vunpack.c.l.b16 %v39
  %v168 = vunpack.c.l.b16 %v40
  %v169 = vunpack.c.l.b16 %v41
  %v170 = vunpack.c.l.b16 %v42
  %v171 = vunpack.c.l.b16 %v43
  %v172 = vunpack.c.l.b16 %v44
  %v173 = vunpack.c.l.b16 %v45
  %v174 = vunpack.c.l.b16 %v46
  %v175 = vunpack.c.l.b16 %v47
  %v176 = vunpack.c.l.b16 %v48
  %v177 = vunpack.c.l.b16 %v49
  %v178 = vunpack.c.l.b16 %v50
  %v179 = vunpack.c.l.b16 %v51
  %v180 = vunpack.c.l.b16 %v52
  %v181 = vunpack.c.l.b16 %v53
  %v182 = vunpack.c.l.b16 %v54
  %v183 = vunpack.c.l.b16 %v55
  %v184 = vunpack.c.l.b16 %v56
  %v185 = vunpack.c.l.b16 %v57
  %v186 = vunpack.c.l.b16 %v58
  %v187 = vunpack.c.l.b16 %v59
  %v188 = vunpack.c.l.b16 %v60
  %v189 = vunpack.c.l.b16 %v61
  %v190 = vunpack.c.l.b16 %v62
  %v191 = vunpack.c.l.b16 %v63
  %v192 = vunpack.c.l.b16 %v64
  %v193 = vunpack.c.l.b16 %v65
  %v194 = vunpack.c.l.b16 %v66
  %v195 = vunpack.c.l.b16 %v67
  %v196 = vunpack.c.l.b16 %v68
  %v197 = vunpack.c.l.b16 %v69
  %v198 = vunpack.c.l.b16 %v70
  %v199 = vunpack.c.l.b16 %v71
  %v200 = vunpack.c.l.b16 %v72
  %v201 = vunpack.c.l.b16 %v73
  %v202 = vunpack.c.l.b16 %v74
  %v203 = vunpack.c.l.b16 %v75
  %v204 = vunpack.c.l.b16 %v76
  %v205 = vunpack.c.l.b16 %v77
  %v206 = vunpack.c.l.b16 %v78
  %v207 = vunpack.c.l.b16 %v79
  %v208 = vunpack.c.l.b16 %v80
  %v209 = vpack.c.b16 %v162, %v161
  %v210 = vpack.c.b16 %v164, %v163
  %v211 = vpack.c.b16 %v166, %v165
  %v212 = vpack.c.b16 %v168, %v167
  %v213 = vpack.c.b16 %v170, %v169
  %v214 = vpack.c.b16 %v172, %v171
  %v215 = vpack.c.b16 %v174, %v173
  %v216 = vpack.c.b16 %v176, %v175
  %v217 = vpack.c.b16 %v178, %v177
  %v218 = vpack.c.b16 %v180, %v179
  %v219 = vpack.c.b16 %v182, %v181
  %v220 = vpack.c.b16 %v184, %v183
  %v221 = vpack.c.b16 %v186, %v185
  %v222 = vpack.c.b16 %v188, %v187
  %v223 = vpack.c.b16 %v190, %v189
  %v224 = vpack.c.b16 %v192, %v191
  %v225 = vpack.c.b16 %v194, %v193
  %v226 = vpack.c.b16 %v196, %v195
  %v227 = vpack.c.b16 %v198, %v197
  %v228 = vpack.c.b16 %v200, %v199
  %v229 = vpack.c.b16 %v202, %v201
  %v230 = vpack.c.b16 %v204, %v203
  %v231 = vpack.c.b16 %v206, %v205
  %v232 = vpack.c.b16 %v208, %v207
  %257 = vmatprep.subr.bf16.mxu0 0
  %258 = vmatpush1.bf16.msra.mxu0 %v209
  %259 = vmatprep.subr.bf16.mxu0 0
  %260 = vmatpush1.bf16.msra.mxu0 %v210
  %261 = vmatprep.subr.bf16.mxu0 0
  %262 = vmatpush1.bf16.msra.mxu0 %v211
  %263 = vmatprep.subr.bf16.mxu0 0
  %264 = vmatpush1.bf16.msra.mxu0 %v212
  %265 = vmatprep.subr.bf16.mxu0 0
  %266 = vmatpush1.bf16.msra.mxu0 %v213
  %267 = vmatprep.subr.bf16.mxu0 0
  %268 = vmatpush1.bf16.msra.mxu0 %v214
  %269 = vmatprep.subr.bf16.mxu0 0
  %270 = vmatpush1.bf16.msra.mxu0 %v215
  %271 = vmatprep.subr.bf16.mxu0 0
  %272 = vmatpush1.bf16.msra.mxu0 %v216
  %273 = vmatprep.subr.bf16.mxu0 0
  %274 = vmatpush1.bf16.msra.mxu0 %v217
  %275 = vmatprep.subr.bf16.mxu0 0
  %276 = vmatpush1.bf16.msra.mxu0 %v218
  %277 = vmatprep.subr.bf16.mxu0 0
  %278 = vmatpush1.bf16.msra.mxu0 %v219
  %279 = vmatprep.subr.bf16.mxu0 0
  %280 = vmatpush1.bf16.msra.mxu0 %v220
  %281 = vmatprep.subr.bf16.mxu0 0
  %282 = vmatpush1.bf16.msra.mxu0 %v221
  %283 = vmatprep.subr.bf16.mxu0 0
  %284 = vmatpush1.bf16.msra.mxu0 %v222
  %285 = vmatprep.subr.bf16.mxu0 0
  %286 = vmatpush1.bf16.msra.mxu0 %v223
  %287 = vmatprep.subr.bf16.mxu0 0
  %288 = vmatpush1.bf16.msra.mxu0 %v224
  %289 = vmatprep.mubr.bf16.mxu0 %v102
  %290 = vmatmul.mubr.bf16.gmra.mrb[0].mxu0 %v101
  %v291 = vpop.f32.mrb[0].mxu0
  %v292 = vadd.f32 0.0, %v291
  %v293 = vpop.f32.mrb[0].mxu0
  %v294 = vpop.f32.mrb[0].mxu0
  %v295 = vadd.f32 0.0, %v294
  %v296 = vpop.f32.mrb[0].mxu0
  %297 = vmatprep.mubr.bf16.mxu0 %v105
  %298 = vmatmul.mubr.bf16.gmra.mrb[0].mxu0 %v104
  %v299 = vpop.f32.mrb[0].mxu0
  %v300 = vadd.f32 0.0, %v299
  %v301 = vpop.f32.mrb[0].mxu0
  %v302 = vpop.f32.mrb[0].mxu0
  %v303 = vadd.f32 0.0, %v302
  %v304 = vpop.f32.mrb[0].mxu0
  %305 = vdwg.mxu0
  %306 = vmatprep.subr.bf16.mxu0 0
  %307 = vmatpush1.bf16.msra.mxu0 %v225
  %308 = vmatprep.subr.bf16.mxu0 0
  %309 = vmatpush1.bf16.msra.mxu0 %v226
  %310 = vmatprep.subr.bf16.mxu0 0
  %311 = vmatpush1.bf16.msra.mxu0 %v227
  %312 = vmatprep.subr.bf16.mxu0 0
  %313 = vmatpush1.bf16.msra.mxu0 %v228
  %314 = vmatprep.subr.bf16.mxu0 0
  %315 = vmatpush1.bf16.msra.mxu0 %v229
  %316 = vmatprep.subr.bf16.mxu0 0
  %317 = vmatpush1.bf16.msra.mxu0 %v230
  %318 = vmatprep.subr.bf16.mxu0 0
  %319 = vmatpush1.bf16.msra.mxu0 %v231
  %320 = vmatprep.subr.bf16.mxu0 0
  %321 = vmatpush1.bf16.msra.mxu0 %v232
  %322 = vmatprep.subr.bf16.mxu0 0
  %323 = vmatpush1.bf16.msra.mxu0 0
  %324 = vmatprep.subr.bf16.mxu0 0
  %325 = vmatpush1.bf16.msra.mxu0 0
  %326 = vmatprep.subr.bf16.mxu0 0
  %327 = vmatpush1.bf16.msra.mxu0 0
  %328 = vmatprep.subr.bf16.mxu0 0
  %329 = vmatpush1.bf16.msra.mxu0 0
  %330 = vmatprep.subr.bf16.mxu0 0
  %331 = vmatpush1.bf16.msra.mxu0 0
  %332 = vmatprep.subr.bf16.mxu0 0
  %333 = vmatpush1.bf16.msra.mxu0 0
  %334 = vmatprep.subr.bf16.mxu0 0
  %335 = vmatpush1.bf16.msra.mxu0 0
  %336 = vmatprep.subr.bf16.mxu0 0
  %337 = vmatpush1.bf16.msra.mxu0 0
  %338 = vmatprep.mubr.bf16.mxu0 0
  %339 = vmatmul.mubr.bf16.gmra.mrb[0].mxu0 %v103
  %v340 = vpop.f32.mrb[0].mxu0
  %v341 = vadd.f32 %v292, %v340
  %v342 = vpop.f32.mrb[0].mxu0
  %v343 = vpop.f32.mrb[0].mxu0
  %v344 = vadd.f32 %v295, %v343
  %v345 = vpop.f32.mrb[0].mxu0
  %346 = vmatprep.mubr.bf16.mxu0 0
  %347 = vmatmul.mubr.bf16.gmra.mrb[0].mxu0 %v106
  %v348 = vpop.f32.mrb[0].mxu0
  %v349 = vadd.f32 %v300, %v348
  %v350 = vpop.f32.mrb[0].mxu0
  %v351 = vpop.f32.mrb[0].mxu0
  %v352 = vadd.f32 %v303, %v351
  %v353 = vpop.f32.mrb[0].mxu0
  %354 = vdwg.mxu0
  %v355 = vld [vmem:[#allocation2] sm:$0xff]
  %v356 = vld [vmem:[#allocation2 + $0x8] sm:$0xff]
  %v357 = vld [vmem:[#allocation2 + $0x10] sm:$0xff]
  %v358 = vld [vmem:[#allocation2 + $0x18] sm:$0xff]
  %v359 = vadd.f32 %v355, %v341
  %v360 = vadd.f32 %v356, %v344
  %v361 = vadd.f32 %v357, %v349
  %v362 = vadd.f32 %v358, %v352
  %363 = vst [vmem:[#allocation2] sm:$0xff] %v359
  %364 = vst [vmem:[#allocation2 + $0x8] sm:$0xff] %v360
  %365 = vst [vmem:[#allocation2 + $0x10] sm:$0xff] %v361
  %366 = vst [vmem:[#allocation2 + $0x18] sm:$0xff] %v362
  // Predicated region
  $region18: #{denoising_genius_forward.17} parent=0 // pred_check
    %p367 = pneg %p17
  $region19: #{denoising_genius_forward.17} parent=0 // pred_check_branch
    %369 = sbr.rel (%p367) target = $region21
  $region20: #{denoising_genius_forward.17} parent=0 // pred_region
    %v370 = vld [vmem:[#allocation2] sm:$0xff]
    %v371 = vld [vmem:[#allocation2 + $0x8] sm:$0xff]
    %v372 = vld [vmem:[#allocation2 + $0x10] sm:$0xff]
    %v373 = vld [vmem:[#allocation2 + $0x18] sm:$0xff]
    %v374 = vld [vmem:[%s2] sm:$0x1]
    %v376 = vlaneseq
    %v377 = vshrl.u32 %v376, 7
    %v378 = vsub.s32 0, %v377
    %v379 = vrot.slane %v374, %v378
    %v381 = vadd.f32 %v370, %v379
    %v382 = vadd.f32 %v371, %v379
    %v383 = vadd.f32 %v372, %v379
    %v384 = vadd.f32 %v373, %v379
    %v385 = vpack.c.bf16 %v382, %v381
    %v386 = vpack.c.bf16 %v384, %v383
    %v389 = vunpack.c.l.b16 %v385
    %v390 = vunpack.c.h.b16 %v385
    %v391 = vunpack.c.l.b16 %v386
    %v392 = vunpack.c.h.b16 %v386
    %v393 = vpack.c.b16 %v389, %v389
    %v394 = vpack.c.b16 %v390, %v390
    %v395 = vpack.c.b16 %v391, %v391
    %v396 = vpack.c.b16 %v392, %v392
    %401 = vst [vmem:[%s3] sm:$0xf] %v393
    %402 = vst [vmem:[%s3 + $0x4] sm:$0xf] %v394
    %403 = vst [vmem:[%s3 + $0x8] sm:$0xf] %v395
    %404 = vst [vmem:[%s3 + $0xc] sm:$0xf] %v396
    %v405 = vadd.f32 %v370, %v371
    %v406 = vadd.f32 %v405, %v372
    %v407 = vadd.f32 %v406, %v373
    %v408 = vrot.slane %v407, 4
    %v409 = vadd.f32 %v407, %v408
    %v410 = vrot.slane %v409, 2
    %v411 = vadd.f32 %v409, %v410
    %v412 = vrot.slane %v411, 1
    %v413 = vadd.f32 %v411, %v412
    %v414 = vmul.f32 %v370, %v370
    %v415 = vmul.f32 %v371, %v371
    %v416 = vmul.f32 %v372, %v372
    %v417 = vmul.f32 %v373, %v373
    %v418 = vadd.f32 %v414, %v415
    %v419 = vadd.f32 %v418, %v416
    %v420 = vadd.f32 %v419, %v417
    %v421 = vrot.slane %v420, 4
    %v422 = vadd.f32 %v420, %v421
    %v423 = vrot.slane %v422, 2
    %v424 = vadd.f32 %v422, %v423
    %v425 = vrot.slane %v424, 1
    %v426 = vadd.f32 %v424, %v425
    %v427 = vlaneseq
    %v428 = vshrl.u32 %v427, 7
    %vm429 = vcmp.eq.s32.totalorder %v428, 0
    %vm430 = vcmp.eq.s32.totalorder %v428, 1
    %v431 = vsel %vm430, %v426, 0.0
    %v432 = vsel %vm429, %v413, %v431
    %433 = vst [vmem:[%s4] sm:$0xff] %v432
  $region21: #{denoising_genius_forward.17} parent=0 // pred_fallthru
    _
  // Predicated region
  $region22: #{denoising_genius_forward.17} parent=0 // pred_check
    _
  $region23: #{denoising_genius_forward.17} parent=0 // pred_check_branch
    %435 = sbr.rel (0) target = $region25
  $region24: #{denoising_genius_forward.17} parent=0 // pred_region
    _
  $region25: #{denoising_genius_forward.17} parent=0 // pred_fallthru
    _
  // Predicated region
  $region26: #{denoising_genius_forward.17} parent=0 // pred_check
    _
  $region27: #{denoising_genius_forward.17} parent=0 // pred_check_branch
    %437 = sbr.rel (0) target = $region29
  $region28: #{denoising_genius_forward.17} parent=0 // pred_region
    _
  $region29: #{denoising_genius_forward.17} parent=0 // pred_fallthru
    _
  // Predicated region
  $region30: #{denoising_genius_forward.17} parent=0 // pred_check
    _
  $region31: #{denoising_genius_forward.17} parent=0 // pred_check_branch
    %439 = sbr.rel (0) target = $region33
  $region32: #{denoising_genius_forward.17} parent=0 // pred_region
    _
  $region33: #{denoising_genius_forward.17} parent=0 // pred_fallthru
    _
  // Predicated region
  $region34: #{denoising_genius_forward.17} parent=0 // pred_check
    _
  $region35: #{denoising_genius_forward.17} parent=0 // pred_check_branch
    %441 = sbr.rel (0) target = $region37
  $region36: #{denoising_genius_forward.17} parent=0 // pred_region
    _
  $region37: #{denoising_genius_forward.17} parent=0 // pred_fallthru
    _

// kernel: denoising_genius_forward.20
$region0: #{denoising_genius_forward.20}
  #allocation0 [shape = 'u32[]', space=smem, size = 0x4, offset = 0x4, fixed_abs, tag = 'smem constant byte address 0x4 - core index']
  #allocation1 [shape = 'u32[144,128]{1,0:T(1,128)}', space=vmem, size = 0x12000, scoped, tag = 'internal scratch']
  %s0 = inlined_call_operand.vmem [shape: bf16[16,128], index: 0, kind: input, shape index: {}]
  %s1 = inlined_call_operand.vmem [shape: f32[1,128], index: 1, kind: input, shape index: {}]
  %s2 = inlined_call_operand.vmem [shape: f32[1,128], index: 2, kind: input, shape index: {}]
  %s3 = inlined_call_operand.vmem [shape: bf16[16,128], index: 3, kind: output, shape index: {}]
  %s4 = sld [smem:[#allocation0]]
  $region22: #{denoising_genius_forward.20} parent=0
    _
  %s6 = ssub.s32 1, %s4
  %s7 = scalar_select 0, %s6, %s4
  // Predicated region
  $region2: #{denoising_genius_forward.20} parent=0 // pred_check
    _
  $region3: #{denoising_genius_forward.20} parent=0 // pred_check_branch
    %9 = sbr.rel (0) target = $region5
  $region4: #{denoising_genius_forward.20} parent=0 // pred_region
    _
  $region5: #{denoising_genius_forward.20} parent=0 // pred_fallthru
    _
  // Predicated region
  $region6: #{denoising_genius_forward.20} parent=0 // pred_check
    _
  $region7: #{denoising_genius_forward.20} parent=0 // pred_check_branch
    %11 = sbr.rel (0) target = $region9
  $region8: #{denoising_genius_forward.20} parent=0 // pred_region
    _
  $region9: #{denoising_genius_forward.20} parent=0 // pred_fallthru
    _
  // Predicated region
  $region10: #{denoising_genius_forward.20} parent=0 // pred_check
    _
  $region11: #{denoising_genius_forward.20} parent=0 // pred_check_branch
    %13 = sbr.rel (0) target = $region13
  $region12: #{denoising_genius_forward.20} parent=0 // pred_region
    _
  $region13: #{denoising_genius_forward.20} parent=0 // pred_fallthru
    _
  %v14 = vld [vmem:[%s0] sm:$0xf]
  %v15 = vld [vmem:[%s0 + $0x4] sm:$0xf]
  %v16 = vunpack.c.l.bf16 %v14
  %v17 = vunpack.c.l.bf16 %v15
  %v18 = vld [vmem:[%s1] sm:$0x1]
  %v20 = vlaneseq
  %v21 = vshrl.u32 %v20, 7
  %v22 = vsub.s32 0, %v21
  %v23 = vrot.slane %v18, %v22
  %v25 = vmul.f32 %v16, %v23
  %v26 = vmul.f32 %v17, %v23
  %v27 = vld [vmem:[%s2] sm:$0x1]
  %v29 = vlaneseq
  %v30 = vshrl.u32 %v29, 7
  %v31 = vsub.s32 0, %v30
  %v32 = vrot.slane %v27, %v31
  %v34 = vadd.f32 %v25, %v32
  %v35 = vadd.f32 %v26, %v32
  %v36 = vmax.f32 %v34, 0.0
  %v37 = vmax.f32 %v35, 0.0
  %v38 = vpack.c.bf16 %v37, %v36
  %v40 = vunpack.c.l.b16 %v38
  %v41 = vunpack.c.h.b16 %v38
  %v42 = vpack.c.b16 %v40, %v40
  %v43 = vpack.c.b16 %v41, %v41
  %46 = vst [vmem:[%s3] sm:$0xf] %v42
  %47 = vst [vmem:[%s3 + $0x4] sm:$0xf] %v43
  // Predicated region
  $region14: #{denoising_genius_forward.20} parent=0 // pred_check
    _
  $region15: #{denoising_genius_forward.20} parent=0 // pred_check_branch
    %49 = sbr.rel (0) target = $region17
  $region16: #{denoising_genius_forward.20} parent=0 // pred_region
    _
  $region17: #{denoising_genius_forward.20} parent=0 // pred_fallthru
    _
  // Predicated region
  $region18: #{denoising_genius_forward.20} parent=0 // pred_check
    _
  $region19: #{denoising_genius_forward.20} parent=0 // pred_check_branch
    %51 = sbr.rel (0) target = $region21
  $region20: #{denoising_genius_forward.20} parent=0 // pred_region
    _
  $region21: #{denoising_genius_forward.20} parent=0 // pred_fallthru
    _

// kernel: denoising_genius_forward.19
$region0: #{denoising_genius_forward.19}
  #allocation0 [shape = 'u32[]', space=smem, size = 0x4, offset = 0x4, fixed_abs, tag = 'smem constant byte address 0x4 - core index']
  #allocation1 [shape = 'u32[144,128]{1,0:T(1,128)}', space=vmem, size = 0x12000, scoped, tag = 'internal scratch']
  #allocation2 [shape = 'f32[16,128]{1,0:T(8,128)}', space=vmem, size = 0x2000, scoped, tag = 'scratch operand']
  %s0 = inlined_call_operand.vmem [shape: bf16[16,768], index: 0, kind: input, shape index: {}]
  %s1 = inlined_call_operand.vmem [shape: bf16[768,128], index: 1, kind: input, shape index: {}]
  %s2 = inlined_call_operand.vmem [shape: f32[1,128], index: 2, kind: input, shape index: {}]
  %s3 = inlined_call_operand.vmem [shape: bf16[16,128], index: 3, kind: output, shape index: {0}]
  %s4 = inlined_call_operand.vmem [shape: f32[1,8,128], index: 4, kind: output, shape index: {1}]
  %5 = xla_tuple %s3, %s4
  %s6 = sld [smem:[#allocation0]]
  $region87: #{denoising_genius_forward.19} parent=0
    _
  %s8 = ssub.s32 1, %s6
  %s9 = scalar_select 0, %s8, %s6
  $region1: #{denoising_genius_forward.19} parent=0
    #allocation3 [shape = 'u8[24576]{0}', space=vmem, size = 0x6000, scoped, tag = 'input window, operand 0']
    loop: start=0, step=1, limit=4
    $region2: #{denoising_genius_forward.19} parent=1 // loop_pre_header
      _
    $region3: #{denoising_genius_forward.19} parent=1 // loop_header
      %s11 = sphi 0, %s15
      %p12 = scmp.ge.s32.totalorder %s11, 4
      %s18 = sphi 0, %s37
      %s19 = sphi 0, %s33
      %s20 = sphi 0, %s29
      %s21 = sphi 0, %s18
      %s22 = sphi 0, %s19
      %s23 = sphi 0, %s20
      %s24 = sphi 0, %s21
      %s25 = sphi 0, %s22
      %s26 = sphi 0, %s23
      %s42 = sphi 0, %s44
      %s45 = sphi 0, %s42
      %s46 = sphi 0, %s45
      %s62 = sphi 0, %s46
      %s70 = sphi 0, %s72
      %s73 = sphi 0, %s70
      %s74 = sphi 0, %s73
      %s90 = sphi 0, %s74
      %s96 = sphi 0, %s98
      %s99 = sphi 0, %s96
      %s100 = sphi 0, %s99
      %s116 = sphi 0, %s100
      %s124 = sphi 0, %s126
      %s127 = sphi 0, %s124
      %s128 = sphi 0, %s127
      %s144 = sphi 0, %s128
      %s152 = sphi 0, %s154
      %s155 = sphi 0, %s152
      %s156 = sphi 0, %s155
      %s172 = sphi 0, %s156
    $region4: #{denoising_genius_forward.19} parent=1 // loop_header_branch
      %14 = sbr.rel (%p12) target = $region8
    $region5: #{denoising_genius_forward.19} parent=1 // loop_body
      %s16 = ssub.s32 %s11, 1
      %s17 = ssub.s32 %s11, 2
      %s27 = sadd.s32 1, %s20
      %p28 = scmp.ge.s32.totalorder %s27, 2
      %s29 = scalar_select %p28, 0, %s27
      %s30 = sadd.s32 1, %s19
      %s31 = scalar_select %p28, %s30, %s19
      %p32 = scmp.ge.s32.totalorder %s31, 1
      %s33 = scalar_select %p32, 0, %s31
      %s34 = sadd.s32 1, %s18
      %s35 = scalar_select %p32, %s34, %s18
      %p36 = scmp.ge.s32.totalorder %s35, 1
      %s37 = scalar_select %p36, 0, %s35
      %s38 = ssub.s32 %s18, %s37
      %s39 = ssub.s32 %s20, %s29
      %s40 = sor.u32 %s38, %s39
      %p41 = scmp.eq.s32.totalorder %s40, 0
      %s43 = sadd.s32 %s42, 1
      %s44 = scalar_select %p41, %s42, %s43
      %p47 = pneg %p41
      %p48 = scmp.eq.s32.totalorder %s11, 1
      %p49 = por %p47, %p48
      %p50 = scmp.ne.s32.totalorder %s42, %s45
      %p51 = scmp.eq.s32.totalorder %s11, 0
      %p52 = por %p50, %p51
      %p53 = scmp.ne.s32.totalorder %s42, %s45
      %p54 = scmp.eq.s32.totalorder %s16, 1
      %p55 = por %p53, %p54
      %p56 = scmp.ne.s32.totalorder %s45, %s46
      %p57 = scmp.eq.s32.totalorder %s16, 0
      %p58 = por %p56, %p57
      %p59 = scmp.ne.s32.totalorder %s45, %s46
      %p60 = scmp.eq.s32.totalorder %s17, 1
      %p61 = por %p59, %p60
      %p63 = scmp.ne.s32.totalorder %s46, %s62
      %p64 = scmp.eq.s32.totalorder %s17, 0
      %p65 = por %p63, %p64
      %s66 = ssub.s32 %s20, %s29
      %s67 = ssub.s32 %s19, %s33
      %s68 = sor.u32 %s66, %s67
      %p69 = scmp.eq.s32.totalorder %s68, 0
      %s71 = sadd.s32 %s70, 1
      %s72 = scalar_select %p69, %s70, %s71
      %p75 = pneg %p69
      %p76 = scmp.eq.s32.totalorder %s11, 1
      %p77 = por %p75, %p76
      %p78 = scmp.ne.s32.totalorder %s70, %s73
      %p79 = scmp.eq.s32.totalorder %s11, 0
      %p80 = por %p78, %p79
      %p81 = scmp.ne.s32.totalorder %s70, %s73
      %p82 = scmp.eq.s32.totalorder %s16, 1
      %p83 = por %p81, %p82
      %p84 = scmp.ne.s32.totalorder %s73, %s74
      %p85 = scmp.eq.s32.totalorder %s16, 0
      %p86 = por %p84, %p85
      %p87 = scmp.ne.s32.totalorder %s73, %s74
      %p88 = scmp.eq.s32.totalorder %s17, 1
      %p89 = por %p87, %p88
      %p91 = scmp.ne.s32.totalorder %s74, %s90
      %p92 = scmp.eq.s32.totalorder %s17, 0
      %p93 = por %p91, %p92
      %s94 = ssub.s32 %s19, %s33
      %p95 = scmp.eq.s32.totalorder %s94, 0
      %s97 = sadd.s32 %s96, 1
      %s98 = scalar_select %p95, %s96, %s97
      %p101 = pneg %p95
      %p102 = scmp.eq.s32.totalorder %s11, 1
      %p103 = por %p101, %p102
      %p104 = scmp.ne.s32.totalorder %s96, %s99
      %p105 = scmp.eq.s32.totalorder %s11, 0
      %p106 = por %p104, %p105
      %p107 = scmp.ne.s32.totalorder %s96, %s99
      %p108 = scmp.eq.s32.totalorder %s16, 1
      %p109 = por %p107, %p108
      %p110 = scmp.ne.s32.totalorder %s99, %s100
      %p111 = scmp.eq.s32.totalorder %s16, 0
      %p112 = por %p110, %p111
      %p113 = scmp.ne.s32.totalorder %s99, %s100
      %p114 = scmp.eq.s32.totalorder %s17, 1
      %p115 = por %p113, %p114
      %p117 = scmp.ne.s32.totalorder %s100, %s116
      %p118 = scmp.eq.s32.totalorder %s17, 0
      %p119 = por %p117, %p118
      %s120 = ssub.s32 %s18, %s37
      %s121 = ssub.s32 %s19, %s33
      %s122 = sor.u32 %s120, %s121
      %p123 = scmp.eq.s32.totalorder %s122, 0
      %s125 = sadd.s32 %s124, 1
      %s126 = scalar_select %p123, %s124, %s125
      %p129 = pneg %p123
      %p130 = scmp.eq.s32.totalorder %s11, 1
      %p131 = por %p129, %p130
      %p132 = scmp.ne.s32.totalorder %s124, %s127
      %p133 = scmp.eq.s32.totalorder %s11, 0
      %p134 = por %p132, %p133
      %p135 = scmp.ne.s32.totalorder %s124, %s127
      %p136 = scmp.eq.s32.totalorder %s16, 1
      %p137 = por %p135, %p136
      %p138 = scmp.ne.s32.totalorder %s127, %s128
      %p139 = scmp.eq.s32.totalorder %s16, 0
      %p140 = por %p138, %p139
      %p141 = scmp.ne.s32.totalorder %s127, %s128
      %p142 = scmp.eq.s32.totalorder %s17, 1
      %p143 = por %p141, %p142
      %p145 = scmp.ne.s32.totalorder %s128, %s144
      %p146 = scmp.eq.s32.totalorder %s17, 0
      %p147 = por %p145, %p146
      %s148 = ssub.s32 %s18, %s37
      %s149 = ssub.s32 %s19, %s33
      %s150 = sor.u32 %s148, %s149
      %p151 = scmp.eq.s32.totalorder %s150, 0
      %s153 = sadd.s32 %s152, 1
      %s154 = scalar_select %p151, %s152, %s153
      %p157 = pneg %p151
      %p158 = scmp.eq.s32.totalorder %s11, 1
      %p159 = por %p157, %p158
      %p160 = scmp.ne.s32.totalorder %s152, %s155
      %p161 = scmp.eq.s32.totalorder %s11, 0
      %p162 = por %p160, %p161
      %p163 = scmp.ne.s32.totalorder %s152, %s155
      %p164 = scmp.eq.s32.totalorder %s16, 1
      %p165 = por %p163, %p164
      %p166 = scmp.ne.s32.totalorder %s155, %s156
      %p167 = scmp.eq.s32.totalorder %s16, 0
      %p168 = por %p166, %p167
      %p169 = scmp.ne.s32.totalorder %s155, %s156
      %p170 = scmp.eq.s32.totalorder %s17, 1
      %p171 = por %p169, %p170
      %p173 = scmp.ne.s32.totalorder %s156, %s172
      %p174 = scmp.eq.s32.totalorder %s17, 0
      %p175 = por %p173, %p174
      %p176 = scmp.le.s32.totalorder 1, %s11
      %p177 = scmp.lt.s32.totalorder %s11, 3
      %p178 = pnand %p176, %p177
      %p179 = pneg %p178
      // Predicated region
      $region9: #{denoising_genius_forward.19} parent=5 // pred_check
        _
      $region10: #{denoising_genius_forward.19} parent=5 // pred_check_branch
        %181 = sbr.rel (%p178) target = $region12
      $region11: #{denoising_genius_forward.19} parent=5 // pred_region
        %s182 = ssub.s32 %s11, 1
        // Predicated region
        $region13: #{denoising_genius_forward.19} parent=11 // pred_check
          %p183 = pneg %p112
        $region14: #{denoising_genius_forward.19} parent=11 // pred_check_branch
          %185 = sbr.rel (%p183) target = $region16
        $region15: #{denoising_genius_forward.19} parent=11 // pred_region
          %p186 = scmp.lt.s32.totalorder %s22, 0
          %s187 = scalar_select %p186, %s22, 0
          %s188 = scalar_lea.vmem %s2, %s187
        $region16: #{denoising_genius_forward.19} parent=11 // pred_fallthru
          _
      $region12: #{denoising_genius_forward.19} parent=5 // pred_fallthru
        _
      %p189 = scmp.lt.s32.totalorder %s11, 2
      // Predicated region
      $region17: #{denoising_genius_forward.19} parent=5 // pred_check
        %p190 = pneg %p189
      $region18: #{denoising_genius_forward.19} parent=5 // pred_check_branch
        %192 = sbr.rel (%p190) target = $region20
      $region19: #{denoising_genius_forward.19} parent=5 // pred_region
        // Predicated region
        $region21: #{denoising_genius_forward.19} parent=19 // pred_check
          %p193 = pneg %p52
        $region22: #{denoising_genius_forward.19} parent=19 // pred_check_branch
          %195 = sbr.rel (%p193) target = $region24
        $region23: #{denoising_genius_forward.19} parent=19 // pred_region
          %s196 = sand.u32 %s42, 1
          %s197 = sand.u32 %s42, 1
          %s198 = smul.addr %s197, 24
          %s199 = scalar_lea.vmem [#allocation3], %s198
          %s200 = smul.u32 2, %s18
          %s201 = smul.u32 3, %s20
          %s202 = smul.addr %s200, 6
          %s203 = sadd.s32 %s201, %s202
          %s204 = smul.addr %s203, 4
          %s205 = scalar_lea.vmem %s0, %s204
          // Predicated region
          $region25: #{denoising_genius_forward.19} parent=23 // pred_check
            _
          $region26: #{denoising_genius_forward.19} parent=23 // pred_check_branch
            %207 = sbr.rel (0) target = $region28
          $region27: #{denoising_genius_forward.19} parent=23 // pred_region
            // Predicated region
            $region29: #{denoising_genius_forward.19} parent=27 // pred_check
              _
            $region30: #{denoising_genius_forward.19} parent=27 // pred_check_branch
              %209 = sbr.rel (0) target = $region32
            $region31: #{denoising_genius_forward.19} parent=27 // pred_region
              %s210 = scalar_lea.vmem %s205, 8
              %s211 = scalar_lea.vmem %s199, 8 [#allocation3]
              loop: start=0, step=1, limit=1
              $region33: #{denoising_genius_forward.19} parent=31 // loop_pre_header
                _
              $region34: #{denoising_genius_forward.19} parent=31 // loop_header
                %s213 = sphi 0, %s217
                %p214 = scmp.ge.s32.totalorder %s213, 1
                %s218 = sphi %s205, %s205
                %s219 = sphi %s199, %s199
              $region35: #{denoising_genius_forward.19} parent=31 // loop_header_branch
                %216 = sbr.rel (%p214) target = $region39
              $region36: #{denoising_genius_forward.19} parent=31 // loop_body
                %v220 = vld [vmem:[%s218] sm:$0xff]
                %221 = vst [vmem:[%s219] sm:$0xff] %v220
                %v222 = vld [vmem:[%s218 + $0x18] sm:$0xff]
                %223 = vst [vmem:[%s219 + $0xc] sm:$0xff] %v222
              $region37: #{denoising_genius_forward.19} parent=31 // loop_footer
                %s217 = sadd.s32 1, %s213
              $region38: #{denoising_genius_forward.19} parent=31 // loop_footer_branch
                %212 = sbr.rel target = $region34
              $region39: #{denoising_genius_forward.19} parent=31 // loop_exit
                _
              loop: start=0, step=1, limit=1
              $region40: #{denoising_genius_forward.19} parent=31 // loop_pre_header
                _
              $region41: #{denoising_genius_forward.19} parent=31 // loop_header
                %s226 = sphi 0, %s230
                %p227 = scmp.ge.s32.totalorder %s226, 1
                %s231 = sphi %s210, %s210
                %s232 = sphi %s211, %s211
              $region42: #{denoising_genius_forward.19} parent=31 // loop_header_branch
                %229 = sbr.rel (%p227) target = $region46
              $region43: #{denoising_genius_forward.19} parent=31 // loop_body
                %v233 = vld [vmem:[%s231] sm:$0xf]
                %234 = vst [vmem:[%s232] sm:$0xf] %v233
                %v235 = vld [vmem:[%s231 + $0x18] sm:$0xf]
                %236 = vst [vmem:[%s232 + $0xc] sm:$0xf] %v235
              $region44: #{denoising_genius_forward.19} parent=31 // loop_footer
                %s230 = sadd.s32 1, %s226
              $region45: #{denoising_genius_forward.19} parent=31 // loop_footer_branch
                %225 = sbr.rel target = $region41
              $region46: #{denoising_genius_forward.19} parent=31 // loop_exit
                _
            $region32: #{denoising_genius_forward.19} parent=27 // pred_fallthru
              _
          $region28: #{denoising_genius_forward.19} parent=23 // pred_fallthru
            _
          %237 = vnop
        $region24: #{denoising_genius_forward.19} parent=19 // pred_fallthru
          _
        // Predicated region
        $region47: #{denoising_genius_forward.19} parent=19 // pred_check
          %p238 = pneg %p80
        $region48: #{denoising_genius_forward.19} parent=19 // pred_check_branch
          %240 = sbr.rel (%p238) target = $region50
        $region49: #{denoising_genius_forward.19} parent=19 // pred_region
          %s241 = smul.u32 48, %s20
          %p242 = scmp.lt.s32.totalorder %s241, 95
          %s243 = scalar_select %p242, %s241, 95
          %p244 = scmp.lt.s32.totalorder %s19, 0
          %s245 = scalar_select %p244, %s19, 0
          %s246 = sadd.s32 %s245, %s243
          %s247 = smul.addr %s246, 4
          %s248 = scalar_lea.vmem %s1, %s247
          %s249 = smul.u32 48, %s20
        $region50: #{denoising_genius_forward.19} parent=19 // pred_fallthru
          _
      $region20: #{denoising_genius_forward.19} parent=5 // pred_fallthru
        _
      %p250 = scmp.le.s32.totalorder 1, %s11
      %p251 = scmp.lt.s32.totalorder %s11, 3
      %p252 = pnand %p250, %p251
      %p253 = pneg %p252
      // Predicated region
      $region51: #{denoising_genius_forward.19} parent=5 // pred_check
        _
      $region52: #{denoising_genius_forward.19} parent=5 // pred_check_branch
        %255 = sbr.rel (%p252) target = $region54
      $region53: #{denoising_genius_forward.19} parent=5 // pred_region
        %s256 = ssub.s32 %s11, 1
        %s257 = sand.u32 %s45, 1
        %s258 = sand.u32 %s45, 1
        %s259 = smul.addr %s258, 24
        %s260 = scalar_lea.vmem [#allocation3], %s259
        // Predicated region
        $region55: #{denoising_genius_forward.19} parent=53 // pred_check
          %p261 = pneg %p58
        $region56: #{denoising_genius_forward.19} parent=53 // pred_check_branch
          %263 = sbr.rel (%p261) target = $region58
        $region57: #{denoising_genius_forward.19} parent=53 // pred_region
          _
        $region58: #{denoising_genius_forward.19} parent=53 // pred_fallthru
          _
        %s264 = sand.u32 %s45, 1
        %s265 = sand.u32 %s45, 1
        %s266 = smul.addr %s265, 24
        %s267 = scalar_lea.vmem [#allocation3], %s266
        %p268 = pneg %p58
        %p269 = pneg %p55
        %s270 = smul.u32 48, %s23
        %p271 = scmp.lt.s32.totalorder %s270, 95
        %s272 = scalar_select %p271, %s270, 95
        %p273 = scmp.lt.s32.totalorder %s22, 0
        %s274 = scalar_select %p273, %s22, 0
        %s275 = sadd.s32 %s274, %s272
        %s276 = smul.addr %s275, 4
        %s277 = scalar_lea.vmem %s1, %s276
        %p278 = pneg %p86
        %p279 = pneg %p83
        %p280 = scmp.lt.s32.totalorder %s22, 0
        %s281 = scalar_select %p280, %s22, 0
        %s282 = scalar_lea.vmem %s2, %s281
        %p283 = pneg %p112
        %p284 = pneg %p109
        %p285 = pneg %p140
        %p286 = pneg %p137
        %s287 = smul.u32 2, %s21
        %p288 = scmp.lt.s32.totalorder %s287, 1
        %s289 = scalar_select %p288, %s287, 1
        %p290 = scmp.lt.s32.totalorder %s22, 0
        %s291 = scalar_select %p290, %s22, 0
        %s292 = sadd.s32 %s291, %s289
        %s293 = smul.addr %s292, 4
        %s294 = scalar_lea.vmem %s3, %s293
        %p295 = pneg %p168
        %p296 = pneg %p165
        %p297 = scmp.lt.s32.totalorder %s21, 0
        %s298 = scalar_select %p297, %s21, 0
        %p299 = scmp.lt.s32.totalorder %s22, 0
        %s300 = scalar_select %p299, %s22, 0
        %s301 = sadd.s32 %s300, %s298
        %s302 = smul.addr %s301, 8
        %s303 = scalar_lea.vmem %s4, %s302
        %s304 = smul.u32 2, %s21
        %s305 = smul.u32 3, %s23
        %s306 = smul.u32 48, %s23
        %p307 = scmp.lt.s32.totalorder %s306, 95
        %s308 = scalar_select %p307, %s306, 95
        %p309 = scmp.lt.s32.totalorder %s22, 0
        %s310 = scalar_select %p309, %s22, 0
        %s311 = sadd.s32 %s310, %s308
        %s312 = smul.addr %s311, 4
        %s313 = scalar_lea.vmem %s1, %s312
        %s314 = smul.u32 48, %s23
        %p315 = scmp.lt.s32.totalorder %s22, 0
        %s316 = scalar_select %p315, %s22, 0
        %s317 = scalar_lea.vmem %s2, %s316
        %s318 = smul.u32 2, %s21
        %p319 = scmp.lt.s32.totalorder %s318, 1
        %s320 = scalar_select %p319, %s318, 1
        %p321 = scmp.lt.s32.totalorder %s22, 0
        %s322 = scalar_select %p321, %s22, 0
        %s323 = sadd.s32 %s322, %s320
        %s324 = smul.addr %s323, 4
        %s325 = scalar_lea.vmem %s3, %s324
        %s326 = smul.u32 2, %s21
        %p327 = scmp.lt.s32.totalorder %s21, 0
        %s328 = scalar_select %p327, %s21, 0
        %p329 = scmp.lt.s32.totalorder %s22, 0
        %s330 = scalar_select %p329, %s22, 0
        %s331 = sadd.s32 %s330, %s328
        %s332 = smul.addr %s331, 8
        %s333 = scalar_lea.vmem %s4, %s332
        %p335 = scmp.eq.s32.totalorder %s23, 0
        // Predicated region
        $region59: #{denoising_genius_forward.19} parent=53 // pred_check
          %p336 = pneg %p335
        $region60: #{denoising_genius_forward.19} parent=53 // pred_check_branch
          %338 = sbr.rel (%p336) target = $region62
        $region61: #{denoising_genius_forward.19} parent=53 // pred_region
          %339 = vst [vmem:[#allocation2] sm:$0xff] 0.0
          %340 = vst [vmem:[#allocation2 + $0x8] sm:$0xff] 0.0
        $region62: #{denoising_genius_forward.19} parent=53 // pred_fallthru
          _
        %v341 = vld [vmem:[%s260] sm:$0xff]
        %v342 = vld [vmem:[%s260 + $0x8] sm:$0xf]
        %v343 = vld [vmem:[%s260 + $0xc] sm:$0xff]
        %v344 = vld [vmem:[%s260 + $0x14] sm:$0xf]
        %v345 = vld [vmem:[%s313] sm:$0xf]
        %v346 = vld [vmem:[%s313 + $0x4] sm:$0xf]
        %v347 = vld [vmem:[%s313 + $0x8] sm:$0xf]
        %v348 = vld [vmem:[%s313 + $0xc] sm:$0xf]
        %v349 = vld [vmem:[%s313 + $0x10] sm:$0xf]
        %v350 = vld [vmem:[%s313 + $0x14] sm:$0xf]
        %v351 = vld [vmem:[%s313 + $0x18] sm:$0xf]
        %v352 = vld [vmem:[%s313 + $0x1c] sm:$0xf]
        %v353 = vld [vmem:[%s313 + $0x20] sm:$0xf]
        %v354 = vld [vmem:[%s313 + $0x24] sm:$0xf]
        %v355 = vld [vmem:[%s313 + $0x28] sm:$0xf]
        %v356 = vld [vmem:[%s313 + $0x2c] sm:$0xf]
        %v357 = vld [vmem:[%s313 + $0x30] sm:$0xf]
        %v358 = vld [vmem:[%s313 + $0x34] sm:$0xf]
        %v359 = vld [vmem:[%s313 + $0x38] sm:$0xf]
        %v360 = vld [vmem:[%s313 + $0x3c] sm:$0xf]
        %v361 = vld [vmem:[%s313 + $0x40] sm:$0xf]
        %v362 = vld [vmem:[%s313 + $0x44] sm:$0xf]
        %v363 = vld [vmem:[%s313 + $0x48] sm:$0xf]
        %v364 = vld [vmem:[%s313 + $0x4c] sm:$0xf]
        %v365 = vld [vmem:[%s313 + $0x50] sm:$0xf]
        %v366 = vld [vmem:[%s313 + $0x54] sm:$0xf]
        %v367 = vld [vmem:[%s313 + $0x58] sm:$0xf]
        %v368 = vld [vmem:[%s313 + $0x5c] sm:$0xf]
        %v369 = vld [vmem:[%s313 + $0x60] sm:$0xf]
        %v370 = vld [vmem:[%s313 + $0x64] sm:$0xf]
        %v371 = vld [vmem:[%s313 + $0x68] sm:$0xf]
        %v372 = vld [vmem:[%s313 + $0x6c] sm:$0xf]
        %v373 = vld [vmem:[%s313 + $0x70] sm:$0xf]
        %v374 = vld [vmem:[%s313 + $0x74] sm:$0xf]
        %v375 = vld [vmem:[%s313 + $0x78] sm:$0xf]
        %v376 = vld [vmem:[%s313 + $0x7c] sm:$0xf]
        %v377 = vld [vmem:[%s313 + $0x80] sm:$0xf]
        %v378 = vld [vmem:[%s313 + $0x84] sm:$0xf]
        %v379 = vld [vmem:[%s313 + $0x88] sm:$0xf]
        %v380 = vld [vmem:[%s313 + $0x8c] sm:$0xf]
        %v381 = vld [vmem:[%s313 + $0x90] sm:$0xf]
        %v382 = vld [vmem:[%s313 + $0x94] sm:$0xf]
        %v383 = vld [vmem:[%s313 + $0x98] sm:$0xf]
        %v384 = vld [vmem:[%s313 + $0x9c] sm:$0xf]
        %v385 = vld [vmem:[%s313 + $0xa0] sm:$0xf]
        %v386 = vld [vmem:[%s313 + $0xa4] sm:$0xf]
        %v387 = vld [vmem:[%s313 + $0xa8] sm:$0xf]
        %v388 = vld [vmem:[%s313 + $0xac] sm:$0xf]
        %v389 = vld [vmem:[%s313 + $0xb0] sm:$0xf]
        %v390 = vld [vmem:[%s313 + $0xb4] sm:$0xf]
        %v391 = vld [vmem:[%s313 + $0xb8] sm:$0xf]
        %v392 = vld [vmem:[%s313 + $0xbc] sm:$0xf]
        %v397 = vunpack.c.l.b16 %v341
        %v398 = vunpack.c.h.b16 %v341
        %v399 = vunpack.c.l.b16 %v342
        %v400 = vunpack.c.l.b16 %v343
        %v401 = vunpack.c.h.b16 %v343
        %v402 = vunpack.c.l.b16 %v344
        %v403 = vpack.c.b16 %v400, %v397
        %v404 = vpack.c.b16 %v401, %v398
        %v405 = vpack.c.b16 %v402, %v399
        %v457 = vunpack.c.l.b16 %v345
        %v458 = vunpack.c.l.b16 %v346
        %v459 = vunpack.c.l.b16 %v347
        %v460 = vunpack.c.l.b16 %v348
        %v461 = vunpack.c.l.b16 %v349
        %v462 = vunpack.c.l.b16 %v350
        %v463 = vunpack.c.l.b16 %v351
        %v464 = vunpack.c.l.b16 %v352
        %v465 = vunpack.c.l.b16 %v353
        %v466 = vunpack.c.l.b16 %v354
        %v467 = vunpack.c.l.b16 %v355
        %v468 = vunpack.c.l.b16 %v356
        %v469 = vunpack.c.l.b16 %v357
        %v470 = vunpack.c.l.b16 %v358
        %v471 = vunpack.c.l.b16 %v359
        %v472 = vunpack.c.l.b16 %v360
        %v473 = vunpack.c.l.b16 %v361
        %v474 = vunpack.c.l.b16 %v362
        %v475 = vunpack.c.l.b16 %v363
        %v476 = vunpack.c.l.b16 %v364
        %v477 = vunpack.c.l.b16 %v365
        %v478 = vunpack.c.l.b16 %v366
        %v479 = vunpack.c.l.b16 %v367
        %v480 = vunpack.c.l.b16 %v368
        %v481 = vunpack.c.l.b16 %v369
        %v482 = vunpack.c.l.b16 %v370
        %v483 = vunpack.c.l.b16 %v371
        %v484 = vunpack.c.l.b16 %v372
        %v485 = vunpack.c.l.b16 %v373
        %v486 = vunpack.c.l.b16 %v374
        %v487 = vunpack.c.l.b16 %v375
        %v488 = vunpack.c.l.b16 %v376
        %v489 = vunpack.c.l.b16 %v377
        %v490 = vunpack.c.l.b16 %v378
        %v491 = vunpack.c.l.b16 %v379
        %v492 = vunpack.c.l.b16 %v380
        %v493 = vunpack.c.l.b16 %v381
        %v494 = vunpack.c.l.b16 %v382
        %v495 = vunpack.c.l.b16 %v383
        %v496 = vunpack.c.l.b16 %v384
        %v497 = vunpack.c.l.b16 %v385
        %v498 = vunpack.c.l.b16 %v386
        %v499 = vunpack.c.l.b16 %v387
        %v500 = vunpack.c.l.b16 %v388
        %v501 = vunpack.c.l.b16 %v389
        %v502 = vunpack.c.l.b16 %v390
        %v503 = vunpack.c.l.b16 %v391
        %v504 = vunpack.c.l.b16 %v392
        %v505 = vpack.c.b16 %v458, %v457
        %v506 = vpack.c.b16 %v460, %v459
        %v507 = vpack.c.b16 %v462, %v461
        %v508 = vpack.c.b16 %v464, %v463
        %v509 = vpack.c.b16 %v466, %v465
        %v510 = vpack.c.b16 %v468, %v467
        %v511 = vpack.c.b16 %v470, %v469
        %v512 = vpack.c.b16 %v472, %v471
        %v513 = vpack.c.b16 %v474, %v473
        %v514 = vpack.c.b16 %v476, %v475
        %v515 = vpack.c.b16 %v478, %v477
        %v516 = vpack.c.b16 %v480, %v479
        %v517 = vpack.c.b16 %v482, %v481
        %v518 = vpack.c.b16 %v484, %v483
        %v519 = vpack.c.b16 %v486, %v485
        %v520 = vpack.c.b16 %v488, %v487
        %v521 = vpack.c.b16 %v490, %v489
        %v522 = vpack.c.b16 %v492, %v491
        %v523 = vpack.c.b16 %v494, %v493
        %v524 = vpack.c.b16 %v496, %v495
        %v525 = vpack.c.b16 %v498, %v497
        %v526 = vpack.c.b16 %v500, %v499
        %v527 = vpack.c.b16 %v502, %v501
        %v528 = vpack.c.b16 %v504, %v503
        %553 = vmatprep.subr.bf16.mxu0 0
        %554 = vmatpush1.bf16.msra.mxu0 %v505
        %555 = vmatprep.subr.bf16.mxu0 0
        %556 = vmatpush1.bf16.msra.mxu0 %v506
        %557 = vmatprep.subr.bf16.mxu0 0
        %558 = vmatpush1.bf16.msra.mxu0 %v507
        %559 = vmatprep.subr.bf16.mxu0 0
        %560 = vmatpush1.bf16.msra.mxu0 %v508
        %561 = vmatprep.subr.bf16.mxu0 0
        %562 = vmatpush1.bf16.msra.mxu0 %v509
        %563 = vmatprep.subr.bf16.mxu0 0
        %564 = vmatpush1.bf16.msra.mxu0 %v510
        %565 = vmatprep.subr.bf16.mxu0 0
        %566 = vmatpush1.bf16.msra.mxu0 %v511
        %567 = vmatprep.subr.bf16.mxu0 0
        %568 = vmatpush1.bf16.msra.mxu0 %v512
        %569 = vmatprep.subr.bf16.mxu0 0
        %570 = vmatpush1.bf16.msra.mxu0 %v513
        %571 = vmatprep.subr.bf16.mxu0 0
        %572 = vmatpush1.bf16.msra.mxu0 %v514
        %573 = vmatprep.subr.bf16.mxu0 0
        %574 = vmatpush1.bf16.msra.mxu0 %v515
        %575 = vmatprep.subr.bf16.mxu0 0
        %576 = vmatpush1.bf16.msra.mxu0 %v516
        %577 = vmatprep.subr.bf16.mxu0 0
        %578 = vmatpush1.bf16.msra.mxu0 %v517
        %579 = vmatprep.subr.bf16.mxu0 0
        %580 = vmatpush1.bf16.msra.mxu0 %v518
        %581 = vmatprep.subr.bf16.mxu0 0
        %582 = vmatpush1.bf16.msra.mxu0 %v519
        %583 = vmatprep.subr.bf16.mxu0 0
        %584 = vmatpush1.bf16.msra.mxu0 %v520
        %585 = vmatprep.mubr.bf16.mxu0 %v404
        %586 = vmatmul.mubr.bf16.gmra.mrb[0].mxu0 %v403
        %v587 = vpop.f32.mrb[0].mxu0
        %v588 = vadd.f32 0.0, %v587
        %v589 = vpop.f32.mrb[0].mxu0
        %v590 = vpop.f32.mrb[0].mxu0
        %v591 = vadd.f32 0.0, %v590
        %v592 = vpop.f32.mrb[0].mxu0
        %593 = vdwg.mxu0
        %594 = vmatprep.subr.bf16.mxu0 0
        %595 = vmatpush1.bf16.msra.mxu0 %v521
        %596 = vmatprep.subr.bf16.mxu0 0
        %597 = vmatpush1.bf16.msra.mxu0 %v522
        %598 = vmatprep.subr.bf16.mxu0 0
        %599 = vmatpush1.bf16.msra.mxu0 %v523
        %600 = vmatprep.subr.bf16.mxu0 0
        %601 = vmatpush1.bf16.msra.mxu0 %v524
        %602 = vmatprep.subr.bf16.mxu0 0
        %603 = vmatpush1.bf16.msra.mxu0 %v525
        %604 = vmatprep.subr.bf16.mxu0 0
        %605 = vmatpush1.bf16.msra.mxu0 %v526
        %606 = vmatprep.subr.bf16.mxu0 0
        %607 = vmatpush1.bf16.msra.mxu0 %v527
        %608 = vmatprep.subr.bf16.mxu0 0
        %609 = vmatpush1.bf16.msra.mxu0 %v528
        %610 = vmatprep.subr.bf16.mxu0 0
        %611 = vmatpush1.bf16.msra.mxu0 0
        %612 = vmatprep.subr.bf16.mxu0 0
        %613 = vmatpush1.bf16.msra.mxu0 0
        %614 = vmatprep.subr.bf16.mxu0 0
        %615 = vmatpush1.bf16.msra.mxu0 0
        %616 = vmatprep.subr.bf16.mxu0 0
        %617 = vmatpush1.bf16.msra.mxu0 0
        %618 = vmatprep.subr.bf16.mxu0 0
        %619 = vmatpush1.bf16.msra.mxu0 0
        %620 = vmatprep.subr.bf16.mxu0 0
        %621 = vmatpush1.bf16.msra.mxu0 0
        %622 = vmatprep.subr.bf16.mxu0 0
        %623 = vmatpush1.bf16.msra.mxu0 0
        %624 = vmatprep.subr.bf16.mxu0 0
        %625 = vmatpush1.bf16.msra.mxu0 0
        %626 = vmatprep.mubr.bf16.mxu0 0
        %627 = vmatmul.mubr.bf16.gmra.mrb[0].mxu0 %v405
        %v628 = vpop.f32.mrb[0].mxu0
        %v629 = vadd.f32 %v588, %v628
        %v630 = vpop.f32.mrb[0].mxu0
        %v631 = vpop.f32.mrb[0].mxu0
        %v632 = vadd.f32 %v591, %v631
        %v633 = vpop.f32.mrb[0].mxu0
        %634 = vdwg.mxu0
        %v635 = vld [vmem:[#allocation2] sm:$0xff]
        %v636 = vld [vmem:[#allocation2 + $0x8] sm:$0xff]
        %v637 = vadd.f32 %v635, %v629
        %v638 = vadd.f32 %v636, %v632
        %639 = vst [vmem:[#allocation2] sm:$0xff] %v637
        %640 = vst [vmem:[#allocation2 + $0x8] sm:$0xff] %v638
        %p641 = scmp.eq.s32.totalorder %s23, 1
        // Predicated region
        $region63: #{denoising_genius_forward.19} parent=53 // pred_check
          %p642 = pneg %p641
        $region64: #{denoising_genius_forward.19} parent=53 // pred_check_branch
          %644 = sbr.rel (%p642) target = $region66
        $region65: #{denoising_genius_forward.19} parent=53 // pred_region
          %v645 = vld [vmem:[#allocation2] sm:$0xff]
          %v646 = vld [vmem:[#allocation2 + $0x8] sm:$0xff]
          %v647 = vld [vmem:[%s317] sm:$0x1]
          %v649 = vlaneseq
          %v650 = vshrl.u32 %v649, 7
          %v651 = vsub.s32 0, %v650
          %v652 = vrot.slane %v647, %v651
          %v654 = vadd.f32 %v645, %v652
          %v655 = vadd.f32 %v646, %v652
          %v656 = vpack.c.bf16 %v655, %v654
          %v658 = vunpack.c.l.b16 %v656
          %v659 = vunpack.c.h.b16 %v656
          %v660 = vpack.c.b16 %v658, %v658
          %v661 = vpack.c.b16 %v659, %v659
          %664 = vst [vmem:[%s325] sm:$0xf] %v660
          %665 = vst [vmem:[%s325 + $0x4] sm:$0xf] %v661
          %v666 = vadd.f32 %v645, %v646
          %v667 = vrot.slane %v666, 4
          %v668 = vadd.f32 %v666, %v667
          %v669 = vrot.slane %v668, 2
          %v670 = vadd.f32 %v668, %v669
          %v671 = vrot.slane %v670, 1
          %v672 = vadd.f32 %v670, %v671
          %v673 = vmul.f32 %v645, %v645
          %v674 = vmul.f32 %v646, %v646
          %v675 = vadd.f32 %v673, %v674
          %v676 = vrot.slane %v675, 4
          %v677 = vadd.f32 %v675, %v676
          %v678 = vrot.slane %v677, 2
          %v679 = vadd.f32 %v677, %v678
          %v680 = vrot.slane %v679, 1
          %v681 = vadd.f32 %v679, %v680
          %v682 = vlaneseq
          %v683 = vshrl.u32 %v682, 7
          %vm684 = vcmp.eq.s32.totalorder %v683, 0
          %vm685 = vcmp.eq.s32.totalorder %v683, 1
          %v686 = vsel %vm685, %v681, 0.0
          %v687 = vsel %vm684, %v672, %v686
          %688 = vst [vmem:[%s333] sm:$0xff] %v687
        $region66: #{denoising_genius_forward.19} parent=53 // pred_fallthru
          _
        %s689 = smul.u32 2, %s21
        %p690 = scmp.lt.s32.totalorder %s689, 1
        %s691 = scalar_select %p690, %s689, 1
        %p692 = scmp.lt.s32.totalorder %s22, 0
        %s693 = scalar_select %p692, %s22, 0
        %s694 = sadd.s32 %s693, %s691
        %s695 = smul.addr %s694, 4
        %s696 = scalar_lea.vmem %s3, %s695
        %p697 = scmp.lt.s32.totalorder %s21, 0
        %s698 = scalar_select %p697, %s21, 0
        %p699 = scmp.lt.s32.totalorder %s22, 0
        %s700 = scalar_select %p699, %s22, 0
        %s701 = sadd.s32 %s700, %s698
        %s702 = smul.addr %s701, 8
        %s703 = scalar_lea.vmem %s4, %s702
        // Predicated region
        $region67: #{denoising_genius_forward.19} parent=53 // pred_check
          %p704 = pneg %p137
        $region68: #{denoising_genius_forward.19} parent=53 // pred_check_branch
          %706 = sbr.rel (%p704) target = $region70
        $region69: #{denoising_genius_forward.19} parent=53 // pred_region
          %s707 = smul.u32 2, %s21
        $region70: #{denoising_genius_forward.19} parent=53 // pred_fallthru
          _
        // Predicated region
        $region71: #{denoising_genius_forward.19} parent=53 // pred_check
          %p708 = pneg %p165
        $region72: #{denoising_genius_forward.19} parent=53 // pred_check_branch
          %710 = sbr.rel (%p708) target = $region74
        $region73: #{denoising_genius_forward.19} parent=53 // pred_region
          _
        $region74: #{denoising_genius_forward.19} parent=53 // pred_fallthru
          _
        // Predicated region
        $region75: #{denoising_genius_forward.19} parent=53 // pred_check
          %p711 = pneg %p137
        $region76: #{denoising_genius_forward.19} parent=53 // pred_check_branch
          %713 = sbr.rel (%p711) target = $region78
        $region77: #{denoising_genius_forward.19} parent=53 // pred_region
          %s714 = smul.u32 2, %s21
          %p715 = scmp.lt.s32.totalorder %s714, 1
          %s716 = scalar_select %p715, %s714, 1
          %p717 = scmp.lt.s32.totalorder %s22, 0
          %s718 = scalar_select %p717, %s22, 0
          %s719 = sadd.s32 %s718, %s716
          %s720 = smul.addr %s719, 4
          %s721 = scalar_lea.vmem %s3, %s720
        $region78: #{denoising_genius_forward.19} parent=53 // pred_fallthru
          _
        // Predicated region
        $region79: #{denoising_genius_forward.19} parent=53 // pred_check
          %p722 = pneg %p165
        $region80: #{denoising_genius_forward.19} parent=53 // pred_check_branch
          %724 = sbr.rel (%p722) target = $region82
        $region81: #{denoising_genius_forward.19} parent=53 // pred_region
          %p725 = scmp.lt.s32.totalorder %s21, 0
          %s726 = scalar_select %p725, %s21, 0
          %p727 = scmp.lt.s32.totalorder %s22, 0
          %s728 = scalar_select %p727, %s22, 0
          %s729 = sadd.s32 %s728, %s726
          %s730 = smul.addr %s729, 8
          %s731 = scalar_lea.vmem %s4, %s730
        $region82: #{denoising_genius_forward.19} parent=53 // pred_fallthru
          _
      $region54: #{denoising_genius_forward.19} parent=5 // pred_fallthru
        _
      %p732 = scmp.le.s32.totalorder 2, %s11
      // Predicated region
      $region83: #{denoising_genius_forward.19} parent=5 // pred_check
        %p733 = pneg %p732
      $region84: #{denoising_genius_forward.19} parent=5 // pred_check_branch
        %735 = sbr.rel (%p733) target = $region86
      $region85: #{denoising_genius_forward.19} parent=5 // pred_region
        %s736 = ssub.s32 %s11, 2
      $region86: #{denoising_genius_forward.19} parent=5 // pred_fallthru
        _
    $region6: #{denoising_genius_forward.19} parent=1 // loop_footer
      %s15 = sadd.s32 1, %s11
    $region7: #{denoising_genius_forward.19} parent=1 // loop_footer_branch
      %10 = sbr.rel target = $region3
    $region8: #{denoising_genius_forward.19} parent=1 // loop_exit
      _

// kernel: denoising_genius_forward.22
$region0: #{denoising_genius_forward.22}
  #allocation0 [shape = 'u32[]', space=smem, size = 0x4, offset = 0x4, fixed_abs, tag = 'smem constant byte address 0x4 - core index']
  #allocation1 [shape = 'u32[144,128]{1,0:T(1,128)}', space=vmem, size = 0x12000, scoped, tag = 'internal scratch']
  %s0 = inlined_call_operand.vmem [shape: bf16[16,256], index: 0, kind: input, shape index: {}]
  %s1 = inlined_call_operand.vmem [shape: f32[1,256], index: 1, kind: input, shape index: {}]
  %s2 = inlined_call_operand.vmem [shape: f32[1,256], index: 2, kind: input, shape index: {}]
  %s3 = inlined_call_operand.vmem [shape: bf16[16,256], index: 3, kind: output, shape index: {}]
  %s4 = sld [smem:[#allocation0]]
  $region22: #{denoising_genius_forward.22} parent=0
    _
  %s6 = ssub.s32 1, %s4
  %s7 = scalar_select 0, %s6, %s4
  // Predicated region
  $region2: #{denoising_genius_forward.22} parent=0 // pred_check
    _
  $region3: #{denoising_genius_forward.22} parent=0 // pred_check_branch
    %9 = sbr.rel (0) target = $region5
  $region4: #{denoising_genius_forward.22} parent=0 // pred_region
    _
  $region5: #{denoising_genius_forward.22} parent=0 // pred_fallthru
    _
  // Predicated region
  $region6: #{denoising_genius_forward.22} parent=0 // pred_check
    _
  $region7: #{denoising_genius_forward.22} parent=0 // pred_check_branch
    %11 = sbr.rel (0) target = $region9
  $region8: #{denoising_genius_forward.22} parent=0 // pred_region
    _
  $region9: #{denoising_genius_forward.22} parent=0 // pred_fallthru
    _
  // Predicated region
  $region10: #{denoising_genius_forward.22} parent=0 // pred_check
    _
  $region11: #{denoising_genius_forward.22} parent=0 // pred_check_branch
    %13 = sbr.rel (0) target = $region13
  $region12: #{denoising_genius_forward.22} parent=0 // pred_region
    _
  $region13: #{denoising_genius_forward.22} parent=0 // pred_fallthru
    _
  %v14 = vld [vmem:[%s0] sm:$0xff]
  %v15 = vld [vmem:[%s0 + $0x8] sm:$0xff]
  %v16 = vunpack.c.l.bf16 %v14
  %v17 = vunpack.c.h.bf16 %v14
  %v18 = vunpack.c.l.bf16 %v15
  %v19 = vunpack.c.h.bf16 %v15
  %v20 = vld [vmem:[%s1] sm:$0x3]
  %v22 = vlaneseq
  %v23 = vshrl.u32 %v22, 7
  %v24 = vsub.s32 0, %v23
  %v25 = vrot.slane %v20, %v24
  %v26 = vlaneseq
  %v27 = vshrl.u32 %v26, 7
  %v28 = vsub.s32 1, %v27
  %v29 = vrot.slane %v20, %v28
  %v32 = vmul.f32 %v16, %v25
  %v33 = vmul.f32 %v17, %v29
  %v34 = vmul.f32 %v18, %v25
  %v35 = vmul.f32 %v19, %v29
  %v36 = vld [vmem:[%s2] sm:$0x3]
  %v38 = vlaneseq
  %v39 = vshrl.u32 %v38, 7
  %v40 = vsub.s32 0, %v39
  %v41 = vrot.slane %v36, %v40
  %v42 = vlaneseq
  %v43 = vshrl.u32 %v42, 7
  %v44 = vsub.s32 1, %v43
  %v45 = vrot.slane %v36, %v44
  %v48 = vadd.f32 %v32, %v41
  %v49 = vadd.f32 %v33, %v45
  %v50 = vadd.f32 %v34, %v41
  %v51 = vadd.f32 %v35, %v45
  %v52 = vmax.f32 %v48, 0.0
  %v53 = vmax.f32 %v49, 0.0
  %v54 = vmax.f32 %v50, 0.0
  %v55 = vmax.f32 %v51, 0.0
  %v56 = vpack.c.bf16 %v54, %v52
  %v57 = vpack.c.bf16 %v55, %v53
  %v60 = vunpack.c.l.b16 %v56
  %v61 = vunpack.c.l.b16 %v57
  %v62 = vunpack.c.h.b16 %v56
  %v63 = vunpack.c.h.b16 %v57
  %v64 = vpack.c.b16 %v61, %v60
  %v65 = vpack.c.b16 %v63, %v62
  %68 = vst [vmem:[%s3] sm:$0xff] %v64
  %69 = vst [vmem:[%s3 + $0x8] sm:$0xff] %v65
  // Predicated region
  $region14: #{denoising_genius_forward.22} parent=0 // pred_check
    _
  $region15: #{denoising_genius_forward.22} parent=0 // pred_check_branch
    %71 = sbr.rel (0) target = $region17
  $region16: #{denoising_genius_forward.22} parent=0 // pred_region
    _
  $region17: #{denoising_genius_forward.22} parent=0 // pred_fallthru
    _
  // Predicated region
  $region18: #{denoising_genius_forward.22} parent=0 // pred_check
    _
  $region19: #{denoising_genius_forward.22} parent=0 // pred_check_branch
    %73 = sbr.rel (0) target = $region21
  $region20: #{denoising_genius_forward.22} parent=0 // pred_region
    _
  $region21: #{denoising_genius_forward.22} parent=0 // pred_fallthru
    _

// kernel: tile.33
$region0: #{tile.33}
  #allocation0 [shape = 's32[1]{0}', space=sflag, size = 0x4, scoped, tag = 'scoped memory for tile.33']
  %s0 = inlined_call_operand.vmem [shape: f32[128], index: 0, kind: input, shape index: {}]
  %s1 = inlined_call_operand.vmem [shape: f32[4,128], index: 1, kind: output, shape index: {}]
  // Predicated region
  $region2: #{tile.33} parent=0 // pred_check
    _
  $region3: #{tile.33} parent=0 // pred_check_branch
    %3 = sbr.rel (0) target = $region5
  $region4: #{tile.33} parent=0 // pred_region
    _
  $region5: #{tile.33} parent=0 // pred_fallthru
    _
  %v4 = vld [vmem:[%s0] ss:$0 sm:$0xff]
  %5 = vst [vmem:[%s1] sm:$0xf] %v4

// kernel: denoising_genius_forward.21
$region0: #{denoising_genius_forward.21}
  #allocation0 [shape = 'u32[]', space=smem, size = 0x4, offset = 0x4, fixed_abs, tag = 'smem constant byte address 0x4 - core index']
  #allocation1 [shape = 'u32[144,128]{1,0:T(1,128)}', space=vmem, size = 0x12000, scoped, tag = 'internal scratch']
  #allocation2 [shape = 'f32[16,256]{1,0:T(8,128)}', space=vmem, size = 0x4000, scoped, tag = 'scratch operand']
  %s0 = inlined_call_operand.vmem [shape: bf16[16,1152], index: 0, kind: input, shape index: {}]
  %s1 = inlined_call_operand.vmem [shape: bf16[1152,256], index: 1, kind: input, shape index: {}]
  %s2 = inlined_call_operand.vmem [shape: f32[1,256], index: 2, kind: input, shape index: {}]
  %s3 = inlined_call_operand.vmem [shape: bf16[16,256], index: 3, kind: output, shape index: {0}]
  %s4 = inlined_call_operand.vmem [shape: f32[1,8,256], index: 4, kind: output, shape index: {1}]
  %5 = xla_tuple %s3, %s4
  %s6 = sld [smem:[#allocation0]]
  $region87: #{denoising_genius_forward.21} parent=0
    _
  %s8 = ssub.s32 1, %s6
  %s9 = scalar_select 0, %s8, %s6
  $region1: #{denoising_genius_forward.21} parent=0
    #allocation3 [shape = 'u8[24576]{0}', space=vmem, size = 0x6000, scoped, tag = 'input window, operand 0']
    loop: start=0, step=1, limit=5
    $region2: #{denoising_genius_forward.21} parent=1 // loop_pre_header
      _
    $region3: #{denoising_genius_forward.21} parent=1 // loop_header
      %s11 = sphi 0, %s15
      %p12 = scmp.ge.s32.totalorder %s11, 5
      %s18 = sphi 0, %s37
      %s19 = sphi 0, %s33
      %s20 = sphi 0, %s29
      %s21 = sphi 0, %s18
      %s22 = sphi 0, %s19
      %s23 = sphi 0, %s20
      %s24 = sphi 0, %s21
      %s25 = sphi 0, %s22
      %s26 = sphi 0, %s23
      %s42 = sphi 0, %s44
      %s45 = sphi 0, %s42
      %s46 = sphi 0, %s45
      %s62 = sphi 0, %s46
      %s70 = sphi 0, %s72
      %s73 = sphi 0, %s70
      %s74 = sphi 0, %s73
      %s90 = sphi 0, %s74
      %s96 = sphi 0, %s98
      %s99 = sphi 0, %s96
      %s100 = sphi 0, %s99
      %s116 = sphi 0, %s100
      %s124 = sphi 0, %s126
      %s127 = sphi 0, %s124
      %s128 = sphi 0, %s127
      %s144 = sphi 0, %s128
      %s152 = sphi 0, %s154
      %s155 = sphi 0, %s152
      %s156 = sphi 0, %s155
      %s172 = sphi 0, %s156
    $region4: #{denoising_genius_forward.21} parent=1 // loop_header_branch
      %14 = sbr.rel (%p12) target = $region8
    $region5: #{denoising_genius_forward.21} parent=1 // loop_body
      %s16 = ssub.s32 %s11, 1
      %s17 = ssub.s32 %s11, 2
      %s27 = sadd.s32 1, %s20
      %p28 = scmp.ge.s32.totalorder %s27, 3
      %s29 = scalar_select %p28, 0, %s27
      %s30 = sadd.s32 1, %s19
      %s31 = scalar_select %p28, %s30, %s19
      %p32 = scmp.ge.s32.totalorder %s31, 1
      %s33 = scalar_select %p32, 0, %s31
      %s34 = sadd.s32 1, %s18
      %s35 = scalar_select %p32, %s34, %s18
      %p36 = scmp.ge.s32.totalorder %s35, 1
      %s37 = scalar_select %p36, 0, %s35
      %s38 = ssub.s32 %s18, %s37
      %s39 = ssub.s32 %s20, %s29
      %s40 = sor.u32 %s38, %s39
      %p41 = scmp.eq.s32.totalorder %s40, 0
      %s43 = sadd.s32 %s42, 1
      %s44 = scalar_select %p41, %s42, %s43
      %p47 = pneg %p41
      %p48 = scmp.eq.s32.totalorder %s11, 2
      %p49 = por %p47, %p48
      %p50 = scmp.ne.s32.totalorder %s42, %s45
      %p51 = scmp.eq.s32.totalorder %s11, 0
      %p52 = por %p50, %p51
      %p53 = scmp.ne.s32.totalorder %s42, %s45
      %p54 = scmp.eq.s32.totalorder %s16, 2
      %p55 = por %p53, %p54
      %p56 = scmp.ne.s32.totalorder %s45, %s46
      %p57 = scmp.eq.s32.totalorder %s16, 0
      %p58 = por %p56, %p57
      %p59 = scmp.ne.s32.totalorder %s45, %s46
      %p60 = scmp.eq.s32.totalorder %s17, 2
      %p61 = por %p59, %p60
      %p63 = scmp.ne.s32.totalorder %s46, %s62
      %p64 = scmp.eq.s32.totalorder %s17, 0
      %p65 = por %p63, %p64
      %s66 = ssub.s32 %s20, %s29
      %s67 = ssub.s32 %s19, %s33
      %s68 = sor.u32 %s66, %s67
      %p69 = scmp.eq.s32.totalorder %s68, 0
      %s71 = sadd.s32 %s70, 1
      %s72 = scalar_select %p69, %s70, %s71
      %p75 = pneg %p69
      %p76 = scmp.eq.s32.totalorder %s11, 2
      %p77 = por %p75, %p76
      %p78 = scmp.ne.s32.totalorder %s70, %s73
      %p79 = scmp.eq.s32.totalorder %s11, 0
      %p80 = por %p78, %p79
      %p81 = scmp.ne.s32.totalorder %s70, %s73
      %p82 = scmp.eq.s32.totalorder %s16, 2
      %p83 = por %p81, %p82
      %p84 = scmp.ne.s32.totalorder %s73, %s74
      %p85 = scmp.eq.s32.totalorder %s16, 0
      %p86 = por %p84, %p85
      %p87 = scmp.ne.s32.totalorder %s73, %s74
      %p88 = scmp.eq.s32.totalorder %s17, 2
      %p89 = por %p87, %p88
      %p91 = scmp.ne.s32.totalorder %s74, %s90
      %p92 = scmp.eq.s32.totalorder %s17, 0
      %p93 = por %p91, %p92
      %s94 = ssub.s32 %s19, %s33
      %p95 = scmp.eq.s32.totalorder %s94, 0
      %s97 = sadd.s32 %s96, 1
      %s98 = scalar_select %p95, %s96, %s97
      %p101 = pneg %p95
      %p102 = scmp.eq.s32.totalorder %s11, 2
      %p103 = por %p101, %p102
      %p104 = scmp.ne.s32.totalorder %s96, %s99
      %p105 = scmp.eq.s32.totalorder %s11, 0
      %p106 = por %p104, %p105
      %p107 = scmp.ne.s32.totalorder %s96, %s99
      %p108 = scmp.eq.s32.totalorder %s16, 2
      %p109 = por %p107, %p108
      %p110 = scmp.ne.s32.totalorder %s99, %s100
      %p111 = scmp.eq.s32.totalorder %s16, 0
      %p112 = por %p110, %p111
      %p113 = scmp.ne.s32.totalorder %s99, %s100
      %p114 = scmp.eq.s32.totalorder %s17, 2
      %p115 = por %p113, %p114
      %p117 = scmp.ne.s32.totalorder %s100, %s116
      %p118 = scmp.eq.s32.totalorder %s17, 0
      %p119 = por %p117, %p118
      %s120 = ssub.s32 %s18, %s37
      %s121 = ssub.s32 %s19, %s33
      %s122 = sor.u32 %s120, %s121
      %p123 = scmp.eq.s32.totalorder %s122, 0
      %s125 = sadd.s32 %s124, 1
      %s126 = scalar_select %p123, %s124, %s125
      %p129 = pneg %p123
      %p130 = scmp.eq.s32.totalorder %s11, 2
      %p131 = por %p129, %p130
      %p132 = scmp.ne.s32.totalorder %s124, %s127
      %p133 = scmp.eq.s32.totalorder %s11, 0
      %p134 = por %p132, %p133
      %p135 = scmp.ne.s32.totalorder %s124, %s127
      %p136 = scmp.eq.s32.totalorder %s16, 2
      %p137 = por %p135, %p136
      %p138 = scmp.ne.s32.totalorder %s127, %s128
      %p139 = scmp.eq.s32.totalorder %s16, 0
      %p140 = por %p138, %p139
      %p141 = scmp.ne.s32.totalorder %s127, %s128
      %p142 = scmp.eq.s32.totalorder %s17, 2
      %p143 = por %p141, %p142
      %p145 = scmp.ne.s32.totalorder %s128, %s144
      %p146 = scmp.eq.s32.totalorder %s17, 0
      %p147 = por %p145, %p146
      %s148 = ssub.s32 %s18, %s37
      %s149 = ssub.s32 %s19, %s33
      %s150 = sor.u32 %s148, %s149
      %p151 = scmp.eq.s32.totalorder %s150, 0
      %s153 = sadd.s32 %s152, 1
      %s154 = scalar_select %p151, %s152, %s153
      %p157 = pneg %p151
      %p158 = scmp.eq.s32.totalorder %s11, 2
      %p159 = por %p157, %p158
      %p160 = scmp.ne.s32.totalorder %s152, %s155
      %p161 = scmp.eq.s32.totalorder %s11, 0
      %p162 = por %p160, %p161
      %p163 = scmp.ne.s32.totalorder %s152, %s155
      %p164 = scmp.eq.s32.totalorder %s16, 2
      %p165 = por %p163, %p164
      %p166 = scmp.ne.s32.totalorder %s155, %s156
      %p167 = scmp.eq.s32.totalorder %s16, 0
      %p168 = por %p166, %p167
      %p169 = scmp.ne.s32.totalorder %s155, %s156
      %p170 = scmp.eq.s32.totalorder %s17, 2
      %p171 = por %p169, %p170
      %p173 = scmp.ne.s32.totalorder %s156, %s172
      %p174 = scmp.eq.s32.totalorder %s17, 0
      %p175 = por %p173, %p174
      %p176 = scmp.le.s32.totalorder 1, %s11
      %p177 = scmp.lt.s32.totalorder %s11, 4
      %p178 = pnand %p176, %p177
      %p179 = pneg %p178
      // Predicated region
      $region9: #{denoising_genius_forward.21} parent=5 // pred_check
        _
      $region10: #{denoising_genius_forward.21} parent=5 // pred_check_branch
        %181 = sbr.rel (%p178) target = $region12
      $region11: #{denoising_genius_forward.21} parent=5 // pred_region
        %s182 = ssub.s32 %s11, 1
        // Predicated region
        $region13: #{denoising_genius_forward.21} parent=11 // pred_check
          %p183 = pneg %p112
        $region14: #{denoising_genius_forward.21} parent=11 // pred_check_branch
          %185 = sbr.rel (%p183) target = $region16
        $region15: #{denoising_genius_forward.21} parent=11 // pred_region
          %s186 = smul.u32 2, %s22
          %p187 = scmp.lt.s32.totalorder %s186, 1
          %s188 = scalar_select %p187, %s186, 1
          %s189 = scalar_lea.vmem %s2, %s188
          %s190 = smul.u32 2, %s22
        $region16: #{denoising_genius_forward.21} parent=11 // pred_fallthru
          _
      $region12: #{denoising_genius_forward.21} parent=5 // pred_fallthru
        _
      %p191 = scmp.lt.s32.totalorder %s11, 3
      // Predicated region
      $region17: #{denoising_genius_forward.21} parent=5 // pred_check
        %p192 = pneg %p191
      $region18: #{denoising_genius_forward.21} parent=5 // pred_check_branch
        %194 = sbr.rel (%p192) target = $region20
      $region19: #{denoising_genius_forward.21} parent=5 // pred_region
        // Predicated region
        $region21: #{denoising_genius_forward.21} parent=19 // pred_check
          %p195 = pneg %p52
        $region22: #{denoising_genius_forward.21} parent=19 // pred_check_branch
          %197 = sbr.rel (%p195) target = $region24
        $region23: #{denoising_genius_forward.21} parent=19 // pred_region
          %s198 = sand.u32 %s42, 1
          %s199 = sand.u32 %s42, 1
          %s200 = smul.addr %s199, 24
          %s201 = scalar_lea.vmem [#allocation3], %s200
          %s202 = smul.u32 2, %s18
          %s203 = smul.u32 3, %s20
          %s204 = smul.addr %s202, 9
          %s205 = sadd.s32 %s203, %s204
          %s206 = smul.addr %s205, 4
          %s207 = scalar_lea.vmem %s0, %s206
          // Predicated region
          $region25: #{denoising_genius_forward.21} parent=23 // pred_check
            _
          $region26: #{denoising_genius_forward.21} parent=23 // pred_check_branch
            %209 = sbr.rel (0) target = $region28
          $region27: #{denoising_genius_forward.21} parent=23 // pred_region
            // Predicated region
            $region29: #{denoising_genius_forward.21} parent=27 // pred_check
              _
            $region30: #{denoising_genius_forward.21} parent=27 // pred_check_branch
              %211 = sbr.rel (0) target = $region32
            $region31: #{denoising_genius_forward.21} parent=27 // pred_region
              %s212 = scalar_lea.vmem %s207, 8
              %s213 = scalar_lea.vmem %s201, 8 [#allocation3]
              loop: start=0, step=1, limit=1
              $region33: #{denoising_genius_forward.21} parent=31 // loop_pre_header
                _
              $region34: #{denoising_genius_forward.21} parent=31 // loop_header
                %s215 = sphi 0, %s219
                %p216 = scmp.ge.s32.totalorder %s215, 1
                %s220 = sphi %s207, %s207
                %s221 = sphi %s201, %s201
              $region35: #{denoising_genius_forward.21} parent=31 // loop_header_branch
                %218 = sbr.rel (%p216) target = $region39
              $region36: #{denoising_genius_forward.21} parent=31 // loop_body
                %v222 = vld [vmem:[%s220] sm:$0xff]
                %223 = vst [vmem:[%s221] sm:$0xff] %v222
                %v224 = vld [vmem:[%s220 + $0x24] sm:$0xff]
                %225 = vst [vmem:[%s221 + $0xc] sm:$0xff] %v224
              $region37: #{denoising_genius_forward.21} parent=31 // loop_footer
                %s219 = sadd.s32 1, %s215
              $region38: #{denoising_genius_forward.21} parent=31 // loop_footer_branch
                %214 = sbr.rel target = $region34
              $region39: #{denoising_genius_forward.21} parent=31 // loop_exit
                _
              loop: start=0, step=1, limit=1
              $region40: #{denoising_genius_forward.21} parent=31 // loop_pre_header
                _
              $region41: #{denoising_genius_forward.21} parent=31 // loop_header
                %s228 = sphi 0, %s232
                %p229 = scmp.ge.s32.totalorder %s228, 1
                %s233 = sphi %s212, %s212
                %s234 = sphi %s213, %s213
              $region42: #{denoising_genius_forward.21} parent=31 // loop_header_branch
                %231 = sbr.rel (%p229) target = $region46
              $region43: #{denoising_genius_forward.21} parent=31 // loop_body
                %v235 = vld [vmem:[%s233] sm:$0xf]
                %236 = vst [vmem:[%s234] sm:$0xf] %v235
                %v237 = vld [vmem:[%s233 + $0x24] sm:$0xf]
                %238 = vst [vmem:[%s234 + $0xc] sm:$0xf] %v237
              $region44: #{denoising_genius_forward.21} parent=31 // loop_footer
                %s232 = sadd.s32 1, %s228
              $region45: #{denoising_genius_forward.21} parent=31 // loop_footer_branch
                %227 = sbr.rel target = $region41
              $region46: #{denoising_genius_forward.21} parent=31 // loop_exit
                _
            $region32: #{denoising_genius_forward.21} parent=27 // pred_fallthru
              _
          $region28: #{denoising_genius_forward.21} parent=23 // pred_fallthru
            _
          %239 = vnop
        $region24: #{denoising_genius_forward.21} parent=19 // pred_fallthru
          _
        // Predicated region
        $region47: #{denoising_genius_forward.21} parent=19 // pred_check
          %p240 = pneg %p80
        $region48: #{denoising_genius_forward.21} parent=19 // pred_check_branch
          %242 = sbr.rel (%p240) target = $region50
        $region49: #{denoising_genius_forward.21} parent=19 // pred_region
          %s243 = smul.u32 48, %s20
          %s244 = smul.u32 2, %s19
          %p245 = scmp.lt.s32.totalorder %s243, 143
          %s246 = scalar_select %p245, %s243, 143
          %p247 = scmp.lt.s32.totalorder %s244, 1
          %s248 = scalar_select %p247, %s244, 1
          %s249 = smul.addr %s246, 2
          %s250 = sadd.s32 %s248, %s249
          %s251 = smul.addr %s250, 4
          %s252 = scalar_lea.vmem %s1, %s251
          %s253 = smul.u32 48, %s20
          %s254 = smul.u32 2, %s19
        $region50: #{denoising_genius_forward.21} parent=19 // pred_fallthru
          _
      $region20: #{denoising_genius_forward.21} parent=5 // pred_fallthru
        _
      %p255 = scmp.le.s32.totalorder 1, %s11
      %p256 = scmp.lt.s32.totalorder %s11, 4
      %p257 = pnand %p255, %p256
      %p258 = pneg %p257
      // Predicated region
      $region51: #{denoising_genius_forward.21} parent=5 // pred_check
        _
      $region52: #{denoising_genius_forward.21} parent=5 // pred_check_branch
        %260 = sbr.rel (%p257) target = $region54
      $region53: #{denoising_genius_forward.21} parent=5 // pred_region
        %s261 = ssub.s32 %s11, 1
        %s262 = sand.u32 %s45, 1
        %s263 = sand.u32 %s45, 1
        %s264 = smul.addr %s263, 24
        %s265 = scalar_lea.vmem [#allocation3], %s264
        // Predicated region
        $region55: #{denoising_genius_forward.21} parent=53 // pred_check
          %p266 = pneg %p58
        $region56: #{denoising_genius_forward.21} parent=53 // pred_check_branch
          %268 = sbr.rel (%p266) target = $region58
        $region57: #{denoising_genius_forward.21} parent=53 // pred_region
          _
        $region58: #{denoising_genius_forward.21} parent=53 // pred_fallthru
          _
        %s269 = sand.u32 %s45, 1
        %s270 = sand.u32 %s45, 1
        %s271 = smul.addr %s270, 24
        %s272 = scalar_lea.vmem [#allocation3], %s271
        %p273 = pneg %p58
        %p274 = pneg %p55
        %s275 = smul.u32 48, %s23
        %s276 = smul.u32 2, %s22
        %p277 = scmp.lt.s32.totalorder %s275, 143
        %s278 = scalar_select %p277, %s275, 143
        %p279 = scmp.lt.s32.totalorder %s276, 1
        %s280 = scalar_select %p279, %s276, 1
        %s281 = smul.addr %s278, 2
        %s282 = sadd.s32 %s280, %s281
        %s283 = smul.addr %s282, 4
        %s284 = scalar_lea.vmem %s1, %s283
        %p285 = pneg %p86
        %p286 = pneg %p83
        %s287 = smul.u32 2, %s22
        %p288 = scmp.lt.s32.totalorder %s287, 1
        %s289 = scalar_select %p288, %s287, 1
        %s290 = scalar_lea.vmem %s2, %s289
        %p291 = pneg %p112
        %p292 = pneg %p109
        %p293 = pneg %p140
        %p294 = pneg %p137
        %s295 = smul.u32 2, %s21
        %s296 = smul.u32 2, %s22
        %p297 = scmp.lt.s32.totalorder %s295, 1
        %s298 = scalar_select %p297, %s295, 1
        %p299 = scmp.lt.s32.totalorder %s296, 1
        %s300 = scalar_select %p299, %s296, 1
        %s301 = smul.addr %s298, 2
        %s302 = sadd.s32 %s300, %s301
        %s303 = smul.addr %s302, 4
        %s304 = scalar_lea.vmem %s3, %s303
        %p305 = pneg %p168
        %p306 = pneg %p165
        %s307 = smul.u32 2, %s22
        %p308 = scmp.lt.s32.totalorder %s21, 0
        %s309 = scalar_select %p308, %s21, 0
        %p310 = scmp.lt.s32.totalorder %s307, 1
        %s311 = scalar_select %p310, %s307, 1
        %s312 = smul.addr %s309, 2
        %s313 = sadd.s32 %s311, %s312
        %s314 = smul.addr %s313, 8
        %s315 = scalar_lea.vmem %s4, %s314
        %s316 = smul.u32 2, %s21
        %s317 = smul.u32 3, %s23
        %s318 = smul.u32 48, %s23
        %s319 = smul.u32 2, %s22
        %p320 = scmp.lt.s32.totalorder %s318, 143
        %s321 = scalar_select %p320, %s318, 143
        %p322 = scmp.lt.s32.totalorder %s319, 1
        %s323 = scalar_select %p322, %s319, 1
        %s324 = smul.addr %s321, 2
        %s325 = sadd.s32 %s323, %s324
        %s326 = smul.addr %s325, 4
        %s327 = scalar_lea.vmem %s1, %s326
        %s328 = smul.u32 48, %s23
        %s329 = smul.u32 2, %s22
        %s330 = smul.u32 2, %s22
        %p331 = scmp.lt.s32.totalorder %s330, 1
        %s332 = scalar_select %p331, %s330, 1
        %s333 = scalar_lea.vmem %s2, %s332
        %s334 = smul.u32 2, %s22
        %s335 = smul.u32 2, %s21
        %s336 = smul.u32 2, %s22
        %p337 = scmp.lt.s32.totalorder %s335, 1
        %s338 = scalar_select %p337, %s335, 1
        %p339 = scmp.lt.s32.totalorder %s336, 1
        %s340 = scalar_select %p339, %s336, 1
        %s341 = smul.addr %s338, 2
        %s342 = sadd.s32 %s340, %s341
        %s343 = smul.addr %s342, 4
        %s344 = scalar_lea.vmem %s3, %s343
        %s345 = smul.u32 2, %s21
        %s346 = smul.u32 2, %s22
        %s347 = smul.u32 2, %s22
        %p348 = scmp.lt.s32.totalorder %s21, 0
        %s349 = scalar_select %p348, %s21, 0
        %p350 = scmp.lt.s32.totalorder %s347, 1
        %s351 = scalar_select %p350, %s347, 1
        %s352 = smul.addr %s349, 2
        %s353 = sadd.s32 %s351, %s352
        %s354 = smul.addr %s353, 8
        %s355 = scalar_lea.vmem %s4, %s354
        %s356 = smul.u32 2, %s22
        %p358 = scmp.eq.s32.totalorder %s23, 0
        // Predicated region
        $region59: #{denoising_genius_forward.21} parent=53 // pred_check
          %p359 = pneg %p358
        $region60: #{denoising_genius_forward.21} parent=53 // pred_check_branch
          %361 = sbr.rel (%p359) target = $region62
        $region61: #{denoising_genius_forward.21} parent=53 // pred_region
          %362 = vst [vmem:[#allocation2] sm:$0xff] 0.0
          %363 = vst [vmem:[#allocation2 + $0x8] sm:$0xff] 0.0
          %364 = vst [vmem:[#allocation2 + $0x10] sm:$0xff] 0.0
          %365 = vst [vmem:[#allocation2 + $0x18] sm:$0xff] 0.0
        $region62: #{denoising_genius_forward.21} parent=53 // pred_fallthru
          _
        %v366 = vld [vmem:[%s265] sm:$0xff]
        %v367 = vld [vmem:[%s265 + $0x8] sm:$0xf]
        %v368 = vld [vmem:[%s265 + $0xc] sm:$0xff]
        %v369 = vld [vmem:[%s265 + $0x14] sm:$0xf]
        %v370 = vld [vmem:[%s327] sm:$0xff]
        %v371 = vld [vmem:[%s327 + $0x8] sm:$0xff]
        %v372 = vld [vmem:[%s327 + $0x10] sm:$0xff]
        %v373 = vld [vmem:[%s327 + $0x18] sm:$0xff]
        %v374 = vld [vmem:[%s327 + $0x20] sm:$0xff]
        %v375 = vld [vmem:[%s327 + $0x28] sm:$0xff]
        %v376 = vld [vmem:[%s327 + $0x30] sm:$0xff]
        %v377 = vld [vmem:[%s327 + $0x38] sm:$0xff]
        %v378 = vld [vmem:[%s327 + $0x40] sm:$0xff]
        %v379 = vld [vmem:[%s327 + $0x48] sm:$0xff]
        %v380 = vld [vmem:[%s327 + $0x50] sm:$0xff]
        %v381 = vld [vmem:[%s327 + $0x58] sm:$0xff]
        %v382 = vld [vmem:[%s327 + $0x60] sm:$0xff]
        %v383 = vld [vmem:[%s327 + $0x68] sm:$0xff]
        %v384 = vld [vmem:[%s327 + $0x70] sm:$0xff]
        %v385 = vld [vmem:[%s327 + $0x78] sm:$0xff]
        %v386 = vld [vmem:[%s327 + $0x80] sm:$0xff]
        %v387 = vld [vmem:[%s327 + $0x88] sm:$0xff]
        %v388 = vld [vmem:[%s327 + $0x90] sm:$0xff]
        %v389 = vld [vmem:[%s327 + $0x98] sm:$0xff]
        %v390 = vld [vmem:[%s327 + $0xa0] sm:$0xff]
        %v391 = vld [vmem:[%s327 + $0xa8] sm:$0xff]
        %v392 = vld [vmem:[%s327 + $0xb0] sm:$0xff]
        %v393 = vld [vmem:[%s327 + $0xb8] sm:$0xff]
        %v394 = vld [vmem:[%s327 + $0xc0] sm:$0xff]
        %v395 = vld [vmem:[%s327 + $0xc8] sm:$0xff]
        %v396 = vld [vmem:[%s327 + $0xd0] sm:$0xff]
        %v397 = vld [vmem:[%s327 + $0xd8] sm:$0xff]
        %v398 = vld [vmem:[%s327 + $0xe0] sm:$0xff]
        %v399 = vld [vmem:[%s327 + $0xe8] sm:$0xff]
        %v400 = vld [vmem:[%s327 + $0xf0] sm:$0xff]
        %v401 = vld [vmem:[%s327 + $0xf8] sm:$0xff]
        %v402 = vld [vmem:[%s327 + $0x100] sm:$0xff]
        %v403 = vld [vmem:[%s327 + $0x108] sm:$0xff]
        %v404 = vld [vmem:[%s327 + $0x110] sm:$0xff]
        %v405 = vld [vmem:[%s327 + $0x118] sm:$0xff]
        %v406 = vld [vmem:[%s327 + $0x120] sm:$0xff]
        %v407 = vld [vmem:[%s327 + $0x128] sm:$0xff]
        %v408 = vld [vmem:[%s327 + $0x130] sm:$0xff]
        %v409 = vld [vmem:[%s327 + $0x138] sm:$0xff]
        %v410 = vld [vmem:[%s327 + $0x140] sm:$0xff]
        %v411 = vld [vmem:[%s327 + $0x148] sm:$0xff]
        %v412 = vld [vmem:[%s327 + $0x150] sm:$0xff]
        %v413 = vld [vmem:[%s327 + $0x158] sm:$0xff]
        %v414 = vld [vmem:[%s327 + $0x160] sm:$0xff]
        %v415 = vld [vmem:[%s327 + $0x168] sm:$0xff]
        %v416 = vld [vmem:[%s327 + $0x170] sm:$0xff]
        %v417 = vld [vmem:[%s327 + $0x178] sm:$0xff]
        %v422 = vunpack.c.l.b16 %v366
        %v423 = vunpack.c.h.b16 %v366
        %v424 = vunpack.c.l.b16 %v367
        %v425 = vunpack.c.l.b16 %v368
        %v426 = vunpack.c.h.b16 %v368
        %v427 = vunpack.c.l.b16 %v369
        %v428 = vpack.c.b16 %v425, %v422
        %v429 = vpack.c.b16 %v426, %v423
        %v430 = vpack.c.b16 %v427, %v424
        %v482 = vunpack.c.l.b16 %v370
        %v483 = vunpack.c.h.b16 %v370
        %v484 = vunpack.c.l.b16 %v371
        %v485 = vunpack.c.h.b16 %v371
        %v486 = vunpack.c.l.b16 %v372
        %v487 = vunpack.c.h.b16 %v372
        %v488 = vunpack.c.l.b16 %v373
        %v489 = vunpack.c.h.b16 %v373
        %v490 = vunpack.c.l.b16 %v374
        %v491 = vunpack.c.h.b16 %v374
        %v492 = vunpack.c.l.b16 %v375
        %v493 = vunpack.c.h.b16 %v375
        %v494 = vunpack.c.l.b16 %v376
        %v495 = vunpack.c.h.b16 %v376
        %v496 = vunpack.c.l.b16 %v377
        %v497 = vunpack.c.h.b16 %v377
        %v498 = vunpack.c.l.b16 %v378
        %v499 = vunpack.c.h.b16 %v378
        %v500 = vunpack.c.l.b16 %v379
        %v501 = vunpack.c.h.b16 %v379
        %v502 = vunpack.c.l.b16 %v380
        %v503 = vunpack.c.h.b16 %v380
        %v504 = vunpack.c.l.b16 %v381
        %v505 = vunpack.c.h.b16 %v381
        %v506 = vunpack.c.l.b16 %v382
        %v507 = vunpack.c.h.b16 %v382
        %v508 = vunpack.c.l.b16 %v383
        %v509 = vunpack.c.h.b16 %v383
        %v510 = vunpack.c.l.b16 %v384
        %v511 = vunpack.c.h.b16 %v384
        %v512 = vunpack.c.l.b16 %v385
        %v513 = vunpack.c.h.b16 %v385
        %v514 = vunpack.c.l.b16 %v386
        %v515 = vunpack.c.h.b16 %v386
        %v516 = vunpack.c.l.b16 %v387
        %v517 = vunpack.c.h.b16 %v387
        %v518 = vunpack.c.l.b16 %v388
        %v519 = vunpack.c.h.b16 %v388
        %v520 = vunpack.c.l.b16 %v389
        %v521 = vunpack.c.h.b16 %v389
        %v522 = vunpack.c.l.b16 %v390
        %v523 = vunpack.c.h.b16 %v390
        %v524 = vunpack.c.l.b16 %v391
        %v525 = vunpack.c.h.b16 %v391
        %v526 = vunpack.c.l.b16 %v392
        %v527 = vunpack.c.h.b16 %v392
        %v528 = vunpack.c.l.b16 %v393
        %v529 = vunpack.c.h.b16 %v393
        %v530 = vunpack.c.l.b16 %v394
        %v531 = vunpack.c.h.b16 %v394
        %v532 = vunpack.c.l.b16 %v395
        %v533 = vunpack.c.h.b16 %v395
        %v534 = vunpack.c.l.b16 %v396
        %v535 = vunpack.c.h.b16 %v396
        %v536 = vunpack.c.l.b16 %v397
        %v537 = vunpack.c.h.b16 %v397
        %v538 = vunpack.c.l.b16 %v398
        %v539 = vunpack.c.h.b16 %v398
        %v540 = vunpack.c.l.b16 %v399
        %v541 = vunpack.c.h.b16 %v399
        %v542 = vunpack.c.l.b16 %v400
        %v543 = vunpack.c.h.b16 %v400
        %v544 = vunpack.c.l.b16 %v401
        %v545 = vunpack.c.h.b16 %v401
        %v546 = vunpack.c.l.b16 %v402
        %v547 = vunpack.c.h.b16 %v402
        %v548 = vunpack.c.l.b16 %v403
        %v549 = vunpack.c.h.b16 %v403
        %v550 = vunpack.c.l.b16 %v404
        %v551 = vunpack.c.h.b16 %v404
        %v552 = vunpack.c.l.b16 %v405
        %v553 = vunpack.c.h.b16 %v405
        %v554 = vunpack.c.l.b16 %v406
        %v555 = vunpack.c.h.b16 %v406
        %v556 = vunpack.c.l.b16 %v407
        %v557 = vunpack.c.h.b16 %v407
        %v558 = vunpack.c.l.b16 %v408
        %v559 = vunpack.c.h.b16 %v408
        %v560 = vunpack.c.l.b16 %v409
        %v561 = vunpack.c.h.b16 %v409
        %v562 = vunpack.c.l.b16 %v410
        %v563 = vunpack.c.h.b16 %v410
        %v564 = vunpack.c.l.b16 %v411
        %v565 = vunpack.c.h.b16 %v411
        %v566 = vunpack.c.l.b16 %v412
        %v567 = vunpack.c.h.b16 %v412
        %v568 = vunpack.c.l.b16 %v413
        %v569 = vunpack.c.h.b16 %v413
        %v570 = vunpack.c.l.b16 %v414
        %v571 = vunpack.c.h.b16 %v414
        %v572 = vunpack.c.l.b16 %v415
        %v573 = vunpack.c.h.b16 %v415
        %v574 = vunpack.c.l.b16 %v416
        %v575 = vunpack.c.h.b16 %v416
        %v576 = vunpack.c.l.b16 %v417
        %v577 = vunpack.c.h.b16 %v417
        %v578 = vpack.c.b16 %v484, %v482
        %v579 = vpack.c.b16 %v485, %v483
        %v580 = vpack.c.b16 %v488, %v486
        %v581 = vpack.c.b16 %v489, %v487
        %v582 = vpack.c.b16 %v492, %v490
        %v583 = vpack.c.b16 %v493, %v491
        %v584 = vpack.c.b16 %v496, %v494
        %v585 = vpack.c.b16 %v497, %v495
        %v586 = vpack.c.b16 %v500, %v498
        %v587 = vpack.c.b16 %v501, %v499
        %v588 = vpack.c.b16 %v504, %v502
        %v589 = vpack.c.b16 %v505, %v503
        %v590 = vpack.c.b16 %v508, %v506
        %v591 = vpack.c.b16 %v509, %v507
        %v592 = vpack.c.b16 %v512, %v510
        %v593 = vpack.c.b16 %v513, %v511
        %v594 = vpack.c.b16 %v516, %v514
        %v595 = vpack.c.b16 %v517, %v515
        %v596 = vpack.c.b16 %v520, %v518
        %v597 = vpack.c.b16 %v521, %v519
        %v598 = vpack.c.b16 %v524, %v522
        %v599 = vpack.c.b16 %v525, %v523
        %v600 = vpack.c.b16 %v528, %v526
        %v601 = vpack.c.b16 %v529, %v527
        %v602 = vpack.c.b16 %v532, %v530
        %v603 = vpack.c.b16 %v533, %v531
        %v604 = vpack.c.b16 %v536, %v534
        %v605 = vpack.c.b16 %v537, %v535
        %v606 = vpack.c.b16 %v540, %v538
        %v607 = vpack.c.b16 %v541, %v539
        %v608 = vpack.c.b16 %v544, %v542
        %v609 = vpack.c.b16 %v545, %v543
        %v610 = vpack.c.b16 %v548, %v546
        %v611 = vpack.c.b16 %v549, %v547
        %v612 = vpack.c.b16 %v552, %v550
        %v613 = vpack.c.b16 %v553, %v551
        %v614 = vpack.c.b16 %v556, %v554
        %v615 = vpack.c.b16 %v557, %v555
        %v616 = vpack.c.b16 %v560, %v558
        %v617 = vpack.c.b16 %v561, %v559
        %v618 = vpack.c.b16 %v564, %v562
        %v619 = vpack.c.b16 %v565, %v563
        %v620 = vpack.c.b16 %v568, %v566
        %v621 = vpack.c.b16 %v569, %v567
        %v622 = vpack.c.b16 %v572, %v570
        %v623 = vpack.c.b16 %v573, %v571
        %v624 = vpack.c.b16 %v576, %v574
        %v625 = vpack.c.b16 %v577, %v575
        %674 = vmatprep.subr.bf16.mxu0 %v579
        %675 = vmatpush1.bf16.msra.mxu0 %v578
        %676 = vmatprep.subr.bf16.mxu0 %v581
        %677 = vmatpush1.bf16.msra.mxu0 %v580
        %678 = vmatprep.subr.bf16.mxu0 %v583
        %679 = vmatpush1.bf16.msra.mxu0 %v582
        %680 = vmatprep.subr.bf16.mxu0 %v585
        %681 = vmatpush1.bf16.msra.mxu0 %v584
        %682 = vmatprep.subr.bf16.mxu0 %v587
        %683 = vmatpush1.bf16.msra.mxu0 %v586
        %684 = vmatprep.subr.bf16.mxu0 %v589
        %685 = vmatpush1.bf16.msra.mxu0 %v588
        %686 = vmatprep.subr.bf16.mxu0 %v591
        %687 = vmatpush1.bf16.msra.mxu0 %v590
        %688 = vmatprep.subr.bf16.mxu0 %v593
        %689 = vmatpush1.bf16.msra.mxu0 %v592
        %690 = vmatprep.subr.bf16.mxu0 %v595
        %691 = vmatpush1.bf16.msra.mxu0 %v594
        %692 = vmatprep.subr.bf16.mxu0 %v597
        %693 = vmatpush1.bf16.msra.mxu0 %v596
        %694 = vmatprep.subr.bf16.mxu0 %v599
        %695 = vmatpush1.bf16.msra.mxu0 %v598
        %696 = vmatprep.subr.bf16.mxu0 %v601
        %697 = vmatpush1.bf16.msra.mxu0 %v600
        %698 = vmatprep.subr.bf16.mxu0 %v603
        %699 = vmatpush1.bf16.msra.mxu0 %v602
        %700 = vmatprep.subr.bf16.mxu0 %v605
        %701 = vmatpush1.bf16.msra.mxu0 %v604
        %702 = vmatprep.subr.bf16.mxu0 %v607
        %703 = vmatpush1.bf16.msra.mxu0 %v606
        %704 = vmatprep.subr.bf16.mxu0 %v609
        %705 = vmatpush1.bf16.msra.mxu0 %v608
        %706 = vmatprep.mubr.bf16.mxu0 %v429
        %707 = vmatmul.mubr.bf16.gmra.mrb[0].mxu0 %v428
        %v708 = vpop.f32.mrb[0].mxu0
        %v709 = vadd.f32 0.0, %v708
        %v710 = vpop.f32.mrb[0].mxu0
        %v711 = vadd.f32 0.0, %v710
        %v712 = vpop.f32.mrb[0].mxu0
        %v713 = vadd.f32 0.0, %v712
        %v714 = vpop.f32.mrb[0].mxu0
        %v715 = vadd.f32 0.0, %v714
        %716 = vdwg.mxu0
        %717 = vmatprep.subr.bf16.mxu0 %v611
        %718 = vmatpush1.bf16.msra.mxu0 %v610
        %719 = vmatprep.subr.bf16.mxu0 %v613
        %720 = vmatpush1.bf16.msra.mxu0 %v612
        %721 = vmatprep.subr.bf16.mxu0 %v615
        %722 = vmatpush1.bf16.msra.mxu0 %v614
        %723 = vmatprep.subr.bf16.mxu0 %v617
        %724 = vmatpush1.bf16.msra.mxu0 %v616
        %725 = vmatprep.subr.bf16.mxu0 %v619
        %726 = vmatpush1.bf16.msra.mxu0 %v618
        %727 = vmatprep.subr.bf16.mxu0 %v621
        %728 = vmatpush1.bf16.msra.mxu0 %v620
        %729 = vmatprep.subr.bf16.mxu0 %v623
        %730 = vmatpush1.bf16.msra.mxu0 %v622
        %731 = vmatprep.subr.bf16.mxu0 %v625
        %732 = vmatpush1.bf16.msra.mxu0 %v624
        %733 = vmatprep.subr.bf16.mxu0 0
        %734 = vmatpush1.bf16.msra.mxu0 0
        %735 = vmatprep.subr.bf16.mxu0 0
        %736 = vmatpush1.bf16.msra.mxu0 0
        %737 = vmatprep.subr.bf16.mxu0 0
        %738 = vmatpush1.bf16.msra.mxu0 0
        %739 = vmatprep.subr.bf16.mxu0 0
        %740 = vmatpush1.bf16.msra.mxu0 0
        %741 = vmatprep.subr.bf16.mxu0 0
        %742 = vmatpush1.bf16.msra.mxu0 0
        %743 = vmatprep.subr.bf16.mxu0 0
        %744 = vmatpush1.bf16.msra.mxu0 0
        %745 = vmatprep.subr.bf16.mxu0 0
        %746 = vmatpush1.bf16.msra.mxu0 0
        %747 = vmatprep.subr.bf16.mxu0 0
        %748 = vmatpush1.bf16.msra.mxu0 0
        %749 = vmatprep.mubr.bf16.mxu0 0
        %750 = vmatmul.mubr.bf16.gmra.mrb[0].mxu0 %v430
        %v751 = vpop.f32.mrb[0].mxu0
        %v752 = vadd.f32 %v709, %v751
        %v753 = vpop.f32.mrb[0].mxu0
        %v754 = vadd.f32 %v711, %v753
        %v755 = vpop.f32.mrb[0].mxu0
        %v756 = vadd.f32 %v713, %v755
        %v757 = vpop.f32.mrb[0].mxu0
        %v758 = vadd.f32 %v715, %v757
        %759 = vdwg.mxu0
        %v760 = vld [vmem:[#allocation2] sm:$0xff]
        %v761 = vld [vmem:[#allocation2 + $0x8] sm:$0xff]
        %v762 = vld [vmem:[#allocation2 + $0x10] sm:$0xff]
        %v763 = vld [vmem:[#allocation2 + $0x18] sm:$0xff]
        %v764 = vadd.f32 %v760, %v752
        %v765 = vadd.f32 %v761, %v754
        %v766 = vadd.f32 %v762, %v756
        %v767 = vadd.f32 %v763, %v758
        %768 = vst [vmem:[#allocation2] sm:$0xff] %v764
        %769 = vst [vmem:[#allocation2 + $0x8] sm:$0xff] %v765
        %770 = vst [vmem:[#allocation2 + $0x10] sm:$0xff] %v766
        %771 = vst [vmem:[#allocation2 + $0x18] sm:$0xff] %v767
        %p772 = scmp.eq.s32.totalorder %s23, 2
        // Predicated region
        $region63: #{denoising_genius_forward.21} parent=53 // pred_check
          %p773 = pneg %p772
        $region64: #{denoising_genius_forward.21} parent=53 // pred_check_branch
          %775 = sbr.rel (%p773) target = $region66
        $region65: #{denoising_genius_forward.21} parent=53 // pred_region
          %v776 = vld [vmem:[#allocation2] sm:$0xff]
          %v777 = vld [vmem:[#allocation2 + $0x8] sm:$0xff]
          %v778 = vld [vmem:[#allocation2 + $0x10] sm:$0xff]
          %v779 = vld [vmem:[#allocation2 + $0x18] sm:$0xff]
          %v780 = vld [vmem:[%s333] sm:$0x3]
          %v782 = vlaneseq
          %v783 = vshrl.u32 %v782, 7
          %v784 = vsub.s32 0, %v783
          %v785 = vrot.slane %v780, %v784
          %v786 = vlaneseq
          %v787 = vshrl.u32 %v786, 7
          %v788 = vsub.s32 1, %v787
          %v789 = vrot.slane %v780, %v788
          %v792 = vadd.f32 %v776, %v785
          %v793 = vadd.f32 %v777, %v789
          %v794 = vadd.f32 %v778, %v785
          %v795 = vadd.f32 %v779, %v789
          %v796 = vpack.c.bf16 %v794, %v792
          %v797 = vpack.c.bf16 %v795, %v793
          %v800 = vunpack.c.l.b16 %v796
          %v801 = vunpack.c.l.b16 %v797
          %v802 = vunpack.c.h.b16 %v796
          %v803 = vunpack.c.h.b16 %v797
          %v804 = vpack.c.b16 %v801, %v800
          %v805 = vpack.c.b16 %v803, %v802
          %808 = vst [vmem:[%s344] sm:$0xff] %v804
          %809 = vst [vmem:[%s344 + $0x8] sm:$0xff] %v805
          %v810 = vadd.f32 %v776, %v778
          %v811 = vrot.slane %v810, 4
          %v812 = vadd.f32 %v810, %v811
          %v813 = vrot.slane %v812, 2
          %v814 = vadd.f32 %v812, %v813
          %v815 = vrot.slane %v814, 1
          %v816 = vadd.f32 %v814, %v815
          %v817 = vadd.f32 %v777, %v779
          %v818 = vrot.slane %v817, 4
          %v819 = vadd.f32 %v817, %v818
          %v820 = vrot.slane %v819, 2
          %v821 = vadd.f32 %v819, %v820
          %v822 = vrot.slane %v821, 1
          %v823 = vadd.f32 %v821, %v822
          %v824 = vmul.f32 %v776, %v776
          %v825 = vmul.f32 %v777, %v777
          %v826 = vmul.f32 %v778, %v778
          %v827 = vmul.f32 %v779, %v779
          %v828 = vadd.f32 %v824, %v826
          %v829 = vrot.slane %v828, 4
          %v830 = vadd.f32 %v828, %v829
          %v831 = vrot.slane %v830, 2
          %v832 = vadd.f32 %v830, %v831
          %v833 = vrot.slane %v832, 1
          %v834 = vadd.f32 %v832, %v833
          %v835 = vadd.f32 %v825, %v827
          %v836 = vrot.slane %v835, 4
          %v837 = vadd.f32 %v835, %v836
          %v838 = vrot.slane %v837, 2
          %v839 = vadd.f32 %v837, %v838
          %v840 = vrot.slane %v839, 1
          %v841 = vadd.f32 %v839, %v840
          %v842 = vlaneseq
          %v843 = vshrl.u32 %v842, 7
          %vm844 = vcmp.eq.s32.totalorder %v843, 0
          %vm845 = vcmp.eq.s32.totalorder %v843, 1
          %v846 = vsel %vm845, %v834, 0.0
          %v847 = vsel %vm845, %v841, 0.0
          %v848 = vsel %vm844, %v816, %v846
          %v849 = vsel %vm844, %v823, %v847
          %850 = vst [vmem:[%s355] sm:$0xff] %v848
          %851 = vst [vmem:[%s355 + $0x8] sm:$0xff] %v849
        $region66: #{denoising_genius_forward.21} parent=53 // pred_fallthru
          _
        %s852 = smul.u32 2, %s21
        %s853 = smul.u32 2, %s22
        %p854 = scmp.lt.s32.totalorder %s852, 1
        %s855 = scalar_select %p854, %s852, 1
        %p856 = scmp.lt.s32.totalorder %s853, 1
        %s857 = scalar_select %p856, %s853, 1
        %s858 = smul.addr %s855, 2
        %s859 = sadd.s32 %s857, %s858
        %s860 = smul.addr %s859, 4
        %s861 = scalar_lea.vmem %s3, %s860
        %s862 = smul.u32 2, %s22
        %p863 = scmp.lt.s32.totalorder %s21, 0
        %s864 = scalar_select %p863, %s21, 0
        %p865 = scmp.lt.s32.totalorder %s862, 1
        %s866 = scalar_select %p865, %s862, 1
        %s867 = smul.addr %s864, 2
        %s868 = sadd.s32 %s866, %s867
        %s869 = smul.addr %s868, 8
        %s870 = scalar_lea.vmem %s4, %s869
        // Predicated region
        $region67: #{denoising_genius_forward.21} parent=53 // pred_check
          %p871 = pneg %p137
        $region68: #{denoising_genius_forward.21} parent=53 // pred_check_branch
          %873 = sbr.rel (%p871) target = $region70
        $region69: #{denoising_genius_forward.21} parent=53 // pred_region
          %s874 = smul.u32 2, %s21
          %s875 = smul.u32 2, %s22
        $region70: #{denoising_genius_forward.21} parent=53 // pred_fallthru
          _
        // Predicated region
        $region71: #{denoising_genius_forward.21} parent=53 // pred_check
          %p876 = pneg %p165
        $region72: #{denoising_genius_forward.21} parent=53 // pred_check_branch
          %878 = sbr.rel (%p876) target = $region74
        $region73: #{denoising_genius_forward.21} parent=53 // pred_region
          %s879 = smul.u32 2, %s22
        $region74: #{denoising_genius_forward.21} parent=53 // pred_fallthru
          _
        // Predicated region
        $region75: #{denoising_genius_forward.21} parent=53 // pred_check
          %p880 = pneg %p137
        $region76: #{denoising_genius_forward.21} parent=53 // pred_check_branch
          %882 = sbr.rel (%p880) target = $region78
        $region77: #{denoising_genius_forward.21} parent=53 // pred_region
          %s883 = smul.u32 2, %s21
          %s884 = smul.u32 2, %s22
          %p885 = scmp.lt.s32.totalorder %s883, 1
          %s886 = scalar_select %p885, %s883, 1
          %p887 = scmp.lt.s32.totalorder %s884, 1
          %s888 = scalar_select %p887, %s884, 1
          %s889 = smul.addr %s886, 2
          %s890 = sadd.s32 %s888, %s889
          %s891 = smul.addr %s890, 4
          %s892 = scalar_lea.vmem %s3, %s891
        $region78: #{denoising_genius_forward.21} parent=53 // pred_fallthru
          _
        // Predicated region
        $region79: #{denoising_genius_forward.21} parent=53 // pred_check
          %p893 = pneg %p165
        $region80: #{denoising_genius_forward.21} parent=53 // pred_check_branch
          %895 = sbr.rel (%p893) target = $region82
        $region81: #{denoising_genius_forward.21} parent=53 // pred_region
          %s896 = smul.u32 2, %s22
          %p897 = scmp.lt.s32.totalorder %s21, 0
          %s898 = scalar_select %p897, %s21, 0
          %p899 = scmp.lt.s32.totalorder %s896, 1
          %s900 = scalar_select %p899, %s896, 1
          %s901 = smul.addr %s898, 2
          %s902 = sadd.s32 %s900, %s901
          %s903 = smul.addr %s902, 8
          %s904 = scalar_lea.vmem %s4, %s903
        $region82: #{denoising_genius_forward.21} parent=53 // pred_fallthru
          _
      $region54: #{denoising_genius_forward.21} parent=5 // pred_fallthru
        _
      %p905 = scmp.le.s32.totalorder 2, %s11
      // Predicated region
      $region83: #{denoising_genius_forward.21} parent=5 // pred_check
        %p906 = pneg %p905
      $region84: #{denoising_genius_forward.21} parent=5 // pred_check_branch
        %908 = sbr.rel (%p906) target = $region86
      $region85: #{denoising_genius_forward.21} parent=5 // pred_region
        %s909 = ssub.s32 %s11, 2
      $region86: #{denoising_genius_forward.21} parent=5 // pred_fallthru
        _
    $region6: #{denoising_genius_forward.21} parent=1 // loop_footer
      %s15 = sadd.s32 1, %s11
    $region7: #{denoising_genius_forward.21} parent=1 // loop_footer_branch
      %10 = sbr.rel target = $region3
    $region8: #{denoising_genius_forward.21} parent=1 // loop_exit
      _

// kernel: squeeze.24
$region0: #{squeeze.24}
  %s0 = inlined_call_operand.vmem [shape: f32[256], index: 0, kind: input, shape index: {}]
  %s1 = inlined_call_operand.vmem [shape: f32[4,64], index: 1, kind: output, shape index: {}]
  $region1: #{squeeze.24} parent=0
    #allocation0 [shape = 'u8[4096]{0}', space=vmem, size = 0x1000, scoped, tag = 'scoped mem for output reshape']
    #allocation1 [shape = 'u8[4096]{0}', space=vmem, size = 0x1000, scoped, tag = 'scoped mem for input reshape']
    %s3 = sshllo.u32 0, 2
    %v4 = vld [vmem:[%s0] sm:%s3]
    %5 = vst [vmem:[#allocation1] sm:%s3] %v4
    %v6 = vld [vmem:[#allocation1] sm:$0x3]
    %vm7 = vcmask 523264
    %8 = vst.msk [vmem:[#allocation0] ss:$2 sm:$0x3] %vm7, %v6
    %v9 = vld [vmem:[#allocation1] sm:$0x3]
    %10 = vrot.lane.b32.xlu0 %v9, 64
    %v11 = vpop.permute.xlu0 %10
    %vm12 = vcmask 523264
    %s13 = scalar_lea.vmem [#allocation0], 1
    %14 = vst.msk [vmem:[%s13] ss:$2 sm:$0x3] %vm12, %v11
    %s16 = sshllo.u32 0, 4
    %v18 = vld [vmem:[#allocation0] sm:%s16]
    %s19 = sshllo.u32 0, 4
    %20 = vst [vmem:[%s1] sm:%s19] %v18

// kernel: denoising_genius_forward.24
$region0: #{denoising_genius_forward.24}
  #allocation0 [shape = 'u32[]', space=smem, size = 0x4, offset = 0x4, fixed_abs, tag = 'smem constant byte address 0x4 - core index']
  #allocation1 [shape = 'u32[144,128]{1,0:T(1,128)}', space=vmem, size = 0x12000, scoped, tag = 'internal scratch']
  %s0 = inlined_call_operand.vmem [shape: bf16[16,512], index: 0, kind: input, shape index: {}]
  %s1 = inlined_call_operand.vmem [shape: f32[1,512], index: 1, kind: input, shape index: {}]
  %s2 = inlined_call_operand.vmem [shape: f32[1,512], index: 2, kind: input, shape index: {}]
  %s3 = inlined_call_operand.vmem [shape: bf16[16,512], index: 3, kind: output, shape index: {}]
  %s4 = sld [smem:[#allocation0]]
  $region22: #{denoising_genius_forward.24} parent=0
    _
  %s6 = ssub.s32 1, %s4
  %s7 = scalar_select 0, %s6, %s4
  // Predicated region
  $region2: #{denoising_genius_forward.24} parent=0 // pred_check
    _
  $region3: #{denoising_genius_forward.24} parent=0 // pred_check_branch
    %9 = sbr.rel (0) target = $region5
  $region4: #{denoising_genius_forward.24} parent=0 // pred_region
    _
  $region5: #{denoising_genius_forward.24} parent=0 // pred_fallthru
    _
  // Predicated region
  $region6: #{denoising_genius_forward.24} parent=0 // pred_check
    _
  $region7: #{denoising_genius_forward.24} parent=0 // pred_check_branch
    %11 = sbr.rel (0) target = $region9
  $region8: #{denoising_genius_forward.24} parent=0 // pred_region
    _
  $region9: #{denoising_genius_forward.24} parent=0 // pred_fallthru
    _
  // Predicated region
  $region10: #{denoising_genius_forward.24} parent=0 // pred_check
    _
  $region11: #{denoising_genius_forward.24} parent=0 // pred_check_branch
    %13 = sbr.rel (0) target = $region13
  $region12: #{denoising_genius_forward.24} parent=0 // pred_region
    _
  $region13: #{denoising_genius_forward.24} parent=0 // pred_fallthru
    _
  %v14 = vld [vmem:[%s0] sm:$0xff]
  %v15 = vld [vmem:[%s0 + $0x8] sm:$0xff]
  %v16 = vld [vmem:[%s0 + $0x10] sm:$0xff]
  %v17 = vld [vmem:[%s0 + $0x18] sm:$0xff]
  %v18 = vunpack.c.l.bf16 %v14
  %v19 = vunpack.c.h.bf16 %v14
  %v20 = vunpack.c.l.bf16 %v15
  %v21 = vunpack.c.h.bf16 %v15
  %v22 = vunpack.c.l.bf16 %v16
  %v23 = vunpack.c.h.bf16 %v16
  %v24 = vunpack.c.l.bf16 %v17
  %v25 = vunpack.c.h.bf16 %v17
  %v26 = vld [vmem:[%s1] sm:$0xf]
  %v28 = vlaneseq
  %v29 = vshrl.u32 %v28, 7
  %v30 = vsub.s32 0, %v29
  %v31 = vrot.slane %v26, %v30
  %v32 = vlaneseq
  %v33 = vshrl.u32 %v32, 7
  %v34 = vsub.s32 1, %v33
  %v35 = vrot.slane %v26, %v34
  %v36 = vlaneseq
  %v37 = vshrl.u32 %v36, 7
  %v38 = vsub.s32 2, %v37
  %v39 = vrot.slane %v26, %v38
  %v40 = vlaneseq
  %v41 = vshrl.u32 %v40, 7
  %v42 = vsub.s32 3, %v41
  %v43 = vrot.slane %v26, %v42
  %v48 = vmul.f32 %v18, %v31
  %v49 = vmul.f32 %v19, %v35
  %v50 = vmul.f32 %v20, %v39
  %v51 = vmul.f32 %v21, %v43
  %v52 = vmul.f32 %v22, %v31
  %v53 = vmul.f32 %v23, %v35
  %v54 = vmul.f32 %v24, %v39
  %v55 = vmul.f32 %v25, %v43
  %v56 = vld [vmem:[%s2] sm:$0xf]
  %v58 = vlaneseq
  %v59 = vshrl.u32 %v58, 7
  %v60 = vsub.s32 0, %v59
  %v61 = vrot.slane %v56, %v60
  %v62 = vlaneseq
  %v63 = vshrl.u32 %v62, 7
  %v64 = vsub.s32 1, %v63
  %v65 = vrot.slane %v56, %v64
  %v66 = vlaneseq
  %v67 = vshrl.u32 %v66, 7
  %v68 = vsub.s32 2, %v67
  %v69 = vrot.slane %v56, %v68
  %v70 = vlaneseq
  %v71 = vshrl.u32 %v70, 7
  %v72 = vsub.s32 3, %v71
  %v73 = vrot.slane %v56, %v72
  %v78 = vadd.f32 %v48, %v61
  %v79 = vadd.f32 %v49, %v65
  %v80 = vadd.f32 %v50, %v69
  %v81 = vadd.f32 %v51, %v73
  %v82 = vadd.f32 %v52, %v61
  %v83 = vadd.f32 %v53, %v65
  %v84 = vadd.f32 %v54, %v69
  %v85 = vadd.f32 %v55, %v73
  %v86 = vmax.f32 %v78, 0.0
  %v87 = vmax.f32 %v79, 0.0
  %v88 = vmax.f32 %v80, 0.0
  %v89 = vmax.f32 %v81, 0.0
  %v90 = vmax.f32 %v82, 0.0
  %v91 = vmax.f32 %v83, 0.0
  %v92 = vmax.f32 %v84, 0.0
  %v93 = vmax.f32 %v85, 0.0
  %v94 = vpack.c.bf16 %v90, %v86
  %v95 = vpack.c.bf16 %v91, %v87
  %v96 = vpack.c.bf16 %v92, %v88
  %v97 = vpack.c.bf16 %v93, %v89
  %v102 = vunpack.c.l.b16 %v94
  %v103 = vunpack.c.l.b16 %v95
  %v104 = vunpack.c.l.b16 %v96
  %v105 = vunpack.c.l.b16 %v97
  %v106 = vunpack.c.h.b16 %v94
  %v107 = vunpack.c.h.b16 %v95
  %v108 = vunpack.c.h.b16 %v96
  %v109 = vunpack.c.h.b16 %v97
  %v110 = vpack.c.b16 %v103, %v102
  %v111 = vpack.c.b16 %v105, %v104
  %v112 = vpack.c.b16 %v107, %v106
  %v113 = vpack.c.b16 %v109, %v108
  %118 = vst [vmem:[%s3] sm:$0xff] %v110
  %119 = vst [vmem:[%s3 + $0x8] sm:$0xff] %v111
  %120 = vst [vmem:[%s3 + $0x10] sm:$0xff] %v112
  %121 = vst [vmem:[%s3 + $0x18] sm:$0xff] %v113
  // Predicated region
  $region14: #{denoising_genius_forward.24} parent=0 // pred_check
    _
  $region15: #{denoising_genius_forward.24} parent=0 // pred_check_branch
    %123 = sbr.rel (0) target = $region17
  $region16: #{denoising_genius_forward.24} parent=0 // pred_region
    _
  $region17: #{denoising_genius_forward.24} parent=0 // pred_fallthru
    _
  // Predicated region
  $region18: #{denoising_genius_forward.24} parent=0 // pred_check
    _
  $region19: #{denoising_genius_forward.24} parent=0 // pred_check_branch
    %125 = sbr.rel (0) target = $region21
  $region20: #{denoising_genius_forward.24} parent=0 // pred_region
    _
  $region21: #{denoising_genius_forward.24} parent=0 // pred_fallthru
    _

// kernel: tile.43
$region0: #{tile.43}
  #allocation0 [shape = 's32[1]{0}', space=sflag, size = 0x4, scoped, tag = 'scoped memory for tile.43']
  %s0 = inlined_call_operand.vmem [shape: f32[64], index: 0, kind: input, shape index: {}]
  %s1 = inlined_call_operand.vmem [shape: f32[4,64], index: 1, kind: output, shape index: {}]
  // Predicated region
  $region2: #{tile.43} parent=0 // pred_check
    _
  $region3: #{tile.43} parent=0 // pred_check_branch
    %3 = sbr.rel (0) target = $region5
  $region4: #{tile.43} parent=0 // pred_region
    _
  $region5: #{tile.43} parent=0 // pred_fallthru
    _
  %v4 = vld [vmem:[%s0] ss:$0 sm:$0xff]
  %5 = vst [vmem:[%s1] sm:$0xf] %v4

// kernel: denoising_genius_forward.23
$region0: #{denoising_genius_forward.23}
  #allocation0 [shape = 'u32[]', space=smem, size = 0x4, offset = 0x4, fixed_abs, tag = 'smem constant byte address 0x4 - core index']
  #allocation1 [shape = 'u32[144,128]{1,0:T(1,128)}', space=vmem, size = 0x12000, scoped, tag = 'internal scratch']
  #allocation2 [shape = 'f32[16,256]{1,0:T(8,128)}', space=vmem, size = 0x4000, scoped, tag = 'scratch operand']
  %s0 = inlined_call_operand.vmem [shape: bf16[16,2304], index: 0, kind: input, shape index: {}]
  %s1 = inlined_call_operand.vmem [shape: bf16[2304,512], index: 1, kind: input, shape index: {}]
  %s2 = inlined_call_operand.vmem [shape: f32[1,512], index: 2, kind: input, shape index: {}]
  %s3 = inlined_call_operand.vmem [shape: bf16[16,512], index: 3, kind: output, shape index: {0}]
  %s4 = inlined_call_operand.vmem [shape: f32[1,8,512], index: 4, kind: output, shape index: {1}]
  %5 = xla_tuple %s3, %s4
  %s6 = sld [smem:[#allocation0]]
  $region159: #{denoising_genius_forward.23} parent=0
    _
  %s8 = ssub.s32 1, %s6
  %s9 = scalar_select 0, %s8, %s6
  $region1: #{denoising_genius_forward.23} parent=0
    #allocation3 [shape = 'u8[24576]{0}', space=vmem, size = 0x6000, scoped, tag = 'input window, operand 0']
    #allocation4 [shape = 'u8[393216]{0}', space=vmem, size = 0x60000, scoped, tag = 'input window, operand 1']
    #allocation5 [shape = 'u8[16384]{0}', space=vmem, size = 0x4000, scoped, tag = 'output window, operand 0']
    loop: start=0, step=1, limit=14
    $region2: #{denoising_genius_forward.23} parent=1 // loop_pre_header
      _
    $region3: #{denoising_genius_forward.23} parent=1 // loop_header
      %s11 = sphi 0, %s15
      %p12 = scmp.ge.s32.totalorder %s11, 14
      %s18 = sphi 0, %s37
      %s19 = sphi 0, %s33
      %s20 = sphi 0, %s29
      %s21 = sphi 0, %s18
      %s22 = sphi 0, %s19
      %s23 = sphi 0, %s20
      %s24 = sphi 0, %s21
      %s25 = sphi 0, %s22
      %s26 = sphi 0, %s23
      %s42 = sphi 0, %s44
      %s45 = sphi 0, %s42
      %s46 = sphi 0, %s45
      %s62 = sphi 0, %s46
      %s70 = sphi 0, %s72
      %s73 = sphi 0, %s70
      %s74 = sphi 0, %s73
      %s90 = sphi 0, %s74
      %s96 = sphi 0, %s98
      %s99 = sphi 0, %s96
      %s100 = sphi 0, %s99
      %s116 = sphi 0, %s100
      %s124 = sphi 0, %s126
      %s127 = sphi 0, %s124
      %s128 = sphi 0, %s127
      %s144 = sphi 0, %s128
      %s152 = sphi 0, %s154
      %s155 = sphi 0, %s152
      %s156 = sphi 0, %s155
      %s172 = sphi 0, %s156
    $region4: #{denoising_genius_forward.23} parent=1 // loop_header_branch
      %14 = sbr.rel (%p12) target = $region8
    $region5: #{denoising_genius_forward.23} parent=1 // loop_body
      %s16 = ssub.s32 %s11, 1
      %s17 = ssub.s32 %s11, 2
      %s27 = sadd.s32 1, %s20
      %p28 = scmp.ge.s32.totalorder %s27, 6
      %s29 = scalar_select %p28, 0, %s27
      %s30 = sadd.s32 1, %s19
      %s31 = scalar_select %p28, %s30, %s19
      %p32 = scmp.ge.s32.totalorder %s31, 2
      %s33 = scalar_select %p32, 0, %s31
      %s34 = sadd.s32 1, %s18
      %s35 = scalar_select %p32, %s34, %s18
      %p36 = scmp.ge.s32.totalorder %s35, 1
      %s37 = scalar_select %p36, 0, %s35
      %s38 = ssub.s32 %s18, %s37
      %s39 = ssub.s32 %s20, %s29
      %s40 = sor.u32 %s38, %s39
      %p41 = scmp.eq.s32.totalorder %s40, 0
      %s43 = sadd.s32 %s42, 1
      %s44 = scalar_select %p41, %s42, %s43
      %p47 = pneg %p41
      %p48 = scmp.eq.s32.totalorder %s11, 11
      %p49 = por %p47, %p48
      %p50 = scmp.ne.s32.totalorder %s42, %s45
      %p51 = scmp.eq.s32.totalorder %s11, 0
      %p52 = por %p50, %p51
      %p53 = scmp.ne.s32.totalorder %s42, %s45
      %p54 = scmp.eq.s32.totalorder %s16, 11
      %p55 = por %p53, %p54
      %p56 = scmp.ne.s32.totalorder %s45, %s46
      %p57 = scmp.eq.s32.totalorder %s16, 0
      %p58 = por %p56, %p57
      %p59 = scmp.ne.s32.totalorder %s45, %s46
      %p60 = scmp.eq.s32.totalorder %s17, 11
      %p61 = por %p59, %p60
      %p63 = scmp.ne.s32.totalorder %s46, %s62
      %p64 = scmp.eq.s32.totalorder %s17, 0
      %p65 = por %p63, %p64
      %s66 = ssub.s32 %s20, %s29
      %s67 = ssub.s32 %s19, %s33
      %s68 = sor.u32 %s66, %s67
      %p69 = scmp.eq.s32.totalorder %s68, 0
      %s71 = sadd.s32 %s70, 1
      %s72 = scalar_select %p69, %s70, %s71
      %p75 = pneg %p69
      %p76 = scmp.eq.s32.totalorder %s11, 11
      %p77 = por %p75, %p76
      %p78 = scmp.ne.s32.totalorder %s70, %s73
      %p79 = scmp.eq.s32.totalorder %s11, 0
      %p80 = por %p78, %p79
      %p81 = scmp.ne.s32.totalorder %s70, %s73
      %p82 = scmp.eq.s32.totalorder %s16, 11
      %p83 = por %p81, %p82
      %p84 = scmp.ne.s32.totalorder %s73, %s74
      %p85 = scmp.eq.s32.totalorder %s16, 0
      %p86 = por %p84, %p85
      %p87 = scmp.ne.s32.totalorder %s73, %s74
      %p88 = scmp.eq.s32.totalorder %s17, 11
      %p89 = por %p87, %p88
      %p91 = scmp.ne.s32.totalorder %s74, %s90
      %p92 = scmp.eq.s32.totalorder %s17, 0
      %p93 = por %p91, %p92
      %s94 = ssub.s32 %s19, %s33
      %p95 = scmp.eq.s32.totalorder %s94, 0
      %s97 = sadd.s32 %s96, 1
      %s98 = scalar_select %p95, %s96, %s97
      %p101 = pneg %p95
      %p102 = scmp.eq.s32.totalorder %s11, 11
      %p103 = por %p101, %p102
      %p104 = scmp.ne.s32.totalorder %s96, %s99
      %p105 = scmp.eq.s32.totalorder %s11, 0
      %p106 = por %p104, %p105
      %p107 = scmp.ne.s32.totalorder %s96, %s99
      %p108 = scmp.eq.s32.totalorder %s16, 11
      %p109 = por %p107, %p108
      %p110 = scmp.ne.s32.totalorder %s99, %s100
      %p111 = scmp.eq.s32.totalorder %s16, 0
      %p112 = por %p110, %p111
      %p113 = scmp.ne.s32.totalorder %s99, %s100
      %p114 = scmp.eq.s32.totalorder %s17, 11
      %p115 = por %p113, %p114
      %p117 = scmp.ne.s32.totalorder %s100, %s116
      %p118 = scmp.eq.s32.totalorder %s17, 0
      %p119 = por %p117, %p118
      %s120 = ssub.s32 %s18, %s37
      %s121 = ssub.s32 %s19, %s33
      %s122 = sor.u32 %s120, %s121
      %p123 = scmp.eq.s32.totalorder %s122, 0
      %s125 = sadd.s32 %s124, 1
      %s126 = scalar_select %p123, %s124, %s125
      %p129 = pneg %p123
      %p130 = scmp.eq.s32.totalorder %s11, 11
      %p131 = por %p129, %p130
      %p132 = scmp.ne.s32.totalorder %s124, %s127
      %p133 = scmp.eq.s32.totalorder %s11, 0
      %p134 = por %p132, %p133
      %p135 = scmp.ne.s32.totalorder %s124, %s127
      %p136 = scmp.eq.s32.totalorder %s16, 11
      %p137 = por %p135, %p136
      %p138 = scmp.ne.s32.totalorder %s127, %s128
      %p139 = scmp.eq.s32.totalorder %s16, 0
      %p140 = por %p138, %p139
      %p141 = scmp.ne.s32.totalorder %s127, %s128
      %p142 = scmp.eq.s32.totalorder %s17, 11
      %p143 = por %p141, %p142
      %p145 = scmp.ne.s32.totalorder %s128, %s144
      %p146 = scmp.eq.s32.totalorder %s17, 0
      %p147 = por %p145, %p146
      %s148 = ssub.s32 %s18, %s37
      %s149 = ssub.s32 %s19, %s33
      %s150 = sor.u32 %s148, %s149
      %p151 = scmp.eq.s32.totalorder %s150, 0
      %s153 = sadd.s32 %s152, 1
      %s154 = scalar_select %p151, %s152, %s153
      %p157 = pneg %p151
      %p158 = scmp.eq.s32.totalorder %s11, 11
      %p159 = por %p157, %p158
      %p160 = scmp.ne.s32.totalorder %s152, %s155
      %p161 = scmp.eq.s32.totalorder %s11, 0
      %p162 = por %p160, %p161
      %p163 = scmp.ne.s32.totalorder %s152, %s155
      %p164 = scmp.eq.s32.totalorder %s16, 11
      %p165 = por %p163, %p164
      %p166 = scmp.ne.s32.totalorder %s155, %s156
      %p167 = scmp.eq.s32.totalorder %s16, 0
      %p168 = por %p166, %p167
      %p169 = scmp.ne.s32.totalorder %s155, %s156
      %p170 = scmp.eq.s32.totalorder %s17, 11
      %p171 = por %p169, %p170
      %p173 = scmp.ne.s32.totalorder %s156, %s172
      %p174 = scmp.eq.s32.totalorder %s17, 0
      %p175 = por %p173, %p174
      %p176 = scmp.le.s32.totalorder 1, %s11
      %p177 = scmp.lt.s32.totalorder %s11, 13
      %p178 = pnand %p176, %p177
      %p179 = pneg %p178
      // Predicated region
      $region9: #{denoising_genius_forward.23} parent=5 // pred_check
        _
      $region10: #{denoising_genius_forward.23} parent=5 // pred_check_branch
        %181 = sbr.rel (%p178) target = $region12
      $region11: #{denoising_genius_forward.23} parent=5 // pred_region
        %s182 = ssub.s32 %s11, 1
      $region12: #{denoising_genius_forward.23} parent=5 // pred_fallthru
        _
      %p183 = scmp.lt.s32.totalorder %s11, 12
      // Predicated region
      $region13: #{denoising_genius_forward.23} parent=5 // pred_check
        %p184 = pneg %p183
      $region14: #{denoising_genius_forward.23} parent=5 // pred_check_branch
        %186 = sbr.rel (%p184) target = $region16
      $region15: #{denoising_genius_forward.23} parent=5 // pred_region
        // Predicated region
        $region17: #{denoising_genius_forward.23} parent=15 // pred_check
          %p187 = pneg %p52
        $region18: #{denoising_genius_forward.23} parent=15 // pred_check_branch
          %189 = sbr.rel (%p187) target = $region20
        $region19: #{denoising_genius_forward.23} parent=15 // pred_region
          %s190 = sand.u32 %s42, 1
          %s191 = sand.u32 %s42, 1
          %s192 = smul.addr %s191, 24
          %s193 = scalar_lea.vmem [#allocation3], %s192
          %s194 = smul.u32 2, %s18
          %s195 = smul.u32 3, %s20
          %s196 = smul.addr %s194, 18
          %s197 = sadd.s32 %s195, %s196
          %s198 = smul.addr %s197, 4
          %s199 = scalar_lea.vmem %s0, %s198
          // Predicated region
          $region21: #{denoising_genius_forward.23} parent=19 // pred_check
            _
          $region22: #{denoising_genius_forward.23} parent=19 // pred_check_branch
            %201 = sbr.rel (0) target = $region24
          $region23: #{denoising_genius_forward.23} parent=19 // pred_region
            // Predicated region
            $region25: #{denoising_genius_forward.23} parent=23 // pred_check
              _
            $region26: #{denoising_genius_forward.23} parent=23 // pred_check_branch
              %203 = sbr.rel (0) target = $region28
            $region27: #{denoising_genius_forward.23} parent=23 // pred_region
              %s204 = scalar_lea.vmem %s199, 8
              %s205 = scalar_lea.vmem %s193, 8 [#allocation3]
              loop: start=0, step=1, limit=1
              $region29: #{denoising_genius_forward.23} parent=27 // loop_pre_header
                _
              $region30: #{denoising_genius_forward.23} parent=27 // loop_header
                %s207 = sphi 0, %s211
                %p208 = scmp.ge.s32.totalorder %s207, 1
                %s212 = sphi %s199, %s199
                %s213 = sphi %s193, %s193
              $region31: #{denoising_genius_forward.23} parent=27 // loop_header_branch
                %210 = sbr.rel (%p208) target = $region35
              $region32: #{denoising_genius_forward.23} parent=27 // loop_body
                %v214 = vld [vmem:[%s212] sm:$0xff]
                %215 = vst [vmem:[%s213] sm:$0xff] %v214
                %v216 = vld [vmem:[%s212 + $0x48] sm:$0xff]
                %217 = vst [vmem:[%s213 + $0xc] sm:$0xff] %v216
              $region33: #{denoising_genius_forward.23} parent=27 // loop_footer
                %s211 = sadd.s32 1, %s207
              $region34: #{denoising_genius_forward.23} parent=27 // loop_footer_branch
                %206 = sbr.rel target = $region30
              $region35: #{denoising_genius_forward.23} parent=27 // loop_exit
                _
              loop: start=0, step=1, limit=1
              $region36: #{denoising_genius_forward.23} parent=27 // loop_pre_header
                _
              $region37: #{denoising_genius_forward.23} parent=27 // loop_header
                %s220 = sphi 0, %s224
                %p221 = scmp.ge.s32.totalorder %s220, 1
                %s225 = sphi %s204, %s204
                %s226 = sphi %s205, %s205
              $region38: #{denoising_genius_forward.23} parent=27 // loop_header_branch
                %223 = sbr.rel (%p221) target = $region42
              $region39: #{denoising_genius_forward.23} parent=27 // loop_body
                %v227 = vld [vmem:[%s225] sm:$0xf]
                %228 = vst [vmem:[%s226] sm:$0xf] %v227
                %v229 = vld [vmem:[%s225 + $0x48] sm:$0xf]
                %230 = vst [vmem:[%s226 + $0xc] sm:$0xf] %v229
              $region40: #{denoising_genius_forward.23} parent=27 // loop_footer
                %s224 = sadd.s32 1, %s220
              $region41: #{denoising_genius_forward.23} parent=27 // loop_footer_branch
                %219 = sbr.rel target = $region37
              $region42: #{denoising_genius_forward.23} parent=27 // loop_exit
                _
            $region28: #{denoising_genius_forward.23} parent=23 // pred_fallthru
              _
          $region24: #{denoising_genius_forward.23} parent=19 // pred_fallthru
            _
          %231 = vnop
        $region20: #{denoising_genius_forward.23} parent=15 // pred_fallthru
          _
        // Predicated region
        $region43: #{denoising_genius_forward.23} parent=15 // pred_check
          %p232 = pneg %p80
        $region44: #{denoising_genius_forward.23} parent=15 // pred_check_branch
          %234 = sbr.rel (%p232) target = $region46
        $region45: #{denoising_genius_forward.23} parent=15 // pred_region
          %s235 = sand.u32 %s70, 1
          %s236 = sand.u32 %s70, 1
          %s237 = smul.addr %s236, 384
          %s238 = scalar_lea.vmem [#allocation4], %s237
          %s239 = smul.u32 48, %s20
          %s240 = smul.u32 2, %s19
          %s241 = smul.addr %s239, 4
          %s242 = sadd.s32 %s240, %s241
          %s243 = smul.addr %s242, 4
          %s244 = scalar_lea.vmem %s1, %s243
          // Predicated region
          $region47: #{denoising_genius_forward.23} parent=45 // pred_check
            _
          $region48: #{denoising_genius_forward.23} parent=45 // pred_check_branch
            %246 = sbr.rel (0) target = $region50
          $region49: #{denoising_genius_forward.23} parent=45 // pred_region
            // Predicated region
            $region51: #{denoising_genius_forward.23} parent=49 // pred_check
              _
            $region52: #{denoising_genius_forward.23} parent=49 // pred_check_branch
              %248 = sbr.rel (0) target = $region54
            $region53: #{denoising_genius_forward.23} parent=49 // pred_region
              // Predicated region
              $region66: #{denoising_genius_forward.23} parent=53 // pred_check
                _
              $region67: #{denoising_genius_forward.23} parent=53 // pred_check_branch
                %357 = sbr.rel (0) target = $region69
              $region68: #{denoising_genius_forward.23} parent=53 // pred_region
                loop: start=0, step=1, limit=1
                $region70: #{denoising_genius_forward.23} parent=68 // loop_pre_header
                  _
                $region71: #{denoising_genius_forward.23} parent=68 // loop_header
                  %s359 = sphi 0, %s363
                  %p360 = scmp.ge.s32.totalorder %s359, 1
                  %s364 = sphi %s244, %s244
                  %s365 = sphi %s238, %s238
                $region72: #{denoising_genius_forward.23} parent=68 // loop_header_branch
                  %362 = sbr.rel (%p360) target = $region76
                $region73: #{denoising_genius_forward.23} parent=68 // loop_body
                  %v366 = vld [vmem:[%s364] sm:$0xff]
                  %367 = vst [vmem:[%s365] sm:$0xff] %v366
                  %v368 = vld [vmem:[%s364 + $0x10] sm:$0xff]
                  %369 = vst [vmem:[%s365 + $0x8] sm:$0xff] %v368
                  %v370 = vld [vmem:[%s364 + $0x20] sm:$0xff]
                  %371 = vst [vmem:[%s365 + $0x10] sm:$0xff] %v370
                  %v372 = vld [vmem:[%s364 + $0x30] sm:$0xff]
                  %373 = vst [vmem:[%s365 + $0x18] sm:$0xff] %v372
                  %v374 = vld [vmem:[%s364 + $0x40] sm:$0xff]
                  %375 = vst [vmem:[%s365 + $0x20] sm:$0xff] %v374
                  %v376 = vld [vmem:[%s364 + $0x50] sm:$0xff]
                  %377 = vst [vmem:[%s365 + $0x28] sm:$0xff] %v376
                  %v378 = vld [vmem:[%s364 + $0x60] sm:$0xff]
                  %379 = vst [vmem:[%s365 + $0x30] sm:$0xff] %v378
                  %v380 = vld [vmem:[%s364 + $0x70] sm:$0xff]
                  %381 = vst [vmem:[%s365 + $0x38] sm:$0xff] %v380
                  %v382 = vld [vmem:[%s364 + $0x80] sm:$0xff]
                  %383 = vst [vmem:[%s365 + $0x40] sm:$0xff] %v382
                  %v384 = vld [vmem:[%s364 + $0x90] sm:$0xff]
                  %385 = vst [vmem:[%s365 + $0x48] sm:$0xff] %v384
                  %v386 = vld [vmem:[%s364 + $0xa0] sm:$0xff]
                  %387 = vst [vmem:[%s365 + $0x50] sm:$0xff] %v386
                  %v388 = vld [vmem:[%s364 + $0xb0] sm:$0xff]
                  %389 = vst [vmem:[%s365 + $0x58] sm:$0xff] %v388
                  %v390 = vld [vmem:[%s364 + $0xc0] sm:$0xff]
                  %391 = vst [vmem:[%s365 + $0x60] sm:$0xff] %v390
                  %v392 = vld [vmem:[%s364 + $0xd0] sm:$0xff]
                  %393 = vst [vmem:[%s365 + $0x68] sm:$0xff] %v392
                  %v394 = vld [vmem:[%s364 + $0xe0] sm:$0xff]
                  %395 = vst [vmem:[%s365 + $0x70] sm:$0xff] %v394
                  %v396 = vld [vmem:[%s364 + $0xf0] sm:$0xff]
                  %397 = vst [vmem:[%s365 + $0x78] sm:$0xff] %v396
                  %v398 = vld [vmem:[%s364 + $0x100] sm:$0xff]
                  %399 = vst [vmem:[%s365 + $0x80] sm:$0xff] %v398
                  %v400 = vld [vmem:[%s364 + $0x110] sm:$0xff]
                  %401 = vst [vmem:[%s365 + $0x88] sm:$0xff] %v400
                  %v402 = vld [vmem:[%s364 + $0x120] sm:$0xff]
                  %403 = vst [vmem:[%s365 + $0x90] sm:$0xff] %v402
                  %v404 = vld [vmem:[%s364 + $0x130] sm:$0xff]
                  %405 = vst [vmem:[%s365 + $0x98] sm:$0xff] %v404
                  %v406 = vld [vmem:[%s364 + $0x140] sm:$0xff]
                  %407 = vst [vmem:[%s365 + $0xa0] sm:$0xff] %v406
                  %v408 = vld [vmem:[%s364 + $0x150] sm:$0xff]
                  %409 = vst [vmem:[%s365 + $0xa8] sm:$0xff] %v408
                  %v410 = vld [vmem:[%s364 + $0x160] sm:$0xff]
                  %411 = vst [vmem:[%s365 + $0xb0] sm:$0xff] %v410
                  %v412 = vld [vmem:[%s364 + $0x170] sm:$0xff]
                  %413 = vst [vmem:[%s365 + $0xb8] sm:$0xff] %v412
                  %v414 = vld [vmem:[%s364 + $0x180] sm:$0xff]
                  %415 = vst [vmem:[%s365 + $0xc0] sm:$0xff] %v414
                  %v416 = vld [vmem:[%s364 + $0x190] sm:$0xff]
                  %417 = vst [vmem:[%s365 + $0xc8] sm:$0xff] %v416
                  %v418 = vld [vmem:[%s364 + $0x1a0] sm:$0xff]
                  %419 = vst [vmem:[%s365 + $0xd0] sm:$0xff] %v418
                  %v420 = vld [vmem:[%s364 + $0x1b0] sm:$0xff]
                  %421 = vst [vmem:[%s365 + $0xd8] sm:$0xff] %v420
                  %v422 = vld [vmem:[%s364 + $0x1c0] sm:$0xff]
                  %423 = vst [vmem:[%s365 + $0xe0] sm:$0xff] %v422
                  %v424 = vld [vmem:[%s364 + $0x1d0] sm:$0xff]
                  %425 = vst [vmem:[%s365 + $0xe8] sm:$0xff] %v424
                  %v426 = vld [vmem:[%s364 + $0x1e0] sm:$0xff]
                  %427 = vst [vmem:[%s365 + $0xf0] sm:$0xff] %v426
                  %v428 = vld [vmem:[%s364 + $0x1f0] sm:$0xff]
                  %429 = vst [vmem:[%s365 + $0xf8] sm:$0xff] %v428
                  %v430 = vld [vmem:[%s364 + $0x200] sm:$0xff]
                  %431 = vst [vmem:[%s365 + $0x100] sm:$0xff] %v430
                  %v432 = vld [vmem:[%s364 + $0x210] sm:$0xff]
                  %433 = vst [vmem:[%s365 + $0x108] sm:$0xff] %v432
                  %v434 = vld [vmem:[%s364 + $0x220] sm:$0xff]
                  %435 = vst [vmem:[%s365 + $0x110] sm:$0xff] %v434
                  %v436 = vld [vmem:[%s364 + $0x230] sm:$0xff]
                  %437 = vst [vmem:[%s365 + $0x118] sm:$0xff] %v436
                  %v438 = vld [vmem:[%s364 + $0x240] sm:$0xff]
                  %439 = vst [vmem:[%s365 + $0x120] sm:$0xff] %v438
                  %v440 = vld [vmem:[%s364 + $0x250] sm:$0xff]
                  %441 = vst [vmem:[%s365 + $0x128] sm:$0xff] %v440
                  %v442 = vld [vmem:[%s364 + $0x260] sm:$0xff]
                  %443 = vst [vmem:[%s365 + $0x130] sm:$0xff] %v442
                  %v444 = vld [vmem:[%s364 + $0x270] sm:$0xff]
                  %445 = vst [vmem:[%s365 + $0x138] sm:$0xff] %v444
                  %v446 = vld [vmem:[%s364 + $0x280] sm:$0xff]
                  %447 = vst [vmem:[%s365 + $0x140] sm:$0xff] %v446
                  %v448 = vld [vmem:[%s364 + $0x290] sm:$0xff]
                  %449 = vst [vmem:[%s365 + $0x148] sm:$0xff] %v448
                  %v450 = vld [vmem:[%s364 + $0x2a0] sm:$0xff]
                  %451 = vst [vmem:[%s365 + $0x150] sm:$0xff] %v450
                  %v452 = vld [vmem:[%s364 + $0x2b0] sm:$0xff]
                  %453 = vst [vmem:[%s365 + $0x158] sm:$0xff] %v452
                  %v454 = vld [vmem:[%s364 + $0x2c0] sm:$0xff]
                  %455 = vst [vmem:[%s365 + $0x160] sm:$0xff] %v454
                  %v456 = vld [vmem:[%s364 + $0x2d0] sm:$0xff]
                  %457 = vst [vmem:[%s365 + $0x168] sm:$0xff] %v456
                  %v458 = vld [vmem:[%s364 + $0x2e0] sm:$0xff]
                  %459 = vst [vmem:[%s365 + $0x170] sm:$0xff] %v458
                  %v460 = vld [vmem:[%s364 + $0x2f0] sm:$0xff]
                  %461 = vst [vmem:[%s365 + $0x178] sm:$0xff] %v460
                $region74: #{denoising_genius_forward.23} parent=68 // loop_footer
                  %s363 = sadd.s32 1, %s359
                $region75: #{denoising_genius_forward.23} parent=68 // loop_footer_branch
                  %358 = sbr.rel target = $region71
                $region76: #{denoising_genius_forward.23} parent=68 // loop_exit
                  _
              $region69: #{denoising_genius_forward.23} parent=53 // pred_fallthru
                _
              // Predicated region
              $region77: #{denoising_genius_forward.23} parent=53 // pred_check
                _
              $region78: #{denoising_genius_forward.23} parent=53 // pred_check_branch
                %463 = sbr.rel target = $region80
              $region79: #{denoising_genius_forward.23} parent=53 // pred_region
                _
              $region80: #{denoising_genius_forward.23} parent=53 // pred_fallthru
                _
            $region54: #{denoising_genius_forward.23} parent=49 // pred_fallthru
              _
            // Predicated region
            $region55: #{denoising_genius_forward.23} parent=49 // pred_check
              _
            $region56: #{denoising_genius_forward.23} parent=49 // pred_check_branch
              %250 = sbr.rel target = $region58
            $region57: #{denoising_genius_forward.23} parent=49 // pred_region
              loop: start=0, step=1, limit=1
              $region59: #{denoising_genius_forward.23} parent=57 // loop_pre_header
                _
              $region60: #{denoising_genius_forward.23} parent=57 // loop_header
                %s253 = sphi 0, %s257
                %p254 = scmp.ge.s32.totalorder %s253, 1
                %s258 = sphi %s244, %s244
                %s259 = sphi %s238, %s238
              $region61: #{denoising_genius_forward.23} parent=57 // loop_header_branch
                %256 = sbr.rel (%p254) target = $region65
              $region62: #{denoising_genius_forward.23} parent=57 // loop_body
                %v260 = vld [vmem:[%s258] sm:$0xff]
                %261 = vst [vmem:[%s259] sm:$0xff] %v260
                %v262 = vld [vmem:[%s258 + $0x10] sm:$0xff]
                %263 = vst [vmem:[%s259 + $0x8] sm:$0xff] %v262
                %v264 = vld [vmem:[%s258 + $0x20] sm:$0xff]
                %265 = vst [vmem:[%s259 + $0x10] sm:$0xff] %v264
                %v266 = vld [vmem:[%s258 + $0x30] sm:$0xff]
                %267 = vst [vmem:[%s259 + $0x18] sm:$0xff] %v266
                %v268 = vld [vmem:[%s258 + $0x40] sm:$0xff]
                %269 = vst [vmem:[%s259 + $0x20] sm:$0xff] %v268
                %v270 = vld [vmem:[%s258 + $0x50] sm:$0xff]
                %271 = vst [vmem:[%s259 + $0x28] sm:$0xff] %v270
                %v272 = vld [vmem:[%s258 + $0x60] sm:$0xff]
                %273 = vst [vmem:[%s259 + $0x30] sm:$0xff] %v272
                %v274 = vld [vmem:[%s258 + $0x70] sm:$0xff]
                %275 = vst [vmem:[%s259 + $0x38] sm:$0xff] %v274
                %v276 = vld [vmem:[%s258 + $0x80] sm:$0xff]
                %277 = vst [vmem:[%s259 + $0x40] sm:$0xff] %v276
                %v278 = vld [vmem:[%s258 + $0x90] sm:$0xff]
                %279 = vst [vmem:[%s259 + $0x48] sm:$0xff] %v278
                %v280 = vld [vmem:[%s258 + $0xa0] sm:$0xff]
                %281 = vst [vmem:[%s259 + $0x50] sm:$0xff] %v280
                %v282 = vld [vmem:[%s258 + $0xb0] sm:$0xff]
                %283 = vst [vmem:[%s259 + $0x58] sm:$0xff] %v282
                %v284 = vld [vmem:[%s258 + $0xc0] sm:$0xff]
                %285 = vst [vmem:[%s259 + $0x60] sm:$0xff] %v284
                %v286 = vld [vmem:[%s258 + $0xd0] sm:$0xff]
                %287 = vst [vmem:[%s259 + $0x68] sm:$0xff] %v286
                %v288 = vld [vmem:[%s258 + $0xe0] sm:$0xff]
                %289 = vst [vmem:[%s259 + $0x70] sm:$0xff] %v288
                %v290 = vld [vmem:[%s258 + $0xf0] sm:$0xff]
                %291 = vst [vmem:[%s259 + $0x78] sm:$0xff] %v290
                %v292 = vld [vmem:[%s258 + $0x100] sm:$0xff]
                %293 = vst [vmem:[%s259 + $0x80] sm:$0xff] %v292
                %v294 = vld [vmem:[%s258 + $0x110] sm:$0xff]
                %295 = vst [vmem:[%s259 + $0x88] sm:$0xff] %v294
                %v296 = vld [vmem:[%s258 + $0x120] sm:$0xff]
                %297 = vst [vmem:[%s259 + $0x90] sm:$0xff] %v296
                %v298 = vld [vmem:[%s258 + $0x130] sm:$0xff]
                %299 = vst [vmem:[%s259 + $0x98] sm:$0xff] %v298
                %v300 = vld [vmem:[%s258 + $0x140] sm:$0xff]
                %301 = vst [vmem:[%s259 + $0xa0] sm:$0xff] %v300
                %v302 = vld [vmem:[%s258 + $0x150] sm:$0xff]
                %303 = vst [vmem:[%s259 + $0xa8] sm:$0xff] %v302
                %v304 = vld [vmem:[%s258 + $0x160] sm:$0xff]
                %305 = vst [vmem:[%s259 + $0xb0] sm:$0xff] %v304
                %v306 = vld [vmem:[%s258 + $0x170] sm:$0xff]
                %307 = vst [vmem:[%s259 + $0xb8] sm:$0xff] %v306
                %v308 = vld [vmem:[%s258 + $0x180] sm:$0xff]
                %309 = vst [vmem:[%s259 + $0xc0] sm:$0xff] %v308
                %v310 = vld [vmem:[%s258 + $0x190] sm:$0xff]
                %311 = vst [vmem:[%s259 + $0xc8] sm:$0xff] %v310
                %v312 = vld [vmem:[%s258 + $0x1a0] sm:$0xff]
                %313 = vst [vmem:[%s259 + $0xd0] sm:$0xff] %v312
                %v314 = vld [vmem:[%s258 + $0x1b0] sm:$0xff]
                %315 = vst [vmem:[%s259 + $0xd8] sm:$0xff] %v314
                %v316 = vld [vmem:[%s258 + $0x1c0] sm:$0xff]
                %317 = vst [vmem:[%s259 + $0xe0] sm:$0xff] %v316
                %v318 = vld [vmem:[%s258 + $0x1d0] sm:$0xff]
                %319 = vst [vmem:[%s259 + $0xe8] sm:$0xff] %v318
                %v320 = vld [vmem:[%s258 + $0x1e0] sm:$0xff]
                %321 = vst [vmem:[%s259 + $0xf0] sm:$0xff] %v320
                %v322 = vld [vmem:[%s258 + $0x1f0] sm:$0xff]
                %323 = vst [vmem:[%s259 + $0xf8] sm:$0xff] %v322
                %v324 = vld [vmem:[%s258 + $0x200] sm:$0xff]
                %325 = vst [vmem:[%s259 + $0x100] sm:$0xff] %v324
                %v326 = vld [vmem:[%s258 + $0x210] sm:$0xff]
                %327 = vst [vmem:[%s259 + $0x108] sm:$0xff] %v326
                %v328 = vld [vmem:[%s258 + $0x220] sm:$0xff]
                %329 = vst [vmem:[%s259 + $0x110] sm:$0xff] %v328
                %v330 = vld [vmem:[%s258 + $0x230] sm:$0xff]
                %331 = vst [vmem:[%s259 + $0x118] sm:$0xff] %v330
                %v332 = vld [vmem:[%s258 + $0x240] sm:$0xff]
                %333 = vst [vmem:[%s259 + $0x120] sm:$0xff] %v332
                %v334 = vld [vmem:[%s258 + $0x250] sm:$0xff]
                %335 = vst [vmem:[%s259 + $0x128] sm:$0xff] %v334
                %v336 = vld [vmem:[%s258 + $0x260] sm:$0xff]
                %337 = vst [vmem:[%s259 + $0x130] sm:$0xff] %v336
                %v338 = vld [vmem:[%s258 + $0x270] sm:$0xff]
                %339 = vst [vmem:[%s259 + $0x138] sm:$0xff] %v338
                %v340 = vld [vmem:[%s258 + $0x280] sm:$0xff]
                %341 = vst [vmem:[%s259 + $0x140] sm:$0xff] %v340
                %v342 = vld [vmem:[%s258 + $0x290] sm:$0xff]
                %343 = vst [vmem:[%s259 + $0x148] sm:$0xff] %v342
                %v344 = vld [vmem:[%s258 + $0x2a0] sm:$0xff]
                %345 = vst [vmem:[%s259 + $0x150] sm:$0xff] %v344
                %v346 = vld [vmem:[%s258 + $0x2b0] sm:$0xff]
                %347 = vst [vmem:[%s259 + $0x158] sm:$0xff] %v346
                %v348 = vld [vmem:[%s258 + $0x2c0] sm:$0xff]
                %349 = vst [vmem:[%s259 + $0x160] sm:$0xff] %v348
                %v350 = vld [vmem:[%s258 + $0x2d0] sm:$0xff]
                %351 = vst [vmem:[%s259 + $0x168] sm:$0xff] %v350
                %v352 = vld [vmem:[%s258 + $0x2e0] sm:$0xff]
                %353 = vst [vmem:[%s259 + $0x170] sm:$0xff] %v352
                %v354 = vld [vmem:[%s258 + $0x2f0] sm:$0xff]
                %355 = vst [vmem:[%s259 + $0x178] sm:$0xff] %v354
              $region63: #{denoising_genius_forward.23} parent=57 // loop_footer
                %s257 = sadd.s32 1, %s253
              $region64: #{denoising_genius_forward.23} parent=57 // loop_footer_branch
                %252 = sbr.rel target = $region60
              $region65: #{denoising_genius_forward.23} parent=57 // loop_exit
                _
            $region58: #{denoising_genius_forward.23} parent=49 // pred_fallthru
              _
          $region50: #{denoising_genius_forward.23} parent=45 // pred_fallthru
            _
          %464 = vnop
        $region46: #{denoising_genius_forward.23} parent=15 // pred_fallthru
          _
        // Predicated region
        $region81: #{denoising_genius_forward.23} parent=15 // pred_check
          %p465 = pneg %p106
        $region82: #{denoising_genius_forward.23} parent=15 // pred_check_branch
          %467 = sbr.rel (%p465) target = $region84
        $region83: #{denoising_genius_forward.23} parent=15 // pred_region
          %s468 = smul.u32 2, %s19
          %p469 = scmp.lt.s32.totalorder %s468, 3
          %s470 = scalar_select %p469, %s468, 3
          %s471 = scalar_lea.vmem %s2, %s470
          %s472 = smul.u32 2, %s19
        $region84: #{denoising_genius_forward.23} parent=15 // pred_fallthru
          _
      $region16: #{denoising_genius_forward.23} parent=5 // pred_fallthru
        _
      %p473 = scmp.le.s32.totalorder 1, %s11
      %p474 = scmp.lt.s32.totalorder %s11, 13
      %p475 = pnand %p473, %p474
      %p476 = pneg %p475
      // Predicated region
      $region85: #{denoising_genius_forward.23} parent=5 // pred_check
        _
      $region86: #{denoising_genius_forward.23} parent=5 // pred_check_branch
        %478 = sbr.rel (%p475) target = $region88
      $region87: #{denoising_genius_forward.23} parent=5 // pred_region
        %s479 = ssub.s32 %s11, 1
        %s480 = sand.u32 %s45, 1
        %s481 = sand.u32 %s45, 1
        %s482 = smul.addr %s481, 24
        %s483 = scalar_lea.vmem [#allocation3], %s482
        // Predicated region
        $region89: #{denoising_genius_forward.23} parent=87 // pred_check
          %p484 = pneg %p58
        $region90: #{denoising_genius_forward.23} parent=87 // pred_check_branch
          %486 = sbr.rel (%p484) target = $region92
        $region91: #{denoising_genius_forward.23} parent=87 // pred_region
          _
        $region92: #{denoising_genius_forward.23} parent=87 // pred_fallthru
          _
        %s487 = sand.u32 %s73, 1
        %s488 = sand.u32 %s73, 1
        %s489 = smul.addr %s488, 384
        %s490 = scalar_lea.vmem [#allocation4], %s489
        // Predicated region
        $region93: #{denoising_genius_forward.23} parent=87 // pred_check
          %p491 = pneg %p86
        $region94: #{denoising_genius_forward.23} parent=87 // pred_check_branch
          %493 = sbr.rel (%p491) target = $region96
        $region95: #{denoising_genius_forward.23} parent=87 // pred_region
          _
        $region96: #{denoising_genius_forward.23} parent=87 // pred_fallthru
          _
        %s494 = sand.u32 %s45, 1
        %s495 = sand.u32 %s45, 1
        %s496 = smul.addr %s495, 24
        %s497 = scalar_lea.vmem [#allocation3], %s496
        %p498 = pneg %p58
        %p499 = pneg %p55
        %s500 = sand.u32 %s73, 1
        %s501 = sand.u32 %s73, 1
        %s502 = smul.addr %s501, 384
        %s503 = scalar_lea.vmem [#allocation4], %s502
        %p504 = pneg %p86
        %p505 = pneg %p83
        %s506 = smul.u32 2, %s22
        %p507 = scmp.lt.s32.totalorder %s506, 3
        %s508 = scalar_select %p507, %s506, 3
        %s509 = scalar_lea.vmem %s2, %s508
        %p510 = pneg %p112
        %p511 = pneg %p109
        %p512 = pneg %p140
        %p513 = pneg %p137
        %s514 = sand.u32 %s127, 1
        %s515 = sand.u32 %s127, 1
        %s516 = smul.addr %s515, 16
        %s517 = scalar_lea.vmem [#allocation5], %s516
        %p518 = pneg %p168
        %p519 = pneg %p165
        %s520 = smul.u32 2, %s22
        %p521 = scmp.lt.s32.totalorder %s21, 0
        %s522 = scalar_select %p521, %s21, 0
        %p523 = scmp.lt.s32.totalorder %s520, 3
        %s524 = scalar_select %p523, %s520, 3
        %s525 = smul.addr %s522, 4
        %s526 = sadd.s32 %s524, %s525
        %s527 = smul.addr %s526, 8
        %s528 = scalar_lea.vmem %s4, %s527
        %s529 = smul.u32 2, %s21
        %s530 = smul.u32 3, %s23
        %s531 = smul.u32 48, %s23
        %s532 = smul.u32 2, %s22
        %s533 = smul.u32 2, %s22
        %p534 = scmp.lt.s32.totalorder %s533, 3
        %s535 = scalar_select %p534, %s533, 3
        %s536 = scalar_lea.vmem %s2, %s535
        %s537 = smul.u32 2, %s22
        %s538 = smul.u32 2, %s21
        %s539 = smul.u32 2, %s22
        %s540 = smul.u32 2, %s22
        %p541 = scmp.lt.s32.totalorder %s21, 0
        %s542 = scalar_select %p541, %s21, 0
        %p543 = scmp.lt.s32.totalorder %s540, 3
        %s544 = scalar_select %p543, %s540, 3
        %s545 = smul.addr %s542, 4
        %s546 = sadd.s32 %s544, %s545
        %s547 = smul.addr %s546, 8
        %s548 = scalar_lea.vmem %s4, %s547
        %s549 = smul.u32 2, %s22
        %p551 = scmp.eq.s32.totalorder %s23, 0
        // Predicated region
        $region97: #{denoising_genius_forward.23} parent=87 // pred_check
          %p552 = pneg %p551
        $region98: #{denoising_genius_forward.23} parent=87 // pred_check_branch
          %554 = sbr.rel (%p552) target = $region100
        $region99: #{denoising_genius_forward.23} parent=87 // pred_region
          %555 = vst [vmem:[#allocation2] sm:$0xff] 0.0
          %556 = vst [vmem:[#allocation2 + $0x8] sm:$0xff] 0.0
          %557 = vst [vmem:[#allocation2 + $0x10] sm:$0xff] 0.0
          %558 = vst [vmem:[#allocation2 + $0x18] sm:$0xff] 0.0
        $region100: #{denoising_genius_forward.23} parent=87 // pred_fallthru
          _
        %v559 = vld [vmem:[%s483] sm:$0xff]
        %v560 = vld [vmem:[%s483 + $0x8] sm:$0xf]
        %v561 = vld [vmem:[%s483 + $0xc] sm:$0xff]
        %v562 = vld [vmem:[%s483 + $0x14] sm:$0xf]
        %v563 = vld [vmem:[%s490] sm:$0xff]
        %v564 = vld [vmem:[%s490 + $0x8] sm:$0xff]
        %v565 = vld [vmem:[%s490 + $0x10] sm:$0xff]
        %v566 = vld [vmem:[%s490 + $0x18] sm:$0xff]
        %v567 = vld [vmem:[%s490 + $0x20] sm:$0xff]
        %v568 = vld [vmem:[%s490 + $0x28] sm:$0xff]
        %v569 = vld [vmem:[%s490 + $0x30] sm:$0xff]
        %v570 = vld [vmem:[%s490 + $0x38] sm:$0xff]
        %v571 = vld [vmem:[%s490 + $0x40] sm:$0xff]
        %v572 = vld [vmem:[%s490 + $0x48] sm:$0xff]
        %v573 = vld [vmem:[%s490 + $0x50] sm:$0xff]
        %v574 = vld [vmem:[%s490 + $0x58] sm:$0xff]
        %v575 = vld [vmem:[%s490 + $0x60] sm:$0xff]
        %v576 = vld [vmem:[%s490 + $0x68] sm:$0xff]
        %v577 = vld [vmem:[%s490 + $0x70] sm:$0xff]
        %v578 = vld [vmem:[%s490 + $0x78] sm:$0xff]
        %v579 = vld [vmem:[%s490 + $0x80] sm:$0xff]
        %v580 = vld [vmem:[%s490 + $0x88] sm:$0xff]
        %v581 = vld [vmem:[%s490 + $0x90] sm:$0xff]
        %v582 = vld [vmem:[%s490 + $0x98] sm:$0xff]
        %v583 = vld [vmem:[%s490 + $0xa0] sm:$0xff]
        %v584 = vld [vmem:[%s490 + $0xa8] sm:$0xff]
        %v585 = vld [vmem:[%s490 + $0xb0] sm:$0xff]
        %v586 = vld [vmem:[%s490 + $0xb8] sm:$0xff]
        %v587 = vld [vmem:[%s490 + $0xc0] sm:$0xff]
        %v588 = vld [vmem:[%s490 + $0xc8] sm:$0xff]
        %v589 = vld [vmem:[%s490 + $0xd0] sm:$0xff]
        %v590 = vld [vmem:[%s490 + $0xd8] sm:$0xff]
        %v591 = vld [vmem:[%s490 + $0xe0] sm:$0xff]
        %v592 = vld [vmem:[%s490 + $0xe8] sm:$0xff]
        %v593 = vld [vmem:[%s490 + $0xf0] sm:$0xff]
        %v594 = vld [vmem:[%s490 + $0xf8] sm:$0xff]
        %v595 = vld [vmem:[%s490 + $0x100] sm:$0xff]
        %v596 = vld [vmem:[%s490 + $0x108] sm:$0xff]
        %v597 = vld [vmem:[%s490 + $0x110] sm:$0xff]
        %v598 = vld [vmem:[%s490 + $0x118] sm:$0xff]
        %v599 = vld [vmem:[%s490 + $0x120] sm:$0xff]
        %v600 = vld [vmem:[%s490 + $0x128] sm:$0xff]
        %v601 = vld [vmem:[%s490 + $0x130] sm:$0xff]
        %v602 = vld [vmem:[%s490 + $0x138] sm:$0xff]
        %v603 = vld [vmem:[%s490 + $0x140] sm:$0xff]
        %v604 = vld [vmem:[%s490 + $0x148] sm:$0xff]
        %v605 = vld [vmem:[%s490 + $0x150] sm:$0xff]
        %v606 = vld [vmem:[%s490 + $0x158] sm:$0xff]
        %v607 = vld [vmem:[%s490 + $0x160] sm:$0xff]
        %v608 = vld [vmem:[%s490 + $0x168] sm:$0xff]
        %v609 = vld [vmem:[%s490 + $0x170] sm:$0xff]
        %v610 = vld [vmem:[%s490 + $0x178] sm:$0xff]
        %v615 = vunpack.c.l.b16 %v559
        %v616 = vunpack.c.h.b16 %v559
        %v617 = vunpack.c.l.b16 %v560
        %v618 = vunpack.c.l.b16 %v561
        %v619 = vunpack.c.h.b16 %v561
        %v620 = vunpack.c.l.b16 %v562
        %v621 = vpack.c.b16 %v618, %v615
        %v622 = vpack.c.b16 %v619, %v616
        %v623 = vpack.c.b16 %v620, %v617
        %v675 = vunpack.c.l.b16 %v563
        %v676 = vunpack.c.h.b16 %v563
        %v677 = vunpack.c.l.b16 %v564
        %v678 = vunpack.c.h.b16 %v564
        %v679 = vunpack.c.l.b16 %v565
        %v680 = vunpack.c.h.b16 %v565
        %v681 = vunpack.c.l.b16 %v566
        %v682 = vunpack.c.h.b16 %v566
        %v683 = vunpack.c.l.b16 %v567
        %v684 = vunpack.c.h.b16 %v567
        %v685 = vunpack.c.l.b16 %v568
        %v686 = vunpack.c.h.b16 %v568
        %v687 = vunpack.c.l.b16 %v569
        %v688 = vunpack.c.h.b16 %v569
        %v689 = vunpack.c.l.b16 %v570
        %v690 = vunpack.c.h.b16 %v570
        %v691 = vunpack.c.l.b16 %v571
        %v692 = vunpack.c.h.b16 %v571
        %v693 = vunpack.c.l.b16 %v572
        %v694 = vunpack.c.h.b16 %v572
        %v695 = vunpack.c.l.b16 %v573
        %v696 = vunpack.c.h.b16 %v573
        %v697 = vunpack.c.l.b16 %v574
        %v698 = vunpack.c.h.b16 %v574
        %v699 = vunpack.c.l.b16 %v575
        %v700 = vunpack.c.h.b16 %v575
        %v701 = vunpack.c.l.b16 %v576
        %v702 = vunpack.c.h.b16 %v576
        %v703 = vunpack.c.l.b16 %v577
        %v704 = vunpack.c.h.b16 %v577
        %v705 = vunpack.c.l.b16 %v578
        %v706 = vunpack.c.h.b16 %v578
        %v707 = vunpack.c.l.b16 %v579
        %v708 = vunpack.c.h.b16 %v579
        %v709 = vunpack.c.l.b16 %v580
        %v710 = vunpack.c.h.b16 %v580
        %v711 = vunpack.c.l.b16 %v581
        %v712 = vunpack.c.h.b16 %v581
        %v713 = vunpack.c.l.b16 %v582
        %v714 = vunpack.c.h.b16 %v582
        %v715 = vunpack.c.l.b16 %v583
        %v716 = vunpack.c.h.b16 %v583
        %v717 = vunpack.c.l.b16 %v584
        %v718 = vunpack.c.h.b16 %v584
        %v719 = vunpack.c.l.b16 %v585
        %v720 = vunpack.c.h.b16 %v585
        %v721 = vunpack.c.l.b16 %v586
        %v722 = vunpack.c.h.b16 %v586
        %v723 = vunpack.c.l.b16 %v587
        %v724 = vunpack.c.h.b16 %v587
        %v725 = vunpack.c.l.b16 %v588
        %v726 = vunpack.c.h.b16 %v588
        %v727 = vunpack.c.l.b16 %v589
        %v728 = vunpack.c.h.b16 %v589
        %v729 = vunpack.c.l.b16 %v590
        %v730 = vunpack.c.h.b16 %v590
        %v731 = vunpack.c.l.b16 %v591
        %v732 = vunpack.c.h.b16 %v591
        %v733 = vunpack.c.l.b16 %v592
        %v734 = vunpack.c.h.b16 %v592
        %v735 = vunpack.c.l.b16 %v593
        %v736 = vunpack.c.h.b16 %v593
        %v737 = vunpack.c.l.b16 %v594
        %v738 = vunpack.c.h.b16 %v594
        %v739 = vunpack.c.l.b16 %v595
        %v740 = vunpack.c.h.b16 %v595
        %v741 = vunpack.c.l.b16 %v596
        %v742 = vunpack.c.h.b16 %v596
        %v743 = vunpack.c.l.b16 %v597
        %v744 = vunpack.c.h.b16 %v597
        %v745 = vunpack.c.l.b16 %v598
        %v746 = vunpack.c.h.b16 %v598
        %v747 = vunpack.c.l.b16 %v599
        %v748 = vunpack.c.h.b16 %v599
        %v749 = vunpack.c.l.b16 %v600
        %v750 = vunpack.c.h.b16 %v600
        %v751 = vunpack.c.l.b16 %v601
        %v752 = vunpack.c.h.b16 %v601
        %v753 = vunpack.c.l.b16 %v602
        %v754 = vunpack.c.h.b16 %v602
        %v755 = vunpack.c.l.b16 %v603
        %v756 = vunpack.c.h.b16 %v603
        %v757 = vunpack.c.l.b16 %v604
        %v758 = vunpack.c.h.b16 %v604
        %v759 = vunpack.c.l.b16 %v605
        %v760 = vunpack.c.h.b16 %v605
        %v761 = vunpack.c.l.b16 %v606
        %v762 = vunpack.c.h.b16 %v606
        %v763 = vunpack.c.l.b16 %v607
        %v764 = vunpack.c.h.b16 %v607
        %v765 = vunpack.c.l.b16 %v608
        %v766 = vunpack.c.h.b16 %v608
        %v767 = vunpack.c.l.b16 %v609
        %v768 = vunpack.c.h.b16 %v609
        %v769 = vunpack.c.l.b16 %v610
        %v770 = vunpack.c.h.b16 %v610
        %v771 = vpack.c.b16 %v677, %v675
        %v772 = vpack.c.b16 %v678, %v676
        %v773 = vpack.c.b16 %v681, %v679
        %v774 = vpack.c.b16 %v682, %v680
        %v775 = vpack.c.b16 %v685, %v683
        %v776 = vpack.c.b16 %v686, %v684
        %v777 = vpack.c.b16 %v689, %v687
        %v778 = vpack.c.b16 %v690, %v688
        %v779 = vpack.c.b16 %v693, %v691
        %v780 = vpack.c.b16 %v694, %v692
        %v781 = vpack.c.b16 %v697, %v695
        %v782 = vpack.c.b16 %v698, %v696
        %v783 = vpack.c.b16 %v701, %v699
        %v784 = vpack.c.b16 %v702, %v700
        %v785 = vpack.c.b16 %v705, %v703
        %v786 = vpack.c.b16 %v706, %v704
        %v787 = vpack.c.b16 %v709, %v707
        %v788 = vpack.c.b16 %v710, %v708
        %v789 = vpack.c.b16 %v713, %v711
        %v790 = vpack.c.b16 %v714, %v712
        %v791 = vpack.c.b16 %v717, %v715
        %v792 = vpack.c.b16 %v718, %v716
        %v793 = vpack.c.b16 %v721, %v719
        %v794 = vpack.c.b16 %v722, %v720
        %v795 = vpack.c.b16 %v725, %v723
        %v796 = vpack.c.b16 %v726, %v724
        %v797 = vpack.c.b16 %v729, %v727
        %v798 = vpack.c.b16 %v730, %v728
        %v799 = vpack.c.b16 %v733, %v731
        %v800 = vpack.c.b16 %v734, %v732
        %v801 = vpack.c.b16 %v737, %v735
        %v802 = vpack.c.b16 %v738, %v736
        %v803 = vpack.c.b16 %v741, %v739
        %v804 = vpack.c.b16 %v742, %v740
        %v805 = vpack.c.b16 %v745, %v743
        %v806 = vpack.c.b16 %v746, %v744
        %v807 = vpack.c.b16 %v749, %v747
        %v808 = vpack.c.b16 %v750, %v748
        %v809 = vpack.c.b16 %v753, %v751
        %v810 = vpack.c.b16 %v754, %v752
        %v811 = vpack.c.b16 %v757, %v755
        %v812 = vpack.c.b16 %v758, %v756
        %v813 = vpack.c.b16 %v761, %v759
        %v814 = vpack.c.b16 %v762, %v760
        %v815 = vpack.c.b16 %v765, %v763
        %v816 = vpack.c.b16 %v766, %v764
        %v817 = vpack.c.b16 %v769, %v767
        %v818 = vpack.c.b16 %v770, %v768
        %867 = vmatprep.subr.bf16.mxu0 %v772
        %868 = vmatpush1.bf16.msra.mxu0 %v771
        %869 = vmatprep.subr.bf16.mxu0 %v774
        %870 = vmatpush1.bf16.msra.mxu0 %v773
        %871 = vmatprep.subr.bf16.mxu0 %v776
        %872 = vmatpush1.bf16.msra.mxu0 %v775
        %873 = vmatprep.subr.bf16.mxu0 %v778
        %874 = vmatpush1.bf16.msra.mxu0 %v777
        %875 = vmatprep.subr.bf16.mxu0 %v780
        %876 = vmatpush1.bf16.msra.mxu0 %v779
        %877 = vmatprep.subr.bf16.mxu0 %v782
        %878 = vmatpush1.bf16.msra.mxu0 %v781
        %879 = vmatprep.subr.bf16.mxu0 %v784
        %880 = vmatpush1.bf16.msra.mxu0 %v783
        %881 = vmatprep.subr.bf16.mxu0 %v786
        %882 = vmatpush1.bf16.msra.mxu0 %v785
        %883 = vmatprep.subr.bf16.mxu0 %v788
        %884 = vmatpush1.bf16.msra.mxu0 %v787
        %885 = vmatprep.subr.bf16.mxu0 %v790
        %886 = vmatpush1.bf16.msra.mxu0 %v789
        %887 = vmatprep.subr.bf16.mxu0 %v792
        %888 = vmatpush1.bf16.msra.mxu0 %v791
        %889 = vmatprep.subr.bf16.mxu0 %v794
        %890 = vmatpush1.bf16.msra.mxu0 %v793
        %891 = vmatprep.subr.bf16.mxu0 %v796
        %892 = vmatpush1.bf16.msra.mxu0 %v795
        %893 = vmatprep.subr.bf16.mxu0 %v798
        %894 = vmatpush1.bf16.msra.mxu0 %v797
        %895 = vmatprep.subr.bf16.mxu0 %v800
        %896 = vmatpush1.bf16.msra.mxu0 %v799
        %897 = vmatprep.subr.bf16.mxu0 %v802
        %898 = vmatpush1.bf16.msra.mxu0 %v801
        %899 = vmatprep.mubr.bf16.mxu0 %v622
        %900 = vmatmul.mubr.bf16.gmra.mrb[0].mxu0 %v621
        %v901 = vpop.f32.mrb[0].mxu0
        %v902 = vadd.f32 0.0, %v901
        %v903 = vpop.f32.mrb[0].mxu0
        %v904 = vadd.f32 0.0, %v903
        %v905 = vpop.f32.mrb[0].mxu0
        %v906 = vadd.f32 0.0, %v905
        %v907 = vpop.f32.mrb[0].mxu0
        %v908 = vadd.f32 0.0, %v907
        %909 = vdwg.mxu0
        %910 = vmatprep.subr.bf16.mxu0 %v804
        %911 = vmatpush1.bf16.msra.mxu0 %v803
        %912 = vmatprep.subr.bf16.mxu0 %v806
        %913 = vmatpush1.bf16.msra.mxu0 %v805
        %914 = vmatprep.subr.bf16.mxu0 %v808
        %915 = vmatpush1.bf16.msra.mxu0 %v807
        %916 = vmatprep.subr.bf16.mxu0 %v810
        %917 = vmatpush1.bf16.msra.mxu0 %v809
        %918 = vmatprep.subr.bf16.mxu0 %v812
        %919 = vmatpush1.bf16.msra.mxu0 %v811
        %920 = vmatprep.subr.bf16.mxu0 %v814
        %921 = vmatpush1.bf16.msra.mxu0 %v813
        %922 = vmatprep.subr.bf16.mxu0 %v816
        %923 = vmatpush1.bf16.msra.mxu0 %v815
        %924 = vmatprep.subr.bf16.mxu0 %v818
        %925 = vmatpush1.bf16.msra.mxu0 %v817
        %926 = vmatprep.subr.bf16.mxu0 0
        %927 = vmatpush1.bf16.msra.mxu0 0
        %928 = vmatprep.subr.bf16.mxu0 0
        %929 = vmatpush1.bf16.msra.mxu0 0
        %930 = vmatprep.subr.bf16.mxu0 0
        %931 = vmatpush1.bf16.msra.mxu0 0
        %932 = vmatprep.subr.bf16.mxu0 0
        %933 = vmatpush1.bf16.msra.mxu0 0
        %934 = vmatprep.subr.bf16.mxu0 0
        %935 = vmatpush1.bf16.msra.mxu0 0
        %936 = vmatprep.subr.bf16.mxu0 0
        %937 = vmatpush1.bf16.msra.mxu0 0
        %938 = vmatprep.subr.bf16.mxu0 0
        %939 = vmatpush1.bf16.msra.mxu0 0
        %940 = vmatprep.subr.bf16.mxu0 0
        %941 = vmatpush1.bf16.msra.mxu0 0
        %942 = vmatprep.mubr.bf16.mxu0 0
        %943 = vmatmul.mubr.bf16.gmra.mrb[0].mxu0 %v623
        %v944 = vpop.f32.mrb[0].mxu0
        %v945 = vadd.f32 %v902, %v944
        %v946 = vpop.f32.mrb[0].mxu0
        %v947 = vadd.f32 %v904, %v946
        %v948 = vpop.f32.mrb[0].mxu0
        %v949 = vadd.f32 %v906, %v948
        %v950 = vpop.f32.mrb[0].mxu0
        %v951 = vadd.f32 %v908, %v950
        %952 = vdwg.mxu0
        %v953 = vld [vmem:[#allocation2] sm:$0xff]
        %v954 = vld [vmem:[#allocation2 + $0x8] sm:$0xff]
        %v955 = vld [vmem:[#allocation2 + $0x10] sm:$0xff]
        %v956 = vld [vmem:[#allocation2 + $0x18] sm:$0xff]
        %v957 = vadd.f32 %v953, %v945
        %v958 = vadd.f32 %v954, %v947
        %v959 = vadd.f32 %v955, %v949
        %v960 = vadd.f32 %v956, %v951
        %961 = vst [vmem:[#allocation2] sm:$0xff] %v957
        %962 = vst [vmem:[#allocation2 + $0x8] sm:$0xff] %v958
        %963 = vst [vmem:[#allocation2 + $0x10] sm:$0xff] %v959
        %964 = vst [vmem:[#allocation2 + $0x18] sm:$0xff] %v960
        %p965 = scmp.eq.s32.totalorder %s23, 5
        // Predicated region
        $region101: #{denoising_genius_forward.23} parent=87 // pred_check
          %p966 = pneg %p965
        $region102: #{denoising_genius_forward.23} parent=87 // pred_check_branch
          %968 = sbr.rel (%p966) target = $region104
        $region103: #{denoising_genius_forward.23} parent=87 // pred_region
          %v969 = vld [vmem:[#allocation2] sm:$0xff]
          %v970 = vld [vmem:[#allocation2 + $0x8] sm:$0xff]
          %v971 = vld [vmem:[#allocation2 + $0x10] sm:$0xff]
          %v972 = vld [vmem:[#allocation2 + $0x18] sm:$0xff]
          %v973 = vld [vmem:[%s536] sm:$0x3]
          %v975 = vlaneseq
          %v976 = vshrl.u32 %v975, 7
          %v977 = vsub.s32 0, %v976
          %v978 = vrot.slane %v973, %v977
          %v979 = vlaneseq
          %v980 = vshrl.u32 %v979, 7
          %v981 = vsub.s32 1, %v980
          %v982 = vrot.slane %v973, %v981
          %v985 = vadd.f32 %v969, %v978
          %v986 = vadd.f32 %v970, %v982
          %v987 = vadd.f32 %v971, %v978
          %v988 = vadd.f32 %v972, %v982
          %v989 = vpack.c.bf16 %v987, %v985
          %v990 = vpack.c.bf16 %v988, %v986
          %v993 = vunpack.c.l.b16 %v989
          %v994 = vunpack.c.l.b16 %v990
          %v995 = vunpack.c.h.b16 %v989
          %v996 = vunpack.c.h.b16 %v990
          %v997 = vpack.c.b16 %v994, %v993
          %v998 = vpack.c.b16 %v996, %v995
          %1001 = vst [vmem:[%s517] sm:$0xff] %v997
          %1002 = vst [vmem:[%s517 + $0x8] sm:$0xff] %v998
          %v1003 = vadd.f32 %v969, %v971
          %v1004 = vrot.slane %v1003, 4
          %v1005 = vadd.f32 %v1003, %v1004
          %v1006 = vrot.slane %v1005, 2
          %v1007 = vadd.f32 %v1005, %v1006
          %v1008 = vrot.slane %v1007, 1
          %v1009 = vadd.f32 %v1007, %v1008
          %v1010 = vadd.f32 %v970, %v972
          %v1011 = vrot.slane %v1010, 4
          %v1012 = vadd.f32 %v1010, %v1011
          %v1013 = vrot.slane %v1012, 2
          %v1014 = vadd.f32 %v1012, %v1013
          %v1015 = vrot.slane %v1014, 1
          %v1016 = vadd.f32 %v1014, %v1015
          %v1017 = vmul.f32 %v969, %v969
          %v1018 = vmul.f32 %v970, %v970
          %v1019 = vmul.f32 %v971, %v971
          %v1020 = vmul.f32 %v972, %v972
          %v1021 = vadd.f32 %v1017, %v1019
          %v1022 = vrot.slane %v1021, 4
          %v1023 = vadd.f32 %v1021, %v1022
          %v1024 = vrot.slane %v1023, 2
          %v1025 = vadd.f32 %v1023, %v1024
          %v1026 = vrot.slane %v1025, 1
          %v1027 = vadd.f32 %v1025, %v1026
          %v1028 = vadd.f32 %v1018, %v1020
          %v1029 = vrot.slane %v1028, 4
          %v1030 = vadd.f32 %v1028, %v1029
          %v1031 = vrot.slane %v1030, 2
          %v1032 = vadd.f32 %v1030, %v1031
          %v1033 = vrot.slane %v1032, 1
          %v1034 = vadd.f32 %v1032, %v1033
          %v1035 = vlaneseq
          %v1036 = vshrl.u32 %v1035, 7
          %vm1037 = vcmp.eq.s32.totalorder %v1036, 0
          %vm1038 = vcmp.eq.s32.totalorder %v1036, 1
          %v1039 = vsel %vm1038, %v1027, 0.0
          %v1040 = vsel %vm1038, %v1034, 0.0
          %v1041 = vsel %vm1037, %v1009, %v1039
          %v1042 = vsel %vm1037, %v1016, %v1040
          %1043 = vst [vmem:[%s548] sm:$0xff] %v1041
          %1044 = vst [vmem:[%s548 + $0x8] sm:$0xff] %v1042
        $region104: #{denoising_genius_forward.23} parent=87 // pred_fallthru
          _
        %s1045 = sand.u32 %s127, 1
        %s1046 = sand.u32 %s127, 1
        %s1047 = smul.addr %s1046, 16
        %s1048 = scalar_lea.vmem [#allocation5], %s1047
        %s1049 = smul.u32 2, %s22
        %p1050 = scmp.lt.s32.totalorder %s21, 0
        %s1051 = scalar_select %p1050, %s21, 0
        %p1052 = scmp.lt.s32.totalorder %s1049, 3
        %s1053 = scalar_select %p1052, %s1049, 3
        %s1054 = smul.addr %s1051, 4
        %s1055 = sadd.s32 %s1053, %s1054
        %s1056 = smul.addr %s1055, 8
        %s1057 = scalar_lea.vmem %s4, %s1056
        // Predicated region
        $region105: #{denoising_genius_forward.23} parent=87 // pred_check
          %p1058 = pneg %p137
        $region106: #{denoising_genius_forward.23} parent=87 // pred_check_branch
          %1060 = sbr.rel (%p1058) target = $region108
        $region107: #{denoising_genius_forward.23} parent=87 // pred_region
          %s1061 = smul.u32 2, %s21
          %s1062 = smul.u32 2, %s22
          %s1063 = smul.addr %s1061, 4
          %s1064 = sadd.s32 %s1062, %s1063
          %s1065 = smul.addr %s1064, 4
          %s1066 = scalar_lea.vmem %s3, %s1065
          // Predicated region
          $region109: #{denoising_genius_forward.23} parent=107 // pred_check
            _
          $region110: #{denoising_genius_forward.23} parent=107 // pred_check_branch
            %1068 = sbr.rel (0) target = $region112
          $region111: #{denoising_genius_forward.23} parent=107 // pred_region
            // Predicated region
            $region113: #{denoising_genius_forward.23} parent=111 // pred_check
              _
            $region114: #{denoising_genius_forward.23} parent=111 // pred_check_branch
              %1070 = sbr.rel (0) target = $region116
            $region115: #{denoising_genius_forward.23} parent=111 // pred_region
              // Predicated region
              $region128: #{denoising_genius_forward.23} parent=115 // pred_check
                _
              $region129: #{denoising_genius_forward.23} parent=115 // pred_check_branch
                %1087 = sbr.rel (0) target = $region131
              $region130: #{denoising_genius_forward.23} parent=115 // pred_region
                loop: start=0, step=1, limit=1
                $region132: #{denoising_genius_forward.23} parent=130 // loop_pre_header
                  _
                $region133: #{denoising_genius_forward.23} parent=130 // loop_header
                  %s1089 = sphi 0, %s1093
                  %p1090 = scmp.ge.s32.totalorder %s1089, 1
                  %s1094 = sphi %s1048, %s1048
                  %s1095 = sphi %s1066, %s1066
                $region134: #{denoising_genius_forward.23} parent=130 // loop_header_branch
                  %1092 = sbr.rel (%p1090) target = $region138
                $region135: #{denoising_genius_forward.23} parent=130 // loop_body
                  %v1096 = vld [vmem:[%s1094] sm:$0xff]
                  %1097 = vst [vmem:[%s1095] sm:$0xff] %v1096
                  %v1098 = vld [vmem:[%s1094 + $0x8] sm:$0xff]
                  %1099 = vst [vmem:[%s1095 + $0x10] sm:$0xff] %v1098
                $region136: #{denoising_genius_forward.23} parent=130 // loop_footer
                  %s1093 = sadd.s32 1, %s1089
                $region137: #{denoising_genius_forward.23} parent=130 // loop_footer_branch
                  %1088 = sbr.rel target = $region133
                $region138: #{denoising_genius_forward.23} parent=130 // loop_exit
                  _
              $region131: #{denoising_genius_forward.23} parent=115 // pred_fallthru
                _
              // Predicated region
              $region139: #{denoising_genius_forward.23} parent=115 // pred_check
                _
              $region140: #{denoising_genius_forward.23} parent=115 // pred_check_branch
                %1101 = sbr.rel target = $region142
              $region141: #{denoising_genius_forward.23} parent=115 // pred_region
                _
              $region142: #{denoising_genius_forward.23} parent=115 // pred_fallthru
                _
            $region116: #{denoising_genius_forward.23} parent=111 // pred_fallthru
              _
            // Predicated region
            $region117: #{denoising_genius_forward.23} parent=111 // pred_check
              _
            $region118: #{denoising_genius_forward.23} parent=111 // pred_check_branch
              %1072 = sbr.rel target = $region120
            $region119: #{denoising_genius_forward.23} parent=111 // pred_region
              loop: start=0, step=1, limit=1
              $region121: #{denoising_genius_forward.23} parent=119 // loop_pre_header
                _
              $region122: #{denoising_genius_forward.23} parent=119 // loop_header
                %s1075 = sphi 0, %s1079
                %p1076 = scmp.ge.s32.totalorder %s1075, 1
                %s1080 = sphi %s1048, %s1048
                %s1081 = sphi %s1066, %s1066
              $region123: #{denoising_genius_forward.23} parent=119 // loop_header_branch
                %1078 = sbr.rel (%p1076) target = $region127
              $region124: #{denoising_genius_forward.23} parent=119 // loop_body
                %v1082 = vld [vmem:[%s1080] sm:$0xff]
                %1083 = vst [vmem:[%s1081] sm:$0xff] %v1082
                %v1084 = vld [vmem:[%s1080 + $0x8] sm:$0xff]
                %1085 = vst [vmem:[%s1081 + $0x10] sm:$0xff] %v1084
              $region125: #{denoising_genius_forward.23} parent=119 // loop_footer
                %s1079 = sadd.s32 1, %s1075
              $region126: #{denoising_genius_forward.23} parent=119 // loop_footer_branch
                %1074 = sbr.rel target = $region122
              $region127: #{denoising_genius_forward.23} parent=119 // loop_exit
                _
            $region120: #{denoising_genius_forward.23} parent=111 // pred_fallthru
              _
          $region112: #{denoising_genius_forward.23} parent=107 // pred_fallthru
            _
          %1102 = vnop
        $region108: #{denoising_genius_forward.23} parent=87 // pred_fallthru
          _
        // Predicated region
        $region143: #{denoising_genius_forward.23} parent=87 // pred_check
          %p1103 = pneg %p165
        $region144: #{denoising_genius_forward.23} parent=87 // pred_check_branch
          %1105 = sbr.rel (%p1103) target = $region146
        $region145: #{denoising_genius_forward.23} parent=87 // pred_region
          %s1106 = smul.u32 2, %s22
        $region146: #{denoising_genius_forward.23} parent=87 // pred_fallthru
          _
      $region88: #{denoising_genius_forward.23} parent=5 // pred_fallthru
        _
      %p1107 = scmp.le.s32.totalorder 2, %s11
      // Predicated region
      $region147: #{denoising_genius_forward.23} parent=5 // pred_check
        %p1108 = pneg %p1107
      $region148: #{denoising_genius_forward.23} parent=5 // pred_check_branch
        %1110 = sbr.rel (%p1108) target = $region150
      $region149: #{denoising_genius_forward.23} parent=5 // pred_region
        %s1111 = ssub.s32 %s11, 2
        // Predicated region
        $region151: #{denoising_genius_forward.23} parent=149 // pred_check
          %p1112 = pneg %p143
        $region152: #{denoising_genius_forward.23} parent=149 // pred_check_branch
          %1114 = sbr.rel (%p1112) target = $region154
        $region153: #{denoising_genius_forward.23} parent=149 // pred_region
          %s1115 = sand.u32 %s128, 1
          %s1116 = sand.u32 %s128, 1
          %s1117 = smul.addr %s1116, 16
          %s1118 = scalar_lea.vmem [#allocation5], %s1117
        $region154: #{denoising_genius_forward.23} parent=149 // pred_fallthru
          _
        // Predicated region
        $region155: #{denoising_genius_forward.23} parent=149 // pred_check
          %p1119 = pneg %p171
        $region156: #{denoising_genius_forward.23} parent=149 // pred_check_branch
          %1121 = sbr.rel (%p1119) target = $region158
        $region157: #{denoising_genius_forward.23} parent=149 // pred_region
          %s1122 = smul.u32 2, %s25
          %p1123 = scmp.lt.s32.totalorder %s24, 0
          %s1124 = scalar_select %p1123, %s24, 0
          %p1125 = scmp.lt.s32.totalorder %s1122, 3
          %s1126 = scalar_select %p1125, %s1122, 3
          %s1127 = smul.addr %s1124, 4
          %s1128 = sadd.s32 %s1126, %s1127
          %s1129 = smul.addr %s1128, 8
          %s1130 = scalar_lea.vmem %s4, %s1129
        $region158: #{denoising_genius_forward.23} parent=149 // pred_fallthru
          _
      $region150: #{denoising_genius_forward.23} parent=5 // pred_fallthru
        _
    $region6: #{denoising_genius_forward.23} parent=1 // loop_footer
      %s15 = sadd.s32 1, %s11
    $region7: #{denoising_genius_forward.23} parent=1 // loop_footer_branch
      %10 = sbr.rel target = $region3
    $region8: #{denoising_genius_forward.23} parent=1 // loop_exit
      _

// kernel: squeeze.26
$region0: #{squeeze.26}
  %s0 = inlined_call_operand.vmem [shape: f32[128], index: 0, kind: input, shape index: {}]
  %s1 = inlined_call_operand.vmem [shape: f32[4,32], index: 1, kind: output, shape index: {}]
  $region1: #{squeeze.26} parent=0
    #allocation0 [shape = 'u8[4096]{0}', space=vmem, size = 0x1000, scoped, tag = 'scoped mem for output reshape']
    #allocation1 [shape = 'u8[4096]{0}', space=vmem, size = 0x1000, scoped, tag = 'scoped mem for input reshape']
    %s3 = sshllo.u32 0, 1
    %v4 = vld [vmem:[%s0] sm:%s3]
    %5 = vst [vmem:[#allocation1] sm:%s3] %v4
    %v6 = vld [vmem:[#allocation1] sm:$0x1]
    %vm7 = vcmask 261120
    %8 = vst.msk [vmem:[#allocation0] sm:$0x1] %vm7, %v6
    %v9 = vld [vmem:[#allocation1] sm:$0x1]
    %10 = vrot.lane.b32.xlu0 %v9, 96
    %v11 = vpop.permute.xlu0 %10
    %vm12 = vcmask 261120
    %s13 = scalar_lea.vmem [#allocation0], 1
    %14 = vst.msk [vmem:[%s13] sm:$0x1] %vm12, %v11
    %v15 = vld [vmem:[#allocation1] sm:$0x1]
    %16 = vrot.lane.b32.xlu0 %v15, 64
    %v17 = vpop.permute.xlu0 %16
    %vm18 = vcmask 261120
    %s19 = scalar_lea.vmem [#allocation0], 2
    %20 = vst.msk [vmem:[%s19] sm:$0x1] %vm18, %v17
    %v21 = vld [vmem:[#allocation1] sm:$0x1]
    %22 = vrot.lane.b32.xlu0 %v21, 32
    %v23 = vpop.permute.xlu0 %22
    %vm24 = vcmask 261120
    %s25 = scalar_lea.vmem [#allocation0], 3
    %26 = vst.msk [vmem:[%s25] sm:$0x1] %vm24, %v23
    %s28 = sshllo.u32 0, 4
    %v30 = vld [vmem:[#allocation0] sm:%s28]
    %s31 = sshllo.u32 0, 4
    %32 = vst [vmem:[%s1] sm:%s31] %v30

// kernel: tile.53
$region0: #{tile.53}
  #allocation0 [shape = 's32[1]{0}', space=sflag, size = 0x4, scoped, tag = 'scoped memory for tile.53']
  %s0 = inlined_call_operand.vmem [shape: f32[32], index: 0, kind: input, shape index: {}]
  %s1 = inlined_call_operand.vmem [shape: f32[4,32], index: 1, kind: output, shape index: {}]
  // Predicated region
  $region2: #{tile.53} parent=0 // pred_check
    _
  $region3: #{tile.53} parent=0 // pred_check_branch
    %3 = sbr.rel (0) target = $region5
  $region4: #{tile.53} parent=0 // pred_region
    _
  $region5: #{tile.53} parent=0 // pred_fallthru
    _
  %v4 = vld [vmem:[%s0] ss:$0 sm:$0xff]
  %5 = vst [vmem:[%s1] sm:$0xf] %v4

// kernel: denoising_genius_forward.25
$region0: #{denoising_genius_forward.25}
  #allocation0 [shape = 'u32[]', space=smem, size = 0x4, offset = 0x4, fixed_abs, tag = 'smem constant byte address 0x4 - core index']
  #allocation1 [shape = 'u32[144,128]{1,0:T(1,128)}', space=vmem, size = 0x12000, scoped, tag = 'internal scratch']
  #allocation2 [shape = 'f32[16,256]{1,0:T(8,128)}', space=vmem, size = 0x4000, scoped, tag = 'scratch operand']
  %s0 = inlined_call_operand.vmem [shape: bf16[16,1152], index: 0, kind: input, shape index: {}]
  %s1 = inlined_call_operand.vmem [shape: bf16[16,1152], index: 1, kind: input, shape index: {}]
  %s2 = inlined_call_operand.vmem [shape: bf16[1152,256], index: 2, kind: input, shape index: {}]
  %s3 = inlined_call_operand.vmem [shape: bf16[1152,256], index: 3, kind: input, shape index: {}]
  %s4 = inlined_call_operand.vmem [shape: f32[1,256], index: 4, kind: input, shape index: {}]
  %s5 = inlined_call_operand.vmem [shape: bf16[16,256], index: 5, kind: output, shape index: {0}]
  %s6 = inlined_call_operand.vmem [shape: f32[1,8,256], index: 6, kind: output, shape index: {1}]
  %7 = xla_tuple %s5, %s6
  %s8 = sld [smem:[#allocation0]]
  $region121: #{denoising_genius_forward.25} parent=0
    _
  %s10 = ssub.s32 1, %s8
  %s11 = scalar_select 0, %s10, %s8
  $region1: #{denoising_genius_forward.25} parent=0
    #allocation3 [shape = 'u8[24576]{0}', space=vmem, size = 0x6000, scoped, tag = 'input window, operand 0']
    #allocation4 [shape = 'u8[24576]{0}', space=vmem, size = 0x6000, scoped, tag = 'input window, operand 1']
    loop: start=0, step=1, limit=5
    $region2: #{denoising_genius_forward.25} parent=1 // loop_pre_header
      _
    $region3: #{denoising_genius_forward.25} parent=1 // loop_header
      %s13 = sphi 0, %s17
      %p14 = scmp.ge.s32.totalorder %s13, 5
      %s20 = sphi 0, %s39
      %s21 = sphi 0, %s35
      %s22 = sphi 0, %s31
      %s23 = sphi 0, %s20
      %s24 = sphi 0, %s21
      %s25 = sphi 0, %s22
      %s26 = sphi 0, %s23
      %s27 = sphi 0, %s24
      %s28 = sphi 0, %s25
      %s44 = sphi 0, %s46
      %s47 = sphi 0, %s44
      %s48 = sphi 0, %s47
      %s64 = sphi 0, %s48
      %s72 = sphi 0, %s74
      %s75 = sphi 0, %s72
      %s76 = sphi 0, %s75
      %s92 = sphi 0, %s76
      %s100 = sphi 0, %s102
      %s103 = sphi 0, %s100
      %s104 = sphi 0, %s103
      %s120 = sphi 0, %s104
      %s128 = sphi 0, %s130
      %s131 = sphi 0, %s128
      %s132 = sphi 0, %s131
      %s148 = sphi 0, %s132
      %s154 = sphi 0, %s156
      %s157 = sphi 0, %s154
      %s158 = sphi 0, %s157
      %s174 = sphi 0, %s158
      %s182 = sphi 0, %s184
      %s185 = sphi 0, %s182
      %s186 = sphi 0, %s185
      %s202 = sphi 0, %s186
      %s210 = sphi 0, %s212
      %s213 = sphi 0, %s210
      %s214 = sphi 0, %s213
      %s230 = sphi 0, %s214
    $region4: #{denoising_genius_forward.25} parent=1 // loop_header_branch
      %16 = sbr.rel (%p14) target = $region8
    $region5: #{denoising_genius_forward.25} parent=1 // loop_body
      %s18 = ssub.s32 %s13, 1
      %s19 = ssub.s32 %s13, 2
      %s29 = sadd.s32 1, %s22
      %p30 = scmp.ge.s32.totalorder %s29, 3
      %s31 = scalar_select %p30, 0, %s29
      %s32 = sadd.s32 1, %s21
      %s33 = scalar_select %p30, %s32, %s21
      %p34 = scmp.ge.s32.totalorder %s33, 1
      %s35 = scalar_select %p34, 0, %s33
      %s36 = sadd.s32 1, %s20
      %s37 = scalar_select %p34, %s36, %s20
      %p38 = scmp.ge.s32.totalorder %s37, 1
      %s39 = scalar_select %p38, 0, %s37
      %s40 = ssub.s32 %s20, %s39
      %s41 = ssub.s32 %s22, %s31
      %s42 = sor.u32 %s40, %s41
      %p43 = scmp.eq.s32.totalorder %s42, 0
      %s45 = sadd.s32 %s44, 1
      %s46 = scalar_select %p43, %s44, %s45
      %p49 = pneg %p43
      %p50 = scmp.eq.s32.totalorder %s13, 2
      %p51 = por %p49, %p50
      %p52 = scmp.ne.s32.totalorder %s44, %s47
      %p53 = scmp.eq.s32.totalorder %s13, 0
      %p54 = por %p52, %p53
      %p55 = scmp.ne.s32.totalorder %s44, %s47
      %p56 = scmp.eq.s32.totalorder %s18, 2
      %p57 = por %p55, %p56
      %p58 = scmp.ne.s32.totalorder %s47, %s48
      %p59 = scmp.eq.s32.totalorder %s18, 0
      %p60 = por %p58, %p59
      %p61 = scmp.ne.s32.totalorder %s47, %s48
      %p62 = scmp.eq.s32.totalorder %s19, 2
      %p63 = por %p61, %p62
      %p65 = scmp.ne.s32.totalorder %s48, %s64
      %p66 = scmp.eq.s32.totalorder %s19, 0
      %p67 = por %p65, %p66
      %s68 = ssub.s32 %s20, %s39
      %s69 = ssub.s32 %s22, %s31
      %s70 = sor.u32 %s68, %s69
      %p71 = scmp.eq.s32.totalorder %s70, 0
      %s73 = sadd.s32 %s72, 1
      %s74 = scalar_select %p71, %s72, %s73
      %p77 = pneg %p71
      %p78 = scmp.eq.s32.totalorder %s13, 2
      %p79 = por %p77, %p78
      %p80 = scmp.ne.s32.totalorder %s72, %s75
      %p81 = scmp.eq.s32.totalorder %s13, 0
      %p82 = por %p80, %p81
      %p83 = scmp.ne.s32.totalorder %s72, %s75
      %p84 = scmp.eq.s32.totalorder %s18, 2
      %p85 = por %p83, %p84
      %p86 = scmp.ne.s32.totalorder %s75, %s76
      %p87 = scmp.eq.s32.totalorder %s18, 0
      %p88 = por %p86, %p87
      %p89 = scmp.ne.s32.totalorder %s75, %s76
      %p90 = scmp.eq.s32.totalorder %s19, 2
      %p91 = por %p89, %p90
      %p93 = scmp.ne.s32.totalorder %s76, %s92
      %p94 = scmp.eq.s32.totalorder %s19, 0
      %p95 = por %p93, %p94
      %s96 = ssub.s32 %s22, %s31
      %s97 = ssub.s32 %s21, %s35
      %s98 = sor.u32 %s96, %s97
      %p99 = scmp.eq.s32.totalorder %s98, 0
      %s101 = sadd.s32 %s100, 1
      %s102 = scalar_select %p99, %s100, %s101
      %p105 = pneg %p99
      %p106 = scmp.eq.s32.totalorder %s13, 2
      %p107 = por %p105, %p106
      %p108 = scmp.ne.s32.totalorder %s100, %s103
      %p109 = scmp.eq.s32.totalorder %s13, 0
      %p110 = por %p108, %p109
      %p111 = scmp.ne.s32.totalorder %s100, %s103
      %p112 = scmp.eq.s32.totalorder %s18, 2
      %p113 = por %p111, %p112
      %p114 = scmp.ne.s32.totalorder %s103, %s104
      %p115 = scmp.eq.s32.totalorder %s18, 0
      %p116 = por %p114, %p115
      %p117 = scmp.ne.s32.totalorder %s103, %s104
      %p118 = scmp.eq.s32.totalorder %s19, 2
      %p119 = por %p117, %p118
      %p121 = scmp.ne.s32.totalorder %s104, %s120
      %p122 = scmp.eq.s32.totalorder %s19, 0
      %p123 = por %p121, %p122
      %s124 = ssub.s32 %s22, %s31
      %s125 = ssub.s32 %s21, %s35
      %s126 = sor.u32 %s124, %s125
      %p127 = scmp.eq.s32.totalorder %s126, 0
      %s129 = sadd.s32 %s128, 1
      %s130 = scalar_select %p127, %s128, %s129
      %p133 = pneg %p127
      %p134 = scmp.eq.s32.totalorder %s13, 2
      %p135 = por %p133, %p134
      %p136 = scmp.ne.s32.totalorder %s128, %s131
      %p137 = scmp.eq.s32.totalorder %s13, 0
      %p138 = por %p136, %p137
      %p139 = scmp.ne.s32.totalorder %s128, %s131
      %p140 = scmp.eq.s32.totalorder %s18, 2
      %p141 = por %p139, %p140
      %p142 = scmp.ne.s32.totalorder %s131, %s132
      %p143 = scmp.eq.s32.totalorder %s18, 0
      %p144 = por %p142, %p143
      %p145 = scmp.ne.s32.totalorder %s131, %s132
      %p146 = scmp.eq.s32.totalorder %s19, 2
      %p147 = por %p145, %p146
      %p149 = scmp.ne.s32.totalorder %s132, %s148
      %p150 = scmp.eq.s32.totalorder %s19, 0
      %p151 = por %p149, %p150
      %s152 = ssub.s32 %s21, %s35
      %p153 = scmp.eq.s32.totalorder %s152, 0
      %s155 = sadd.s32 %s154, 1
      %s156 = scalar_select %p153, %s154, %s155
      %p159 = pneg %p153
      %p160 = scmp.eq.s32.totalorder %s13, 2
      %p161 = por %p159, %p160
      %p162 = scmp.ne.s32.totalorder %s154, %s157
      %p163 = scmp.eq.s32.totalorder %s13, 0
      %p164 = por %p162, %p163
      %p165 = scmp.ne.s32.totalorder %s154, %s157
      %p166 = scmp.eq.s32.totalorder %s18, 2
      %p167 = por %p165, %p166
      %p168 = scmp.ne.s32.totalorder %s157, %s158
      %p169 = scmp.eq.s32.totalorder %s18, 0
      %p170 = por %p168, %p169
      %p171 = scmp.ne.s32.totalorder %s157, %s158
      %p172 = scmp.eq.s32.totalorder %s19, 2
      %p173 = por %p171, %p172
      %p175 = scmp.ne.s32.totalorder %s158, %s174
      %p176 = scmp.eq.s32.totalorder %s19, 0
      %p177 = por %p175, %p176
      %s178 = ssub.s32 %s20, %s39
      %s179 = ssub.s32 %s21, %s35
      %s180 = sor.u32 %s178, %s179
      %p181 = scmp.eq.s32.totalorder %s180, 0
      %s183 = sadd.s32 %s182, 1
      %s184 = scalar_select %p181, %s182, %s183
      %p187 = pneg %p181
      %p188 = scmp.eq.s32.totalorder %s13, 2
      %p189 = por %p187, %p188
      %p190 = scmp.ne.s32.totalorder %s182, %s185
      %p191 = scmp.eq.s32.totalorder %s13, 0
      %p192 = por %p190, %p191
      %p193 = scmp.ne.s32.totalorder %s182, %s185
      %p194 = scmp.eq.s32.totalorder %s18, 2
      %p195 = por %p193, %p194
      %p196 = scmp.ne.s32.totalorder %s185, %s186
      %p197 = scmp.eq.s32.totalorder %s18, 0
      %p198 = por %p196, %p197
      %p199 = scmp.ne.s32.totalorder %s185, %s186
      %p200 = scmp.eq.s32.totalorder %s19, 2
      %p201 = por %p199, %p200
      %p203 = scmp.ne.s32.totalorder %s186, %s202
      %p204 = scmp.eq.s32.totalorder %s19, 0
      %p205 = por %p203, %p204
      %s206 = ssub.s32 %s20, %s39
      %s207 = ssub.s32 %s21, %s35
      %s208 = sor.u32 %s206, %s207
      %p209 = scmp.eq.s32.totalorder %s208, 0
      %s211 = sadd.s32 %s210, 1
      %s212 = scalar_select %p209, %s210, %s211
      %p215 = pneg %p209
      %p216 = scmp.eq.s32.totalorder %s13, 2
      %p217 = por %p215, %p216
      %p218 = scmp.ne.s32.totalorder %s210, %s213
      %p219 = scmp.eq.s32.totalorder %s13, 0
      %p220 = por %p218, %p219
      %p221 = scmp.ne.s32.totalorder %s210, %s213
      %p222 = scmp.eq.s32.totalorder %s18, 2
      %p223 = por %p221, %p222
      %p224 = scmp.ne.s32.totalorder %s213, %s214
      %p225 = scmp.eq.s32.totalorder %s18, 0
      %p226 = por %p224, %p225
      %p227 = scmp.ne.s32.totalorder %s213, %s214
      %p228 = scmp.eq.s32.totalorder %s19, 2
      %p229 = por %p227, %p228
      %p231 = scmp.ne.s32.totalorder %s214, %s230
      %p232 = scmp.eq.s32.totalorder %s19, 0
      %p233 = por %p231, %p232
      %p234 = scmp.le.s32.totalorder 1, %s13
      %p235 = scmp.lt.s32.totalorder %s13, 4
      %p236 = pnand %p234, %p235
      %p237 = pneg %p236
      // Predicated region
      $region9: #{denoising_genius_forward.25} parent=5 // pred_check
        _
      $region10: #{denoising_genius_forward.25} parent=5 // pred_check_branch
        %239 = sbr.rel (%p236) target = $region12
      $region11: #{denoising_genius_forward.25} parent=5 // pred_region
        %s240 = ssub.s32 %s13, 1
        // Predicated region
        $region13: #{denoising_genius_forward.25} parent=11 // pred_check
          %p241 = pneg %p170
        $region14: #{denoising_genius_forward.25} parent=11 // pred_check_branch
          %243 = sbr.rel (%p241) target = $region16
        $region15: #{denoising_genius_forward.25} parent=11 // pred_region
          %s244 = smul.u32 2, %s24
          %p245 = scmp.lt.s32.totalorder %s244, 1
          %s246 = scalar_select %p245, %s244, 1
          %s247 = scalar_lea.vmem %s4, %s246
          %s248 = smul.u32 2, %s24
        $region16: #{denoising_genius_forward.25} parent=11 // pred_fallthru
          _
      $region12: #{denoising_genius_forward.25} parent=5 // pred_fallthru
        _
      %p249 = scmp.lt.s32.totalorder %s13, 3
      // Predicated region
      $region17: #{denoising_genius_forward.25} parent=5 // pred_check
        %p250 = pneg %p249
      $region18: #{denoising_genius_forward.25} parent=5 // pred_check_branch
        %252 = sbr.rel (%p250) target = $region20
      $region19: #{denoising_genius_forward.25} parent=5 // pred_region
        // Predicated region
        $region21: #{denoising_genius_forward.25} parent=19 // pred_check
          %p253 = pneg %p54
        $region22: #{denoising_genius_forward.25} parent=19 // pred_check_branch
          %255 = sbr.rel (%p253) target = $region24
        $region23: #{denoising_genius_forward.25} parent=19 // pred_region
          %s256 = sand.u32 %s44, 1
          %s257 = sand.u32 %s44, 1
          %s258 = smul.addr %s257, 24
          %s259 = scalar_lea.vmem [#allocation3], %s258
          %s260 = smul.u32 2, %s20
          %s261 = smul.u32 3, %s22
          %s262 = smul.addr %s260, 9
          %s263 = sadd.s32 %s261, %s262
          %s264 = smul.addr %s263, 4
          %s265 = scalar_lea.vmem %s0, %s264
          // Predicated region
          $region25: #{denoising_genius_forward.25} parent=23 // pred_check
            _
          $region26: #{denoising_genius_forward.25} parent=23 // pred_check_branch
            %267 = sbr.rel (0) target = $region28
          $region27: #{denoising_genius_forward.25} parent=23 // pred_region
            // Predicated region
            $region29: #{denoising_genius_forward.25} parent=27 // pred_check
              _
            $region30: #{denoising_genius_forward.25} parent=27 // pred_check_branch
              %269 = sbr.rel (0) target = $region32
            $region31: #{denoising_genius_forward.25} parent=27 // pred_region
              %s270 = scalar_lea.vmem %s265, 8
              %s271 = scalar_lea.vmem %s259, 8 [#allocation3]
              loop: start=0, step=1, limit=1
              $region33: #{denoising_genius_forward.25} parent=31 // loop_pre_header
                _
              $region34: #{denoising_genius_forward.25} parent=31 // loop_header
                %s273 = sphi 0, %s277
                %p274 = scmp.ge.s32.totalorder %s273, 1
                %s278 = sphi %s265, %s265
                %s279 = sphi %s259, %s259
              $region35: #{denoising_genius_forward.25} parent=31 // loop_header_branch
                %276 = sbr.rel (%p274) target = $region39
              $region36: #{denoising_genius_forward.25} parent=31 // loop_body
                %v280 = vld [vmem:[%s278] sm:$0xff]
                %281 = vst [vmem:[%s279] sm:$0xff] %v280
                %v282 = vld [vmem:[%s278 + $0x24] sm:$0xff]
                %283 = vst [vmem:[%s279 + $0xc] sm:$0xff] %v282
              $region37: #{denoising_genius_forward.25} parent=31 // loop_footer
                %s277 = sadd.s32 1, %s273
              $region38: #{denoising_genius_forward.25} parent=31 // loop_footer_branch
                %272 = sbr.rel target = $region34
              $region39: #{denoising_genius_forward.25} parent=31 // loop_exit
                _
              loop: start=0, step=1, limit=1
              $region40: #{denoising_genius_forward.25} parent=31 // loop_pre_header
                _
              $region41: #{denoising_genius_forward.25} parent=31 // loop_header
                %s286 = sphi 0, %s290
                %p287 = scmp.ge.s32.totalorder %s286, 1
                %s291 = sphi %s270, %s270
                %s292 = sphi %s271, %s271
              $region42: #{denoising_genius_forward.25} parent=31 // loop_header_branch
                %289 = sbr.rel (%p287) target = $region46
              $region43: #{denoising_genius_forward.25} parent=31 // loop_body
                %v293 = vld [vmem:[%s291] sm:$0xf]
                %294 = vst [vmem:[%s292] sm:$0xf] %v293
                %v295 = vld [vmem:[%s291 + $0x24] sm:$0xf]
                %296 = vst [vmem:[%s292 + $0xc] sm:$0xf] %v295
              $region44: #{denoising_genius_forward.25} parent=31 // loop_footer
                %s290 = sadd.s32 1, %s286
              $region45: #{denoising_genius_forward.25} parent=31 // loop_footer_branch
                %285 = sbr.rel target = $region41
              $region46: #{denoising_genius_forward.25} parent=31 // loop_exit
                _
            $region32: #{denoising_genius_forward.25} parent=27 // pred_fallthru
              _
          $region28: #{denoising_genius_forward.25} parent=23 // pred_fallthru
            _
          %297 = vnop
        $region24: #{denoising_genius_forward.25} parent=19 // pred_fallthru
          _
        // Predicated region
        $region47: #{denoising_genius_forward.25} parent=19 // pred_check
          %p298 = pneg %p82
        $region48: #{denoising_genius_forward.25} parent=19 // pred_check_branch
          %300 = sbr.rel (%p298) target = $region50
        $region49: #{denoising_genius_forward.25} parent=19 // pred_region
          %s301 = sand.u32 %s72, 1
          %s302 = sand.u32 %s72, 1
          %s303 = smul.addr %s302, 24
          %s304 = scalar_lea.vmem [#allocation4], %s303
          %s305 = smul.u32 2, %s20
          %s306 = smul.u32 3, %s22
          %s307 = smul.addr %s305, 9
          %s308 = sadd.s32 %s306, %s307
          %s309 = smul.addr %s308, 4
          %s310 = scalar_lea.vmem %s1, %s309
          // Predicated region
          $region51: #{denoising_genius_forward.25} parent=49 // pred_check
            _
          $region52: #{denoising_genius_forward.25} parent=49 // pred_check_branch
            %312 = sbr.rel (0) target = $region54
          $region53: #{denoising_genius_forward.25} parent=49 // pred_region
            // Predicated region
            $region55: #{denoising_genius_forward.25} parent=53 // pred_check
              _
            $region56: #{denoising_genius_forward.25} parent=53 // pred_check_branch
              %314 = sbr.rel (0) target = $region58
            $region57: #{denoising_genius_forward.25} parent=53 // pred_region
              %s315 = scalar_lea.vmem %s310, 8
              %s316 = scalar_lea.vmem %s304, 8 [#allocation4]
              loop: start=0, step=1, limit=1
              $region59: #{denoising_genius_forward.25} parent=57 // loop_pre_header
                _
              $region60: #{denoising_genius_forward.25} parent=57 // loop_header
                %s318 = sphi 0, %s322
                %p319 = scmp.ge.s32.totalorder %s318, 1
                %s323 = sphi %s310, %s310
                %s324 = sphi %s304, %s304
              $region61: #{denoising_genius_forward.25} parent=57 // loop_header_branch
                %321 = sbr.rel (%p319) target = $region65
              $region62: #{denoising_genius_forward.25} parent=57 // loop_body
                %v325 = vld [vmem:[%s323] sm:$0xff]
                %326 = vst [vmem:[%s324] sm:$0xff] %v325
                %v327 = vld [vmem:[%s323 + $0x24] sm:$0xff]
                %328 = vst [vmem:[%s324 + $0xc] sm:$0xff] %v327
              $region63: #{denoising_genius_forward.25} parent=57 // loop_footer
                %s322 = sadd.s32 1, %s318
              $region64: #{denoising_genius_forward.25} parent=57 // loop_footer_branch
                %317 = sbr.rel target = $region60
              $region65: #{denoising_genius_forward.25} parent=57 // loop_exit
                _
              loop: start=0, step=1, limit=1
              $region66: #{denoising_genius_forward.25} parent=57 // loop_pre_header
                _
              $region67: #{denoising_genius_forward.25} parent=57 // loop_header
                %s331 = sphi 0, %s335
                %p332 = scmp.ge.s32.totalorder %s331, 1
                %s336 = sphi %s315, %s315
                %s337 = sphi %s316, %s316
              $region68: #{denoising_genius_forward.25} parent=57 // loop_header_branch
                %334 = sbr.rel (%p332) target = $region72
              $region69: #{denoising_genius_forward.25} parent=57 // loop_body
                %v338 = vld [vmem:[%s336] sm:$0xf]
                %339 = vst [vmem:[%s337] sm:$0xf] %v338
                %v340 = vld [vmem:[%s336 + $0x24] sm:$0xf]
                %341 = vst [vmem:[%s337 + $0xc] sm:$0xf] %v340
              $region70: #{denoising_genius_forward.25} parent=57 // loop_footer
                %s335 = sadd.s32 1, %s331
              $region71: #{denoising_genius_forward.25} parent=57 // loop_footer_branch
                %330 = sbr.rel target = $region67
              $region72: #{denoising_genius_forward.25} parent=57 // loop_exit
                _
            $region58: #{denoising_genius_forward.25} parent=53 // pred_fallthru
              _
          $region54: #{denoising_genius_forward.25} parent=49 // pred_fallthru
            _
          %342 = vnop
        $region50: #{denoising_genius_forward.25} parent=19 // pred_fallthru
          _
        // Predicated region
        $region73: #{denoising_genius_forward.25} parent=19 // pred_check
          %p343 = pneg %p110
        $region74: #{denoising_genius_forward.25} parent=19 // pred_check_branch
          %345 = sbr.rel (%p343) target = $region76
        $region75: #{denoising_genius_forward.25} parent=19 // pred_region
          %s346 = smul.u32 48, %s22
          %s347 = smul.u32 2, %s21
          %p348 = scmp.lt.s32.totalorder %s346, 143
          %s349 = scalar_select %p348, %s346, 143
          %p350 = scmp.lt.s32.totalorder %s347, 1
          %s351 = scalar_select %p350, %s347, 1
          %s352 = smul.addr %s349, 2
          %s353 = sadd.s32 %s351, %s352
          %s354 = smul.addr %s353, 4
          %s355 = scalar_lea.vmem %s2, %s354
          %s356 = smul.u32 48, %s22
          %s357 = smul.u32 2, %s21
        $region76: #{denoising_genius_forward.25} parent=19 // pred_fallthru
          _
        // Predicated region
        $region77: #{denoising_genius_forward.25} parent=19 // pred_check
          %p358 = pneg %p138
        $region78: #{denoising_genius_forward.25} parent=19 // pred_check_branch
          %360 = sbr.rel (%p358) target = $region80
        $region79: #{denoising_genius_forward.25} parent=19 // pred_region
          %s361 = smul.u32 48, %s22
          %s362 = smul.u32 2, %s21
          %p363 = scmp.lt.s32.totalorder %s361, 143
          %s364 = scalar_select %p363, %s361, 143
          %p365 = scmp.lt.s32.totalorder %s362, 1
          %s366 = scalar_select %p365, %s362, 1
          %s367 = smul.addr %s364, 2
          %s368 = sadd.s32 %s366, %s367
          %s369 = smul.addr %s368, 4
          %s370 = scalar_lea.vmem %s3, %s369
          %s371 = smul.u32 48, %s22
          %s372 = smul.u32 2, %s21
        $region80: #{denoising_genius_forward.25} parent=19 // pred_fallthru
          _
      $region20: #{denoising_genius_forward.25} parent=5 // pred_fallthru
        _
      %p373 = scmp.le.s32.totalorder 1, %s13
      %p374 = scmp.lt.s32.totalorder %s13, 4
      %p375 = pnand %p373, %p374
      %p376 = pneg %p375
      // Predicated region
      $region81: #{denoising_genius_forward.25} parent=5 // pred_check
        _
      $region82: #{denoising_genius_forward.25} parent=5 // pred_check_branch
        %378 = sbr.rel (%p375) target = $region84
      $region83: #{denoising_genius_forward.25} parent=5 // pred_region
        %s379 = ssub.s32 %s13, 1
        %s380 = sand.u32 %s47, 1
        %s381 = sand.u32 %s47, 1
        %s382 = smul.addr %s381, 24
        %s383 = scalar_lea.vmem [#allocation3], %s382
        // Predicated region
        $region85: #{denoising_genius_forward.25} parent=83 // pred_check
          %p384 = pneg %p60
        $region86: #{denoising_genius_forward.25} parent=83 // pred_check_branch
          %386 = sbr.rel (%p384) target = $region88
        $region87: #{denoising_genius_forward.25} parent=83 // pred_region
          _
        $region88: #{denoising_genius_forward.25} parent=83 // pred_fallthru
          _
        %s387 = sand.u32 %s75, 1
        %s388 = sand.u32 %s75, 1
        %s389 = smul.addr %s388, 24
        %s390 = scalar_lea.vmem [#allocation4], %s389
        // Predicated region
        $region89: #{denoising_genius_forward.25} parent=83 // pred_check
          %p391 = pneg %p88
        $region90: #{denoising_genius_forward.25} parent=83 // pred_check_branch
          %393 = sbr.rel (%p391) target = $region92
        $region91: #{denoising_genius_forward.25} parent=83 // pred_region
          _
        $region92: #{denoising_genius_forward.25} parent=83 // pred_fallthru
          _
        %s394 = sand.u32 %s47, 1
        %s395 = sand.u32 %s47, 1
        %s396 = smul.addr %s395, 24
        %s397 = scalar_lea.vmem [#allocation3], %s396
        %p398 = pneg %p60
        %p399 = pneg %p57
        %s400 = sand.u32 %s75, 1
        %s401 = sand.u32 %s75, 1
        %s402 = smul.addr %s401, 24
        %s403 = scalar_lea.vmem [#allocation4], %s402
        %p404 = pneg %p88
        %p405 = pneg %p85
        %s406 = smul.u32 48, %s25
        %s407 = smul.u32 2, %s24
        %p408 = scmp.lt.s32.totalorder %s406, 143
        %s409 = scalar_select %p408, %s406, 143
        %p410 = scmp.lt.s32.totalorder %s407, 1
        %s411 = scalar_select %p410, %s407, 1
        %s412 = smul.addr %s409, 2
        %s413 = sadd.s32 %s411, %s412
        %s414 = smul.addr %s413, 4
        %s415 = scalar_lea.vmem %s2, %s414
        %p416 = pneg %p116
        %p417 = pneg %p113
        %s418 = smul.u32 48, %s25
        %s419 = smul.u32 2, %s24
        %p420 = scmp.lt.s32.totalorder %s418, 143
        %s421 = scalar_select %p420, %s418, 143
        %p422 = scmp.lt.s32.totalorder %s419, 1
        %s423 = scalar_select %p422, %s419, 1
        %s424 = smul.addr %s421, 2
        %s425 = sadd.s32 %s423, %s424
        %s426 = smul.addr %s425, 4
        %s427 = scalar_lea.vmem %s3, %s426
        %p428 = pneg %p144
        %p429 = pneg %p141
        %s430 = smul.u32 2, %s24
        %p431 = scmp.lt.s32.totalorder %s430, 1
        %s432 = scalar_select %p431, %s430, 1
        %s433 = scalar_lea.vmem %s4, %s432
        %p434 = pneg %p170
        %p435 = pneg %p167
        %p436 = pneg %p198
        %p437 = pneg %p195
        %s438 = smul.u32 2, %s23
        %s439 = smul.u32 2, %s24
        %p440 = scmp.lt.s32.totalorder %s438, 1
        %s441 = scalar_select %p440, %s438, 1
        %p442 = scmp.lt.s32.totalorder %s439, 1
        %s443 = scalar_select %p442, %s439, 1
        %s444 = smul.addr %s441, 2
        %s445 = sadd.s32 %s443, %s444
        %s446 = smul.addr %s445, 4
        %s447 = scalar_lea.vmem %s5, %s446
        %p448 = pneg %p226
        %p449 = pneg %p223
        %s450 = smul.u32 2, %s24
        %p451 = scmp.lt.s32.totalorder %s23, 0
        %s452 = scalar_select %p451, %s23, 0
        %p453 = scmp.lt.s32.totalorder %s450, 1
        %s454 = scalar_select %p453, %s450, 1
        %s455 = smul.addr %s452, 2
        %s456 = sadd.s32 %s454, %s455
        %s457 = smul.addr %s456, 8
        %s458 = scalar_lea.vmem %s6, %s457
        %s459 = smul.u32 2, %s23
        %s460 = smul.u32 3, %s25
        %s461 = smul.u32 2, %s23
        %s462 = smul.u32 3, %s25
        %s463 = smul.u32 48, %s25
        %s464 = smul.u32 2, %s24
        %p465 = scmp.lt.s32.totalorder %s463, 143
        %s466 = scalar_select %p465, %s463, 143
        %p467 = scmp.lt.s32.totalorder %s464, 1
        %s468 = scalar_select %p467, %s464, 1
        %s469 = smul.addr %s466, 2
        %s470 = sadd.s32 %s468, %s469
        %s471 = smul.addr %s470, 4
        %s472 = scalar_lea.vmem %s2, %s471
        %s473 = smul.u32 48, %s25
        %s474 = smul.u32 2, %s24
        %s475 = smul.u32 48, %s25
        %s476 = smul.u32 2, %s24
        %p477 = scmp.lt.s32.totalorder %s475, 143
        %s478 = scalar_select %p477, %s475, 143
        %p479 = scmp.lt.s32.totalorder %s476, 1
        %s480 = scalar_select %p479, %s476, 1
        %s481 = smul.addr %s478, 2
        %s482 = sadd.s32 %s480, %s481
        %s483 = smul.addr %s482, 4
        %s484 = scalar_lea.vmem %s3, %s483
        %s485 = smul.u32 48, %s25
        %s486 = smul.u32 2, %s24
        %s487 = smul.u32 2, %s24
        %p488 = scmp.lt.s32.totalorder %s487, 1
        %s489 = scalar_select %p488, %s487, 1
        %s490 = scalar_lea.vmem %s4, %s489
        %s491 = smul.u32 2, %s24
        %s492 = smul.u32 2, %s23
        %s493 = smul.u32 2, %s24
        %p494 = scmp.lt.s32.totalorder %s492, 1
        %s495 = scalar_select %p494, %s492, 1
        %p496 = scmp.lt.s32.totalorder %s493, 1
        %s497 = scalar_select %p496, %s493, 1
        %s498 = smul.addr %s495, 2
        %s499 = sadd.s32 %s497, %s498
        %s500 = smul.addr %s499, 4
        %s501 = scalar_lea.vmem %s5, %s500
        %s502 = smul.u32 2, %s23
        %s503 = smul.u32 2, %s24
        %s504 = smul.u32 2, %s24
        %p505 = scmp.lt.s32.totalorder %s23, 0
        %s506 = scalar_select %p505, %s23, 0
        %p507 = scmp.lt.s32.totalorder %s504, 1
        %s508 = scalar_select %p507, %s504, 1
        %s509 = smul.addr %s506, 2
        %s510 = sadd.s32 %s508, %s509
        %s511 = smul.addr %s510, 8
        %s512 = scalar_lea.vmem %s6, %s511
        %s513 = smul.u32 2, %s24
        %p515 = scmp.eq.s32.totalorder %s25, 0
        // Predicated region
        $region93: #{denoising_genius_forward.25} parent=83 // pred_check
          %p516 = pneg %p515
        $region94: #{denoising_genius_forward.25} parent=83 // pred_check_branch
          %518 = sbr.rel (%p516) target = $region96
        $region95: #{denoising_genius_forward.25} parent=83 // pred_region
          %519 = vst [vmem:[#allocation2] sm:$0xff] 0.0
          %520 = vst [vmem:[#allocation2 + $0x8] sm:$0xff] 0.0
          %521 = vst [vmem:[#allocation2 + $0x10] sm:$0xff] 0.0
          %522 = vst [vmem:[#allocation2 + $0x18] sm:$0xff] 0.0
        $region96: #{denoising_genius_forward.25} parent=83 // pred_fallthru
          _
        %v523 = vld [vmem:[%s383] sm:$0xff]
        %v524 = vld [vmem:[%s383 + $0x8] sm:$0xf]
        %v525 = vld [vmem:[%s383 + $0xc] sm:$0xff]
        %v526 = vld [vmem:[%s383 + $0x14] sm:$0xf]
        %v527 = vld [vmem:[%s472] sm:$0xff]
        %v528 = vld [vmem:[%s472 + $0x8] sm:$0xff]
        %v529 = vld [vmem:[%s472 + $0x10] sm:$0xff]
        %v530 = vld [vmem:[%s472 + $0x18] sm:$0xff]
        %v531 = vld [vmem:[%s472 + $0x20] sm:$0xff]
        %v532 = vld [vmem:[%s472 + $0x28] sm:$0xff]
        %v533 = vld [vmem:[%s472 + $0x30] sm:$0xff]
        %v534 = vld [vmem:[%s472 + $0x38] sm:$0xff]
        %v535 = vld [vmem:[%s472 + $0x40] sm:$0xff]
        %v536 = vld [vmem:[%s472 + $0x48] sm:$0xff]
        %v537 = vld [vmem:[%s472 + $0x50] sm:$0xff]
        %v538 = vld [vmem:[%s472 + $0x58] sm:$0xff]
        %v539 = vld [vmem:[%s472 + $0x60] sm:$0xff]
        %v540 = vld [vmem:[%s472 + $0x68] sm:$0xff]
        %v541 = vld [vmem:[%s472 + $0x70] sm:$0xff]
        %v542 = vld [vmem:[%s472 + $0x78] sm:$0xff]
        %v543 = vld [vmem:[%s472 + $0x80] sm:$0xff]
        %v544 = vld [vmem:[%s472 + $0x88] sm:$0xff]
        %v545 = vld [vmem:[%s472 + $0x90] sm:$0xff]
        %v546 = vld [vmem:[%s472 + $0x98] sm:$0xff]
        %v547 = vld [vmem:[%s472 + $0xa0] sm:$0xff]
        %v548 = vld [vmem:[%s472 + $0xa8] sm:$0xff]
        %v549 = vld [vmem:[%s472 + $0xb0] sm:$0xff]
        %v550 = vld [vmem:[%s472 + $0xb8] sm:$0xff]
        %v551 = vld [vmem:[%s472 + $0xc0] sm:$0xff]
        %v552 = vld [vmem:[%s472 + $0xc8] sm:$0xff]
        %v553 = vld [vmem:[%s472 + $0xd0] sm:$0xff]
        %v554 = vld [vmem:[%s472 + $0xd8] sm:$0xff]
        %v555 = vld [vmem:[%s472 + $0xe0] sm:$0xff]
        %v556 = vld [vmem:[%s472 + $0xe8] sm:$0xff]
        %v557 = vld [vmem:[%s472 + $0xf0] sm:$0xff]
        %v558 = vld [vmem:[%s472 + $0xf8] sm:$0xff]
        %v559 = vld [vmem:[%s472 + $0x100] sm:$0xff]
        %v560 = vld [vmem:[%s472 + $0x108] sm:$0xff]
        %v561 = vld [vmem:[%s472 + $0x110] sm:$0xff]
        %v562 = vld [vmem:[%s472 + $0x118] sm:$0xff]
        %v563 = vld [vmem:[%s472 + $0x120] sm:$0xff]
        %v564 = vld [vmem:[%s472 + $0x128] sm:$0xff]
        %v565 = vld [vmem:[%s472 + $0x130] sm:$0xff]
        %v566 = vld [vmem:[%s472 + $0x138] sm:$0xff]
        %v567 = vld [vmem:[%s472 + $0x140] sm:$0xff]
        %v568 = vld [vmem:[%s472 + $0x148] sm:$0xff]
        %v569 = vld [vmem:[%s472 + $0x150] sm:$0xff]
        %v570 = vld [vmem:[%s472 + $0x158] sm:$0xff]
        %v571 = vld [vmem:[%s472 + $0x160] sm:$0xff]
        %v572 = vld [vmem:[%s472 + $0x168] sm:$0xff]
        %v573 = vld [vmem:[%s472 + $0x170] sm:$0xff]
        %v574 = vld [vmem:[%s472 + $0x178] sm:$0xff]
        %v575 = vld [vmem:[%s390] sm:$0xff]
        %v576 = vld [vmem:[%s390 + $0x8] sm:$0xf]
        %v577 = vld [vmem:[%s390 + $0xc] sm:$0xff]
        %v578 = vld [vmem:[%s390 + $0x14] sm:$0xf]
        %v579 = vld [vmem:[%s484] sm:$0xff]
        %v580 = vld [vmem:[%s484 + $0x8] sm:$0xff]
        %v581 = vld [vmem:[%s484 + $0x10] sm:$0xff]
        %v582 = vld [vmem:[%s484 + $0x18] sm:$0xff]
        %v583 = vld [vmem:[%s484 + $0x20] sm:$0xff]
        %v584 = vld [vmem:[%s484 + $0x28] sm:$0xff]
        %v585 = vld [vmem:[%s484 + $0x30] sm:$0xff]
        %v586 = vld [vmem:[%s484 + $0x38] sm:$0xff]
        %v587 = vld [vmem:[%s484 + $0x40] sm:$0xff]
        %v588 = vld [vmem:[%s484 + $0x48] sm:$0xff]
        %v589 = vld [vmem:[%s484 + $0x50] sm:$0xff]
        %v590 = vld [vmem:[%s484 + $0x58] sm:$0xff]
        %v591 = vld [vmem:[%s484 + $0x60] sm:$0xff]
        %v592 = vld [vmem:[%s484 + $0x68] sm:$0xff]
        %v593 = vld [vmem:[%s484 + $0x70] sm:$0xff]
        %v594 = vld [vmem:[%s484 + $0x78] sm:$0xff]
        %v595 = vld [vmem:[%s484 + $0x80] sm:$0xff]
        %v596 = vld [vmem:[%s484 + $0x88] sm:$0xff]
        %v597 = vld [vmem:[%s484 + $0x90] sm:$0xff]
        %v598 = vld [vmem:[%s484 + $0x98] sm:$0xff]
        %v599 = vld [vmem:[%s484 + $0xa0] sm:$0xff]
        %v600 = vld [vmem:[%s484 + $0xa8] sm:$0xff]
        %v601 = vld [vmem:[%s484 + $0xb0] sm:$0xff]
        %v602 = vld [vmem:[%s484 + $0xb8] sm:$0xff]
        %v603 = vld [vmem:[%s484 + $0xc0] sm:$0xff]
        %v604 = vld [vmem:[%s484 + $0xc8] sm:$0xff]
        %v605 = vld [vmem:[%s484 + $0xd0] sm:$0xff]
        %v606 = vld [vmem:[%s484 + $0xd8] sm:$0xff]
        %v607 = vld [vmem:[%s484 + $0xe0] sm:$0xff]
        %v608 = vld [vmem:[%s484 + $0xe8] sm:$0xff]
        %v609 = vld [vmem:[%s484 + $0xf0] sm:$0xff]
        %v610 = vld [vmem:[%s484 + $0xf8] sm:$0xff]
        %v611 = vld [vmem:[%s484 + $0x100] sm:$0xff]
        %v612 = vld [vmem:[%s484 + $0x108] sm:$0xff]
        %v613 = vld [vmem:[%s484 + $0x110] sm:$0xff]
        %v614 = vld [vmem:[%s484 + $0x118] sm:$0xff]
        %v615 = vld [vmem:[%s484 + $0x120] sm:$0xff]
        %v616 = vld [vmem:[%s484 + $0x128] sm:$0xff]
        %v617 = vld [vmem:[%s484 + $0x130] sm:$0xff]
        %v618 = vld [vmem:[%s484 + $0x138] sm:$0xff]
        %v619 = vld [vmem:[%s484 + $0x140] sm:$0xff]
        %v620 = vld [vmem:[%s484 + $0x148] sm:$0xff]
        %v621 = vld [vmem:[%s484 + $0x150] sm:$0xff]
        %v622 = vld [vmem:[%s484 + $0x158] sm:$0xff]
        %v623 = vld [vmem:[%s484 + $0x160] sm:$0xff]
        %v624 = vld [vmem:[%s484 + $0x168] sm:$0xff]
        %v625 = vld [vmem:[%s484 + $0x170] sm:$0xff]
        %v626 = vld [vmem:[%s484 + $0x178] sm:$0xff]
        %v631 = vunpack.c.l.b16 %v575
        %v632 = vunpack.c.h.b16 %v575
        %v633 = vunpack.c.l.b16 %v576
        %v634 = vunpack.c.l.b16 %v577
        %v635 = vunpack.c.h.b16 %v577
        %v636 = vunpack.c.l.b16 %v578
        %v637 = vpack.c.b16 %v634, %v631
        %v638 = vpack.c.b16 %v635, %v632
        %v639 = vpack.c.b16 %v636, %v633
        %v691 = vunpack.c.l.b16 %v579
        %v692 = vunpack.c.h.b16 %v579
        %v693 = vunpack.c.l.b16 %v580
        %v694 = vunpack.c.h.b16 %v580
        %v695 = vunpack.c.l.b16 %v581
        %v696 = vunpack.c.h.b16 %v581
        %v697 = vunpack.c.l.b16 %v582
        %v698 = vunpack.c.h.b16 %v582
        %v699 = vunpack.c.l.b16 %v583
        %v700 = vunpack.c.h.b16 %v583
        %v701 = vunpack.c.l.b16 %v584
        %v702 = vunpack.c.h.b16 %v584
        %v703 = vunpack.c.l.b16 %v585
        %v704 = vunpack.c.h.b16 %v585
        %v705 = vunpack.c.l.b16 %v586
        %v706 = vunpack.c.h.b16 %v586
        %v707 = vunpack.c.l.b16 %v587
        %v708 = vunpack.c.h.b16 %v587
        %v709 = vunpack.c.l.b16 %v588
        %v710 = vunpack.c.h.b16 %v588
        %v711 = vunpack.c.l.b16 %v589
        %v712 = vunpack.c.h.b16 %v589
        %v713 = vunpack.c.l.b16 %v590
        %v714 = vunpack.c.h.b16 %v590
        %v715 = vunpack.c.l.b16 %v591
        %v716 = vunpack.c.h.b16 %v591
        %v717 = vunpack.c.l.b16 %v592
        %v718 = vunpack.c.h.b16 %v592
        %v719 = vunpack.c.l.b16 %v593
        %v720 = vunpack.c.h.b16 %v593
        %v721 = vunpack.c.l.b16 %v594
        %v722 = vunpack.c.h.b16 %v594
        %v723 = vunpack.c.l.b16 %v595
        %v724 = vunpack.c.h.b16 %v595
        %v725 = vunpack.c.l.b16 %v596
        %v726 = vunpack.c.h.b16 %v596
        %v727 = vunpack.c.l.b16 %v597
        %v728 = vunpack.c.h.b16 %v597
        %v729 = vunpack.c.l.b16 %v598
        %v730 = vunpack.c.h.b16 %v598
        %v731 = vunpack.c.l.b16 %v599
        %v732 = vunpack.c.h.b16 %v599
        %v733 = vunpack.c.l.b16 %v600
        %v734 = vunpack.c.h.b16 %v600
        %v735 = vunpack.c.l.b16 %v601
        %v736 = vunpack.c.h.b16 %v601
        %v737 = vunpack.c.l.b16 %v602
        %v738 = vunpack.c.h.b16 %v602
        %v739 = vunpack.c.l.b16 %v603
        %v740 = vunpack.c.h.b16 %v603
        %v741 = vunpack.c.l.b16 %v604
        %v742 = vunpack.c.h.b16 %v604
        %v743 = vunpack.c.l.b16 %v605
        %v744 = vunpack.c.h.b16 %v605
        %v745 = vunpack.c.l.b16 %v606
        %v746 = vunpack.c.h.b16 %v606
        %v747 = vunpack.c.l.b16 %v607
        %v748 = vunpack.c.h.b16 %v607
        %v749 = vunpack.c.l.b16 %v608
        %v750 = vunpack.c.h.b16 %v608
        %v751 = vunpack.c.l.b16 %v609
        %v752 = vunpack.c.h.b16 %v609
        %v753 = vunpack.c.l.b16 %v610
        %v754 = vunpack.c.h.b16 %v610
        %v755 = vunpack.c.l.b16 %v611
        %v756 = vunpack.c.h.b16 %v611
        %v757 = vunpack.c.l.b16 %v612
        %v758 = vunpack.c.h.b16 %v612
        %v759 = vunpack.c.l.b16 %v613
        %v760 = vunpack.c.h.b16 %v613
        %v761 = vunpack.c.l.b16 %v614
        %v762 = vunpack.c.h.b16 %v614
        %v763 = vunpack.c.l.b16 %v615
        %v764 = vunpack.c.h.b16 %v615
        %v765 = vunpack.c.l.b16 %v616
        %v766 = vunpack.c.h.b16 %v616
        %v767 = vunpack.c.l.b16 %v617
        %v768 = vunpack.c.h.b16 %v617
        %v769 = vunpack.c.l.b16 %v618
        %v770 = vunpack.c.h.b16 %v618
        %v771 = vunpack.c.l.b16 %v619
        %v772 = vunpack.c.h.b16 %v619
        %v773 = vunpack.c.l.b16 %v620
        %v774 = vunpack.c.h.b16 %v620
        %v775 = vunpack.c.l.b16 %v621
        %v776 = vunpack.c.h.b16 %v621
        %v777 = vunpack.c.l.b16 %v622
        %v778 = vunpack.c.h.b16 %v622
        %v779 = vunpack.c.l.b16 %v623
        %v780 = vunpack.c.h.b16 %v623
        %v781 = vunpack.c.l.b16 %v624
        %v782 = vunpack.c.h.b16 %v624
        %v783 = vunpack.c.l.b16 %v625
        %v784 = vunpack.c.h.b16 %v625
        %v785 = vunpack.c.l.b16 %v626
        %v786 = vunpack.c.h.b16 %v626
        %v787 = vpack.c.b16 %v693, %v691
        %v788 = vpack.c.b16 %v694, %v692
        %v789 = vpack.c.b16 %v697, %v695
        %v790 = vpack.c.b16 %v698, %v696
        %v791 = vpack.c.b16 %v701, %v699
        %v792 = vpack.c.b16 %v702, %v700
        %v793 = vpack.c.b16 %v705, %v703
        %v794 = vpack.c.b16 %v706, %v704
        %v795 = vpack.c.b16 %v709, %v707
        %v796 = vpack.c.b16 %v710, %v708
        %v797 = vpack.c.b16 %v713, %v711
        %v798 = vpack.c.b16 %v714, %v712
        %v799 = vpack.c.b16 %v717, %v715
        %v800 = vpack.c.b16 %v718, %v716
        %v801 = vpack.c.b16 %v721, %v719
        %v802 = vpack.c.b16 %v722, %v720
        %v803 = vpack.c.b16 %v725, %v723
        %v804 = vpack.c.b16 %v726, %v724
        %v805 = vpack.c.b16 %v729, %v727
        %v806 = vpack.c.b16 %v730, %v728
        %v807 = vpack.c.b16 %v733, %v731
        %v808 = vpack.c.b16 %v734, %v732
        %v809 = vpack.c.b16 %v737, %v735
        %v810 = vpack.c.b16 %v738, %v736
        %v811 = vpack.c.b16 %v741, %v739
        %v812 = vpack.c.b16 %v742, %v740
        %v813 = vpack.c.b16 %v745, %v743
        %v814 = vpack.c.b16 %v746, %v744
        %v815 = vpack.c.b16 %v749, %v747
        %v816 = vpack.c.b16 %v750, %v748
        %v817 = vpack.c.b16 %v753, %v751
        %v818 = vpack.c.b16 %v754, %v752
        %v819 = vpack.c.b16 %v757, %v755
        %v820 = vpack.c.b16 %v758, %v756
        %v821 = vpack.c.b16 %v761, %v759
        %v822 = vpack.c.b16 %v762, %v760
        %v823 = vpack.c.b16 %v765, %v763
        %v824 = vpack.c.b16 %v766, %v764
        %v825 = vpack.c.b16 %v769, %v767
        %v826 = vpack.c.b16 %v770, %v768
        %v827 = vpack.c.b16 %v773, %v771
        %v828 = vpack.c.b16 %v774, %v772
        %v829 = vpack.c.b16 %v777, %v775
        %v830 = vpack.c.b16 %v778, %v776
        %v831 = vpack.c.b16 %v781, %v779
        %v832 = vpack.c.b16 %v782, %v780
        %v833 = vpack.c.b16 %v785, %v783
        %v834 = vpack.c.b16 %v786, %v784
        %883 = vmatprep.subr.bf16.mxu0 %v788
        %884 = vmatpush1.bf16.msra.mxu0 %v787
        %885 = vmatprep.subr.bf16.mxu0 %v790
        %886 = vmatpush1.bf16.msra.mxu0 %v789
        %887 = vmatprep.subr.bf16.mxu0 %v792
        %888 = vmatpush1.bf16.msra.mxu0 %v791
        %889 = vmatprep.subr.bf16.mxu0 %v794
        %890 = vmatpush1.bf16.msra.mxu0 %v793
        %891 = vmatprep.subr.bf16.mxu0 %v796
        %892 = vmatpush1.bf16.msra.mxu0 %v795
        %893 = vmatprep.subr.bf16.mxu0 %v798
        %894 = vmatpush1.bf16.msra.mxu0 %v797
        %895 = vmatprep.subr.bf16.mxu0 %v800
        %896 = vmatpush1.bf16.msra.mxu0 %v799
        %897 = vmatprep.subr.bf16.mxu0 %v802
        %898 = vmatpush1.bf16.msra.mxu0 %v801
        %899 = vmatprep.subr.bf16.mxu0 %v804
        %900 = vmatpush1.bf16.msra.mxu0 %v803
        %901 = vmatprep.subr.bf16.mxu0 %v806
        %902 = vmatpush1.bf16.msra.mxu0 %v805
        %903 = vmatprep.subr.bf16.mxu0 %v808
        %904 = vmatpush1.bf16.msra.mxu0 %v807
        %905 = vmatprep.subr.bf16.mxu0 %v810
        %906 = vmatpush1.bf16.msra.mxu0 %v809
        %907 = vmatprep.subr.bf16.mxu0 %v812
        %908 = vmatpush1.bf16.msra.mxu0 %v811
        %909 = vmatprep.subr.bf16.mxu0 %v814
        %910 = vmatpush1.bf16.msra.mxu0 %v813
        %911 = vmatprep.subr.bf16.mxu0 %v816
        %912 = vmatpush1.bf16.msra.mxu0 %v815
        %913 = vmatprep.subr.bf16.mxu0 %v818
        %914 = vmatpush1.bf16.msra.mxu0 %v817
        %915 = vmatprep.mubr.bf16.mxu0 %v638
        %916 = vmatmul.mubr.bf16.gmra.mrb[0].mxu0 %v637
        %v917 = vpop.f32.mrb[0].mxu0
        %v918 = vadd.f32 0.0, %v917
        %v919 = vpop.f32.mrb[0].mxu0
        %v920 = vadd.f32 0.0, %v919
        %v921 = vpop.f32.mrb[0].mxu0
        %v922 = vadd.f32 0.0, %v921
        %v923 = vpop.f32.mrb[0].mxu0
        %v924 = vadd.f32 0.0, %v923
        %925 = vdwg.mxu0
        %926 = vmatprep.subr.bf16.mxu0 %v820
        %927 = vmatpush1.bf16.msra.mxu0 %v819
        %928 = vmatprep.subr.bf16.mxu0 %v822
        %929 = vmatpush1.bf16.msra.mxu0 %v821
        %930 = vmatprep.subr.bf16.mxu0 %v824
        %931 = vmatpush1.bf16.msra.mxu0 %v823
        %932 = vmatprep.subr.bf16.mxu0 %v826
        %933 = vmatpush1.bf16.msra.mxu0 %v825
        %934 = vmatprep.subr.bf16.mxu0 %v828
        %935 = vmatpush1.bf16.msra.mxu0 %v827
        %936 = vmatprep.subr.bf16.mxu0 %v830
        %937 = vmatpush1.bf16.msra.mxu0 %v829
        %938 = vmatprep.subr.bf16.mxu0 %v832
        %939 = vmatpush1.bf16.msra.mxu0 %v831
        %940 = vmatprep.subr.bf16.mxu0 %v834
        %941 = vmatpush1.bf16.msra.mxu0 %v833
        %942 = vmatprep.subr.bf16.mxu0 0
        %943 = vmatpush1.bf16.msra.mxu0 0
        %944 = vmatprep.subr.bf16.mxu0 0
        %945 = vmatpush1.bf16.msra.mxu0 0
        %946 = vmatprep.subr.bf16.mxu0 0
        %947 = vmatpush1.bf16.msra.mxu0 0
        %948 = vmatprep.subr.bf16.mxu0 0
        %949 = vmatpush1.bf16.msra.mxu0 0
        %950 = vmatprep.subr.bf16.mxu0 0
        %951 = vmatpush1.bf16.msra.mxu0 0
        %952 = vmatprep.subr.bf16.mxu0 0
        %953 = vmatpush1.bf16.msra.mxu0 0
        %954 = vmatprep.subr.bf16.mxu0 0
        %955 = vmatpush1.bf16.msra.mxu0 0
        %956 = vmatprep.subr.bf16.mxu0 0
        %957 = vmatpush1.bf16.msra.mxu0 0
        %958 = vmatprep.mubr.bf16.mxu0 0
        %959 = vmatmul.mubr.bf16.gmra.mrb[0].mxu0 %v639
        %v960 = vpop.f32.mrb[0].mxu0
        %v961 = vadd.f32 %v918, %v960
        %v962 = vpop.f32.mrb[0].mxu0
        %v963 = vadd.f32 %v920, %v962
        %v964 = vpop.f32.mrb[0].mxu0
        %v965 = vadd.f32 %v922, %v964
        %v966 = vpop.f32.mrb[0].mxu0
        %v967 = vadd.f32 %v924, %v966
        %968 = vdwg.mxu0
        %v973 = vunpack.c.l.b16 %v523
        %v974 = vunpack.c.h.b16 %v523
        %v975 = vunpack.c.l.b16 %v524
        %v976 = vunpack.c.l.b16 %v525
        %v977 = vunpack.c.h.b16 %v525
        %v978 = vunpack.c.l.b16 %v526
        %v979 = vpack.c.b16 %v976, %v973
        %v980 = vpack.c.b16 %v977, %v974
        %v981 = vpack.c.b16 %v978, %v975
        %v1033 = vunpack.c.l.b16 %v527
        %v1034 = vunpack.c.h.b16 %v527
        %v1035 = vunpack.c.l.b16 %v528
        %v1036 = vunpack.c.h.b16 %v528
        %v1037 = vunpack.c.l.b16 %v529
        %v1038 = vunpack.c.h.b16 %v529
        %v1039 = vunpack.c.l.b16 %v530
        %v1040 = vunpack.c.h.b16 %v530
        %v1041 = vunpack.c.l.b16 %v531
        %v1042 = vunpack.c.h.b16 %v531
        %v1043 = vunpack.c.l.b16 %v532
        %v1044 = vunpack.c.h.b16 %v532
        %v1045 = vunpack.c.l.b16 %v533
        %v1046 = vunpack.c.h.b16 %v533
        %v1047 = vunpack.c.l.b16 %v534
        %v1048 = vunpack.c.h.b16 %v534
        %v1049 = vunpack.c.l.b16 %v535
        %v1050 = vunpack.c.h.b16 %v535
        %v1051 = vunpack.c.l.b16 %v536
        %v1052 = vunpack.c.h.b16 %v536
        %v1053 = vunpack.c.l.b16 %v537
        %v1054 = vunpack.c.h.b16 %v537
        %v1055 = vunpack.c.l.b16 %v538
        %v1056 = vunpack.c.h.b16 %v538
        %v1057 = vunpack.c.l.b16 %v539
        %v1058 = vunpack.c.h.b16 %v539
        %v1059 = vunpack.c.l.b16 %v540
        %v1060 = vunpack.c.h.b16 %v540
        %v1061 = vunpack.c.l.b16 %v541
        %v1062 = vunpack.c.h.b16 %v541
        %v1063 = vunpack.c.l.b16 %v542
        %v1064 = vunpack.c.h.b16 %v542
        %v1065 = vunpack.c.l.b16 %v543
        %v1066 = vunpack.c.h.b16 %v543
        %v1067 = vunpack.c.l.b16 %v544
        %v1068 = vunpack.c.h.b16 %v544
        %v1069 = vunpack.c.l.b16 %v545
        %v1070 = vunpack.c.h.b16 %v545
        %v1071 = vunpack.c.l.b16 %v546
        %v1072 = vunpack.c.h.b16 %v546
        %v1073 = vunpack.c.l.b16 %v547
        %v1074 = vunpack.c.h.b16 %v547
        %v1075 = vunpack.c.l.b16 %v548
        %v1076 = vunpack.c.h.b16 %v548
        %v1077 = vunpack.c.l.b16 %v549
        %v1078 = vunpack.c.h.b16 %v549
        %v1079 = vunpack.c.l.b16 %v550
        %v1080 = vunpack.c.h.b16 %v550
        %v1081 = vunpack.c.l.b16 %v551
        %v1082 = vunpack.c.h.b16 %v551
        %v1083 = vunpack.c.l.b16 %v552
        %v1084 = vunpack.c.h.b16 %v552
        %v1085 = vunpack.c.l.b16 %v553
        %v1086 = vunpack.c.h.b16 %v553
        %v1087 = vunpack.c.l.b16 %v554
        %v1088 = vunpack.c.h.b16 %v554
        %v1089 = vunpack.c.l.b16 %v555
        %v1090 = vunpack.c.h.b16 %v555
        %v1091 = vunpack.c.l.b16 %v556
        %v1092 = vunpack.c.h.b16 %v556
        %v1093 = vunpack.c.l.b16 %v557
        %v1094 = vunpack.c.h.b16 %v557
        %v1095 = vunpack.c.l.b16 %v558
        %v1096 = vunpack.c.h.b16 %v558
        %v1097 = vunpack.c.l.b16 %v559
        %v1098 = vunpack.c.h.b16 %v559
        %v1099 = vunpack.c.l.b16 %v560
        %v1100 = vunpack.c.h.b16 %v560
        %v1101 = vunpack.c.l.b16 %v561
        %v1102 = vunpack.c.h.b16 %v561
        %v1103 = vunpack.c.l.b16 %v562
        %v1104 = vunpack.c.h.b16 %v562
        %v1105 = vunpack.c.l.b16 %v563
        %v1106 = vunpack.c.h.b16 %v563
        %v1107 = vunpack.c.l.b16 %v564
        %v1108 = vunpack.c.h.b16 %v564
        %v1109 = vunpack.c.l.b16 %v565
        %v1110 = vunpack.c.h.b16 %v565
        %v1111 = vunpack.c.l.b16 %v566
        %v1112 = vunpack.c.h.b16 %v566
        %v1113 = vunpack.c.l.b16 %v567
        %v1114 = vunpack.c.h.b16 %v567
        %v1115 = vunpack.c.l.b16 %v568
        %v1116 = vunpack.c.h.b16 %v568
        %v1117 = vunpack.c.l.b16 %v569
        %v1118 = vunpack.c.h.b16 %v569
        %v1119 = vunpack.c.l.b16 %v570
        %v1120 = vunpack.c.h.b16 %v570
        %v1121 = vunpack.c.l.b16 %v571
        %v1122 = vunpack.c.h.b16 %v571
        %v1123 = vunpack.c.l.b16 %v572
        %v1124 = vunpack.c.h.b16 %v572
        %v1125 = vunpack.c.l.b16 %v573
        %v1126 = vunpack.c.h.b16 %v573
        %v1127 = vunpack.c.l.b16 %v574
        %v1128 = vunpack.c.h.b16 %v574
        %v1129 = vpack.c.b16 %v1035, %v1033
        %v1130 = vpack.c.b16 %v1036, %v1034
        %v1131 = vpack.c.b16 %v1039, %v1037
        %v1132 = vpack.c.b16 %v1040, %v1038
        %v1133 = vpack.c.b16 %v1043, %v1041
        %v1134 = vpack.c.b16 %v1044, %v1042
        %v1135 = vpack.c.b16 %v1047, %v1045
        %v1136 = vpack.c.b16 %v1048, %v1046
        %v1137 = vpack.c.b16 %v1051, %v1049
        %v1138 = vpack.c.b16 %v1052, %v1050
        %v1139 = vpack.c.b16 %v1055, %v1053
        %v1140 = vpack.c.b16 %v1056, %v1054
        %v1141 = vpack.c.b16 %v1059, %v1057
        %v1142 = vpack.c.b16 %v1060, %v1058
        %v1143 = vpack.c.b16 %v1063, %v1061
        %v1144 = vpack.c.b16 %v1064, %v1062
        %v1145 = vpack.c.b16 %v1067, %v1065
        %v1146 = vpack.c.b16 %v1068, %v1066
        %v1147 = vpack.c.b16 %v1071, %v1069
        %v1148 = vpack.c.b16 %v1072, %v1070
        %v1149 = vpack.c.b16 %v1075, %v1073
        %v1150 = vpack.c.b16 %v1076, %v1074
        %v1151 = vpack.c.b16 %v1079, %v1077
        %v1152 = vpack.c.b16 %v1080, %v1078
        %v1153 = vpack.c.b16 %v1083, %v1081
        %v1154 = vpack.c.b16 %v1084, %v1082
        %v1155 = vpack.c.b16 %v1087, %v1085
        %v1156 = vpack.c.b16 %v1088, %v1086
        %v1157 = vpack.c.b16 %v1091, %v1089
        %v1158 = vpack.c.b16 %v1092, %v1090
        %v1159 = vpack.c.b16 %v1095, %v1093
        %v1160 = vpack.c.b16 %v1096, %v1094
        %v1161 = vpack.c.b16 %v1099, %v1097
        %v1162 = vpack.c.b16 %v1100, %v1098
        %v1163 = vpack.c.b16 %v1103, %v1101
        %v1164 = vpack.c.b16 %v1104, %v1102
        %v1165 = vpack.c.b16 %v1107, %v1105
        %v1166 = vpack.c.b16 %v1108, %v1106
        %v1167 = vpack.c.b16 %v1111, %v1109
        %v1168 = vpack.c.b16 %v1112, %v1110
        %v1169 = vpack.c.b16 %v1115, %v1113
        %v1170 = vpack.c.b16 %v1116, %v1114
        %v1171 = vpack.c.b16 %v1119, %v1117
        %v1172 = vpack.c.b16 %v1120, %v1118
        %v1173 = vpack.c.b16 %v1123, %v1121
        %v1174 = vpack.c.b16 %v1124, %v1122
        %v1175 = vpack.c.b16 %v1127, %v1125
        %v1176 = vpack.c.b16 %v1128, %v1126
        %1225 = vmatprep.subr.bf16.mxu0 %v1130
        %1226 = vmatpush1.bf16.msra.mxu0 %v1129
        %1227 = vmatprep.subr.bf16.mxu0 %v1132
        %1228 = vmatpush1.bf16.msra.mxu0 %v1131
        %1229 = vmatprep.subr.bf16.mxu0 %v1134
        %1230 = vmatpush1.bf16.msra.mxu0 %v1133
        %1231 = vmatprep.subr.bf16.mxu0 %v1136
        %1232 = vmatpush1.bf16.msra.mxu0 %v1135
        %1233 = vmatprep.subr.bf16.mxu0 %v1138
        %1234 = vmatpush1.bf16.msra.mxu0 %v1137
        %1235 = vmatprep.subr.bf16.mxu0 %v1140
        %1236 = vmatpush1.bf16.msra.mxu0 %v1139
        %1237 = vmatprep.subr.bf16.mxu0 %v1142
        %1238 = vmatpush1.bf16.msra.mxu0 %v1141
        %1239 = vmatprep.subr.bf16.mxu0 %v1144
        %1240 = vmatpush1.bf16.msra.mxu0 %v1143
        %1241 = vmatprep.subr.bf16.mxu0 %v1146
        %1242 = vmatpush1.bf16.msra.mxu0 %v1145
        %1243 = vmatprep.subr.bf16.mxu0 %v1148
        %1244 = vmatpush1.bf16.msra.mxu0 %v1147
        %1245 = vmatprep.subr.bf16.mxu0 %v1150
        %1246 = vmatpush1.bf16.msra.mxu0 %v1149
        %1247 = vmatprep.subr.bf16.mxu0 %v1152
        %1248 = vmatpush1.bf16.msra.mxu0 %v1151
        %1249 = vmatprep.subr.bf16.mxu0 %v1154
        %1250 = vmatpush1.bf16.msra.mxu0 %v1153
        %1251 = vmatprep.subr.bf16.mxu0 %v1156
        %1252 = vmatpush1.bf16.msra.mxu0 %v1155
        %1253 = vmatprep.subr.bf16.mxu0 %v1158
        %1254 = vmatpush1.bf16.msra.mxu0 %v1157
        %1255 = vmatprep.subr.bf16.mxu0 %v1160
        %1256 = vmatpush1.bf16.msra.mxu0 %v1159
        %1257 = vmatprep.mubr.bf16.mxu0 %v980
        %1258 = vmatmul.mubr.bf16.gmra.mrb[0].mxu0 %v979
        %v1259 = vpop.f32.mrb[0].mxu0
        %v1260 = vadd.f32 %v961, %v1259
        %v1261 = vpop.f32.mrb[0].mxu0
        %v1262 = vadd.f32 %v963, %v1261
        %v1263 = vpop.f32.mrb[0].mxu0
        %v1264 = vadd.f32 %v965, %v1263
        %v1265 = vpop.f32.mrb[0].mxu0
        %v1266 = vadd.f32 %v967, %v1265
        %1267 = vdwg.mxu0
        %1268 = vmatprep.subr.bf16.mxu0 %v1162
        %1269 = vmatpush1.bf16.msra.mxu0 %v1161
        %1270 = vmatprep.subr.bf16.mxu0 %v1164
        %1271 = vmatpush1.bf16.msra.mxu0 %v1163
        %1272 = vmatprep.subr.bf16.mxu0 %v1166
        %1273 = vmatpush1.bf16.msra.mxu0 %v1165
        %1274 = vmatprep.subr.bf16.mxu0 %v1168
        %1275 = vmatpush1.bf16.msra.mxu0 %v1167
        %1276 = vmatprep.subr.bf16.mxu0 %v1170
        %1277 = vmatpush1.bf16.msra.mxu0 %v1169
        %1278 = vmatprep.subr.bf16.mxu0 %v1172
        %1279 = vmatpush1.bf16.msra.mxu0 %v1171
        %1280 = vmatprep.subr.bf16.mxu0 %v1174
        %1281 = vmatpush1.bf16.msra.mxu0 %v1173
        %1282 = vmatprep.subr.bf16.mxu0 %v1176
        %1283 = vmatpush1.bf16.msra.mxu0 %v1175
        %1284 = vmatprep.subr.bf16.mxu0 0
        %1285 = vmatpush1.bf16.msra.mxu0 0
        %1286 = vmatprep.subr.bf16.mxu0 0
        %1287 = vmatpush1.bf16.msra.mxu0 0
        %1288 = vmatprep.subr.bf16.mxu0 0
        %1289 = vmatpush1.bf16.msra.mxu0 0
        %1290 = vmatprep.subr.bf16.mxu0 0
        %1291 = vmatpush1.bf16.msra.mxu0 0
        %1292 = vmatprep.subr.bf16.mxu0 0
        %1293 = vmatpush1.bf16.msra.mxu0 0
        %1294 = vmatprep.subr.bf16.mxu0 0
        %1295 = vmatpush1.bf16.msra.mxu0 0
        %1296 = vmatprep.subr.bf16.mxu0 0
        %1297 = vmatpush1.bf16.msra.mxu0 0
        %1298 = vmatprep.subr.bf16.mxu0 0
        %1299 = vmatpush1.bf16.msra.mxu0 0
        %1300 = vmatprep.mubr.bf16.mxu0 0
        %1301 = vmatmul.mubr.bf16.gmra.mrb[0].mxu0 %v981
        %v1302 = vpop.f32.mrb[0].mxu0
        %v1303 = vadd.f32 %v1260, %v1302
        %v1304 = vpop.f32.mrb[0].mxu0
        %v1305 = vadd.f32 %v1262, %v1304
        %v1306 = vpop.f32.mrb[0].mxu0
        %v1307 = vadd.f32 %v1264, %v1306
        %v1308 = vpop.f32.mrb[0].mxu0
        %v1309 = vadd.f32 %v1266, %v1308
        %1310 = vdwg.mxu0
        %v1311 = vld [vmem:[#allocation2] sm:$0xff]
        %v1312 = vld [vmem:[#allocation2 + $0x8] sm:$0xff]
        %v1313 = vld [vmem:[#allocation2 + $0x10] sm:$0xff]
        %v1314 = vld [vmem:[#allocation2 + $0x18] sm:$0xff]
        %v1315 = vadd.f32 %v1311, %v1303
        %v1316 = vadd.f32 %v1312, %v1305
        %v1317 = vadd.f32 %v1313, %v1307
        %v1318 = vadd.f32 %v1314, %v1309
        %1319 = vst [vmem:[#allocation2] sm:$0xff] %v1315
        %1320 = vst [vmem:[#allocation2 + $0x8] sm:$0xff] %v1316
        %1321 = vst [vmem:[#allocation2 + $0x10] sm:$0xff] %v1317
        %1322 = vst [vmem:[#allocation2 + $0x18] sm:$0xff] %v1318
        %p1323 = scmp.eq.s32.totalorder %s25, 2
        // Predicated region
        $region97: #{denoising_genius_forward.25} parent=83 // pred_check
          %p1324 = pneg %p1323
        $region98: #{denoising_genius_forward.25} parent=83 // pred_check_branch
          %1326 = sbr.rel (%p1324) target = $region100
        $region99: #{denoising_genius_forward.25} parent=83 // pred_region
          %v1327 = vld [vmem:[#allocation2] sm:$0xff]
          %v1328 = vld [vmem:[#allocation2 + $0x8] sm:$0xff]
          %v1329 = vld [vmem:[#allocation2 + $0x10] sm:$0xff]
          %v1330 = vld [vmem:[#allocation2 + $0x18] sm:$0xff]
          %v1331 = vld [vmem:[%s490] sm:$0x3]
          %v1333 = vlaneseq
          %v1334 = vshrl.u32 %v1333, 7
          %v1335 = vsub.s32 0, %v1334
          %v1336 = vrot.slane %v1331, %v1335
          %v1337 = vlaneseq
          %v1338 = vshrl.u32 %v1337, 7
          %v1339 = vsub.s32 1, %v1338
          %v1340 = vrot.slane %v1331, %v1339
          %v1343 = vadd.f32 %v1327, %v1336
          %v1344 = vadd.f32 %v1328, %v1340
          %v1345 = vadd.f32 %v1329, %v1336
          %v1346 = vadd.f32 %v1330, %v1340
          %v1347 = vpack.c.bf16 %v1345, %v1343
          %v1348 = vpack.c.bf16 %v1346, %v1344
          %v1351 = vunpack.c.l.b16 %v1347
          %v1352 = vunpack.c.l.b16 %v1348
          %v1353 = vunpack.c.h.b16 %v1347
          %v1354 = vunpack.c.h.b16 %v1348
          %v1355 = vpack.c.b16 %v1352, %v1351
          %v1356 = vpack.c.b16 %v1354, %v1353
          %1359 = vst [vmem:[%s501] sm:$0xff] %v1355
          %1360 = vst [vmem:[%s501 + $0x8] sm:$0xff] %v1356
          %v1361 = vadd.f32 %v1327, %v1329
          %v1362 = vrot.slane %v1361, 4
          %v1363 = vadd.f32 %v1361, %v1362
          %v1364 = vrot.slane %v1363, 2
          %v1365 = vadd.f32 %v1363, %v1364
          %v1366 = vrot.slane %v1365, 1
          %v1367 = vadd.f32 %v1365, %v1366
          %v1368 = vadd.f32 %v1328, %v1330
          %v1369 = vrot.slane %v1368, 4
          %v1370 = vadd.f32 %v1368, %v1369
          %v1371 = vrot.slane %v1370, 2
          %v1372 = vadd.f32 %v1370, %v1371
          %v1373 = vrot.slane %v1372, 1
          %v1374 = vadd.f32 %v1372, %v1373
          %v1375 = vmul.f32 %v1327, %v1327
          %v1376 = vmul.f32 %v1328, %v1328
          %v1377 = vmul.f32 %v1329, %v1329
          %v1378 = vmul.f32 %v1330, %v1330
          %v1379 = vadd.f32 %v1375, %v1377
          %v1380 = vrot.slane %v1379, 4
          %v1381 = vadd.f32 %v1379, %v1380
          %v1382 = vrot.slane %v1381, 2
          %v1383 = vadd.f32 %v1381, %v1382
          %v1384 = vrot.slane %v1383, 1
          %v1385 = vadd.f32 %v1383, %v1384
          %v1386 = vadd.f32 %v1376, %v1378
          %v1387 = vrot.slane %v1386, 4
          %v1388 = vadd.f32 %v1386, %v1387
          %v1389 = vrot.slane %v1388, 2
          %v1390 = vadd.f32 %v1388, %v1389
          %v1391 = vrot.slane %v1390, 1
          %v1392 = vadd.f32 %v1390, %v1391
          %v1393 = vlaneseq
          %v1394 = vshrl.u32 %v1393, 7
          %vm1395 = vcmp.eq.s32.totalorder %v1394, 0
          %vm1396 = vcmp.eq.s32.totalorder %v1394, 1
          %v1397 = vsel %vm1396, %v1385, 0.0
          %v1398 = vsel %vm1396, %v1392, 0.0
          %v1399 = vsel %vm1395, %v1367, %v1397
          %v1400 = vsel %vm1395, %v1374, %v1398
          %1401 = vst [vmem:[%s512] sm:$0xff] %v1399
          %1402 = vst [vmem:[%s512 + $0x8] sm:$0xff] %v1400
        $region100: #{denoising_genius_forward.25} parent=83 // pred_fallthru
          _
        %s1403 = smul.u32 2, %s23
        %s1404 = smul.u32 2, %s24
        %p1405 = scmp.lt.s32.totalorder %s1403, 1
        %s1406 = scalar_select %p1405, %s1403, 1
        %p1407 = scmp.lt.s32.totalorder %s1404, 1
        %s1408 = scalar_select %p1407, %s1404, 1
        %s1409 = smul.addr %s1406, 2
        %s1410 = sadd.s32 %s1408, %s1409
        %s1411 = smul.addr %s1410, 4
        %s1412 = scalar_lea.vmem %s5, %s1411
        %s1413 = smul.u32 2, %s24
        %p1414 = scmp.lt.s32.totalorder %s23, 0
        %s1415 = scalar_select %p1414, %s23, 0
        %p1416 = scmp.lt.s32.totalorder %s1413, 1
        %s1417 = scalar_select %p1416, %s1413, 1
        %s1418 = smul.addr %s1415, 2
        %s1419 = sadd.s32 %s1417, %s1418
        %s1420 = smul.addr %s1419, 8
        %s1421 = scalar_lea.vmem %s6, %s1420
        // Predicated region
        $region101: #{denoising_genius_forward.25} parent=83 // pred_check
          %p1422 = pneg %p195
        $region102: #{denoising_genius_forward.25} parent=83 // pred_check_branch
          %1424 = sbr.rel (%p1422) target = $region104
        $region103: #{denoising_genius_forward.25} parent=83 // pred_region
          %s1425 = smul.u32 2, %s23
          %s1426 = smul.u32 2, %s24
        $region104: #{denoising_genius_forward.25} parent=83 // pred_fallthru
          _
        // Predicated region
        $region105: #{denoising_genius_forward.25} parent=83 // pred_check
          %p1427 = pneg %p223
        $region106: #{denoising_genius_forward.25} parent=83 // pred_check_branch
          %1429 = sbr.rel (%p1427) target = $region108
        $region107: #{denoising_genius_forward.25} parent=83 // pred_region
          %s1430 = smul.u32 2, %s24
        $region108: #{denoising_genius_forward.25} parent=83 // pred_fallthru
          _
        // Predicated region
        $region109: #{denoising_genius_forward.25} parent=83 // pred_check
          %p1431 = pneg %p195
        $region110: #{denoising_genius_forward.25} parent=83 // pred_check_branch
          %1433 = sbr.rel (%p1431) target = $region112
        $region111: #{denoising_genius_forward.25} parent=83 // pred_region
          %s1434 = smul.u32 2, %s23
          %s1435 = smul.u32 2, %s24
          %p1436 = scmp.lt.s32.totalorder %s1434, 1
          %s1437 = scalar_select %p1436, %s1434, 1
          %p1438 = scmp.lt.s32.totalorder %s1435, 1
          %s1439 = scalar_select %p1438, %s1435, 1
          %s1440 = smul.addr %s1437, 2
          %s1441 = sadd.s32 %s1439, %s1440
          %s1442 = smul.addr %s1441, 4
          %s1443 = scalar_lea.vmem %s5, %s1442
        $region112: #{denoising_genius_forward.25} parent=83 // pred_fallthru
          _
        // Predicated region
        $region113: #{denoising_genius_forward.25} parent=83 // pred_check
          %p1444 = pneg %p223
        $region114: #{denoising_genius_forward.25} parent=83 // pred_check_branch
          %1446 = sbr.rel (%p1444) target = $region116
        $region115: #{denoising_genius_forward.25} parent=83 // pred_region
          %s1447 = smul.u32 2, %s24
          %p1448 = scmp.lt.s32.totalorder %s23, 0
          %s1449 = scalar_select %p1448, %s23, 0
          %p1450 = scmp.lt.s32.totalorder %s1447, 1
          %s1451 = scalar_select %p1450, %s1447, 1
          %s1452 = smul.addr %s1449, 2
          %s1453 = sadd.s32 %s1451, %s1452
          %s1454 = smul.addr %s1453, 8
          %s1455 = scalar_lea.vmem %s6, %s1454
        $region116: #{denoising_genius_forward.25} parent=83 // pred_fallthru
          _
      $region84: #{denoising_genius_forward.25} parent=5 // pred_fallthru
        _
      %p1456 = scmp.le.s32.totalorder 2, %s13
      // Predicated region
      $region117: #{denoising_genius_forward.25} parent=5 // pred_check
        %p1457 = pneg %p1456
      $region118: #{denoising_genius_forward.25} parent=5 // pred_check_branch
        %1459 = sbr.rel (%p1457) target = $region120
      $region119: #{denoising_genius_forward.25} parent=5 // pred_region
        %s1460 = ssub.s32 %s13, 2
      $region120: #{denoising_genius_forward.25} parent=5 // pred_fallthru
        _
    $region6: #{denoising_genius_forward.25} parent=1 // loop_footer
      %s17 = sadd.s32 1, %s13
    $region7: #{denoising_genius_forward.25} parent=1 // loop_footer_branch
      %12 = sbr.rel target = $region3
    $region8: #{denoising_genius_forward.25} parent=1 // loop_exit
      _

// kernel: denoising_genius_forward.27
$region0: #{denoising_genius_forward.27}
  #allocation0 [shape = 'u32[]', space=smem, size = 0x4, offset = 0x4, fixed_abs, tag = 'smem constant byte address 0x4 - core index']
  #allocation1 [shape = 'u32[144,128]{1,0:T(1,128)}', space=vmem, size = 0x12000, scoped, tag = 'internal scratch']
  #allocation2 [shape = 'f32[32,128]{1,0:T(8,128)}', space=vmem, size = 0x4000, scoped, tag = 'scratch operand']
  %s0 = inlined_call_operand.vmem [shape: bf16[32,768], index: 0, kind: input, shape index: {}]
  %s1 = inlined_call_operand.vmem [shape: bf16[32,768], index: 1, kind: input, shape index: {}]
  %s2 = inlined_call_operand.vmem [shape: bf16[768,128], index: 2, kind: input, shape index: {}]
  %s3 = inlined_call_operand.vmem [shape: bf16[768,128], index: 3, kind: input, shape index: {}]
  %s4 = inlined_call_operand.vmem [shape: f32[1,128], index: 4, kind: input, shape index: {}]
  %s5 = inlined_call_operand.vmem [shape: bf16[32,128], index: 5, kind: output, shape index: {0}]
  %s6 = inlined_call_operand.vmem [shape: f32[1,8,128], index: 6, kind: output, shape index: {1}]
  %7 = xla_tuple %s5, %s6
  %s8 = sld [smem:[#allocation0]]
  $region121: #{denoising_genius_forward.27} parent=0
    _
  %s10 = ssub.s32 1, %s8
  %s11 = scalar_select 0, %s10, %s8
  $region1: #{denoising_genius_forward.27} parent=0
    #allocation3 [shape = 'u8[49152]{0}', space=vmem, size = 0xc000, scoped, tag = 'input window, operand 0']
    #allocation4 [shape = 'u8[49152]{0}', space=vmem, size = 0xc000, scoped, tag = 'input window, operand 1']
    loop: start=0, step=1, limit=4
    $region2: #{denoising_genius_forward.27} parent=1 // loop_pre_header
      _
    $region3: #{denoising_genius_forward.27} parent=1 // loop_header
      %s13 = sphi 0, %s17
      %p14 = scmp.ge.s32.totalorder %s13, 4
      %s20 = sphi 0, %s39
      %s21 = sphi 0, %s35
      %s22 = sphi 0, %s31
      %s23 = sphi 0, %s20
      %s24 = sphi 0, %s21
      %s25 = sphi 0, %s22
      %s26 = sphi 0, %s23
      %s27 = sphi 0, %s24
      %s28 = sphi 0, %s25
      %s44 = sphi 0, %s46
      %s47 = sphi 0, %s44
      %s48 = sphi 0, %s47
      %s64 = sphi 0, %s48
      %s72 = sphi 0, %s74
      %s75 = sphi 0, %s72
      %s76 = sphi 0, %s75
      %s92 = sphi 0, %s76
      %s100 = sphi 0, %s102
      %s103 = sphi 0, %s100
      %s104 = sphi 0, %s103
      %s120 = sphi 0, %s104
      %s128 = sphi 0, %s130
      %s131 = sphi 0, %s128
      %s132 = sphi 0, %s131
      %s148 = sphi 0, %s132
      %s154 = sphi 0, %s156
      %s157 = sphi 0, %s154
      %s158 = sphi 0, %s157
      %s174 = sphi 0, %s158
      %s182 = sphi 0, %s184
      %s185 = sphi 0, %s182
      %s186 = sphi 0, %s185
      %s202 = sphi 0, %s186
      %s210 = sphi 0, %s212
      %s213 = sphi 0, %s210
      %s214 = sphi 0, %s213
      %s230 = sphi 0, %s214
    $region4: #{denoising_genius_forward.27} parent=1 // loop_header_branch
      %16 = sbr.rel (%p14) target = $region8
    $region5: #{denoising_genius_forward.27} parent=1 // loop_body
      %s18 = ssub.s32 %s13, 1
      %s19 = ssub.s32 %s13, 2
      %s29 = sadd.s32 1, %s22
      %p30 = scmp.ge.s32.totalorder %s29, 2
      %s31 = scalar_select %p30, 0, %s29
      %s32 = sadd.s32 1, %s21
      %s33 = scalar_select %p30, %s32, %s21
      %p34 = scmp.ge.s32.totalorder %s33, 1
      %s35 = scalar_select %p34, 0, %s33
      %s36 = sadd.s32 1, %s20
      %s37 = scalar_select %p34, %s36, %s20
      %p38 = scmp.ge.s32.totalorder %s37, 1
      %s39 = scalar_select %p38, 0, %s37
      %s40 = ssub.s32 %s20, %s39
      %s41 = ssub.s32 %s22, %s31
      %s42 = sor.u32 %s40, %s41
      %p43 = scmp.eq.s32.totalorder %s42, 0
      %s45 = sadd.s32 %s44, 1
      %s46 = scalar_select %p43, %s44, %s45
      %p49 = pneg %p43
      %p50 = scmp.eq.s32.totalorder %s13, 1
      %p51 = por %p49, %p50
      %p52 = scmp.ne.s32.totalorder %s44, %s47
      %p53 = scmp.eq.s32.totalorder %s13, 0
      %p54 = por %p52, %p53
      %p55 = scmp.ne.s32.totalorder %s44, %s47
      %p56 = scmp.eq.s32.totalorder %s18, 1
      %p57 = por %p55, %p56
      %p58 = scmp.ne.s32.totalorder %s47, %s48
      %p59 = scmp.eq.s32.totalorder %s18, 0
      %p60 = por %p58, %p59
      %p61 = scmp.ne.s32.totalorder %s47, %s48
      %p62 = scmp.eq.s32.totalorder %s19, 1
      %p63 = por %p61, %p62
      %p65 = scmp.ne.s32.totalorder %s48, %s64
      %p66 = scmp.eq.s32.totalorder %s19, 0
      %p67 = por %p65, %p66
      %s68 = ssub.s32 %s20, %s39
      %s69 = ssub.s32 %s22, %s31
      %s70 = sor.u32 %s68, %s69
      %p71 = scmp.eq.s32.totalorder %s70, 0
      %s73 = sadd.s32 %s72, 1
      %s74 = scalar_select %p71, %s72, %s73
      %p77 = pneg %p71
      %p78 = scmp.eq.s32.totalorder %s13, 1
      %p79 = por %p77, %p78
      %p80 = scmp.ne.s32.totalorder %s72, %s75
      %p81 = scmp.eq.s32.totalorder %s13, 0
      %p82 = por %p80, %p81
      %p83 = scmp.ne.s32.totalorder %s72, %s75
      %p84 = scmp.eq.s32.totalorder %s18, 1
      %p85 = por %p83, %p84
      %p86 = scmp.ne.s32.totalorder %s75, %s76
      %p87 = scmp.eq.s32.totalorder %s18, 0
      %p88 = por %p86, %p87
      %p89 = scmp.ne.s32.totalorder %s75, %s76
      %p90 = scmp.eq.s32.totalorder %s19, 1
      %p91 = por %p89, %p90
      %p93 = scmp.ne.s32.totalorder %s76, %s92
      %p94 = scmp.eq.s32.totalorder %s19, 0
      %p95 = por %p93, %p94
      %s96 = ssub.s32 %s22, %s31
      %s97 = ssub.s32 %s21, %s35
      %s98 = sor.u32 %s96, %s97
      %p99 = scmp.eq.s32.totalorder %s98, 0
      %s101 = sadd.s32 %s100, 1
      %s102 = scalar_select %p99, %s100, %s101
      %p105 = pneg %p99
      %p106 = scmp.eq.s32.totalorder %s13, 1
      %p107 = por %p105, %p106
      %p108 = scmp.ne.s32.totalorder %s100, %s103
      %p109 = scmp.eq.s32.totalorder %s13, 0
      %p110 = por %p108, %p109
      %p111 = scmp.ne.s32.totalorder %s100, %s103
      %p112 = scmp.eq.s32.totalorder %s18, 1
      %p113 = por %p111, %p112
      %p114 = scmp.ne.s32.totalorder %s103, %s104
      %p115 = scmp.eq.s32.totalorder %s18, 0
      %p116 = por %p114, %p115
      %p117 = scmp.ne.s32.totalorder %s103, %s104
      %p118 = scmp.eq.s32.totalorder %s19, 1
      %p119 = por %p117, %p118
      %p121 = scmp.ne.s32.totalorder %s104, %s120
      %p122 = scmp.eq.s32.totalorder %s19, 0
      %p123 = por %p121, %p122
      %s124 = ssub.s32 %s22, %s31
      %s125 = ssub.s32 %s21, %s35
      %s126 = sor.u32 %s124, %s125
      %p127 = scmp.eq.s32.totalorder %s126, 0
      %s129 = sadd.s32 %s128, 1
      %s130 = scalar_select %p127, %s128, %s129
      %p133 = pneg %p127
      %p134 = scmp.eq.s32.totalorder %s13, 1
      %p135 = por %p133, %p134
      %p136 = scmp.ne.s32.totalorder %s128, %s131
      %p137 = scmp.eq.s32.totalorder %s13, 0
      %p138 = por %p136, %p137
      %p139 = scmp.ne.s32.totalorder %s128, %s131
      %p140 = scmp.eq.s32.totalorder %s18, 1
      %p141 = por %p139, %p140
      %p142 = scmp.ne.s32.totalorder %s131, %s132
      %p143 = scmp.eq.s32.totalorder %s18, 0
      %p144 = por %p142, %p143
      %p145 = scmp.ne.s32.totalorder %s131, %s132
      %p146 = scmp.eq.s32.totalorder %s19, 1
      %p147 = por %p145, %p146
      %p149 = scmp.ne.s32.totalorder %s132, %s148
      %p150 = scmp.eq.s32.totalorder %s19, 0
      %p151 = por %p149, %p150
      %s152 = ssub.s32 %s21, %s35
      %p153 = scmp.eq.s32.totalorder %s152, 0
      %s155 = sadd.s32 %s154, 1
      %s156 = scalar_select %p153, %s154, %s155
      %p159 = pneg %p153
      %p160 = scmp.eq.s32.totalorder %s13, 1
      %p161 = por %p159, %p160
      %p162 = scmp.ne.s32.totalorder %s154, %s157
      %p163 = scmp.eq.s32.totalorder %s13, 0
      %p164 = por %p162, %p163
      %p165 = scmp.ne.s32.totalorder %s154, %s157
      %p166 = scmp.eq.s32.totalorder %s18, 1
      %p167 = por %p165, %p166
      %p168 = scmp.ne.s32.totalorder %s157, %s158
      %p169 = scmp.eq.s32.totalorder %s18, 0
      %p170 = por %p168, %p169
      %p171 = scmp.ne.s32.totalorder %s157, %s158
      %p172 = scmp.eq.s32.totalorder %s19, 1
      %p173 = por %p171, %p172
      %p175 = scmp.ne.s32.totalorder %s158, %s174
      %p176 = scmp.eq.s32.totalorder %s19, 0
      %p177 = por %p175, %p176
      %s178 = ssub.s32 %s20, %s39
      %s179 = ssub.s32 %s21, %s35
      %s180 = sor.u32 %s178, %s179
      %p181 = scmp.eq.s32.totalorder %s180, 0
      %s183 = sadd.s32 %s182, 1
      %s184 = scalar_select %p181, %s182, %s183
      %p187 = pneg %p181
      %p188 = scmp.eq.s32.totalorder %s13, 1
      %p189 = por %p187, %p188
      %p190 = scmp.ne.s32.totalorder %s182, %s185
      %p191 = scmp.eq.s32.totalorder %s13, 0
      %p192 = por %p190, %p191
      %p193 = scmp.ne.s32.totalorder %s182, %s185
      %p194 = scmp.eq.s32.totalorder %s18, 1
      %p195 = por %p193, %p194
      %p196 = scmp.ne.s32.totalorder %s185, %s186
      %p197 = scmp.eq.s32.totalorder %s18, 0
      %p198 = por %p196, %p197
      %p199 = scmp.ne.s32.totalorder %s185, %s186
      %p200 = scmp.eq.s32.totalorder %s19, 1
      %p201 = por %p199, %p200
      %p203 = scmp.ne.s32.totalorder %s186, %s202
      %p204 = scmp.eq.s32.totalorder %s19, 0
      %p205 = por %p203, %p204
      %s206 = ssub.s32 %s20, %s39
      %s207 = ssub.s32 %s21, %s35
      %s208 = sor.u32 %s206, %s207
      %p209 = scmp.eq.s32.totalorder %s208, 0
      %s211 = sadd.s32 %s210, 1
      %s212 = scalar_select %p209, %s210, %s211
      %p215 = pneg %p209
      %p216 = scmp.eq.s32.totalorder %s13, 1
      %p217 = por %p215, %p216
      %p218 = scmp.ne.s32.totalorder %s210, %s213
      %p219 = scmp.eq.s32.totalorder %s13, 0
      %p220 = por %p218, %p219
      %p221 = scmp.ne.s32.totalorder %s210, %s213
      %p222 = scmp.eq.s32.totalorder %s18, 1
      %p223 = por %p221, %p222
      %p224 = scmp.ne.s32.totalorder %s213, %s214
      %p225 = scmp.eq.s32.totalorder %s18, 0
      %p226 = por %p224, %p225
      %p227 = scmp.ne.s32.totalorder %s213, %s214
      %p228 = scmp.eq.s32.totalorder %s19, 1
      %p229 = por %p227, %p228
      %p231 = scmp.ne.s32.totalorder %s214, %s230
      %p232 = scmp.eq.s32.totalorder %s19, 0
      %p233 = por %p231, %p232
      %p234 = scmp.le.s32.totalorder 1, %s13
      %p235 = scmp.lt.s32.totalorder %s13, 3
      %p236 = pnand %p234, %p235
      %p237 = pneg %p236
      // Predicated region
      $region9: #{denoising_genius_forward.27} parent=5 // pred_check
        _
      $region10: #{denoising_genius_forward.27} parent=5 // pred_check_branch
        %239 = sbr.rel (%p236) target = $region12
      $region11: #{denoising_genius_forward.27} parent=5 // pred_region
        %s240 = ssub.s32 %s13, 1
        // Predicated region
        $region13: #{denoising_genius_forward.27} parent=11 // pred_check
          %p241 = pneg %p170
        $region14: #{denoising_genius_forward.27} parent=11 // pred_check_branch
          %243 = sbr.rel (%p241) target = $region16
        $region15: #{denoising_genius_forward.27} parent=11 // pred_region
          %p244 = scmp.lt.s32.totalorder %s24, 0
          %s245 = scalar_select %p244, %s24, 0
          %s246 = scalar_lea.vmem %s4, %s245
        $region16: #{denoising_genius_forward.27} parent=11 // pred_fallthru
          _
      $region12: #{denoising_genius_forward.27} parent=5 // pred_fallthru
        _
      %p247 = scmp.lt.s32.totalorder %s13, 2
      // Predicated region
      $region17: #{denoising_genius_forward.27} parent=5 // pred_check
        %p248 = pneg %p247
      $region18: #{denoising_genius_forward.27} parent=5 // pred_check_branch
        %250 = sbr.rel (%p248) target = $region20
      $region19: #{denoising_genius_forward.27} parent=5 // pred_region
        // Predicated region
        $region21: #{denoising_genius_forward.27} parent=19 // pred_check
          %p251 = pneg %p54
        $region22: #{denoising_genius_forward.27} parent=19 // pred_check_branch
          %253 = sbr.rel (%p251) target = $region24
        $region23: #{denoising_genius_forward.27} parent=19 // pred_region
          %s254 = sand.u32 %s44, 1
          %s255 = sand.u32 %s44, 1
          %s256 = smul.addr %s255, 48
          %s257 = scalar_lea.vmem [#allocation3], %s256
          %s258 = smul.u32 4, %s20
          %s259 = smul.u32 3, %s22
          %s260 = smul.addr %s258, 6
          %s261 = sadd.s32 %s259, %s260
          %s262 = smul.addr %s261, 4
          %s263 = scalar_lea.vmem %s0, %s262
          // Predicated region
          $region25: #{denoising_genius_forward.27} parent=23 // pred_check
            _
          $region26: #{denoising_genius_forward.27} parent=23 // pred_check_branch
            %265 = sbr.rel (0) target = $region28
          $region27: #{denoising_genius_forward.27} parent=23 // pred_region
            // Predicated region
            $region29: #{denoising_genius_forward.27} parent=27 // pred_check
              _
            $region30: #{denoising_genius_forward.27} parent=27 // pred_check_branch
              %267 = sbr.rel (0) target = $region32
            $region31: #{denoising_genius_forward.27} parent=27 // pred_region
              %s268 = scalar_lea.vmem %s263, 8
              %s269 = scalar_lea.vmem %s257, 8 [#allocation3]
              loop: start=0, step=1, limit=1
              $region33: #{denoising_genius_forward.27} parent=31 // loop_pre_header
                _
              $region34: #{denoising_genius_forward.27} parent=31 // loop_header
                %s271 = sphi 0, %s275
                %p272 = scmp.ge.s32.totalorder %s271, 1
                %s276 = sphi %s263, %s263
                %s277 = sphi %s257, %s257
              $region35: #{denoising_genius_forward.27} parent=31 // loop_header_branch
                %274 = sbr.rel (%p272) target = $region39
              $region36: #{denoising_genius_forward.27} parent=31 // loop_body
                %v278 = vld [vmem:[%s276] sm:$0xff]
                %279 = vst [vmem:[%s277] sm:$0xff] %v278
                %v280 = vld [vmem:[%s276 + $0x18] sm:$0xff]
                %281 = vst [vmem:[%s277 + $0xc] sm:$0xff] %v280
                %v282 = vld [vmem:[%s276 + $0x30] sm:$0xff]
                %283 = vst [vmem:[%s277 + $0x18] sm:$0xff] %v282
                %v284 = vld [vmem:[%s276 + $0x48] sm:$0xff]
                %285 = vst [vmem:[%s277 + $0x24] sm:$0xff] %v284
              $region37: #{denoising_genius_forward.27} parent=31 // loop_footer
                %s275 = sadd.s32 1, %s271
              $region38: #{denoising_genius_forward.27} parent=31 // loop_footer_branch
                %270 = sbr.rel target = $region34
              $region39: #{denoising_genius_forward.27} parent=31 // loop_exit
                _
              loop: start=0, step=1, limit=1
              $region40: #{denoising_genius_forward.27} parent=31 // loop_pre_header
                _
              $region41: #{denoising_genius_forward.27} parent=31 // loop_header
                %s288 = sphi 0, %s292
                %p289 = scmp.ge.s32.totalorder %s288, 1
                %s293 = sphi %s268, %s268
                %s294 = sphi %s269, %s269
              $region42: #{denoising_genius_forward.27} parent=31 // loop_header_branch
                %291 = sbr.rel (%p289) target = $region46
              $region43: #{denoising_genius_forward.27} parent=31 // loop_body
                %v295 = vld [vmem:[%s293] sm:$0xf]
                %296 = vst [vmem:[%s294] sm:$0xf] %v295
                %v297 = vld [vmem:[%s293 + $0x18] sm:$0xf]
                %298 = vst [vmem:[%s294 + $0xc] sm:$0xf] %v297
                %v299 = vld [vmem:[%s293 + $0x30] sm:$0xf]
                %300 = vst [vmem:[%s294 + $0x18] sm:$0xf] %v299
                %v301 = vld [vmem:[%s293 + $0x48] sm:$0xf]
                %302 = vst [vmem:[%s294 + $0x24] sm:$0xf] %v301
              $region44: #{denoising_genius_forward.27} parent=31 // loop_footer
                %s292 = sadd.s32 1, %s288
              $region45: #{denoising_genius_forward.27} parent=31 // loop_footer_branch
                %287 = sbr.rel target = $region41
              $region46: #{denoising_genius_forward.27} parent=31 // loop_exit
                _
            $region32: #{denoising_genius_forward.27} parent=27 // pred_fallthru
              _
          $region28: #{denoising_genius_forward.27} parent=23 // pred_fallthru
            _
          %303 = vnop
        $region24: #{denoising_genius_forward.27} parent=19 // pred_fallthru
          _
        // Predicated region
        $region47: #{denoising_genius_forward.27} parent=19 // pred_check
          %p304 = pneg %p82
        $region48: #{denoising_genius_forward.27} parent=19 // pred_check_branch
          %306 = sbr.rel (%p304) target = $region50
        $region49: #{denoising_genius_forward.27} parent=19 // pred_region
          %s307 = sand.u32 %s72, 1
          %s308 = sand.u32 %s72, 1
          %s309 = smul.addr %s308, 48
          %s310 = scalar_lea.vmem [#allocation4], %s309
          %s311 = smul.u32 4, %s20
          %s312 = smul.u32 3, %s22
          %s313 = smul.addr %s311, 6
          %s314 = sadd.s32 %s312, %s313
          %s315 = smul.addr %s314, 4
          %s316 = scalar_lea.vmem %s1, %s315
          // Predicated region
          $region51: #{denoising_genius_forward.27} parent=49 // pred_check
            _
          $region52: #{denoising_genius_forward.27} parent=49 // pred_check_branch
            %318 = sbr.rel (0) target = $region54
          $region53: #{denoising_genius_forward.27} parent=49 // pred_region
            // Predicated region
            $region55: #{denoising_genius_forward.27} parent=53 // pred_check
              _
            $region56: #{denoising_genius_forward.27} parent=53 // pred_check_branch
              %320 = sbr.rel (0) target = $region58
            $region57: #{denoising_genius_forward.27} parent=53 // pred_region
              %s321 = scalar_lea.vmem %s316, 8
              %s322 = scalar_lea.vmem %s310, 8 [#allocation4]
              loop: start=0, step=1, limit=1
              $region59: #{denoising_genius_forward.27} parent=57 // loop_pre_header
                _
              $region60: #{denoising_genius_forward.27} parent=57 // loop_header
                %s324 = sphi 0, %s328
                %p325 = scmp.ge.s32.totalorder %s324, 1
                %s329 = sphi %s316, %s316
                %s330 = sphi %s310, %s310
              $region61: #{denoising_genius_forward.27} parent=57 // loop_header_branch
                %327 = sbr.rel (%p325) target = $region65
              $region62: #{denoising_genius_forward.27} parent=57 // loop_body
                %v331 = vld [vmem:[%s329] sm:$0xff]
                %332 = vst [vmem:[%s330] sm:$0xff] %v331
                %v333 = vld [vmem:[%s329 + $0x18] sm:$0xff]
                %334 = vst [vmem:[%s330 + $0xc] sm:$0xff] %v333
                %v335 = vld [vmem:[%s329 + $0x30] sm:$0xff]
                %336 = vst [vmem:[%s330 + $0x18] sm:$0xff] %v335
                %v337 = vld [vmem:[%s329 + $0x48] sm:$0xff]
                %338 = vst [vmem:[%s330 + $0x24] sm:$0xff] %v337
              $region63: #{denoising_genius_forward.27} parent=57 // loop_footer
                %s328 = sadd.s32 1, %s324
              $region64: #{denoising_genius_forward.27} parent=57 // loop_footer_branch
                %323 = sbr.rel target = $region60
              $region65: #{denoising_genius_forward.27} parent=57 // loop_exit
                _
              loop: start=0, step=1, limit=1
              $region66: #{denoising_genius_forward.27} parent=57 // loop_pre_header
                _
              $region67: #{denoising_genius_forward.27} parent=57 // loop_header
                %s341 = sphi 0, %s345
                %p342 = scmp.ge.s32.totalorder %s341, 1
                %s346 = sphi %s321, %s321
                %s347 = sphi %s322, %s322
              $region68: #{denoising_genius_forward.27} parent=57 // loop_header_branch
                %344 = sbr.rel (%p342) target = $region72
              $region69: #{denoising_genius_forward.27} parent=57 // loop_body
                %v348 = vld [vmem:[%s346] sm:$0xf]
                %349 = vst [vmem:[%s347] sm:$0xf] %v348
                %v350 = vld [vmem:[%s346 + $0x18] sm:$0xf]
                %351 = vst [vmem:[%s347 + $0xc] sm:$0xf] %v350
                %v352 = vld [vmem:[%s346 + $0x30] sm:$0xf]
                %353 = vst [vmem:[%s347 + $0x18] sm:$0xf] %v352
                %v354 = vld [vmem:[%s346 + $0x48] sm:$0xf]
                %355 = vst [vmem:[%s347 + $0x24] sm:$0xf] %v354
              $region70: #{denoising_genius_forward.27} parent=57 // loop_footer
                %s345 = sadd.s32 1, %s341
              $region71: #{denoising_genius_forward.27} parent=57 // loop_footer_branch
                %340 = sbr.rel target = $region67
              $region72: #{denoising_genius_forward.27} parent=57 // loop_exit
                _
            $region58: #{denoising_genius_forward.27} parent=53 // pred_fallthru
              _
          $region54: #{denoising_genius_forward.27} parent=49 // pred_fallthru
            _
          %356 = vnop
        $region50: #{denoising_genius_forward.27} parent=19 // pred_fallthru
          _
        // Predicated region
        $region73: #{denoising_genius_forward.27} parent=19 // pred_check
          %p357 = pneg %p110
        $region74: #{denoising_genius_forward.27} parent=19 // pred_check_branch
          %359 = sbr.rel (%p357) target = $region76
        $region75: #{denoising_genius_forward.27} parent=19 // pred_region
          %s360 = smul.u32 48, %s22
          %p361 = scmp.lt.s32.totalorder %s360, 95
          %s362 = scalar_select %p361, %s360, 95
          %p363 = scmp.lt.s32.totalorder %s21, 0
          %s364 = scalar_select %p363, %s21, 0
          %s365 = sadd.s32 %s364, %s362
          %s366 = smul.addr %s365, 4
          %s367 = scalar_lea.vmem %s2, %s366
          %s368 = smul.u32 48, %s22
        $region76: #{denoising_genius_forward.27} parent=19 // pred_fallthru
          _
        // Predicated region
        $region77: #{denoising_genius_forward.27} parent=19 // pred_check
          %p369 = pneg %p138
        $region78: #{denoising_genius_forward.27} parent=19 // pred_check_branch
          %371 = sbr.rel (%p369) target = $region80
        $region79: #{denoising_genius_forward.27} parent=19 // pred_region
          %s372 = smul.u32 48, %s22
          %p373 = scmp.lt.s32.totalorder %s372, 95
          %s374 = scalar_select %p373, %s372, 95
          %p375 = scmp.lt.s32.totalorder %s21, 0
          %s376 = scalar_select %p375, %s21, 0
          %s377 = sadd.s32 %s376, %s374
          %s378 = smul.addr %s377, 4
          %s379 = scalar_lea.vmem %s3, %s378
          %s380 = smul.u32 48, %s22
        $region80: #{denoising_genius_forward.27} parent=19 // pred_fallthru
          _
      $region20: #{denoising_genius_forward.27} parent=5 // pred_fallthru
        _
      %p381 = scmp.le.s32.totalorder 1, %s13
      %p382 = scmp.lt.s32.totalorder %s13, 3
      %p383 = pnand %p381, %p382
      %p384 = pneg %p383
      // Predicated region
      $region81: #{denoising_genius_forward.27} parent=5 // pred_check
        _
      $region82: #{denoising_genius_forward.27} parent=5 // pred_check_branch
        %386 = sbr.rel (%p383) target = $region84
      $region83: #{denoising_genius_forward.27} parent=5 // pred_region
        %s387 = ssub.s32 %s13, 1
        %s388 = sand.u32 %s47, 1
        %s389 = sand.u32 %s47, 1
        %s390 = smul.addr %s389, 48
        %s391 = scalar_lea.vmem [#allocation3], %s390
        // Predicated region
        $region85: #{denoising_genius_forward.27} parent=83 // pred_check
          %p392 = pneg %p60
        $region86: #{denoising_genius_forward.27} parent=83 // pred_check_branch
          %394 = sbr.rel (%p392) target = $region88
        $region87: #{denoising_genius_forward.27} parent=83 // pred_region
          _
        $region88: #{denoising_genius_forward.27} parent=83 // pred_fallthru
          _
        %s395 = sand.u32 %s75, 1
        %s396 = sand.u32 %s75, 1
        %s397 = smul.addr %s396, 48
        %s398 = scalar_lea.vmem [#allocation4], %s397
        // Predicated region
        $region89: #{denoising_genius_forward.27} parent=83 // pred_check
          %p399 = pneg %p88
        $region90: #{denoising_genius_forward.27} parent=83 // pred_check_branch
          %401 = sbr.rel (%p399) target = $region92
        $region91: #{denoising_genius_forward.27} parent=83 // pred_region
          _
        $region92: #{denoising_genius_forward.27} parent=83 // pred_fallthru
          _
        %s402 = sand.u32 %s47, 1
        %s403 = sand.u32 %s47, 1
        %s404 = smul.addr %s403, 48
        %s405 = scalar_lea.vmem [#allocation3], %s404
        %p406 = pneg %p60
        %p407 = pneg %p57
        %s408 = sand.u32 %s75, 1
        %s409 = sand.u32 %s75, 1
        %s410 = smul.addr %s409, 48
        %s411 = scalar_lea.vmem [#allocation4], %s410
        %p412 = pneg %p88
        %p413 = pneg %p85
        %s414 = smul.u32 48, %s25
        %p415 = scmp.lt.s32.totalorder %s414, 95
        %s416 = scalar_select %p415, %s414, 95
        %p417 = scmp.lt.s32.totalorder %s24, 0
        %s418 = scalar_select %p417, %s24, 0
        %s419 = sadd.s32 %s418, %s416
        %s420 = smul.addr %s419, 4
        %s421 = scalar_lea.vmem %s2, %s420
        %p422 = pneg %p116
        %p423 = pneg %p113
        %s424 = smul.u32 48, %s25
        %p425 = scmp.lt.s32.totalorder %s424, 95
        %s426 = scalar_select %p425, %s424, 95
        %p427 = scmp.lt.s32.totalorder %s24, 0
        %s428 = scalar_select %p427, %s24, 0
        %s429 = sadd.s32 %s428, %s426
        %s430 = smul.addr %s429, 4
        %s431 = scalar_lea.vmem %s3, %s430
        %p432 = pneg %p144
        %p433 = pneg %p141
        %p434 = scmp.lt.s32.totalorder %s24, 0
        %s435 = scalar_select %p434, %s24, 0
        %s436 = scalar_lea.vmem %s4, %s435
        %p437 = pneg %p170
        %p438 = pneg %p167
        %p439 = pneg %p198
        %p440 = pneg %p195
        %s441 = smul.u32 4, %s23
        %p442 = scmp.lt.s32.totalorder %s441, 3
        %s443 = scalar_select %p442, %s441, 3
        %p444 = scmp.lt.s32.totalorder %s24, 0
        %s445 = scalar_select %p444, %s24, 0
        %s446 = sadd.s32 %s445, %s443
        %s447 = smul.addr %s446, 4
        %s448 = scalar_lea.vmem %s5, %s447
        %p449 = pneg %p226
        %p450 = pneg %p223
        %p451 = scmp.lt.s32.totalorder %s23, 0
        %s452 = scalar_select %p451, %s23, 0
        %p453 = scmp.lt.s32.totalorder %s24, 0
        %s454 = scalar_select %p453, %s24, 0
        %s455 = sadd.s32 %s454, %s452
        %s456 = smul.addr %s455, 8
        %s457 = scalar_lea.vmem %s6, %s456
        %s458 = smul.u32 4, %s23
        %s459 = smul.u32 3, %s25
        %s460 = smul.u32 4, %s23
        %s461 = smul.u32 3, %s25
        %s462 = smul.u32 48, %s25
        %p463 = scmp.lt.s32.totalorder %s462, 95
        %s464 = scalar_select %p463, %s462, 95
        %p465 = scmp.lt.s32.totalorder %s24, 0
        %s466 = scalar_select %p465, %s24, 0
        %s467 = sadd.s32 %s466, %s464
        %s468 = smul.addr %s467, 4
        %s469 = scalar_lea.vmem %s2, %s468
        %s470 = smul.u32 48, %s25
        %s471 = smul.u32 48, %s25
        %p472 = scmp.lt.s32.totalorder %s471, 95
        %s473 = scalar_select %p472, %s471, 95
        %p474 = scmp.lt.s32.totalorder %s24, 0
        %s475 = scalar_select %p474, %s24, 0
        %s476 = sadd.s32 %s475, %s473
        %s477 = smul.addr %s476, 4
        %s478 = scalar_lea.vmem %s3, %s477
        %s479 = smul.u32 48, %s25
        %p480 = scmp.lt.s32.totalorder %s24, 0
        %s481 = scalar_select %p480, %s24, 0
        %s482 = scalar_lea.vmem %s4, %s481
        %s483 = smul.u32 4, %s23
        %p484 = scmp.lt.s32.totalorder %s483, 3
        %s485 = scalar_select %p484, %s483, 3
        %p486 = scmp.lt.s32.totalorder %s24, 0
        %s487 = scalar_select %p486, %s24, 0
        %s488 = sadd.s32 %s487, %s485
        %s489 = smul.addr %s488, 4
        %s490 = scalar_lea.vmem %s5, %s489
        %s491 = smul.u32 4, %s23
        %p492 = scmp.lt.s32.totalorder %s23, 0
        %s493 = scalar_select %p492, %s23, 0
        %p494 = scmp.lt.s32.totalorder %s24, 0
        %s495 = scalar_select %p494, %s24, 0
        %s496 = sadd.s32 %s495, %s493
        %s497 = smul.addr %s496, 8
        %s498 = scalar_lea.vmem %s6, %s497
        %p500 = scmp.eq.s32.totalorder %s25, 0
        // Predicated region
        $region93: #{denoising_genius_forward.27} parent=83 // pred_check
          %p501 = pneg %p500
        $region94: #{denoising_genius_forward.27} parent=83 // pred_check_branch
          %503 = sbr.rel (%p501) target = $region96
        $region95: #{denoising_genius_forward.27} parent=83 // pred_region
          %504 = vst [vmem:[#allocation2] sm:$0xff] 0.0
          %505 = vst [vmem:[#allocation2 + $0x8] sm:$0xff] 0.0
          %506 = vst [vmem:[#allocation2 + $0x10] sm:$0xff] 0.0
          %507 = vst [vmem:[#allocation2 + $0x18] sm:$0xff] 0.0
        $region96: #{denoising_genius_forward.27} parent=83 // pred_fallthru
          _
        %v508 = vld [vmem:[%s391] sm:$0xff]
        %v509 = vld [vmem:[%s391 + $0x8] sm:$0xf]
        %v510 = vld [vmem:[%s391 + $0xc] sm:$0xff]
        %v511 = vld [vmem:[%s391 + $0x14] sm:$0xf]
        %v512 = vld [vmem:[%s391 + $0x18] sm:$0xff]
        %v513 = vld [vmem:[%s391 + $0x20] sm:$0xf]
        %v514 = vld [vmem:[%s391 + $0x24] sm:$0xff]
        %v515 = vld [vmem:[%s391 + $0x2c] sm:$0xf]
        %v516 = vld [vmem:[%s469] sm:$0xf]
        %v517 = vld [vmem:[%s469 + $0x4] sm:$0xf]
        %v518 = vld [vmem:[%s469 + $0x8] sm:$0xf]
        %v519 = vld [vmem:[%s469 + $0xc] sm:$0xf]
        %v520 = vld [vmem:[%s469 + $0x10] sm:$0xf]
        %v521 = vld [vmem:[%s469 + $0x14] sm:$0xf]
        %v522 = vld [vmem:[%s469 + $0x18] sm:$0xf]
        %v523 = vld [vmem:[%s469 + $0x1c] sm:$0xf]
        %v524 = vld [vmem:[%s469 + $0x20] sm:$0xf]
        %v525 = vld [vmem:[%s469 + $0x24] sm:$0xf]
        %v526 = vld [vmem:[%s469 + $0x28] sm:$0xf]
        %v527 = vld [vmem:[%s469 + $0x2c] sm:$0xf]
        %v528 = vld [vmem:[%s469 + $0x30] sm:$0xf]
        %v529 = vld [vmem:[%s469 + $0x34] sm:$0xf]
        %v530 = vld [vmem:[%s469 + $0x38] sm:$0xf]
        %v531 = vld [vmem:[%s469 + $0x3c] sm:$0xf]
        %v532 = vld [vmem:[%s469 + $0x40] sm:$0xf]
        %v533 = vld [vmem:[%s469 + $0x44] sm:$0xf]
        %v534 = vld [vmem:[%s469 + $0x48] sm:$0xf]
        %v535 = vld [vmem:[%s469 + $0x4c] sm:$0xf]
        %v536 = vld [vmem:[%s469 + $0x50] sm:$0xf]
        %v537 = vld [vmem:[%s469 + $0x54] sm:$0xf]
        %v538 = vld [vmem:[%s469 + $0x58] sm:$0xf]
        %v539 = vld [vmem:[%s469 + $0x5c] sm:$0xf]
        %v540 = vld [vmem:[%s469 + $0x60] sm:$0xf]
        %v541 = vld [vmem:[%s469 + $0x64] sm:$0xf]
        %v542 = vld [vmem:[%s469 + $0x68] sm:$0xf]
        %v543 = vld [vmem:[%s469 + $0x6c] sm:$0xf]
        %v544 = vld [vmem:[%s469 + $0x70] sm:$0xf]
        %v545 = vld [vmem:[%s469 + $0x74] sm:$0xf]
        %v546 = vld [vmem:[%s469 + $0x78] sm:$0xf]
        %v547 = vld [vmem:[%s469 + $0x7c] sm:$0xf]
        %v548 = vld [vmem:[%s469 + $0x80] sm:$0xf]
        %v549 = vld [vmem:[%s469 + $0x84] sm:$0xf]
        %v550 = vld [vmem:[%s469 + $0x88] sm:$0xf]
        %v551 = vld [vmem:[%s469 + $0x8c] sm:$0xf]
        %v552 = vld [vmem:[%s469 + $0x90] sm:$0xf]
        %v553 = vld [vmem:[%s469 + $0x94] sm:$0xf]
        %v554 = vld [vmem:[%s469 + $0x98] sm:$0xf]
        %v555 = vld [vmem:[%s469 + $0x9c] sm:$0xf]
        %v556 = vld [vmem:[%s469 + $0xa0] sm:$0xf]
        %v557 = vld [vmem:[%s469 + $0xa4] sm:$0xf]
        %v558 = vld [vmem:[%s469 + $0xa8] sm:$0xf]
        %v559 = vld [vmem:[%s469 + $0xac] sm:$0xf]
        %v560 = vld [vmem:[%s469 + $0xb0] sm:$0xf]
        %v561 = vld [vmem:[%s469 + $0xb4] sm:$0xf]
        %v562 = vld [vmem:[%s469 + $0xb8] sm:$0xf]
        %v563 = vld [vmem:[%s469 + $0xbc] sm:$0xf]
        %v564 = vld [vmem:[%s398] sm:$0xff]
        %v565 = vld [vmem:[%s398 + $0x8] sm:$0xf]
        %v566 = vld [vmem:[%s398 + $0xc] sm:$0xff]
        %v567 = vld [vmem:[%s398 + $0x14] sm:$0xf]
        %v568 = vld [vmem:[%s398 + $0x18] sm:$0xff]
        %v569 = vld [vmem:[%s398 + $0x20] sm:$0xf]
        %v570 = vld [vmem:[%s398 + $0x24] sm:$0xff]
        %v571 = vld [vmem:[%s398 + $0x2c] sm:$0xf]
        %v572 = vld [vmem:[%s478] sm:$0xf]
        %v573 = vld [vmem:[%s478 + $0x4] sm:$0xf]
        %v574 = vld [vmem:[%s478 + $0x8] sm:$0xf]
        %v575 = vld [vmem:[%s478 + $0xc] sm:$0xf]
        %v576 = vld [vmem:[%s478 + $0x10] sm:$0xf]
        %v577 = vld [vmem:[%s478 + $0x14] sm:$0xf]
        %v578 = vld [vmem:[%s478 + $0x18] sm:$0xf]
        %v579 = vld [vmem:[%s478 + $0x1c] sm:$0xf]
        %v580 = vld [vmem:[%s478 + $0x20] sm:$0xf]
        %v581 = vld [vmem:[%s478 + $0x24] sm:$0xf]
        %v582 = vld [vmem:[%s478 + $0x28] sm:$0xf]
        %v583 = vld [vmem:[%s478 + $0x2c] sm:$0xf]
        %v584 = vld [vmem:[%s478 + $0x30] sm:$0xf]
        %v585 = vld [vmem:[%s478 + $0x34] sm:$0xf]
        %v586 = vld [vmem:[%s478 + $0x38] sm:$0xf]
        %v587 = vld [vmem:[%s478 + $0x3c] sm:$0xf]
        %v588 = vld [vmem:[%s478 + $0x40] sm:$0xf]
        %v589 = vld [vmem:[%s478 + $0x44] sm:$0xf]
        %v590 = vld [vmem:[%s478 + $0x48] sm:$0xf]
        %v591 = vld [vmem:[%s478 + $0x4c] sm:$0xf]
        %v592 = vld [vmem:[%s478 + $0x50] sm:$0xf]
        %v593 = vld [vmem:[%s478 + $0x54] sm:$0xf]
        %v594 = vld [vmem:[%s478 + $0x58] sm:$0xf]
        %v595 = vld [vmem:[%s478 + $0x5c] sm:$0xf]
        %v596 = vld [vmem:[%s478 + $0x60] sm:$0xf]
        %v597 = vld [vmem:[%s478 + $0x64] sm:$0xf]
        %v598 = vld [vmem:[%s478 + $0x68] sm:$0xf]
        %v599 = vld [vmem:[%s478 + $0x6c] sm:$0xf]
        %v600 = vld [vmem:[%s478 + $0x70] sm:$0xf]
        %v601 = vld [vmem:[%s478 + $0x74] sm:$0xf]
        %v602 = vld [vmem:[%s478 + $0x78] sm:$0xf]
        %v603 = vld [vmem:[%s478 + $0x7c] sm:$0xf]
        %v604 = vld [vmem:[%s478 + $0x80] sm:$0xf]
        %v605 = vld [vmem:[%s478 + $0x84] sm:$0xf]
        %v606 = vld [vmem:[%s478 + $0x88] sm:$0xf]
        %v607 = vld [vmem:[%s478 + $0x8c] sm:$0xf]
        %v608 = vld [vmem:[%s478 + $0x90] sm:$0xf]
        %v609 = vld [vmem:[%s478 + $0x94] sm:$0xf]
        %v610 = vld [vmem:[%s478 + $0x98] sm:$0xf]
        %v611 = vld [vmem:[%s478 + $0x9c] sm:$0xf]
        %v612 = vld [vmem:[%s478 + $0xa0] sm:$0xf]
        %v613 = vld [vmem:[%s478 + $0xa4] sm:$0xf]
        %v614 = vld [vmem:[%s478 + $0xa8] sm:$0xf]
        %v615 = vld [vmem:[%s478 + $0xac] sm:$0xf]
        %v616 = vld [vmem:[%s478 + $0xb0] sm:$0xf]
        %v617 = vld [vmem:[%s478 + $0xb4] sm:$0xf]
        %v618 = vld [vmem:[%s478 + $0xb8] sm:$0xf]
        %v619 = vld [vmem:[%s478 + $0xbc] sm:$0xf]
        %v628 = vunpack.c.l.b16 %v564
        %v629 = vunpack.c.h.b16 %v564
        %v630 = vunpack.c.l.b16 %v565
        %v631 = vunpack.c.l.b16 %v566
        %v632 = vunpack.c.h.b16 %v566
        %v633 = vunpack.c.l.b16 %v567
        %v634 = vunpack.c.l.b16 %v568
        %v635 = vunpack.c.h.b16 %v568
        %v636 = vunpack.c.l.b16 %v569
        %v637 = vunpack.c.l.b16 %v570
        %v638 = vunpack.c.h.b16 %v570
        %v639 = vunpack.c.l.b16 %v571
        %v640 = vpack.c.b16 %v631, %v628
        %v641 = vpack.c.b16 %v632, %v629
        %v642 = vpack.c.b16 %v633, %v630
        %v643 = vpack.c.b16 %v637, %v634
        %v644 = vpack.c.b16 %v638, %v635
        %v645 = vpack.c.b16 %v639, %v636
        %v700 = vunpack.c.l.b16 %v572
        %v701 = vunpack.c.l.b16 %v573
        %v702 = vunpack.c.l.b16 %v574
        %v703 = vunpack.c.l.b16 %v575
        %v704 = vunpack.c.l.b16 %v576
        %v705 = vunpack.c.l.b16 %v577
        %v706 = vunpack.c.l.b16 %v578
        %v707 = vunpack.c.l.b16 %v579
        %v708 = vunpack.c.l.b16 %v580
        %v709 = vunpack.c.l.b16 %v581
        %v710 = vunpack.c.l.b16 %v582
        %v711 = vunpack.c.l.b16 %v583
        %v712 = vunpack.c.l.b16 %v584
        %v713 = vunpack.c.l.b16 %v585
        %v714 = vunpack.c.l.b16 %v586
        %v715 = vunpack.c.l.b16 %v587
        %v716 = vunpack.c.l.b16 %v588
        %v717 = vunpack.c.l.b16 %v589
        %v718 = vunpack.c.l.b16 %v590
        %v719 = vunpack.c.l.b16 %v591
        %v720 = vunpack.c.l.b16 %v592
        %v721 = vunpack.c.l.b16 %v593
        %v722 = vunpack.c.l.b16 %v594
        %v723 = vunpack.c.l.b16 %v595
        %v724 = vunpack.c.l.b16 %v596
        %v725 = vunpack.c.l.b16 %v597
        %v726 = vunpack.c.l.b16 %v598
        %v727 = vunpack.c.l.b16 %v599
        %v728 = vunpack.c.l.b16 %v600
        %v729 = vunpack.c.l.b16 %v601
        %v730 = vunpack.c.l.b16 %v602
        %v731 = vunpack.c.l.b16 %v603
        %v732 = vunpack.c.l.b16 %v604
        %v733 = vunpack.c.l.b16 %v605
        %v734 = vunpack.c.l.b16 %v606
        %v735 = vunpack.c.l.b16 %v607
        %v736 = vunpack.c.l.b16 %v608
        %v737 = vunpack.c.l.b16 %v609
        %v738 = vunpack.c.l.b16 %v610
        %v739 = vunpack.c.l.b16 %v611
        %v740 = vunpack.c.l.b16 %v612
        %v741 = vunpack.c.l.b16 %v613
        %v742 = vunpack.c.l.b16 %v614
        %v743 = vunpack.c.l.b16 %v615
        %v744 = vunpack.c.l.b16 %v616
        %v745 = vunpack.c.l.b16 %v617
        %v746 = vunpack.c.l.b16 %v618
        %v747 = vunpack.c.l.b16 %v619
        %v748 = vpack.c.b16 %v701, %v700
        %v749 = vpack.c.b16 %v703, %v702
        %v750 = vpack.c.b16 %v705, %v704
        %v751 = vpack.c.b16 %v707, %v706
        %v752 = vpack.c.b16 %v709, %v708
        %v753 = vpack.c.b16 %v711, %v710
        %v754 = vpack.c.b16 %v713, %v712
        %v755 = vpack.c.b16 %v715, %v714
        %v756 = vpack.c.b16 %v717, %v716
        %v757 = vpack.c.b16 %v719, %v718
        %v758 = vpack.c.b16 %v721, %v720
        %v759 = vpack.c.b16 %v723, %v722
        %v760 = vpack.c.b16 %v725, %v724
        %v761 = vpack.c.b16 %v727, %v726
        %v762 = vpack.c.b16 %v729, %v728
        %v763 = vpack.c.b16 %v731, %v730
        %v764 = vpack.c.b16 %v733, %v732
        %v765 = vpack.c.b16 %v735, %v734
        %v766 = vpack.c.b16 %v737, %v736
        %v767 = vpack.c.b16 %v739, %v738
        %v768 = vpack.c.b16 %v741, %v740
        %v769 = vpack.c.b16 %v743, %v742
        %v770 = vpack.c.b16 %v745, %v744
        %v771 = vpack.c.b16 %v747, %v746
        %796 = vmatprep.subr.bf16.mxu0 0
        %797 = vmatpush1.bf16.msra.mxu0 %v748
        %798 = vmatprep.subr.bf16.mxu0 0
        %799 = vmatpush1.bf16.msra.mxu0 %v749
        %800 = vmatprep.subr.bf16.mxu0 0
        %801 = vmatpush1.bf16.msra.mxu0 %v750
        %802 = vmatprep.subr.bf16.mxu0 0
        %803 = vmatpush1.bf16.msra.mxu0 %v751
        %804 = vmatprep.subr.bf16.mxu0 0
        %805 = vmatpush1.bf16.msra.mxu0 %v752
        %806 = vmatprep.subr.bf16.mxu0 0
        %807 = vmatpush1.bf16.msra.mxu0 %v753
        %808 = vmatprep.subr.bf16.mxu0 0
        %809 = vmatpush1.bf16.msra.mxu0 %v754
        %810 = vmatprep.subr.bf16.mxu0 0
        %811 = vmatpush1.bf16.msra.mxu0 %v755
        %812 = vmatprep.subr.bf16.mxu0 0
        %813 = vmatpush1.bf16.msra.mxu0 %v756
        %814 = vmatprep.subr.bf16.mxu0 0
        %815 = vmatpush1.bf16.msra.mxu0 %v757
        %816 = vmatprep.subr.bf16.mxu0 0
        %817 = vmatpush1.bf16.msra.mxu0 %v758
        %818 = vmatprep.subr.bf16.mxu0 0
        %819 = vmatpush1.bf16.msra.mxu0 %v759
        %820 = vmatprep.subr.bf16.mxu0 0
        %821 = vmatpush1.bf16.msra.mxu0 %v760
        %822 = vmatprep.subr.bf16.mxu0 0
        %823 = vmatpush1.bf16.msra.mxu0 %v761
        %824 = vmatprep.subr.bf16.mxu0 0
        %825 = vmatpush1.bf16.msra.mxu0 %v762
        %826 = vmatprep.subr.bf16.mxu0 0
        %827 = vmatpush1.bf16.msra.mxu0 %v763
        %828 = vmatprep.mubr.bf16.mxu0 %v641
        %829 = vmatmul.mubr.bf16.gmra.mrb[0].mxu0 %v640
        %v830 = vpop.f32.mrb[0].mxu0
        %v831 = vadd.f32 0.0, %v830
        %v832 = vpop.f32.mrb[0].mxu0
        %v833 = vpop.f32.mrb[0].mxu0
        %v834 = vadd.f32 0.0, %v833
        %v835 = vpop.f32.mrb[0].mxu0
        %836 = vmatprep.mubr.bf16.mxu0 %v644
        %837 = vmatmul.mubr.bf16.gmra.mrb[0].mxu0 %v643
        %v838 = vpop.f32.mrb[0].mxu0
        %v839 = vadd.f32 0.0, %v838
        %v840 = vpop.f32.mrb[0].mxu0
        %v841 = vpop.f32.mrb[0].mxu0
        %v842 = vadd.f32 0.0, %v841
        %v843 = vpop.f32.mrb[0].mxu0
        %844 = vdwg.mxu0
        %845 = vmatprep.subr.bf16.mxu0 0
        %846 = vmatpush1.bf16.msra.mxu0 %v764
        %847 = vmatprep.subr.bf16.mxu0 0
        %848 = vmatpush1.bf16.msra.mxu0 %v765
        %849 = vmatprep.subr.bf16.mxu0 0
        %850 = vmatpush1.bf16.msra.mxu0 %v766
        %851 = vmatprep.subr.bf16.mxu0 0
        %852 = vmatpush1.bf16.msra.mxu0 %v767
        %853 = vmatprep.subr.bf16.mxu0 0
        %854 = vmatpush1.bf16.msra.mxu0 %v768
        %855 = vmatprep.subr.bf16.mxu0 0
        %856 = vmatpush1.bf16.msra.mxu0 %v769
        %857 = vmatprep.subr.bf16.mxu0 0
        %858 = vmatpush1.bf16.msra.mxu0 %v770
        %859 = vmatprep.subr.bf16.mxu0 0
        %860 = vmatpush1.bf16.msra.mxu0 %v771
        %861 = vmatprep.subr.bf16.mxu0 0
        %862 = vmatpush1.bf16.msra.mxu0 0
        %863 = vmatprep.subr.bf16.mxu0 0
        %864 = vmatpush1.bf16.msra.mxu0 0
        %865 = vmatprep.subr.bf16.mxu0 0
        %866 = vmatpush1.bf16.msra.mxu0 0
        %867 = vmatprep.subr.bf16.mxu0 0
        %868 = vmatpush1.bf16.msra.mxu0 0
        %869 = vmatprep.subr.bf16.mxu0 0
        %870 = vmatpush1.bf16.msra.mxu0 0
        %871 = vmatprep.subr.bf16.mxu0 0
        %872 = vmatpush1.bf16.msra.mxu0 0
        %873 = vmatprep.subr.bf16.mxu0 0
        %874 = vmatpush1.bf16.msra.mxu0 0
        %875 = vmatprep.subr.bf16.mxu0 0
        %876 = vmatpush1.bf16.msra.mxu0 0
        %877 = vmatprep.mubr.bf16.mxu0 0
        %878 = vmatmul.mubr.bf16.gmra.mrb[0].mxu0 %v642
        %v879 = vpop.f32.mrb[0].mxu0
        %v880 = vadd.f32 %v831, %v879
        %v881 = vpop.f32.mrb[0].mxu0
        %v882 = vpop.f32.mrb[0].mxu0
        %v883 = vadd.f32 %v834, %v882
        %v884 = vpop.f32.mrb[0].mxu0
        %885 = vmatprep.mubr.bf16.mxu0 0
        %886 = vmatmul.mubr.bf16.gmra.mrb[0].mxu0 %v645
        %v887 = vpop.f32.mrb[0].mxu0
        %v888 = vadd.f32 %v839, %v887
        %v889 = vpop.f32.mrb[0].mxu0
        %v890 = vpop.f32.mrb[0].mxu0
        %v891 = vadd.f32 %v842, %v890
        %v892 = vpop.f32.mrb[0].mxu0
        %893 = vdwg.mxu0
        %v902 = vunpack.c.l.b16 %v508
        %v903 = vunpack.c.h.b16 %v508
        %v904 = vunpack.c.l.b16 %v509
        %v905 = vunpack.c.l.b16 %v510
        %v906 = vunpack.c.h.b16 %v510
        %v907 = vunpack.c.l.b16 %v511
        %v908 = vunpack.c.l.b16 %v512
        %v909 = vunpack.c.h.b16 %v512
        %v910 = vunpack.c.l.b16 %v513
        %v911 = vunpack.c.l.b16 %v514
        %v912 = vunpack.c.h.b16 %v514
        %v913 = vunpack.c.l.b16 %v515
        %v914 = vpack.c.b16 %v905, %v902
        %v915 = vpack.c.b16 %v906, %v903
        %v916 = vpack.c.b16 %v907, %v904
        %v917 = vpack.c.b16 %v911, %v908
        %v918 = vpack.c.b16 %v912, %v909
        %v919 = vpack.c.b16 %v913, %v910
        %v974 = vunpack.c.l.b16 %v516
        %v975 = vunpack.c.l.b16 %v517
        %v976 = vunpack.c.l.b16 %v518
        %v977 = vunpack.c.l.b16 %v519
        %v978 = vunpack.c.l.b16 %v520
        %v979 = vunpack.c.l.b16 %v521
        %v980 = vunpack.c.l.b16 %v522
        %v981 = vunpack.c.l.b16 %v523
        %v982 = vunpack.c.l.b16 %v524
        %v983 = vunpack.c.l.b16 %v525
        %v984 = vunpack.c.l.b16 %v526
        %v985 = vunpack.c.l.b16 %v527
        %v986 = vunpack.c.l.b16 %v528
        %v987 = vunpack.c.l.b16 %v529
        %v988 = vunpack.c.l.b16 %v530
        %v989 = vunpack.c.l.b16 %v531
        %v990 = vunpack.c.l.b16 %v532
        %v991 = vunpack.c.l.b16 %v533
        %v992 = vunpack.c.l.b16 %v534
        %v993 = vunpack.c.l.b16 %v535
        %v994 = vunpack.c.l.b16 %v536
        %v995 = vunpack.c.l.b16 %v537
        %v996 = vunpack.c.l.b16 %v538
        %v997 = vunpack.c.l.b16 %v539
        %v998 = vunpack.c.l.b16 %v540
        %v999 = vunpack.c.l.b16 %v541
        %v1000 = vunpack.c.l.b16 %v542
        %v1001 = vunpack.c.l.b16 %v543
        %v1002 = vunpack.c.l.b16 %v544
        %v1003 = vunpack.c.l.b16 %v545
        %v1004 = vunpack.c.l.b16 %v546
        %v1005 = vunpack.c.l.b16 %v547
        %v1006 = vunpack.c.l.b16 %v548
        %v1007 = vunpack.c.l.b16 %v549
        %v1008 = vunpack.c.l.b16 %v550
        %v1009 = vunpack.c.l.b16 %v551
        %v1010 = vunpack.c.l.b16 %v552
        %v1011 = vunpack.c.l.b16 %v553
        %v1012 = vunpack.c.l.b16 %v554
        %v1013 = vunpack.c.l.b16 %v555
        %v1014 = vunpack.c.l.b16 %v556
        %v1015 = vunpack.c.l.b16 %v557
        %v1016 = vunpack.c.l.b16 %v558
        %v1017 = vunpack.c.l.b16 %v559
        %v1018 = vunpack.c.l.b16 %v560
        %v1019 = vunpack.c.l.b16 %v561
        %v1020 = vunpack.c.l.b16 %v562
        %v1021 = vunpack.c.l.b16 %v563
        %v1022 = vpack.c.b16 %v975, %v974
        %v1023 = vpack.c.b16 %v977, %v976
        %v1024 = vpack.c.b16 %v979, %v978
        %v1025 = vpack.c.b16 %v981, %v980
        %v1026 = vpack.c.b16 %v983, %v982
        %v1027 = vpack.c.b16 %v985, %v984
        %v1028 = vpack.c.b16 %v987, %v986
        %v1029 = vpack.c.b16 %v989, %v988
        %v1030 = vpack.c.b16 %v991, %v990
        %v1031 = vpack.c.b16 %v993, %v992
        %v1032 = vpack.c.b16 %v995, %v994
        %v1033 = vpack.c.b16 %v997, %v996
        %v1034 = vpack.c.b16 %v999, %v998
        %v1035 = vpack.c.b16 %v1001, %v1000
        %v1036 = vpack.c.b16 %v1003, %v1002
        %v1037 = vpack.c.b16 %v1005, %v1004
        %v1038 = vpack.c.b16 %v1007, %v1006
        %v1039 = vpack.c.b16 %v1009, %v1008
        %v1040 = vpack.c.b16 %v1011, %v1010
        %v1041 = vpack.c.b16 %v1013, %v1012
        %v1042 = vpack.c.b16 %v1015, %v1014
        %v1043 = vpack.c.b16 %v1017, %v1016
        %v1044 = vpack.c.b16 %v1019, %v1018
        %v1045 = vpack.c.b16 %v1021, %v1020
        %1070 = vmatprep.subr.bf16.mxu0 0
        %1071 = vmatpush1.bf16.msra.mxu0 %v1022
        %1072 = vmatprep.subr.bf16.mxu0 0
        %1073 = vmatpush1.bf16.msra.mxu0 %v1023
        %1074 = vmatprep.subr.bf16.mxu0 0
        %1075 = vmatpush1.bf16.msra.mxu0 %v1024
        %1076 = vmatprep.subr.bf16.mxu0 0
        %1077 = vmatpush1.bf16.msra.mxu0 %v1025
        %1078 = vmatprep.subr.bf16.mxu0 0
        %1079 = vmatpush1.bf16.msra.mxu0 %v1026
        %1080 = vmatprep.subr.bf16.mxu0 0
        %1081 = vmatpush1.bf16.msra.mxu0 %v1027
        %1082 = vmatprep.subr.bf16.mxu0 0
        %1083 = vmatpush1.bf16.msra.mxu0 %v1028
        %1084 = vmatprep.subr.bf16.mxu0 0
        %1085 = vmatpush1.bf16.msra.mxu0 %v1029
        %1086 = vmatprep.subr.bf16.mxu0 0
        %1087 = vmatpush1.bf16.msra.mxu0 %v1030
        %1088 = vmatprep.subr.bf16.mxu0 0
        %1089 = vmatpush1.bf16.msra.mxu0 %v1031
        %1090 = vmatprep.subr.bf16.mxu0 0
        %1091 = vmatpush1.bf16.msra.mxu0 %v1032
        %1092 = vmatprep.subr.bf16.mxu0 0
        %1093 = vmatpush1.bf16.msra.mxu0 %v1033
        %1094 = vmatprep.subr.bf16.mxu0 0
        %1095 = vmatpush1.bf16.msra.mxu0 %v1034
        %1096 = vmatprep.subr.bf16.mxu0 0
        %1097 = vmatpush1.bf16.msra.mxu0 %v1035
        %1098 = vmatprep.subr.bf16.mxu0 0
        %1099 = vmatpush1.bf16.msra.mxu0 %v1036
        %1100 = vmatprep.subr.bf16.mxu0 0
        %1101 = vmatpush1.bf16.msra.mxu0 %v1037
        %1102 = vmatprep.mubr.bf16.mxu0 %v915
        %1103 = vmatmul.mubr.bf16.gmra.mrb[0].mxu0 %v914
        %v1104 = vpop.f32.mrb[0].mxu0
        %v1105 = vadd.f32 %v880, %v1104
        %v1106 = vpop.f32.mrb[0].mxu0
        %v1107 = vpop.f32.mrb[0].mxu0
        %v1108 = vadd.f32 %v883, %v1107
        %v1109 = vpop.f32.mrb[0].mxu0
        %1110 = vmatprep.mubr.bf16.mxu0 %v918
        %1111 = vmatmul.mubr.bf16.gmra.mrb[0].mxu0 %v917
        %v1112 = vpop.f32.mrb[0].mxu0
        %v1113 = vadd.f32 %v888, %v1112
        %v1114 = vpop.f32.mrb[0].mxu0
        %v1115 = vpop.f32.mrb[0].mxu0
        %v1116 = vadd.f32 %v891, %v1115
        %v1117 = vpop.f32.mrb[0].mxu0
        %1118 = vdwg.mxu0
        %1119 = vmatprep.subr.bf16.mxu0 0
        %1120 = vmatpush1.bf16.msra.mxu0 %v1038
        %1121 = vmatprep.subr.bf16.mxu0 0
        %1122 = vmatpush1.bf16.msra.mxu0 %v1039
        %1123 = vmatprep.subr.bf16.mxu0 0
        %1124 = vmatpush1.bf16.msra.mxu0 %v1040
        %1125 = vmatprep.subr.bf16.mxu0 0
        %1126 = vmatpush1.bf16.msra.mxu0 %v1041
        %1127 = vmatprep.subr.bf16.mxu0 0
        %1128 = vmatpush1.bf16.msra.mxu0 %v1042
        %1129 = vmatprep.subr.bf16.mxu0 0
        %1130 = vmatpush1.bf16.msra.mxu0 %v1043
        %1131 = vmatprep.subr.bf16.mxu0 0
        %1132 = vmatpush1.bf16.msra.mxu0 %v1044
        %1133 = vmatprep.subr.bf16.mxu0 0
        %1134 = vmatpush1.bf16.msra.mxu0 %v1045
        %1135 = vmatprep.subr.bf16.mxu0 0
        %1136 = vmatpush1.bf16.msra.mxu0 0
        %1137 = vmatprep.subr.bf16.mxu0 0
        %1138 = vmatpush1.bf16.msra.mxu0 0
        %1139 = vmatprep.subr.bf16.mxu0 0
        %1140 = vmatpush1.bf16.msra.mxu0 0
        %1141 = vmatprep.subr.bf16.mxu0 0
        %1142 = vmatpush1.bf16.msra.mxu0 0
        %1143 = vmatprep.subr.bf16.mxu0 0
        %1144 = vmatpush1.bf16.msra.mxu0 0
        %1145 = vmatprep.subr.bf16.mxu0 0
        %1146 = vmatpush1.bf16.msra.mxu0 0
        %1147 = vmatprep.subr.bf16.mxu0 0
        %1148 = vmatpush1.bf16.msra.mxu0 0
        %1149 = vmatprep.subr.bf16.mxu0 0
        %1150 = vmatpush1.bf16.msra.mxu0 0
        %1151 = vmatprep.mubr.bf16.mxu0 0
        %1152 = vmatmul.mubr.bf16.gmra.mrb[0].mxu0 %v916
        %v1153 = vpop.f32.mrb[0].mxu0
        %v1154 = vadd.f32 %v1105, %v1153
        %v1155 = vpop.f32.mrb[0].mxu0
        %v1156 = vpop.f32.mrb[0].mxu0
        %v1157 = vadd.f32 %v1108, %v1156
        %v1158 = vpop.f32.mrb[0].mxu0
        %1159 = vmatprep.mubr.bf16.mxu0 0
        %1160 = vmatmul.mubr.bf16.gmra.mrb[0].mxu0 %v919
        %v1161 = vpop.f32.mrb[0].mxu0
        %v1162 = vadd.f32 %v1113, %v1161
        %v1163 = vpop.f32.mrb[0].mxu0
        %v1164 = vpop.f32.mrb[0].mxu0
        %v1165 = vadd.f32 %v1116, %v1164
        %v1166 = vpop.f32.mrb[0].mxu0
        %1167 = vdwg.mxu0
        %v1168 = vld [vmem:[#allocation2] sm:$0xff]
        %v1169 = vld [vmem:[#allocation2 + $0x8] sm:$0xff]
        %v1170 = vld [vmem:[#allocation2 + $0x10] sm:$0xff]
        %v1171 = vld [vmem:[#allocation2 + $0x18] sm:$0xff]
        %v1172 = vadd.f32 %v1168, %v1154
        %v1173 = vadd.f32 %v1169, %v1157
        %v1174 = vadd.f32 %v1170, %v1162
        %v1175 = vadd.f32 %v1171, %v1165
        %1176 = vst [vmem:[#allocation2] sm:$0xff] %v1172
        %1177 = vst [vmem:[#allocation2 + $0x8] sm:$0xff] %v1173
        %1178 = vst [vmem:[#allocation2 + $0x10] sm:$0xff] %v1174
        %1179 = vst [vmem:[#allocation2 + $0x18] sm:$0xff] %v1175
        %p1180 = scmp.eq.s32.totalorder %s25, 1
        // Predicated region
        $region97: #{denoising_genius_forward.27} parent=83 // pred_check
          %p1181 = pneg %p1180
        $region98: #{denoising_genius_forward.27} parent=83 // pred_check_branch
          %1183 = sbr.rel (%p1181) target = $region100
        $region99: #{denoising_genius_forward.27} parent=83 // pred_region
          %v1184 = vld [vmem:[#allocation2] sm:$0xff]
          %v1185 = vld [vmem:[#allocation2 + $0x8] sm:$0xff]
          %v1186 = vld [vmem:[#allocation2 + $0x10] sm:$0xff]
          %v1187 = vld [vmem:[#allocation2 + $0x18] sm:$0xff]
          %v1188 = vld [vmem:[%s482] sm:$0x1]
          %v1190 = vlaneseq
          %v1191 = vshrl.u32 %v1190, 7
          %v1192 = vsub.s32 0, %v1191
          %v1193 = vrot.slane %v1188, %v1192
          %v1195 = vadd.f32 %v1184, %v1193
          %v1196 = vadd.f32 %v1185, %v1193
          %v1197 = vadd.f32 %v1186, %v1193
          %v1198 = vadd.f32 %v1187, %v1193
          %v1199 = vpack.c.bf16 %v1196, %v1195
          %v1200 = vpack.c.bf16 %v1198, %v1197
          %v1203 = vunpack.c.l.b16 %v1199
          %v1204 = vunpack.c.h.b16 %v1199
          %v1205 = vunpack.c.l.b16 %v1200
          %v1206 = vunpack.c.h.b16 %v1200
          %v1207 = vpack.c.b16 %v1203, %v1203
          %v1208 = vpack.c.b16 %v1204, %v1204
          %v1209 = vpack.c.b16 %v1205, %v1205
          %v1210 = vpack.c.b16 %v1206, %v1206
          %1215 = vst [vmem:[%s490] sm:$0xf] %v1207
          %1216 = vst [vmem:[%s490 + $0x4] sm:$0xf] %v1208
          %1217 = vst [vmem:[%s490 + $0x8] sm:$0xf] %v1209
          %1218 = vst [vmem:[%s490 + $0xc] sm:$0xf] %v1210
          %v1219 = vadd.f32 %v1184, %v1185
          %v1220 = vadd.f32 %v1219, %v1186
          %v1221 = vadd.f32 %v1220, %v1187
          %v1222 = vrot.slane %v1221, 4
          %v1223 = vadd.f32 %v1221, %v1222
          %v1224 = vrot.slane %v1223, 2
          %v1225 = vadd.f32 %v1223, %v1224
          %v1226 = vrot.slane %v1225, 1
          %v1227 = vadd.f32 %v1225, %v1226
          %v1228 = vmul.f32 %v1184, %v1184
          %v1229 = vmul.f32 %v1185, %v1185
          %v1230 = vmul.f32 %v1186, %v1186
          %v1231 = vmul.f32 %v1187, %v1187
          %v1232 = vadd.f32 %v1228, %v1229
          %v1233 = vadd.f32 %v1232, %v1230
          %v1234 = vadd.f32 %v1233, %v1231
          %v1235 = vrot.slane %v1234, 4
          %v1236 = vadd.f32 %v1234, %v1235
          %v1237 = vrot.slane %v1236, 2
          %v1238 = vadd.f32 %v1236, %v1237
          %v1239 = vrot.slane %v1238, 1
          %v1240 = vadd.f32 %v1238, %v1239
          %v1241 = vlaneseq
          %v1242 = vshrl.u32 %v1241, 7
          %vm1243 = vcmp.eq.s32.totalorder %v1242, 0
          %vm1244 = vcmp.eq.s32.totalorder %v1242, 1
          %v1245 = vsel %vm1244, %v1240, 0.0
          %v1246 = vsel %vm1243, %v1227, %v1245
          %1247 = vst [vmem:[%s498] sm:$0xff] %v1246
        $region100: #{denoising_genius_forward.27} parent=83 // pred_fallthru
          _
        %s1248 = smul.u32 4, %s23
        %p1249 = scmp.lt.s32.totalorder %s1248, 3
        %s1250 = scalar_select %p1249, %s1248, 3
        %p1251 = scmp.lt.s32.totalorder %s24, 0
        %s1252 = scalar_select %p1251, %s24, 0
        %s1253 = sadd.s32 %s1252, %s1250
        %s1254 = smul.addr %s1253, 4
        %s1255 = scalar_lea.vmem %s5, %s1254
        %p1256 = scmp.lt.s32.totalorder %s23, 0
        %s1257 = scalar_select %p1256, %s23, 0
        %p1258 = scmp.lt.s32.totalorder %s24, 0
        %s1259 = scalar_select %p1258, %s24, 0
        %s1260 = sadd.s32 %s1259, %s1257
        %s1261 = smul.addr %s1260, 8
        %s1262 = scalar_lea.vmem %s6, %s1261
        // Predicated region
        $region101: #{denoising_genius_forward.27} parent=83 // pred_check
          %p1263 = pneg %p195
        $region102: #{denoising_genius_forward.27} parent=83 // pred_check_branch
          %1265 = sbr.rel (%p1263) target = $region104
        $region103: #{denoising_genius_forward.27} parent=83 // pred_region
          %s1266 = smul.u32 4, %s23
        $region104: #{denoising_genius_forward.27} parent=83 // pred_fallthru
          _
        // Predicated region
        $region105: #{denoising_genius_forward.27} parent=83 // pred_check
          %p1267 = pneg %p223
        $region106: #{denoising_genius_forward.27} parent=83 // pred_check_branch
          %1269 = sbr.rel (%p1267) target = $region108
        $region107: #{denoising_genius_forward.27} parent=83 // pred_region
          _
        $region108: #{denoising_genius_forward.27} parent=83 // pred_fallthru
          _
        // Predicated region
        $region109: #{denoising_genius_forward.27} parent=83 // pred_check
          %p1270 = pneg %p195
        $region110: #{denoising_genius_forward.27} parent=83 // pred_check_branch
          %1272 = sbr.rel (%p1270) target = $region112
        $region111: #{denoising_genius_forward.27} parent=83 // pred_region
          %s1273 = smul.u32 4, %s23
          %p1274 = scmp.lt.s32.totalorder %s1273, 3
          %s1275 = scalar_select %p1274, %s1273, 3
          %p1276 = scmp.lt.s32.totalorder %s24, 0
          %s1277 = scalar_select %p1276, %s24, 0
          %s1278 = sadd.s32 %s1277, %s1275
          %s1279 = smul.addr %s1278, 4
          %s1280 = scalar_lea.vmem %s5, %s1279
        $region112: #{denoising_genius_forward.27} parent=83 // pred_fallthru
          _
        // Predicated region
        $region113: #{denoising_genius_forward.27} parent=83 // pred_check
          %p1281 = pneg %p223
        $region114: #{denoising_genius_forward.27} parent=83 // pred_check_branch
          %1283 = sbr.rel (%p1281) target = $region116
        $region115: #{denoising_genius_forward.27} parent=83 // pred_region
          %p1284 = scmp.lt.s32.totalorder %s23, 0
          %s1285 = scalar_select %p1284, %s23, 0
          %p1286 = scmp.lt.s32.totalorder %s24, 0
          %s1287 = scalar_select %p1286, %s24, 0
          %s1288 = sadd.s32 %s1287, %s1285
          %s1289 = smul.addr %s1288, 8
          %s1290 = scalar_lea.vmem %s6, %s1289
        $region116: #{denoising_genius_forward.27} parent=83 // pred_fallthru
          _
      $region84: #{denoising_genius_forward.27} parent=5 // pred_fallthru
        _
      %p1291 = scmp.le.s32.totalorder 2, %s13
      // Predicated region
      $region117: #{denoising_genius_forward.27} parent=5 // pred_check
        %p1292 = pneg %p1291
      $region118: #{denoising_genius_forward.27} parent=5 // pred_check_branch
        %1294 = sbr.rel (%p1292) target = $region120
      $region119: #{denoising_genius_forward.27} parent=5 // pred_region
        %s1295 = ssub.s32 %s13, 2
      $region120: #{denoising_genius_forward.27} parent=5 // pred_fallthru
        _
    $region6: #{denoising_genius_forward.27} parent=1 // loop_footer
      %s17 = sadd.s32 1, %s13
    $region7: #{denoising_genius_forward.27} parent=1 // loop_footer_branch
      %12 = sbr.rel target = $region3
    $region8: #{denoising_genius_forward.27} parent=1 // loop_exit
      _

// kernel: denoising_genius_forward.29
$region0: #{denoising_genius_forward.29}
  #allocation0 [shape = 'u32[]', space=smem, size = 0x4, offset = 0x4, fixed_abs, tag = 'smem constant byte address 0x4 - core index']
  #allocation1 [shape = 'u32[144,128]{1,0:T(1,128)}', space=vmem, size = 0x12000, scoped, tag = 'internal scratch']
  #allocation2 [shape = 'f32[128,128]{1,0:T(8,128)}', space=vmem, size = 0x10000, scoped, tag = 'scratch operand']
  %s0 = inlined_call_operand.vmem [shape: bf16[128,384], index: 0, kind: input, shape index: {}]
  %s1 = inlined_call_operand.vmem [shape: bf16[128,384], index: 1, kind: input, shape index: {}]
  %s2 = inlined_call_operand.vmem [shape: bf16[384,128], index: 2, kind: input, shape index: {}]
  %s3 = inlined_call_operand.vmem [shape: bf16[384,128], index: 3, kind: input, shape index: {}]
  %s4 = inlined_call_operand.vmem [shape: f32[1,128], index: 4, kind: input, shape index: {}]
  %s5 = inlined_call_operand.vmem [shape: f32[128,128], index: 5, kind: output, shape index: {0}]
  %s6 = inlined_call_operand.hbm [shape: f32[1,8,128], index: 6, kind: output, shape index: {1}]
  %7 = xla_tuple %s5, %s6
  %s8 = sld [smem:[#allocation0]]
  $region46: #{denoising_genius_forward.29} parent=0
    _
  %s10 = ssub.s32 1, %s8
  %s11 = scalar_select 0, %s10, %s8
  $region1: #{denoising_genius_forward.29} parent=0
    #allocation3 [shape = 'u8[4096]{0}', space=vmem, size = 0x1000, scoped, tag = 'output window, operand 1, single buffered']
    #allocation4 [shape = 's32[1]{0}', space=sflag, size = 0x4, scoped, tag = 'scoped memory for denoising_genius_forward.29']
    %12 = vsyncpa [#allocation4], 0
    // Predicated region
    $region2: #{denoising_genius_forward.29} parent=1 // pred_check
      _
    $region3: #{denoising_genius_forward.29} parent=1 // pred_check_branch
      %14 = sbr.rel (0) target = $region5
    $region4: #{denoising_genius_forward.29} parent=1 // pred_region
      _
    $region5: #{denoising_genius_forward.29} parent=1 // pred_fallthru
      _
    // Predicated region
    $region6: #{denoising_genius_forward.29} parent=1 // pred_check
      _
    $region7: #{denoising_genius_forward.29} parent=1 // pred_check_branch
      %16 = sbr.rel (0) target = $region9
    $region8: #{denoising_genius_forward.29} parent=1 // pred_region
      _
    $region9: #{denoising_genius_forward.29} parent=1 // pred_fallthru
      _
    // Predicated region
    $region10: #{denoising_genius_forward.29} parent=1 // pred_check
      _
    $region11: #{denoising_genius_forward.29} parent=1 // pred_check_branch
      %18 = sbr.rel (0) target = $region13
    $region12: #{denoising_genius_forward.29} parent=1 // pred_region
      _
    $region13: #{denoising_genius_forward.29} parent=1 // pred_fallthru
      _
    // Predicated region
    $region14: #{denoising_genius_forward.29} parent=1 // pred_check
      _
    $region15: #{denoising_genius_forward.29} parent=1 // pred_check_branch
      %20 = sbr.rel (0) target = $region17
    $region16: #{denoising_genius_forward.29} parent=1 // pred_region
      _
    $region17: #{denoising_genius_forward.29} parent=1 // pred_fallthru
      _
    // Predicated region
    $region18: #{denoising_genius_forward.29} parent=1 // pred_check
      _
    $region19: #{denoising_genius_forward.29} parent=1 // pred_check_branch
      %22 = sbr.rel (0) target = $region21
    $region20: #{denoising_genius_forward.29} parent=1 // pred_region
      _
    $region21: #{denoising_genius_forward.29} parent=1 // pred_fallthru
      _
    %p24 = scmp.eq.s32.totalorder 0, 0
    // Predicated region
    $region22: #{denoising_genius_forward.29} parent=1 // pred_check
      %p25 = pneg %p24
    $region23: #{denoising_genius_forward.29} parent=1 // pred_check_branch
      %27 = sbr.rel (%p25) target = $region25
    $region24: #{denoising_genius_forward.29} parent=1 // pred_region
      %28 = vst [vmem:[#allocation2] sm:$0xff] 0.0
      %29 = vst [vmem:[#allocation2 + $0x8] sm:$0xff] 0.0
      %30 = vst [vmem:[#allocation2 + $0x10] sm:$0xff] 0.0
      %31 = vst [vmem:[#allocation2 + $0x18] sm:$0xff] 0.0
      %32 = vst [vmem:[#allocation2 + $0x20] sm:$0xff] 0.0
      %33 = vst [vmem:[#allocation2 + $0x28] sm:$0xff] 0.0
      %34 = vst [vmem:[#allocation2 + $0x30] sm:$0xff] 0.0
      %35 = vst [vmem:[#allocation2 + $0x38] sm:$0xff] 0.0
      %36 = vst [vmem:[#allocation2 + $0x40] sm:$0xff] 0.0
      %37 = vst [vmem:[#allocation2 + $0x48] sm:$0xff] 0.0
      %38 = vst [vmem:[#allocation2 + $0x50] sm:$0xff] 0.0
      %39 = vst [vmem:[#allocation2 + $0x58] sm:$0xff] 0.0
      %40 = vst [vmem:[#allocation2 + $0x60] sm:$0xff] 0.0
      %41 = vst [vmem:[#allocation2 + $0x68] sm:$0xff] 0.0
      %42 = vst [vmem:[#allocation2 + $0x70] sm:$0xff] 0.0
      %43 = vst [vmem:[#allocation2 + $0x78] sm:$0xff] 0.0
    $region25: #{denoising_genius_forward.29} parent=1 // pred_fallthru
      _
    %v44 = vld [vmem:[%s0] sm:$0xff]
    %v45 = vld [vmem:[%s0 + $0x8] sm:$0xf]
    %v46 = vld [vmem:[%s0 + $0xc] sm:$0xff]
    %v47 = vld [vmem:[%s0 + $0x14] sm:$0xf]
    %v48 = vld [vmem:[%s0 + $0x18] sm:$0xff]
    %v49 = vld [vmem:[%s0 + $0x20] sm:$0xf]
    %v50 = vld [vmem:[%s0 + $0x24] sm:$0xff]
    %v51 = vld [vmem:[%s0 + $0x2c] sm:$0xf]
    %v52 = vld [vmem:[%s0 + $0x30] sm:$0xff]
    %v53 = vld [vmem:[%s0 + $0x38] sm:$0xf]
    %v54 = vld [vmem:[%s0 + $0x3c] sm:$0xff]
    %v55 = vld [vmem:[%s0 + $0x44] sm:$0xf]
    %v56 = vld [vmem:[%s0 + $0x48] sm:$0xff]
    %v57 = vld [vmem:[%s0 + $0x50] sm:$0xf]
    %v58 = vld [vmem:[%s0 + $0x54] sm:$0xff]
    %v59 = vld [vmem:[%s0 + $0x5c] sm:$0xf]
    %v60 = vld [vmem:[%s0 + $0x60] sm:$0xff]
    %v61 = vld [vmem:[%s0 + $0x68] sm:$0xf]
    %v62 = vld [vmem:[%s0 + $0x6c] sm:$0xff]
    %v63 = vld [vmem:[%s0 + $0x74] sm:$0xf]
    %v64 = vld [vmem:[%s0 + $0x78] sm:$0xff]
    %v65 = vld [vmem:[%s0 + $0x80] sm:$0xf]
    %v66 = vld [vmem:[%s0 + $0x84] sm:$0xff]
    %v67 = vld [vmem:[%s0 + $0x8c] sm:$0xf]
    %v68 = vld [vmem:[%s0 + $0x90] sm:$0xff]
    %v69 = vld [vmem:[%s0 + $0x98] sm:$0xf]
    %v70 = vld [vmem:[%s0 + $0x9c] sm:$0xff]
    %v71 = vld [vmem:[%s0 + $0xa4] sm:$0xf]
    %v72 = vld [vmem:[%s0 + $0xa8] sm:$0xff]
    %v73 = vld [vmem:[%s0 + $0xb0] sm:$0xf]
    %v74 = vld [vmem:[%s0 + $0xb4] sm:$0xff]
    %v75 = vld [vmem:[%s0 + $0xbc] sm:$0xf]
    %v76 = vld [vmem:[%s2] sm:$0xf]
    %v77 = vld [vmem:[%s2 + $0x4] sm:$0xf]
    %v78 = vld [vmem:[%s2 + $0x8] sm:$0xf]
    %v79 = vld [vmem:[%s2 + $0xc] sm:$0xf]
    %v80 = vld [vmem:[%s2 + $0x10] sm:$0xf]
    %v81 = vld [vmem:[%s2 + $0x14] sm:$0xf]
    %v82 = vld [vmem:[%s2 + $0x18] sm:$0xf]
    %v83 = vld [vmem:[%s2 + $0x1c] sm:$0xf]
    %v84 = vld [vmem:[%s2 + $0x20] sm:$0xf]
    %v85 = vld [vmem:[%s2 + $0x24] sm:$0xf]
    %v86 = vld [vmem:[%s2 + $0x28] sm:$0xf]
    %v87 = vld [vmem:[%s2 + $0x2c] sm:$0xf]
    %v88 = vld [vmem:[%s2 + $0x30] sm:$0xf]
    %v89 = vld [vmem:[%s2 + $0x34] sm:$0xf]
    %v90 = vld [vmem:[%s2 + $0x38] sm:$0xf]
    %v91 = vld [vmem:[%s2 + $0x3c] sm:$0xf]
    %v92 = vld [vmem:[%s2 + $0x40] sm:$0xf]
    %v93 = vld [vmem:[%s2 + $0x44] sm:$0xf]
    %v94 = vld [vmem:[%s2 + $0x48] sm:$0xf]
    %v95 = vld [vmem:[%s2 + $0x4c] sm:$0xf]
    %v96 = vld [vmem:[%s2 + $0x50] sm:$0xf]
    %v97 = vld [vmem:[%s2 + $0x54] sm:$0xf]
    %v98 = vld [vmem:[%s2 + $0x58] sm:$0xf]
    %v99 = vld [vmem:[%s2 + $0x5c] sm:$0xf]
    %v100 = vld [vmem:[%s2 + $0x60] sm:$0xf]
    %v101 = vld [vmem:[%s2 + $0x64] sm:$0xf]
    %v102 = vld [vmem:[%s2 + $0x68] sm:$0xf]
    %v103 = vld [vmem:[%s2 + $0x6c] sm:$0xf]
    %v104 = vld [vmem:[%s2 + $0x70] sm:$0xf]
    %v105 = vld [vmem:[%s2 + $0x74] sm:$0xf]
    %v106 = vld [vmem:[%s2 + $0x78] sm:$0xf]
    %v107 = vld [vmem:[%s2 + $0x7c] sm:$0xf]
    %v108 = vld [vmem:[%s2 + $0x80] sm:$0xf]
    %v109 = vld [vmem:[%s2 + $0x84] sm:$0xf]
    %v110 = vld [vmem:[%s2 + $0x88] sm:$0xf]
    %v111 = vld [vmem:[%s2 + $0x8c] sm:$0xf]
    %v112 = vld [vmem:[%s2 + $0x90] sm:$0xf]
    %v113 = vld [vmem:[%s2 + $0x94] sm:$0xf]
    %v114 = vld [vmem:[%s2 + $0x98] sm:$0xf]
    %v115 = vld [vmem:[%s2 + $0x9c] sm:$0xf]
    %v116 = vld [vmem:[%s2 + $0xa0] sm:$0xf]
    %v117 = vld [vmem:[%s2 + $0xa4] sm:$0xf]
    %v118 = vld [vmem:[%s2 + $0xa8] sm:$0xf]
    %v119 = vld [vmem:[%s2 + $0xac] sm:$0xf]
    %v120 = vld [vmem:[%s2 + $0xb0] sm:$0xf]
    %v121 = vld [vmem:[%s2 + $0xb4] sm:$0xf]
    %v122 = vld [vmem:[%s2 + $0xb8] sm:$0xf]
    %v123 = vld [vmem:[%s2 + $0xbc] sm:$0xf]
    %v124 = vld [vmem:[%s1] sm:$0xff]
    %v125 = vld [vmem:[%s1 + $0x8] sm:$0xf]
    %v126 = vld [vmem:[%s1 + $0xc] sm:$0xff]
    %v127 = vld [vmem:[%s1 + $0x14] sm:$0xf]
    %v128 = vld [vmem:[%s1 + $0x18] sm:$0xff]
    %v129 = vld [vmem:[%s1 + $0x20] sm:$0xf]
    %v130 = vld [vmem:[%s1 + $0x24] sm:$0xff]
    %v131 = vld [vmem:[%s1 + $0x2c] sm:$0xf]
    %v132 = vld [vmem:[%s1 + $0x30] sm:$0xff]
    %v133 = vld [vmem:[%s1 + $0x38] sm:$0xf]
    %v134 = vld [vmem:[%s1 + $0x3c] sm:$0xff]
    %v135 = vld [vmem:[%s1 + $0x44] sm:$0xf]
    %v136 = vld [vmem:[%s1 + $0x48] sm:$0xff]
    %v137 = vld [vmem:[%s1 + $0x50] sm:$0xf]
    %v138 = vld [vmem:[%s1 + $0x54] sm:$0xff]
    %v139 = vld [vmem:[%s1 + $0x5c] sm:$0xf]
    %v140 = vld [vmem:[%s1 + $0x60] sm:$0xff]
    %v141 = vld [vmem:[%s1 + $0x68] sm:$0xf]
    %v142 = vld [vmem:[%s1 + $0x6c] sm:$0xff]
    %v143 = vld [vmem:[%s1 + $0x74] sm:$0xf]
    %v144 = vld [vmem:[%s1 + $0x78] sm:$0xff]
    %v145 = vld [vmem:[%s1 + $0x80] sm:$0xf]
    %v146 = vld [vmem:[%s1 + $0x84] sm:$0xff]
    %v147 = vld [vmem:[%s1 + $0x8c] sm:$0xf]
    %v148 = vld [vmem:[%s1 + $0x90] sm:$0xff]
    %v149 = vld [vmem:[%s1 + $0x98] sm:$0xf]
    %v150 = vld [vmem:[%s1 + $0x9c] sm:$0xff]
    %v151 = vld [vmem:[%s1 + $0xa4] sm:$0xf]
    %v152 = vld [vmem:[%s1 + $0xa8] sm:$0xff]
    %v153 = vld [vmem:[%s1 + $0xb0] sm:$0xf]
    %v154 = vld [vmem:[%s1 + $0xb4] sm:$0xff]
    %v155 = vld [vmem:[%s1 + $0xbc] sm:$0xf]
    %v156 = vld [vmem:[%s3] sm:$0xf]
    %v157 = vld [vmem:[%s3 + $0x4] sm:$0xf]
    %v158 = vld [vmem:[%s3 + $0x8] sm:$0xf]
    %v159 = vld [vmem:[%s3 + $0xc] sm:$0xf]
    %v160 = vld [vmem:[%s3 + $0x10] sm:$0xf]
    %v161 = vld [vmem:[%s3 + $0x14] sm:$0xf]
    %v162 = vld [vmem:[%s3 + $0x18] sm:$0xf]
    %v163 = vld [vmem:[%s3 + $0x1c] sm:$0xf]
    %v164 = vld [vmem:[%s3 + $0x20] sm:$0xf]
    %v165 = vld [vmem:[%s3 + $0x24] sm:$0xf]
    %v166 = vld [vmem:[%s3 + $0x28] sm:$0xf]
    %v167 = vld [vmem:[%s3 + $0x2c] sm:$0xf]
    %v168 = vld [vmem:[%s3 + $0x30] sm:$0xf]
    %v169 = vld [vmem:[%s3 + $0x34] sm:$0xf]
    %v170 = vld [vmem:[%s3 + $0x38] sm:$0xf]
    %v171 = vld [vmem:[%s3 + $0x3c] sm:$0xf]
    %v172 = vld [vmem:[%s3 + $0x40] sm:$0xf]
    %v173 = vld [vmem:[%s3 + $0x44] sm:$0xf]
    %v174 = vld [vmem:[%s3 + $0x48] sm:$0xf]
    %v175 = vld [vmem:[%s3 + $0x4c] sm:$0xf]
    %v176 = vld [vmem:[%s3 + $0x50] sm:$0xf]
    %v177 = vld [vmem:[%s3 + $0x54] sm:$0xf]
    %v178 = vld [vmem:[%s3 + $0x58] sm:$0xf]
    %v179 = vld [vmem:[%s3 + $0x5c] sm:$0xf]
    %v180 = vld [vmem:[%s3 + $0x60] sm:$0xf]
    %v181 = vld [vmem:[%s3 + $0x64] sm:$0xf]
    %v182 = vld [vmem:[%s3 + $0x68] sm:$0xf]
    %v183 = vld [vmem:[%s3 + $0x6c] sm:$0xf]
    %v184 = vld [vmem:[%s3 + $0x70] sm:$0xf]
    %v185 = vld [vmem:[%s3 + $0x74] sm:$0xf]
    %v186 = vld [vmem:[%s3 + $0x78] sm:$0xf]
    %v187 = vld [vmem:[%s3 + $0x7c] sm:$0xf]
    %v188 = vld [vmem:[%s3 + $0x80] sm:$0xf]
    %v189 = vld [vmem:[%s3 + $0x84] sm:$0xf]
    %v190 = vld [vmem:[%s3 + $0x88] sm:$0xf]
    %v191 = vld [vmem:[%s3 + $0x8c] sm:$0xf]
    %v192 = vld [vmem:[%s3 + $0x90] sm:$0xf]
    %v193 = vld [vmem:[%s3 + $0x94] sm:$0xf]
    %v194 = vld [vmem:[%s3 + $0x98] sm:$0xf]
    %v195 = vld [vmem:[%s3 + $0x9c] sm:$0xf]
    %v196 = vld [vmem:[%s3 + $0xa0] sm:$0xf]
    %v197 = vld [vmem:[%s3 + $0xa4] sm:$0xf]
    %v198 = vld [vmem:[%s3 + $0xa8] sm:$0xf]
    %v199 = vld [vmem:[%s3 + $0xac] sm:$0xf]
    %v200 = vld [vmem:[%s3 + $0xb0] sm:$0xf]
    %v201 = vld [vmem:[%s3 + $0xb4] sm:$0xf]
    %v202 = vld [vmem:[%s3 + $0xb8] sm:$0xf]
    %v203 = vld [vmem:[%s3 + $0xbc] sm:$0xf]
    %v236 = vunpack.c.l.b16 %v124
    %v237 = vunpack.c.h.b16 %v124
    %v238 = vunpack.c.l.b16 %v125
    %v239 = vunpack.c.l.b16 %v126
    %v240 = vunpack.c.h.b16 %v126
    %v241 = vunpack.c.l.b16 %v127
    %v242 = vunpack.c.l.b16 %v128
    %v243 = vunpack.c.h.b16 %v128
    %v244 = vunpack.c.l.b16 %v129
    %v245 = vunpack.c.l.b16 %v130
    %v246 = vunpack.c.h.b16 %v130
    %v247 = vunpack.c.l.b16 %v131
    %v248 = vunpack.c.l.b16 %v132
    %v249 = vunpack.c.h.b16 %v132
    %v250 = vunpack.c.l.b16 %v133
    %v251 = vunpack.c.l.b16 %v134
    %v252 = vunpack.c.h.b16 %v134
    %v253 = vunpack.c.l.b16 %v135
    %v254 = vunpack.c.l.b16 %v136
    %v255 = vunpack.c.h.b16 %v136
    %v256 = vunpack.c.l.b16 %v137
    %v257 = vunpack.c.l.b16 %v138
    %v258 = vunpack.c.h.b16 %v138
    %v259 = vunpack.c.l.b16 %v139
    %v260 = vunpack.c.l.b16 %v140
    %v261 = vunpack.c.h.b16 %v140
    %v262 = vunpack.c.l.b16 %v141
    %v263 = vunpack.c.l.b16 %v142
    %v264 = vunpack.c.h.b16 %v142
    %v265 = vunpack.c.l.b16 %v143
    %v266 = vunpack.c.l.b16 %v144
    %v267 = vunpack.c.h.b16 %v144
    %v268 = vunpack.c.l.b16 %v145
    %v269 = vunpack.c.l.b16 %v146
    %v270 = vunpack.c.h.b16 %v146
    %v271 = vunpack.c.l.b16 %v147
    %v272 = vunpack.c.l.b16 %v148
    %v273 = vunpack.c.h.b16 %v148
    %v274 = vunpack.c.l.b16 %v149
    %v275 = vunpack.c.l.b16 %v150
    %v276 = vunpack.c.h.b16 %v150
    %v277 = vunpack.c.l.b16 %v151
    %v278 = vunpack.c.l.b16 %v152
    %v279 = vunpack.c.h.b16 %v152
    %v280 = vunpack.c.l.b16 %v153
    %v281 = vunpack.c.l.b16 %v154
    %v282 = vunpack.c.h.b16 %v154
    %v283 = vunpack.c.l.b16 %v155
    %v284 = vpack.c.b16 %v239, %v236
    %v285 = vpack.c.b16 %v240, %v237
    %v286 = vpack.c.b16 %v241, %v238
    %v287 = vpack.c.b16 %v245, %v242
    %v288 = vpack.c.b16 %v246, %v243
    %v289 = vpack.c.b16 %v247, %v244
    %v290 = vpack.c.b16 %v251, %v248
    %v291 = vpack.c.b16 %v252, %v249
    %v292 = vpack.c.b16 %v253, %v250
    %v293 = vpack.c.b16 %v257, %v254
    %v294 = vpack.c.b16 %v258, %v255
    %v295 = vpack.c.b16 %v259, %v256
    %v296 = vpack.c.b16 %v263, %v260
    %v297 = vpack.c.b16 %v264, %v261
    %v298 = vpack.c.b16 %v265, %v262
    %v299 = vpack.c.b16 %v269, %v266
    %v300 = vpack.c.b16 %v270, %v267
    %v301 = vpack.c.b16 %v271, %v268
    %v302 = vpack.c.b16 %v275, %v272
    %v303 = vpack.c.b16 %v276, %v273
    %v304 = vpack.c.b16 %v277, %v274
    %v305 = vpack.c.b16 %v281, %v278
    %v306 = vpack.c.b16 %v282, %v279
    %v307 = vpack.c.b16 %v283, %v280
    %v380 = vunpack.c.l.b16 %v156
    %v381 = vunpack.c.l.b16 %v157
    %v382 = vunpack.c.l.b16 %v158
    %v383 = vunpack.c.l.b16 %v159
    %v384 = vunpack.c.l.b16 %v160
    %v385 = vunpack.c.l.b16 %v161
    %v386 = vunpack.c.l.b16 %v162
    %v387 = vunpack.c.l.b16 %v163
    %v388 = vunpack.c.l.b16 %v164
    %v389 = vunpack.c.l.b16 %v165
    %v390 = vunpack.c.l.b16 %v166
    %v391 = vunpack.c.l.b16 %v167
    %v392 = vunpack.c.l.b16 %v168
    %v393 = vunpack.c.l.b16 %v169
    %v394 = vunpack.c.l.b16 %v170
    %v395 = vunpack.c.l.b16 %v171
    %v396 = vunpack.c.l.b16 %v172
    %v397 = vunpack.c.l.b16 %v173
    %v398 = vunpack.c.l.b16 %v174
    %v399 = vunpack.c.l.b16 %v175
    %v400 = vunpack.c.l.b16 %v176
    %v401 = vunpack.c.l.b16 %v177
    %v402 = vunpack.c.l.b16 %v178
    %v403 = vunpack.c.l.b16 %v179
    %v404 = vunpack.c.l.b16 %v180
    %v405 = vunpack.c.l.b16 %v181
    %v406 = vunpack.c.l.b16 %v182
    %v407 = vunpack.c.l.b16 %v183
    %v408 = vunpack.c.l.b16 %v184
    %v409 = vunpack.c.l.b16 %v185
    %v410 = vunpack.c.l.b16 %v186
    %v411 = vunpack.c.l.b16 %v187
    %v412 = vunpack.c.l.b16 %v188
    %v413 = vunpack.c.l.b16 %v189
    %v414 = vunpack.c.l.b16 %v190
    %v415 = vunpack.c.l.b16 %v191
    %v416 = vunpack.c.l.b16 %v192
    %v417 = vunpack.c.l.b16 %v193
    %v418 = vunpack.c.l.b16 %v194
    %v419 = vunpack.c.l.b16 %v195
    %v420 = vunpack.c.l.b16 %v196
    %v421 = vunpack.c.l.b16 %v197
    %v422 = vunpack.c.l.b16 %v198
    %v423 = vunpack.c.l.b16 %v199
    %v424 = vunpack.c.l.b16 %v200
    %v425 = vunpack.c.l.b16 %v201
    %v426 = vunpack.c.l.b16 %v202
    %v427 = vunpack.c.l.b16 %v203
    %v428 = vpack.c.b16 %v381, %v380
    %v429 = vpack.c.b16 %v383, %v382
    %v430 = vpack.c.b16 %v385, %v384
    %v431 = vpack.c.b16 %v387, %v386
    %v432 = vpack.c.b16 %v389, %v388
    %v433 = vpack.c.b16 %v391, %v390
    %v434 = vpack.c.b16 %v393, %v392
    %v435 = vpack.c.b16 %v395, %v394
    %v436 = vpack.c.b16 %v397, %v396
    %v437 = vpack.c.b16 %v399, %v398
    %v438 = vpack.c.b16 %v401, %v400
    %v439 = vpack.c.b16 %v403, %v402
    %v440 = vpack.c.b16 %v405, %v404
    %v441 = vpack.c.b16 %v407, %v406
    %v442 = vpack.c.b16 %v409, %v408
    %v443 = vpack.c.b16 %v411, %v410
    %v444 = vpack.c.b16 %v413, %v412
    %v445 = vpack.c.b16 %v415, %v414
    %v446 = vpack.c.b16 %v417, %v416
    %v447 = vpack.c.b16 %v419, %v418
    %v448 = vpack.c.b16 %v421, %v420
    %v449 = vpack.c.b16 %v423, %v422
    %v450 = vpack.c.b16 %v425, %v424
    %v451 = vpack.c.b16 %v427, %v426
    %476 = vmatprep.subr.bf16.mxu0 0
    %477 = vmatpush1.bf16.msra.mxu0 %v428
    %478 = vmatprep.subr.bf16.mxu0 0
    %479 = vmatpush1.bf16.msra.mxu0 %v429
    %480 = vmatprep.subr.bf16.mxu0 0
    %481 = vmatpush1.bf16.msra.mxu0 %v430
    %482 = vmatprep.subr.bf16.mxu0 0
    %483 = vmatpush1.bf16.msra.mxu0 %v431
    %484 = vmatprep.subr.bf16.mxu0 0
    %485 = vmatpush1.bf16.msra.mxu0 %v432
    %486 = vmatprep.subr.bf16.mxu0 0
    %487 = vmatpush1.bf16.msra.mxu0 %v433
    %488 = vmatprep.subr.bf16.mxu0 0
    %489 = vmatpush1.bf16.msra.mxu0 %v434
    %490 = vmatprep.subr.bf16.mxu0 0
    %491 = vmatpush1.bf16.msra.mxu0 %v435
    %492 = vmatprep.subr.bf16.mxu0 0
    %493 = vmatpush1.bf16.msra.mxu0 %v436
    %494 = vmatprep.subr.bf16.mxu0 0
    %495 = vmatpush1.bf16.msra.mxu0 %v437
    %496 = vmatprep.subr.bf16.mxu0 0
    %497 = vmatpush1.bf16.msra.mxu0 %v438
    %498 = vmatprep.subr.bf16.mxu0 0
    %499 = vmatpush1.bf16.msra.mxu0 %v439
    %500 = vmatprep.subr.bf16.mxu0 0
    %501 = vmatpush1.bf16.msra.mxu0 %v440
    %502 = vmatprep.subr.bf16.mxu0 0
    %503 = vmatpush1.bf16.msra.mxu0 %v441
    %504 = vmatprep.subr.bf16.mxu0 0
    %505 = vmatpush1.bf16.msra.mxu0 %v442
    %506 = vmatprep.subr.bf16.mxu0 0
    %507 = vmatpush1.bf16.msra.mxu0 %v443
    %508 = vmatprep.mubr.bf16.mxu0 %v285
    %509 = vmatmul.mubr.bf16.gmra.mrb[0].mxu0 %v284
    %v510 = vpop.f32.mrb[0].mxu0
    %v511 = vadd.f32 0.0, %v510
    %v512 = vpop.f32.mrb[0].mxu0
    %v513 = vpop.f32.mrb[0].mxu0
    %v514 = vadd.f32 0.0, %v513
    %v515 = vpop.f32.mrb[0].mxu0
    %516 = vmatprep.mubr.bf16.mxu0 %v288
    %517 = vmatmul.mubr.bf16.gmra.mrb[0].mxu0 %v287
    %v518 = vpop.f32.mrb[0].mxu0
    %v519 = vadd.f32 0.0, %v518
    %v520 = vpop.f32.mrb[0].mxu0
    %v521 = vpop.f32.mrb[0].mxu0
    %v522 = vadd.f32 0.0, %v521
    %v523 = vpop.f32.mrb[0].mxu0
    %524 = vmatprep.mubr.bf16.mxu0 %v291
    %525 = vmatmul.mubr.bf16.gmra.mrb[0].mxu0 %v290
    %v526 = vpop.f32.mrb[0].mxu0
    %v527 = vadd.f32 0.0, %v526
    %v528 = vpop.f32.mrb[0].mxu0
    %v529 = vpop.f32.mrb[0].mxu0
    %v530 = vadd.f32 0.0, %v529
    %v531 = vpop.f32.mrb[0].mxu0
    %532 = vmatprep.mubr.bf16.mxu0 %v294
    %533 = vmatmul.mubr.bf16.gmra.mrb[0].mxu0 %v293
    %v534 = vpop.f32.mrb[0].mxu0
    %v535 = vadd.f32 0.0, %v534
    %v536 = vpop.f32.mrb[0].mxu0
    %v537 = vpop.f32.mrb[0].mxu0
    %v538 = vadd.f32 0.0, %v537
    %v539 = vpop.f32.mrb[0].mxu0
    %540 = vmatprep.mubr.bf16.mxu0 %v297
    %541 = vmatmul.mubr.bf16.gmra.mrb[0].mxu0 %v296
    %v542 = vpop.f32.mrb[0].mxu0
    %v543 = vadd.f32 0.0, %v542
    %v544 = vpop.f32.mrb[0].mxu0
    %v545 = vpop.f32.mrb[0].mxu0
    %v546 = vadd.f32 0.0, %v545
    %v547 = vpop.f32.mrb[0].mxu0
    %548 = vmatprep.mubr.bf16.mxu0 %v300
    %549 = vmatmul.mubr.bf16.gmra.mrb[0].mxu0 %v299
    %v550 = vpop.f32.mrb[0].mxu0
    %v551 = vadd.f32 0.0, %v550
    %v552 = vpop.f32.mrb[0].mxu0
    %v553 = vpop.f32.mrb[0].mxu0
    %v554 = vadd.f32 0.0, %v553
    %v555 = vpop.f32.mrb[0].mxu0
    %556 = vmatprep.mubr.bf16.mxu0 %v303
    %557 = vmatmul.mubr.bf16.gmra.mrb[0].mxu0 %v302
    %v558 = vpop.f32.mrb[0].mxu0
    %v559 = vadd.f32 0.0, %v558
    %v560 = vpop.f32.mrb[0].mxu0
    %v561 = vpop.f32.mrb[0].mxu0
    %v562 = vadd.f32 0.0, %v561
    %v563 = vpop.f32.mrb[0].mxu0
    %564 = vmatprep.mubr.bf16.mxu0 %v306
    %565 = vmatmul.mubr.bf16.gmra.mrb[0].mxu0 %v305
    %v566 = vpop.f32.mrb[0].mxu0
    %v567 = vadd.f32 0.0, %v566
    %v568 = vpop.f32.mrb[0].mxu0
    %v569 = vpop.f32.mrb[0].mxu0
    %v570 = vadd.f32 0.0, %v569
    %v571 = vpop.f32.mrb[0].mxu0
    %572 = vdwg.mxu0
    %573 = vmatprep.subr.bf16.mxu0 0
    %574 = vmatpush1.bf16.msra.mxu0 %v444
    %575 = vmatprep.subr.bf16.mxu0 0
    %576 = vmatpush1.bf16.msra.mxu0 %v445
    %577 = vmatprep.subr.bf16.mxu0 0
    %578 = vmatpush1.bf16.msra.mxu0 %v446
    %579 = vmatprep.subr.bf16.mxu0 0
    %580 = vmatpush1.bf16.msra.mxu0 %v447
    %581 = vmatprep.subr.bf16.mxu0 0
    %582 = vmatpush1.bf16.msra.mxu0 %v448
    %583 = vmatprep.subr.bf16.mxu0 0
    %584 = vmatpush1.bf16.msra.mxu0 %v449
    %585 = vmatprep.subr.bf16.mxu0 0
    %586 = vmatpush1.bf16.msra.mxu0 %v450
    %587 = vmatprep.subr.bf16.mxu0 0
    %588 = vmatpush1.bf16.msra.mxu0 %v451
    %589 = vmatprep.subr.bf16.mxu0 0
    %590 = vmatpush1.bf16.msra.mxu0 0
    %591 = vmatprep.subr.bf16.mxu0 0
    %592 = vmatpush1.bf16.msra.mxu0 0
    %593 = vmatprep.subr.bf16.mxu0 0
    %594 = vmatpush1.bf16.msra.mxu0 0
    %595 = vmatprep.subr.bf16.mxu0 0
    %596 = vmatpush1.bf16.msra.mxu0 0
    %597 = vmatprep.subr.bf16.mxu0 0
    %598 = vmatpush1.bf16.msra.mxu0 0
    %599 = vmatprep.subr.bf16.mxu0 0
    %600 = vmatpush1.bf16.msra.mxu0 0
    %601 = vmatprep.subr.bf16.mxu0 0
    %602 = vmatpush1.bf16.msra.mxu0 0
    %603 = vmatprep.subr.bf16.mxu0 0
    %604 = vmatpush1.bf16.msra.mxu0 0
    %605 = vmatprep.mubr.bf16.mxu0 0
    %606 = vmatmul.mubr.bf16.gmra.mrb[0].mxu0 %v286
    %v607 = vpop.f32.mrb[0].mxu0
    %v608 = vadd.f32 %v511, %v607
    %v609 = vpop.f32.mrb[0].mxu0
    %v610 = vpop.f32.mrb[0].mxu0
    %v611 = vadd.f32 %v514, %v610
    %v612 = vpop.f32.mrb[0].mxu0
    %613 = vmatprep.mubr.bf16.mxu0 0
    %614 = vmatmul.mubr.bf16.gmra.mrb[0].mxu0 %v289
    %v615 = vpop.f32.mrb[0].mxu0
    %v616 = vadd.f32 %v519, %v615
    %v617 = vpop.f32.mrb[0].mxu0
    %v618 = vpop.f32.mrb[0].mxu0
    %v619 = vadd.f32 %v522, %v618
    %v620 = vpop.f32.mrb[0].mxu0
    %621 = vmatprep.mubr.bf16.mxu0 0
    %622 = vmatmul.mubr.bf16.gmra.mrb[0].mxu0 %v292
    %v623 = vpop.f32.mrb[0].mxu0
    %v624 = vadd.f32 %v527, %v623
    %v625 = vpop.f32.mrb[0].mxu0
    %v626 = vpop.f32.mrb[0].mxu0
    %v627 = vadd.f32 %v530, %v626
    %v628 = vpop.f32.mrb[0].mxu0
    %629 = vmatprep.mubr.bf16.mxu0 0
    %630 = vmatmul.mubr.bf16.gmra.mrb[0].mxu0 %v295
    %v631 = vpop.f32.mrb[0].mxu0
    %v632 = vadd.f32 %v535, %v631
    %v633 = vpop.f32.mrb[0].mxu0
    %v634 = vpop.f32.mrb[0].mxu0
    %v635 = vadd.f32 %v538, %v634
    %v636 = vpop.f32.mrb[0].mxu0
    %637 = vmatprep.mubr.bf16.mxu0 0
    %638 = vmatmul.mubr.bf16.gmra.mrb[0].mxu0 %v298
    %v639 = vpop.f32.mrb[0].mxu0
    %v640 = vadd.f32 %v543, %v639
    %v641 = vpop.f32.mrb[0].mxu0
    %v642 = vpop.f32.mrb[0].mxu0
    %v643 = vadd.f32 %v546, %v642
    %v644 = vpop.f32.mrb[0].mxu0
    %645 = vmatprep.mubr.bf16.mxu0 0
    %646 = vmatmul.mubr.bf16.gmra.mrb[0].mxu0 %v301
    %v647 = vpop.f32.mrb[0].mxu0
    %v648 = vadd.f32 %v551, %v647
    %v649 = vpop.f32.mrb[0].mxu0
    %v650 = vpop.f32.mrb[0].mxu0
    %v651 = vadd.f32 %v554, %v650
    %v652 = vpop.f32.mrb[0].mxu0
    %653 = vmatprep.mubr.bf16.mxu0 0
    %654 = vmatmul.mubr.bf16.gmra.mrb[0].mxu0 %v304
    %v655 = vpop.f32.mrb[0].mxu0
    %v656 = vadd.f32 %v559, %v655
    %v657 = vpop.f32.mrb[0].mxu0
    %v658 = vpop.f32.mrb[0].mxu0
    %v659 = vadd.f32 %v562, %v658
    %v660 = vpop.f32.mrb[0].mxu0
    %661 = vmatprep.mubr.bf16.mxu0 0
    %662 = vmatmul.mubr.bf16.gmra.mrb[0].mxu0 %v307
    %v663 = vpop.f32.mrb[0].mxu0
    %v664 = vadd.f32 %v567, %v663
    %v665 = vpop.f32.mrb[0].mxu0
    %v666 = vpop.f32.mrb[0].mxu0
    %v667 = vadd.f32 %v570, %v666
    %v668 = vpop.f32.mrb[0].mxu0
    %669 = vdwg.mxu0
    %v702 = vunpack.c.l.b16 %v44
    %v703 = vunpack.c.h.b16 %v44
    %v704 = vunpack.c.l.b16 %v45
    %v705 = vunpack.c.l.b16 %v46
    %v706 = vunpack.c.h.b16 %v46
    %v707 = vunpack.c.l.b16 %v47
    %v708 = vunpack.c.l.b16 %v48
    %v709 = vunpack.c.h.b16 %v48
    %v710 = vunpack.c.l.b16 %v49
    %v711 = vunpack.c.l.b16 %v50
    %v712 = vunpack.c.h.b16 %v50
    %v713 = vunpack.c.l.b16 %v51
    %v714 = vunpack.c.l.b16 %v52
    %v715 = vunpack.c.h.b16 %v52
    %v716 = vunpack.c.l.b16 %v53
    %v717 = vunpack.c.l.b16 %v54
    %v718 = vunpack.c.h.b16 %v54
    %v719 = vunpack.c.l.b16 %v55
    %v720 = vunpack.c.l.b16 %v56
    %v721 = vunpack.c.h.b16 %v56
    %v722 = vunpack.c.l.b16 %v57
    %v723 = vunpack.c.l.b16 %v58
    %v724 = vunpack.c.h.b16 %v58
    %v725 = vunpack.c.l.b16 %v59
    %v726 = vunpack.c.l.b16 %v60
    %v727 = vunpack.c.h.b16 %v60
    %v728 = vunpack.c.l.b16 %v61
    %v729 = vunpack.c.l.b16 %v62
    %v730 = vunpack.c.h.b16 %v62
    %v731 = vunpack.c.l.b16 %v63
    %v732 = vunpack.c.l.b16 %v64
    %v733 = vunpack.c.h.b16 %v64
    %v734 = vunpack.c.l.b16 %v65
    %v735 = vunpack.c.l.b16 %v66
    %v736 = vunpack.c.h.b16 %v66
    %v737 = vunpack.c.l.b16 %v67
    %v738 = vunpack.c.l.b16 %v68
    %v739 = vunpack.c.h.b16 %v68
    %v740 = vunpack.c.l.b16 %v69
    %v741 = vunpack.c.l.b16 %v70
    %v742 = vunpack.c.h.b16 %v70
    %v743 = vunpack.c.l.b16 %v71
    %v744 = vunpack.c.l.b16 %v72
    %v745 = vunpack.c.h.b16 %v72
    %v746 = vunpack.c.l.b16 %v73
    %v747 = vunpack.c.l.b16 %v74
    %v748 = vunpack.c.h.b16 %v74
    %v749 = vunpack.c.l.b16 %v75
    %v750 = vpack.c.b16 %v705, %v702
    %v751 = vpack.c.b16 %v706, %v703
    %v752 = vpack.c.b16 %v707, %v704
    %v753 = vpack.c.b16 %v711, %v708
    %v754 = vpack.c.b16 %v712, %v709
    %v755 = vpack.c.b16 %v713, %v710
    %v756 = vpack.c.b16 %v717, %v714
    %v757 = vpack.c.b16 %v718, %v715
    %v758 = vpack.c.b16 %v719, %v716
    %v759 = vpack.c.b16 %v723, %v720
    %v760 = vpack.c.b16 %v724, %v721
    %v761 = vpack.c.b16 %v725, %v722
    %v762 = vpack.c.b16 %v729, %v726
    %v763 = vpack.c.b16 %v730, %v727
    %v764 = vpack.c.b16 %v731, %v728
    %v765 = vpack.c.b16 %v735, %v732
    %v766 = vpack.c.b16 %v736, %v733
    %v767 = vpack.c.b16 %v737, %v734
    %v768 = vpack.c.b16 %v741, %v738
    %v769 = vpack.c.b16 %v742, %v739
    %v770 = vpack.c.b16 %v743, %v740
    %v771 = vpack.c.b16 %v747, %v744
    %v772 = vpack.c.b16 %v748, %v745
    %v773 = vpack.c.b16 %v749, %v746
    %v846 = vunpack.c.l.b16 %v76
    %v847 = vunpack.c.l.b16 %v77
    %v848 = vunpack.c.l.b16 %v78
    %v849 = vunpack.c.l.b16 %v79
    %v850 = vunpack.c.l.b16 %v80
    %v851 = vunpack.c.l.b16 %v81
    %v852 = vunpack.c.l.b16 %v82
    %v853 = vunpack.c.l.b16 %v83
    %v854 = vunpack.c.l.b16 %v84
    %v855 = vunpack.c.l.b16 %v85
    %v856 = vunpack.c.l.b16 %v86
    %v857 = vunpack.c.l.b16 %v87
    %v858 = vunpack.c.l.b16 %v88
    %v859 = vunpack.c.l.b16 %v89
    %v860 = vunpack.c.l.b16 %v90
    %v861 = vunpack.c.l.b16 %v91
    %v862 = vunpack.c.l.b16 %v92
    %v863 = vunpack.c.l.b16 %v93
    %v864 = vunpack.c.l.b16 %v94
    %v865 = vunpack.c.l.b16 %v95
    %v866 = vunpack.c.l.b16 %v96
    %v867 = vunpack.c.l.b16 %v97
    %v868 = vunpack.c.l.b16 %v98
    %v869 = vunpack.c.l.b16 %v99
    %v870 = vunpack.c.l.b16 %v100
    %v871 = vunpack.c.l.b16 %v101
    %v872 = vunpack.c.l.b16 %v102
    %v873 = vunpack.c.l.b16 %v103
    %v874 = vunpack.c.l.b16 %v104
    %v875 = vunpack.c.l.b16 %v105
    %v876 = vunpack.c.l.b16 %v106
    %v877 = vunpack.c.l.b16 %v107
    %v878 = vunpack.c.l.b16 %v108
    %v879 = vunpack.c.l.b16 %v109
    %v880 = vunpack.c.l.b16 %v110
    %v881 = vunpack.c.l.b16 %v111
    %v882 = vunpack.c.l.b16 %v112
    %v883 = vunpack.c.l.b16 %v113
    %v884 = vunpack.c.l.b16 %v114
    %v885 = vunpack.c.l.b16 %v115
    %v886 = vunpack.c.l.b16 %v116
    %v887 = vunpack.c.l.b16 %v117
    %v888 = vunpack.c.l.b16 %v118
    %v889 = vunpack.c.l.b16 %v119
    %v890 = vunpack.c.l.b16 %v120
    %v891 = vunpack.c.l.b16 %v121
    %v892 = vunpack.c.l.b16 %v122
    %v893 = vunpack.c.l.b16 %v123
    %v894 = vpack.c.b16 %v847, %v846
    %v895 = vpack.c.b16 %v849, %v848
    %v896 = vpack.c.b16 %v851, %v850
    %v897 = vpack.c.b16 %v853, %v852
    %v898 = vpack.c.b16 %v855, %v854
    %v899 = vpack.c.b16 %v857, %v856
    %v900 = vpack.c.b16 %v859, %v858
    %v901 = vpack.c.b16 %v861, %v860
    %v902 = vpack.c.b16 %v863, %v862
    %v903 = vpack.c.b16 %v865, %v864
    %v904 = vpack.c.b16 %v867, %v866
    %v905 = vpack.c.b16 %v869, %v868
    %v906 = vpack.c.b16 %v871, %v870
    %v907 = vpack.c.b16 %v873, %v872
    %v908 = vpack.c.b16 %v875, %v874
    %v909 = vpack.c.b16 %v877, %v876
    %v910 = vpack.c.b16 %v879, %v878
    %v911 = vpack.c.b16 %v881, %v880
    %v912 = vpack.c.b16 %v883, %v882
    %v913 = vpack.c.b16 %v885, %v884
    %v914 = vpack.c.b16 %v887, %v886
    %v915 = vpack.c.b16 %v889, %v888
    %v916 = vpack.c.b16 %v891, %v890
    %v917 = vpack.c.b16 %v893, %v892
    %942 = vmatprep.subr.bf16.mxu0 0
    %943 = vmatpush1.bf16.msra.mxu0 %v894
    %944 = vmatprep.subr.bf16.mxu0 0
    %945 = vmatpush1.bf16.msra.mxu0 %v895
    %946 = vmatprep.subr.bf16.mxu0 0
    %947 = vmatpush1.bf16.msra.mxu0 %v896
    %948 = vmatprep.subr.bf16.mxu0 0
    %949 = vmatpush1.bf16.msra.mxu0 %v897
    %950 = vmatprep.subr.bf16.mxu0 0
    %951 = vmatpush1.bf16.msra.mxu0 %v898
    %952 = vmatprep.subr.bf16.mxu0 0
    %953 = vmatpush1.bf16.msra.mxu0 %v899
    %954 = vmatprep.subr.bf16.mxu0 0
    %955 = vmatpush1.bf16.msra.mxu0 %v900
    %956 = vmatprep.subr.bf16.mxu0 0
    %957 = vmatpush1.bf16.msra.mxu0 %v901
    %958 = vmatprep.subr.bf16.mxu0 0
    %959 = vmatpush1.bf16.msra.mxu0 %v902
    %960 = vmatprep.subr.bf16.mxu0 0
    %961 = vmatpush1.bf16.msra.mxu0 %v903
    %962 = vmatprep.subr.bf16.mxu0 0
    %963 = vmatpush1.bf16.msra.mxu0 %v904
    %964 = vmatprep.subr.bf16.mxu0 0
    %965 = vmatpush1.bf16.msra.mxu0 %v905
    %966 = vmatprep.subr.bf16.mxu0 0
    %967 = vmatpush1.bf16.msra.mxu0 %v906
    %968 = vmatprep.subr.bf16.mxu0 0
    %969 = vmatpush1.bf16.msra.mxu0 %v907
    %970 = vmatprep.subr.bf16.mxu0 0
    %971 = vmatpush1.bf16.msra.mxu0 %v908
    %972 = vmatprep.subr.bf16.mxu0 0
    %973 = vmatpush1.bf16.msra.mxu0 %v909
    %974 = vmatprep.mubr.bf16.mxu0 %v751
    %975 = vmatmul.mubr.bf16.gmra.mrb[0].mxu0 %v750
    %v976 = vpop.f32.mrb[0].mxu0
    %v977 = vadd.f32 %v608, %v976
    %v978 = vpop.f32.mrb[0].mxu0
    %v979 = vpop.f32.mrb[0].mxu0
    %v980 = vadd.f32 %v611, %v979
    %v981 = vpop.f32.mrb[0].mxu0
    %982 = vmatprep.mubr.bf16.mxu0 %v754
    %983 = vmatmul.mubr.bf16.gmra.mrb[0].mxu0 %v753
    %v984 = vpop.f32.mrb[0].mxu0
    %v985 = vadd.f32 %v616, %v984
    %v986 = vpop.f32.mrb[0].mxu0
    %v987 = vpop.f32.mrb[0].mxu0
    %v988 = vadd.f32 %v619, %v987
    %v989 = vpop.f32.mrb[0].mxu0
    %990 = vmatprep.mubr.bf16.mxu0 %v757
    %991 = vmatmul.mubr.bf16.gmra.mrb[0].mxu0 %v756
    %v992 = vpop.f32.mrb[0].mxu0
    %v993 = vadd.f32 %v624, %v992
    %v994 = vpop.f32.mrb[0].mxu0
    %v995 = vpop.f32.mrb[0].mxu0
    %v996 = vadd.f32 %v627, %v995
    %v997 = vpop.f32.mrb[0].mxu0
    %998 = vmatprep.mubr.bf16.mxu0 %v760
    %999 = vmatmul.mubr.bf16.gmra.mrb[0].mxu0 %v759
    %v1000 = vpop.f32.mrb[0].mxu0
    %v1001 = vadd.f32 %v632, %v1000
    %v1002 = vpop.f32.mrb[0].mxu0
    %v1003 = vpop.f32.mrb[0].mxu0
    %v1004 = vadd.f32 %v635, %v1003
    %v1005 = vpop.f32.mrb[0].mxu0
    %1006 = vmatprep.mubr.bf16.mxu0 %v763
    %1007 = vmatmul.mubr.bf16.gmra.mrb[0].mxu0 %v762
    %v1008 = vpop.f32.mrb[0].mxu0
    %v1009 = vadd.f32 %v640, %v1008
    %v1010 = vpop.f32.mrb[0].mxu0
    %v1011 = vpop.f32.mrb[0].mxu0
    %v1012 = vadd.f32 %v643, %v1011
    %v1013 = vpop.f32.mrb[0].mxu0
    %1014 = vmatprep.mubr.bf16.mxu0 %v766
    %1015 = vmatmul.mubr.bf16.gmra.mrb[0].mxu0 %v765
    %v1016 = vpop.f32.mrb[0].mxu0
    %v1017 = vadd.f32 %v648, %v1016
    %v1018 = vpop.f32.mrb[0].mxu0
    %v1019 = vpop.f32.mrb[0].mxu0
    %v1020 = vadd.f32 %v651, %v1019
    %v1021 = vpop.f32.mrb[0].mxu0
    %1022 = vmatprep.mubr.bf16.mxu0 %v769
    %1023 = vmatmul.mubr.bf16.gmra.mrb[0].mxu0 %v768
    %v1024 = vpop.f32.mrb[0].mxu0
    %v1025 = vadd.f32 %v656, %v1024
    %v1026 = vpop.f32.mrb[0].mxu0
    %v1027 = vpop.f32.mrb[0].mxu0
    %v1028 = vadd.f32 %v659, %v1027
    %v1029 = vpop.f32.mrb[0].mxu0
    %1030 = vmatprep.mubr.bf16.mxu0 %v772
    %1031 = vmatmul.mubr.bf16.gmra.mrb[0].mxu0 %v771
    %v1032 = vpop.f32.mrb[0].mxu0
    %v1033 = vadd.f32 %v664, %v1032
    %v1034 = vpop.f32.mrb[0].mxu0
    %v1035 = vpop.f32.mrb[0].mxu0
    %v1036 = vadd.f32 %v667, %v1035
    %v1037 = vpop.f32.mrb[0].mxu0
    %1038 = vdwg.mxu0
    %1039 = vmatprep.subr.bf16.mxu0 0
    %1040 = vmatpush1.bf16.msra.mxu0 %v910
    %1041 = vmatprep.subr.bf16.mxu0 0
    %1042 = vmatpush1.bf16.msra.mxu0 %v911
    %1043 = vmatprep.subr.bf16.mxu0 0
    %1044 = vmatpush1.bf16.msra.mxu0 %v912
    %1045 = vmatprep.subr.bf16.mxu0 0
    %1046 = vmatpush1.bf16.msra.mxu0 %v913
    %1047 = vmatprep.subr.bf16.mxu0 0
    %1048 = vmatpush1.bf16.msra.mxu0 %v914
    %1049 = vmatprep.subr.bf16.mxu0 0
    %1050 = vmatpush1.bf16.msra.mxu0 %v915
    %1051 = vmatprep.subr.bf16.mxu0 0
    %1052 = vmatpush1.bf16.msra.mxu0 %v916
    %1053 = vmatprep.subr.bf16.mxu0 0
    %1054 = vmatpush1.bf16.msra.mxu0 %v917
    %1055 = vmatprep.subr.bf16.mxu0 0
    %1056 = vmatpush1.bf16.msra.mxu0 0
    %1057 = vmatprep.subr.bf16.mxu0 0
    %1058 = vmatpush1.bf16.msra.mxu0 0
    %1059 = vmatprep.subr.bf16.mxu0 0
    %1060 = vmatpush1.bf16.msra.mxu0 0
    %1061 = vmatprep.subr.bf16.mxu0 0
    %1062 = vmatpush1.bf16.msra.mxu0 0
    %1063 = vmatprep.subr.bf16.mxu0 0
    %1064 = vmatpush1.bf16.msra.mxu0 0
    %1065 = vmatprep.subr.bf16.mxu0 0
    %1066 = vmatpush1.bf16.msra.mxu0 0
    %1067 = vmatprep.subr.bf16.mxu0 0
    %1068 = vmatpush1.bf16.msra.mxu0 0
    %1069 = vmatprep.subr.bf16.mxu0 0
    %1070 = vmatpush1.bf16.msra.mxu0 0
    %1071 = vmatprep.mubr.bf16.mxu0 0
    %1072 = vmatmul.mubr.bf16.gmra.mrb[0].mxu0 %v752
    %v1073 = vpop.f32.mrb[0].mxu0
    %v1074 = vadd.f32 %v977, %v1073
    %v1075 = vpop.f32.mrb[0].mxu0
    %v1076 = vpop.f32.mrb[0].mxu0
    %v1077 = vadd.f32 %v980, %v1076
    %v1078 = vpop.f32.mrb[0].mxu0
    %1079 = vmatprep.mubr.bf16.mxu0 0
    %1080 = vmatmul.mubr.bf16.gmra.mrb[0].mxu0 %v755
    %v1081 = vpop.f32.mrb[0].mxu0
    %v1082 = vadd.f32 %v985, %v1081
    %v1083 = vpop.f32.mrb[0].mxu0
    %v1084 = vpop.f32.mrb[0].mxu0
    %v1085 = vadd.f32 %v988, %v1084
    %v1086 = vpop.f32.mrb[0].mxu0
    %1087 = vmatprep.mubr.bf16.mxu0 0
    %1088 = vmatmul.mubr.bf16.gmra.mrb[0].mxu0 %v758
    %v1089 = vpop.f32.mrb[0].mxu0
    %v1090 = vadd.f32 %v993, %v1089
    %v1091 = vpop.f32.mrb[0].mxu0
    %v1092 = vpop.f32.mrb[0].mxu0
    %v1093 = vadd.f32 %v996, %v1092
    %v1094 = vpop.f32.mrb[0].mxu0
    %1095 = vmatprep.mubr.bf16.mxu0 0
    %1096 = vmatmul.mubr.bf16.gmra.mrb[0].mxu0 %v761
    %v1097 = vpop.f32.mrb[0].mxu0
    %v1098 = vadd.f32 %v1001, %v1097
    %v1099 = vpop.f32.mrb[0].mxu0
    %v1100 = vpop.f32.mrb[0].mxu0
    %v1101 = vadd.f32 %v1004, %v1100
    %v1102 = vpop.f32.mrb[0].mxu0
    %1103 = vmatprep.mubr.bf16.mxu0 0
    %1104 = vmatmul.mubr.bf16.gmra.mrb[0].mxu0 %v764
    %v1105 = vpop.f32.mrb[0].mxu0
    %v1106 = vadd.f32 %v1009, %v1105
    %v1107 = vpop.f32.mrb[0].mxu0
    %v1108 = vpop.f32.mrb[0].mxu0
    %v1109 = vadd.f32 %v1012, %v1108
    %v1110 = vpop.f32.mrb[0].mxu0
    %1111 = vmatprep.mubr.bf16.mxu0 0
    %1112 = vmatmul.mubr.bf16.gmra.mrb[0].mxu0 %v767
    %v1113 = vpop.f32.mrb[0].mxu0
    %v1114 = vadd.f32 %v1017, %v1113
    %v1115 = vpop.f32.mrb[0].mxu0
    %v1116 = vpop.f32.mrb[0].mxu0
    %v1117 = vadd.f32 %v1020, %v1116
    %v1118 = vpop.f32.mrb[0].mxu0
    %1119 = vmatprep.mubr.bf16.mxu0 0
    %1120 = vmatmul.mubr.bf16.gmra.mrb[0].mxu0 %v770
    %v1121 = vpop.f32.mrb[0].mxu0
    %v1122 = vadd.f32 %v1025, %v1121
    %v1123 = vpop.f32.mrb[0].mxu0
    %v1124 = vpop.f32.mrb[0].mxu0
    %v1125 = vadd.f32 %v1028, %v1124
    %v1126 = vpop.f32.mrb[0].mxu0
    %1127 = vmatprep.mubr.bf16.mxu0 0
    %1128 = vmatmul.mubr.bf16.gmra.mrb[0].mxu0 %v773
    %v1129 = vpop.f32.mrb[0].mxu0
    %v1130 = vadd.f32 %v1033, %v1129
    %v1131 = vpop.f32.mrb[0].mxu0
    %v1132 = vpop.f32.mrb[0].mxu0
    %v1133 = vadd.f32 %v1036, %v1132
    %v1134 = vpop.f32.mrb[0].mxu0
    %1135 = vdwg.mxu0
    %v1136 = vld [vmem:[#allocation2] sm:$0xff]
    %v1137 = vld [vmem:[#allocation2 + $0x8] sm:$0xff]
    %v1138 = vld [vmem:[#allocation2 + $0x10] sm:$0xff]
    %v1139 = vld [vmem:[#allocation2 + $0x18] sm:$0xff]
    %v1140 = vld [vmem:[#allocation2 + $0x20] sm:$0xff]
    %v1141 = vld [vmem:[#allocation2 + $0x28] sm:$0xff]
    %v1142 = vld [vmem:[#allocation2 + $0x30] sm:$0xff]
    %v1143 = vld [vmem:[#allocation2 + $0x38] sm:$0xff]
    %v1144 = vld [vmem:[#allocation2 + $0x40] sm:$0xff]
    %v1145 = vld [vmem:[#allocation2 + $0x48] sm:$0xff]
    %v1146 = vld [vmem:[#allocation2 + $0x50] sm:$0xff]
    %v1147 = vld [vmem:[#allocation2 + $0x58] sm:$0xff]
    %v1148 = vld [vmem:[#allocation2 + $0x60] sm:$0xff]
    %v1149 = vld [vmem:[#allocation2 + $0x68] sm:$0xff]
    %v1150 = vld [vmem:[#allocation2 + $0x70] sm:$0xff]
    %v1151 = vld [vmem:[#allocation2 + $0x78] sm:$0xff]
    %v1152 = vadd.f32 %v1136, %v1074
    %v1153 = vadd.f32 %v1137, %v1077
    %v1154 = vadd.f32 %v1138, %v1082
    %v1155 = vadd.f32 %v1139, %v1085
    %v1156 = vadd.f32 %v1140, %v1090
    %v1157 = vadd.f32 %v1141, %v1093
    %v1158 = vadd.f32 %v1142, %v1098
    %v1159 = vadd.f32 %v1143, %v1101
    %v1160 = vadd.f32 %v1144, %v1106
    %v1161 = vadd.f32 %v1145, %v1109
    %v1162 = vadd.f32 %v1146, %v1114
    %v1163 = vadd.f32 %v1147, %v1117
    %v1164 = vadd.f32 %v1148, %v1122
    %v1165 = vadd.f32 %v1149, %v1125
    %v1166 = vadd.f32 %v1150, %v1130
    %v1167 = vadd.f32 %v1151, %v1133
    %1168 = vst [vmem:[#allocation2] sm:$0xff] %v1152
    %1169 = vst [vmem:[#allocation2 + $0x8] sm:$0xff] %v1153
    %1170 = vst [vmem:[#allocation2 + $0x10] sm:$0xff] %v1154
    %1171 = vst [vmem:[#allocation2 + $0x18] sm:$0xff] %v1155
    %1172 = vst [vmem:[#allocation2 + $0x20] sm:$0xff] %v1156
    %1173 = vst [vmem:[#allocation2 + $0x28] sm:$0xff] %v1157
    %1174 = vst [vmem:[#allocation2 + $0x30] sm:$0xff] %v1158
    %1175 = vst [vmem:[#allocation2 + $0x38] sm:$0xff] %v1159
    %1176 = vst [vmem:[#allocation2 + $0x40] sm:$0xff] %v1160
    %1177 = vst [vmem:[#allocation2 + $0x48] sm:$0xff] %v1161
    %1178 = vst [vmem:[#allocation2 + $0x50] sm:$0xff] %v1162
    %1179 = vst [vmem:[#allocation2 + $0x58] sm:$0xff] %v1163
    %1180 = vst [vmem:[#allocation2 + $0x60] sm:$0xff] %v1164
    %1181 = vst [vmem:[#allocation2 + $0x68] sm:$0xff] %v1165
    %1182 = vst [vmem:[#allocation2 + $0x70] sm:$0xff] %v1166
    %1183 = vst [vmem:[#allocation2 + $0x78] sm:$0xff] %v1167
    // Predicated region
    $region26: #{denoising_genius_forward.29} parent=1 // pred_check
      %p1184 = pneg %p24
    $region27: #{denoising_genius_forward.29} parent=1 // pred_check_branch
      %1186 = sbr.rel (%p1184) target = $region29
    $region28: #{denoising_genius_forward.29} parent=1 // pred_region
      %v1187 = vld [vmem:[#allocation2] sm:$0xff]
      %v1188 = vld [vmem:[#allocation2 + $0x8] sm:$0xff]
      %v1189 = vld [vmem:[#allocation2 + $0x10] sm:$0xff]
      %v1190 = vld [vmem:[#allocation2 + $0x18] sm:$0xff]
      %v1191 = vld [vmem:[#allocation2 + $0x20] sm:$0xff]
      %v1192 = vld [vmem:[#allocation2 + $0x28] sm:$0xff]
      %v1193 = vld [vmem:[#allocation2 + $0x30] sm:$0xff]
      %v1194 = vld [vmem:[#allocation2 + $0x38] sm:$0xff]
      %v1195 = vld [vmem:[#allocation2 + $0x40] sm:$0xff]
      %v1196 = vld [vmem:[#allocation2 + $0x48] sm:$0xff]
      %v1197 = vld [vmem:[#allocation2 + $0x50] sm:$0xff]
      %v1198 = vld [vmem:[#allocation2 + $0x58] sm:$0xff]
      %v1199 = vld [vmem:[#allocation2 + $0x60] sm:$0xff]
      %v1200 = vld [vmem:[#allocation2 + $0x68] sm:$0xff]
      %v1201 = vld [vmem:[#allocation2 + $0x70] sm:$0xff]
      %v1202 = vld [vmem:[#allocation2 + $0x78] sm:$0xff]
      %v1203 = vld [vmem:[%s4] sm:$0x1]
      %v1205 = vlaneseq
      %v1206 = vshrl.u32 %v1205, 7
      %v1207 = vsub.s32 0, %v1206
      %v1208 = vrot.slane %v1203, %v1207
      %v1210 = vadd.f32 %v1187, %v1208
      %v1211 = vadd.f32 %v1188, %v1208
      %v1212 = vadd.f32 %v1189, %v1208
      %v1213 = vadd.f32 %v1190, %v1208
      %v1214 = vadd.f32 %v1191, %v1208
      %v1215 = vadd.f32 %v1192, %v1208
      %v1216 = vadd.f32 %v1193, %v1208
      %v1217 = vadd.f32 %v1194, %v1208
      %v1218 = vadd.f32 %v1195, %v1208
      %v1219 = vadd.f32 %v1196, %v1208
      %v1220 = vadd.f32 %v1197, %v1208
      %v1221 = vadd.f32 %v1198, %v1208
      %v1222 = vadd.f32 %v1199, %v1208
      %v1223 = vadd.f32 %v1200, %v1208
      %v1224 = vadd.f32 %v1201, %v1208
      %v1225 = vadd.f32 %v1202, %v1208
      %1226 = vst [vmem:[%s5] sm:$0xff] %v1210
      %1227 = vst [vmem:[%s5 + $0x8] sm:$0xff] %v1211
      %1228 = vst [vmem:[%s5 + $0x10] sm:$0xff] %v1212
      %1229 = vst [vmem:[%s5 + $0x18] sm:$0xff] %v1213
      %1230 = vst [vmem:[%s5 + $0x20] sm:$0xff] %v1214
      %1231 = vst [vmem:[%s5 + $0x28] sm:$0xff] %v1215
      %1232 = vst [vmem:[%s5 + $0x30] sm:$0xff] %v1216
      %1233 = vst [vmem:[%s5 + $0x38] sm:$0xff] %v1217
      %1234 = vst [vmem:[%s5 + $0x40] sm:$0xff] %v1218
      %1235 = vst [vmem:[%s5 + $0x48] sm:$0xff] %v1219
      %1236 = vst [vmem:[%s5 + $0x50] sm:$0xff] %v1220
      %1237 = vst [vmem:[%s5 + $0x58] sm:$0xff] %v1221
      %1238 = vst [vmem:[%s5 + $0x60] sm:$0xff] %v1222
      %1239 = vst [vmem:[%s5 + $0x68] sm:$0xff] %v1223
      %1240 = vst [vmem:[%s5 + $0x70] sm:$0xff] %v1224
      %1241 = vst [vmem:[%s5 + $0x78] sm:$0xff] %v1225
      %v1242 = vadd.f32 %v1187, %v1188
      %v1243 = vadd.f32 %v1242, %v1189
      %v1244 = vadd.f32 %v1243, %v1190
      %v1245 = vadd.f32 %v1244, %v1191
      %v1246 = vadd.f32 %v1245, %v1192
      %v1247 = vadd.f32 %v1246, %v1193
      %v1248 = vadd.f32 %v1247, %v1194
      %v1249 = vadd.f32 %v1248, %v1195
      %v1250 = vadd.f32 %v1249, %v1196
      %v1251 = vadd.f32 %v1250, %v1197
      %v1252 = vadd.f32 %v1251, %v1198
      %v1253 = vadd.f32 %v1252, %v1199
      %v1254 = vadd.f32 %v1253, %v1200
      %v1255 = vadd.f32 %v1254, %v1201
      %v1256 = vadd.f32 %v1255, %v1202
      %v1257 = vrot.slane %v1256, 4
      %v1258 = vadd.f32 %v1256, %v1257
      %v1259 = vrot.slane %v1258, 2
      %v1260 = vadd.f32 %v1258, %v1259
      %v1261 = vrot.slane %v1260, 1
      %v1262 = vadd.f32 %v1260, %v1261
      %v1263 = vmul.f32 %v1187, %v1187
      %v1264 = vmul.f32 %v1188, %v1188
      %v1265 = vmul.f32 %v1189, %v1189
      %v1266 = vmul.f32 %v1190, %v1190
      %v1267 = vmul.f32 %v1191, %v1191
      %v1268 = vmul.f32 %v1192, %v1192
      %v1269 = vmul.f32 %v1193, %v1193
      %v1270 = vmul.f32 %v1194, %v1194
      %v1271 = vmul.f32 %v1195, %v1195
      %v1272 = vmul.f32 %v1196, %v1196
      %v1273 = vmul.f32 %v1197, %v1197
      %v1274 = vmul.f32 %v1198, %v1198
      %v1275 = vmul.f32 %v1199, %v1199
      %v1276 = vmul.f32 %v1200, %v1200
      %v1277 = vmul.f32 %v1201, %v1201
      %v1278 = vmul.f32 %v1202, %v1202
      %v1279 = vadd.f32 %v1263, %v1264
      %v1280 = vadd.f32 %v1279, %v1265
      %v1281 = vadd.f32 %v1280, %v1266
      %v1282 = vadd.f32 %v1281, %v1267
      %v1283 = vadd.f32 %v1282, %v1268
      %v1284 = vadd.f32 %v1283, %v1269
      %v1285 = vadd.f32 %v1284, %v1270
      %v1286 = vadd.f32 %v1285, %v1271
      %v1287 = vadd.f32 %v1286, %v1272
      %v1288 = vadd.f32 %v1287, %v1273
      %v1289 = vadd.f32 %v1288, %v1274
      %v1290 = vadd.f32 %v1289, %v1275
      %v1291 = vadd.f32 %v1290, %v1276
      %v1292 = vadd.f32 %v1291, %v1277
      %v1293 = vadd.f32 %v1292, %v1278
      %v1294 = vrot.slane %v1293, 4
      %v1295 = vadd.f32 %v1293, %v1294
      %v1296 = vrot.slane %v1295, 2
      %v1297 = vadd.f32 %v1295, %v1296
      %v1298 = vrot.slane %v1297, 1
      %v1299 = vadd.f32 %v1297, %v1298
      %v1300 = vlaneseq
      %v1301 = vshrl.u32 %v1300, 7
      %vm1302 = vcmp.eq.s32.totalorder %v1301, 0
      %vm1303 = vcmp.eq.s32.totalorder %v1301, 1
      %v1304 = vsel %vm1303, %v1299, 0.0
      %v1305 = vsel %vm1302, %v1262, %v1304
      %1306 = vst [vmem:[#allocation3] sm:$0xff] %v1305
    $region29: #{denoising_genius_forward.29} parent=1 // pred_fallthru
      _
    // Predicated region
    $region30: #{denoising_genius_forward.29} parent=1 // pred_check
      _
    $region31: #{denoising_genius_forward.29} parent=1 // pred_check_branch
      %1308 = sbr.rel (0) target = $region33
    $region32: #{denoising_genius_forward.29} parent=1 // pred_region
      _
    $region33: #{denoising_genius_forward.29} parent=1 // pred_fallthru
      _
    // Predicated region
    $region34: #{denoising_genius_forward.29} parent=1 // pred_check
      _
    $region35: #{denoising_genius_forward.29} parent=1 // pred_check_branch
      %1310 = sbr.rel (0) target = $region37
    $region36: #{denoising_genius_forward.29} parent=1 // pred_region
      %s1312 = ssub.s32 128, 128
      %1313 = vsyncadd [#allocation4], %s1312
      %s1315 = sshll.u32 [#allocation3], 4
      %s1316 = int_to_ptr.vmem [resolvable:$true] %s1315
      %1318 = dma.vmem_to_hbm [thread:$0]  %s1316, 128, %s6, [#allocation4]
    $region37: #{denoising_genius_forward.29} parent=1 // pred_fallthru
      _
    // Predicated region
    $region38: #{denoising_genius_forward.29} parent=1 // pred_check
      _
    $region39: #{denoising_genius_forward.29} parent=1 // pred_check_branch
      %1320 = sbr.rel (0) target = $region41
    $region40: #{denoising_genius_forward.29} parent=1 // pred_region
      _
    $region41: #{denoising_genius_forward.29} parent=1 // pred_fallthru
      _
    // Predicated region
    $region42: #{denoising_genius_forward.29} parent=1 // pred_check
      _
    $region43: #{denoising_genius_forward.29} parent=1 // pred_check_branch
      %1322 = sbr.rel (0) target = $region45
    $region44: #{denoising_genius_forward.29} parent=1 // pred_region
      %1323 = dma.done [#allocation4], 128
    $region45: #{denoising_genius_forward.29} parent=1 // pred_fallthru
      _
    %1324 = vsyncpa [#allocation4], 1

</llo_original>
